<compile_context>
chip_gen: v5e
topology: v5e:2x2
jax: 0.10.0
libtpu: 0.0.40
codegen_flags: <defaults>
</compile_context>

<pallas_src>
import functools

import jax
import jax.numpy as jnp
from jax import lax
from jax.experimental import pallas as pl
from jax.experimental.pallas import tpu as pltpu

SOS_TOKEN = 1

VOCAB = 48       # vocabulary size
HIDDEN = 32      # GRU hidden size (= embedding size)
N_LAYERS = 2     # GRU layers for encoder and decoder
SEQ_LEN = 8      # input sequence length
MAX_LENGTH = 10  # greedy decoding steps
OUT_PAD = 128    # lane-dense padded output width


def _gru_update(gi, gh, h, hid):
    """PyTorch GRU update from gate pre-activations gi, gh of shape (1, 3H).

    Gate order along the last axis is (r, z, n), matching the packed weights.
    n = tanh(gi_n + r * gh_n); h' = (1 - z) * n + z * h.
    """
    r = jax.nn.sigmoid(gi[:, :hid] + gh[:, :hid])
    z = jax.nn.sigmoid(gi[:, hid:2 * hid] + gh[:, hid:2 * hid])
    n = jnp.tanh(gi[:, 2 * hid:3 * hid] + r * gh[:, 2 * hid:3 * hid])
    return (1.0 - z) * n + z * h


# ---------------------------------------------------------------------------
# Fused kernel: encoder (bidirectional multi-layer GRU) + greedy attention decode.
# ---------------------------------------------------------------------------
def _fused_kernel(seq, hid, vocab, n_layers, max_length, sos_token,
                  tok_in_ref, emb_ref,
                  enc_wih_ref, enc_whh_ref, enc_bih_ref, enc_bhh_ref,
                  dec_w0_ref, dec_wr_ref, dec_b_ref,
                  wc_top_ref, wc_bot_ref, bc_ref, wout_ref, bout_ref,
                  tok_ref, score_ref):
    f32 = jnp.float32
    H3 = 3 * hid

    # ---- encoder input embedding gather (one-hot matmul, in-kernel) ----
    ids_sv = lax.broadcasted_iota(jnp.int32, (seq, vocab), 1)
    onehot_in = (ids_sv == tok_in_ref[...]).astype(f32)                  # (seq, V)
    x_emb = jnp.dot(onehot_in, emb_ref[...],
                    preferred_element_type=f32)                          # (seq, H)

    # ---- bidirectional multi-layer GRU encoder ----
    # Layer input is (seq, 2H) = [fwd half | bwd half]; layer 0's bwd half is
    # zero and its packed input weights were zero-padded accordingly.
    x_layer = jnp.concatenate([x_emb, jnp.zeros((seq, hid), f32)], axis=1)
    h_finals = []
    out_f = out_b = None
    for l in range(n_layers):
        # Hoisted input-to-hidden projections for both directions:
        # one (seq, 2H) x (2H, 3H) matmul per direction instead of 3 per step.
        gi_f = (jnp.dot(x_layer, enc_wih_ref[2 * l],
                        preferred_element_type=f32)
                + enc_bih_ref[pl.ds(2 * l, 1), :])                       # (seq, 3H)
        gi_b = (jnp.dot(x_layer, enc_wih_ref[2 * l + 1],
                        preferred_element_type=f32)
                + enc_bih_ref[pl.ds(2 * l + 1, 1), :])                   # (seq, 3H)

        h_f = jnp.zeros((1, hid), f32)
        h_b = jnp.zeros((1, hid), f32)
        outs_f = [None] * seq
        outs_b = [None] * seq
        for t in range(seq):                          # fully unrolled recurrence
            tb = seq - 1 - t
            # One block-diagonal matmul covers BOTH directions' h@Whh:
            # [h_f | h_b] (1,2H) @ blockdiag(Whh_f, Whh_b) (2H,6H) -> [gh_f | gh_b]
            hh = jnp.concatenate([h_f, h_b], axis=1)
            gh = (jnp.dot(hh, enc_whh_ref[l], preferred_element_type=f32)
                  + enc_bhh_ref[pl.ds(l, 1), :])                         # (1, 6H)
            h_f = _gru_update(gi_f[t:t + 1, :], gh[:, :H3], h_f, hid)
            h_b = _gru_update(gi_b[tb:tb + 1, :], gh[:, H3:], h_b, hid)
            outs_f[t] = h_f
            outs_b[tb] = h_b
        h_finals.append(h_f)                          # PyTorch layout: layer*2 + dir
        h_finals.append(h_b)
        out_f = jnp.concatenate(outs_f, axis=0)       # (seq, H)
        out_b = jnp.concatenate(outs_b, axis=0)       # (seq, H)
        x_layer = jnp.concatenate([out_f, out_b], axis=1)

    # encoderOutputs = outputs[:, :, :H] + outputs[:, :, H:]
    enc = out_f + out_b                               # (seq, H)
    # decoderHidden = encoderHidden[:nLayers]  (layer*2+dir order)
    dec_h = list(h_finals[:n_layers])

    # ---- decode-loop invariants (computed once, in-kernel) ----
    enc_t = enc.T                                                        # (H, seq)
    enc_wc = jnp.dot(enc, wc_bot_ref[...], preferred_element_type=f32)   # (seq, H)
    ids_f = lax.broadcasted_iota(jnp.int32, (1, vocab), 1).astype(f32)   # (1, V)
    lane = lax.broadcasted_iota(jnp.int32, (1, OUT_PAD), 1)              # (1, 128)

    onehot = (ids_f == float(sos_token)).astype(f32)                     # (1, V)
    tok_row = jnp.zeros((1, OUT_PAD), jnp.int32)
    score_row = jnp.zeros((1, OUT_PAD), f32)

    for t in range(max_length):                       # fully unrolled decode loop
        # decoder GRU stack: ONE block-diagonal matmul per layer
        # layer 0 folds the embedding lookup: [onehot | h0] @ blockdiag(E@Wih0, Whh0)
        g = (jnp.dot(jnp.concatenate([onehot, dec_h[0]], axis=1), dec_w0_ref[...],
                     preferred_element_type=f32)
             + dec_b_ref[pl.ds(0, 1), :])                                # (1, 6H)
        dec_h[0] = _gru_update(g[:, :H3], g[:, H3:], dec_h[0], hid)
        inp = dec_h[0]
        for l in range(1, n_layers):
            g = (jnp.dot(jnp.concatenate([inp, dec_h[l]], axis=1),
                         dec_wr_ref[l - 1], preferred_element_type=f32)
                 + dec_b_ref[pl.ds(l, 1), :])                            # (1, 6H)
            dec_h[l] = _gru_update(g[:, :H3], g[:, H3:], dec_h[l], hid)
            inp = dec_h[l]
        rnn_out = inp                                                    # (1, H)

        # Luong "dot" attention over encoder outputs (hoisted transpose enc_t)
        att = jnp.dot(rnn_out, enc_t, preferred_element_type=f32)        # (1, seq)
        att = att - jnp.max(att, axis=1, keepdims=True)
        e = jnp.exp(att)
        attn_w = e * pl.reciprocal(jnp.sum(e, axis=1, keepdims=True), approx=True)

        # fused concat Linear + tanh, then output Linear
        cat = jnp.tanh(
            jnp.dot(rnn_out, wc_top_ref[...], preferred_element_type=f32)
            + jnp.dot(attn_w, enc_wc, preferred_element_type=f32)
            + bc_ref[...])                                               # (1, H)
        logits = (jnp.dot(cat, wout_ref[...], preferred_element_type=f32)
                  + bout_ref[...])                                       # (1, V)

        # torch.max(softmax(logits), dim=1) computed directly from logits:
        # softmax is monotone so argmax (first-max tie-break) is identical, and
        # the max prob is 1 / sum(exp(logits - max_logit)) (exact divide kept).
        m = jnp.max(logits, axis=1, keepdims=True)                       # (1, 1)
        denom = jnp.sum(jnp.exp(logits - m), axis=1, keepdims=True)      # (1, 1)
        score = 1.0 / denom
        best_f = jnp.min(jnp.where(logits >= m, ids_f, float(vocab)),
                         axis=1, keepdims=True)                          # (1, 1)

        tok_row = jnp.where(lane == t, best_f.astype(jnp.int32), tok_row)
        score_row = jnp.where(lane == t, score, score_row)

        if t + 1 < max_length:
            onehot = (ids_f == best_f).astype(f32)    # exact next-token one-hot

    # single lane-dense store of all tokens / scores (unmasked vst)
    tok_ref[...] = tok_row
    score_ref[...] = score_row


def _greedy_search_pallas(tok_in, emb, enc_wih, enc_whh, enc_bih, enc_bhh,
                          dec_w0, dec_wr, dec_b, wc_top, wc_bot, bc, wout, bout,
                          *, n_layers, max_length, sos_token):
    seq = tok_in.shape[0]
    vocab, hid = emb.shape
    kernel = functools.partial(_fused_kernel, seq, hid, vocab, n_layers,
                               max_length, sos_token)
    vmem = lambda: pl.BlockSpec(memory_space=pltpu.MemorySpace.VMEM)
    return pl.pallas_call(
        kernel,
        out_shape=(jax.ShapeDtypeStruct((1, OUT_PAD), jnp.int32),
                   jax.ShapeDtypeStruct((1, OUT_PAD), jnp.float32)),
        in_specs=[vmem() for _ in range(14)],
        out_specs=(vmem(), vmem()),
        cost_estimate=pl.CostEstimate(flops=1_500_000, transcendentals=6_000,
                                      bytes_accessed=350_000),
    )(tok_in, emb, enc_wih, enc_whh, enc_bih, enc_bhh,
      dec_w0, dec_wr, dec_b, wc_top, wc_bot, bc, wout, bout)


# ---------------------------------------------------------------------------
# Deterministic parameter construction (PyTorch weight layout, then repacked).
# ---------------------------------------------------------------------------
def init_params(key):
    def nrm(k, shape, scale=0.2):
        return scale * jax.random.normal(k, shape, jnp.float32)

    keys = iter(jax.random.split(key, 64))
    p = {'embedding': nrm(next(keys), (VOCAB, HIDDEN), 0.5)}
    # encoder: bidirectional GRU (PyTorch layout: W_ih (3H, in), gates r,z,n)
    for l in range(N_LAYERS):
        in_size = HIDDEN if l == 0 else 2 * HIDDEN
        for d in range(2):
            p[f'enc_w_ih_{l}_{d}'] = nrm(next(keys), (3 * HIDDEN, in_size))
            p[f'enc_w_hh_{l}_{d}'] = nrm(next(keys), (3 * HIDDEN, HIDDEN))
            p[f'enc_b_ih_{l}_{d}'] = nrm(next(keys), (3 * HIDDEN,))
            p[f'enc_b_hh_{l}_{d}'] = nrm(next(keys), (3 * HIDDEN,))
    # decoder GRU
    for l in range(N_LAYERS):
        p[f'dec_w_ih_{l}'] = nrm(next(keys), (3 * HIDDEN, HIDDEN))
        p[f'dec_w_hh_{l}'] = nrm(next(keys), (3 * HIDDEN, HIDDEN))
        p[f'dec_b_ih_{l}'] = nrm(next(keys), (3 * HIDDEN,))
        p[f'dec_b_hh_{l}'] = nrm(next(keys), (3 * HIDDEN,))
    # attention decoder heads
    p['concat_w'] = nrm(next(keys), (HIDDEN, 2 * HIDDEN))
    p['concat_b'] = nrm(next(keys), (HIDDEN,))
    p['out_w'] = nrm(next(keys), (VOCAB, HIDDEN))
    p['out_b'] = nrm(next(keys), (VOCAB,))
    return p


def pack_params(p):
    """Repack PyTorch-layout params for the fused kernel.

    Encoder: per cell W_ih -> (2H, 3H) (layer-0 input zero-padded to 2H);
    per layer W_hh fwd/bwd packed as blockdiag -> (2H, 6H); b_hh -> (6H,).
    Decoder: layer 0 weight is blockdiag(emb @ Wih0, Whh0) -> (V+H, 6H) so the
    embedding lookup + layer-0 input projection is a single matmul; layers >=1
    are blockdiag(Wih_l, Whh_l) -> (2H, 6H); biases packed as [b_ih | b_hh].
    Concat Linear is split into Wc_top (H,H) and Wc_bot (H,H) for the
    attention-side fusion enc @ Wc_bot. Gate column order stays (r, z, n).
    """
    H, H3 = HIDDEN, 3 * HIDDEN
    V = p['embedding'].shape[0]

    enc_wih, enc_bih, enc_whh, enc_bhh = [], [], [], []
    for l in range(N_LAYERS):
        for d in range(2):
            W = p[f'enc_w_ih_{l}_{d}'].T                       # (in_size, 3H)
            if l == 0:   # pad layer-0 input width (H) to 2H so all cells are uniform
                W = jnp.concatenate([W, jnp.zeros((H, H3), jnp.float32)], axis=0)
            enc_wih.append(W)                                   # (2H, 3H)
            enc_bih.append(p[f'enc_b_ih_{l}_{d}'])              # (3H,)
        blk = jnp.zeros((2 * H, 2 * H3), jnp.float32)
        blk = blk.at[:H, :H3].set(p[f'enc_w_hh_{l}_0'].T)
        blk = blk.at[H:, H3:].set(p[f'enc_w_hh_{l}_1'].T)
        enc_whh.append(blk)                                     # (2H, 6H)
        enc_bhh.append(jnp.concatenate(
            [p[f'enc_b_hh_{l}_0'], p[f'enc_b_hh_{l}_1']], axis=0))   # (6H,)
    enc_wih = jnp.stack(enc_wih)                                # (2L, 2H, 3H)
    enc_bih = jnp.stack(enc_bih)                                # (2L, 3H)
    enc_whh = jnp.stack(enc_whh)                                # (L, 2H, 6H)
    enc_bhh = jnp.stack(enc_bhh)                                # (L, 6H)

    emb = p['embedding']                                        # (V, H)
    emb_proj0 = emb @ p['dec_w_ih_0'].T                         # (V, 3H)
    dec_w0 = jnp.zeros((V + H, 2 * H3), jnp.float32)
    dec_w0 = dec_w0.at[:V, :H3].set(emb_proj0)
    dec_w0 = dec_w0.at[V:, H3:].set(p['dec_w_hh_0'].T)          # (V+H, 6H)

    dec_wr = []
    for l in range(1, N_LAYERS):
        blk = jnp.zeros((2 * H, 2 * H3), jnp.float32)
        blk = blk.at[:H, :H3].set(p[f'dec_w_ih_{l}'].T)
        blk = blk.at[H:, H3:].set(p[f'dec_w_hh_{l}'].T)
        dec_wr.append(blk)
    dec_wr = jnp.stack(dec_wr)                                  # (L-1, 2H, 6H)

    dec_b = jnp.stack([
        jnp.concatenate([p[f'dec_b_ih_{l}'], p[f'dec_b_hh_{l}']], axis=0)
        for l in range(N_LAYERS)])                              # (L, 6H)

    wc = p['concat_w'].T                                        # (2H, H)
    wc_top, wc_bot = wc[:H, :], wc[H:, :]                       # (H, H) each
    bc = p['concat_b'][None, :]                                 # (1, H)
    wout = p['out_w'].T                                         # (H, V)
    bout = p['out_b'][None, :]                                  # (1, V)
    return (emb, enc_wih, enc_whh, enc_bih, enc_bhh,
            dec_w0, dec_wr, dec_b, wc_top, wc_bot, bc, wout, bout)


# ---------------------------------------------------------------------------
# GreedySearchDecoder.forward equivalent (single fused kernel launch).
# ---------------------------------------------------------------------------
@functools.partial(jax.jit, static_argnames=('max_length',))
def greedy_search_decoder_forward(params, input_sequence, input_length, max_length):
    # TODO(synk): pack_padded_sequence handling of variable lengths is not
    # reproduced; with batch=1 and input_length == seq_len it is a no-op.
    del input_length
    packed = pack_params(params)
    tok_in = input_sequence.astype(jnp.int32)                   # (seq, 1)
    tok2d, score2d = _greedy_search_pallas(
        tok_in, *packed, n_layers=N_LAYERS, max_length=max_length,
        sos_token=SOS_TOKEN)
    all_tokens = tok2d[0, :max_length]     # (max_length,) int32
    all_scores = score2d[0, :max_length]   # (max_length,) float32
    return all_tokens, all_scores


if __name__ == "__main__":
    key = jax.random.PRNGKey(0)
    pkey, skey = jax.random.split(key)
    params = init_params(pkey)

    input_sequence = jax.random.randint(skey, (SEQ_LEN, 1), 2, VOCAB,
                                        dtype=jnp.int32)        # (seq, batch=1)
    input_length = jnp.array([SEQ_LEN], dtype=jnp.int32)

    tokens, scores = greedy_search_decoder_forward(params, input_sequence,
                                                   input_length, MAX_LENGTH)
    tokens, scores = jax.block_until_ready((tokens, scores))
    assert tokens.shape == (MAX_LENGTH,) and tokens.dtype == jnp.int32
    assert scores.shape == (MAX_LENGTH,) and scores.dtype == jnp.float32
    print("KERNEL_OK")
</pallas_src>

<mosaic_0001>
module attributes {stable_mosaic.version = 11 : i64} {
  func.func @_fused_kernel(%arg0: memref<8x1xi32, #tpu.memory_space<vmem>>, %arg1: memref<48x32xf32, #tpu.memory_space<vmem>>, %arg2: memref<4x64x96xf32, #tpu.memory_space<vmem>>, %arg3: memref<2x64x192xf32, #tpu.memory_space<vmem>>, %arg4: memref<4x96xf32, #tpu.memory_space<vmem>>, %arg5: memref<2x192xf32, #tpu.memory_space<vmem>>, %arg6: memref<80x192xf32, #tpu.memory_space<vmem>>, %arg7: memref<1x64x192xf32, #tpu.memory_space<vmem>>, %arg8: memref<2x192xf32, #tpu.memory_space<vmem>>, %arg9: memref<32x32xf32, #tpu.memory_space<vmem>>, %arg10: memref<32x32xf32, #tpu.memory_space<vmem>>, %arg11: memref<1x32xf32, #tpu.memory_space<vmem>>, %arg12: memref<32x48xf32, #tpu.memory_space<vmem>>, %arg13: memref<1x48xf32, #tpu.memory_space<vmem>>, %arg14: memref<1x128xi32, #tpu.memory_space<vmem>>, %arg15: memref<1x128xf32, #tpu.memory_space<vmem>>) attributes {dimension_semantics = [], scalar_prefetch = 0 : i64, scratch_operands = 0 : i64, tpu.core_type = #tpu.core_type<tc>} {
    %0 = tpu.iota {dimensions = array<i32: 1>} : vector<8x48xi32>
    %c0 = arith.constant 0 : index
    %c0_0 = arith.constant 0 : index
    %1 = vector.load %arg0[%c0, %c0_0] : memref<8x1xi32, #tpu.memory_space<vmem>>, vector<8x1xi32>
    %2 = vector.broadcast %1 : vector<8x1xi32> to vector<8x48xi32>
    %3 = arith.cmpi eq, %0, %2 : vector<8x48xi32>
    %4 = arith.extui %3 : vector<8x48xi1> to vector<8x48xi32>
    %5 = arith.sitofp %4 : vector<8x48xi32> to vector<8x48xf32>
    %c0_1 = arith.constant 0 : index
    %c0_2 = arith.constant 0 : index
    %6 = vector.load %arg1[%c0_1, %c0_2] : memref<48x32xf32, #tpu.memory_space<vmem>>, vector<48x32xf32>
    %cst = arith.constant dense<0.000000e+00> : vector<8x32xf32>
    %7 = tpu.matmul %5, %6, %cst {dimension_numbers = #tpu.dot_dimension_numbers<[1], [0], [0], [1], [0, 0, 1, 1], [], []>} : vector<8x48xf32>, vector<48x32xf32>, vector<8x32xf32> -> vector<8x32xf32>
    %cst_3 = arith.constant 0.000000e+00 : f32
    %8 = vector.broadcast %cst_3 : f32 to vector<8x32xf32>
    %9 = tpu.concatenate %7, %8 in 1 : vector<8x32xf32>, vector<8x32xf32> -> vector<8x64xf32>
    %c0_4 = arith.constant 0 : index
    %c0_5 = arith.constant 0 : index
    %c0_6 = arith.constant 0 : index
    %10 = vector.load %arg2[%c0_4, %c0_5, %c0_6] : memref<4x64x96xf32, #tpu.memory_space<vmem>>, vector<1x64x96xf32>
    %11 = vector.shape_cast %10 : vector<1x64x96xf32> to vector<64x96xf32>
    %cst_7 = arith.constant dense<0.000000e+00> : vector<8x96xf32>
    %12 = tpu.matmul %9, %11, %cst_7 {dimension_numbers = #tpu.dot_dimension_numbers<[1], [0], [0], [1], [0, 0, 1, 1], [], []>} : vector<8x64xf32>, vector<64x96xf32>, vector<8x96xf32> -> vector<8x96xf32>
    %c0_8 = arith.constant 0 : index
    %c0_9 = arith.constant 0 : index
    %13 = vector.load %arg4[%c0_8, %c0_9] : memref<4x96xf32, #tpu.memory_space<vmem>>, vector<1x96xf32>
    %14 = vector.broadcast %13 : vector<1x96xf32> to vector<8x96xf32>
    %15 = arith.addf %12, %14 : vector<8x96xf32>
    %c1 = arith.constant 1 : index
    %c0_10 = arith.constant 0 : index
    %c0_11 = arith.constant 0 : index
    %16 = vector.load %arg2[%c1, %c0_10, %c0_11] : memref<4x64x96xf32, #tpu.memory_space<vmem>>, vector<1x64x96xf32>
    %17 = vector.shape_cast %16 : vector<1x64x96xf32> to vector<64x96xf32>
    %cst_12 = arith.constant dense<0.000000e+00> : vector<8x96xf32>
    %18 = tpu.matmul %9, %17, %cst_12 {dimension_numbers = #tpu.dot_dimension_numbers<[1], [0], [0], [1], [0, 0, 1, 1], [], []>} : vector<8x64xf32>, vector<64x96xf32>, vector<8x96xf32> -> vector<8x96xf32>
    %c1_13 = arith.constant 1 : index
    %c0_14 = arith.constant 0 : index
    %19 = vector.load %arg4[%c1_13, %c0_14] : memref<4x96xf32, #tpu.memory_space<vmem>>, vector<1x96xf32>
    %20 = vector.broadcast %19 : vector<1x96xf32> to vector<8x96xf32>
    %21 = arith.addf %18, %20 : vector<8x96xf32>
    %cst_15 = arith.constant 0.000000e+00 : f32
    %22 = vector.broadcast %cst_15 : f32 to vector<1x32xf32>
    %cst_16 = arith.constant 0.000000e+00 : f32
    %23 = vector.broadcast %cst_16 : f32 to vector<1x32xf32>
    %24 = tpu.concatenate %22, %23 in 1 : vector<1x32xf32>, vector<1x32xf32> -> vector<1x64xf32>
    %c0_17 = arith.constant 0 : index
    %c0_18 = arith.constant 0 : index
    %c0_19 = arith.constant 0 : index
    %25 = vector.load %arg3[%c0_17, %c0_18, %c0_19] : memref<2x64x192xf32, #tpu.memory_space<vmem>>, vector<1x64x192xf32>
    %26 = vector.shape_cast %25 : vector<1x64x192xf32> to vector<64x192xf32>
    %cst_20 = arith.constant dense<0.000000e+00> : vector<1x192xf32>
    %27 = tpu.matmul %24, %26, %cst_20 {dimension_numbers = #tpu.dot_dimension_numbers<[1], [0], [0], [1], [0, 0, 1, 1], [], []>} : vector<1x64xf32>, vector<64x192xf32>, vector<1x192xf32> -> vector<1x192xf32>
    %c0_21 = arith.constant 0 : index
    %c0_22 = arith.constant 0 : index
    %28 = vector.load %arg5[%c0_21, %c0_22] : memref<2x192xf32, #tpu.memory_space<vmem>>, vector<1x192xf32>
    %29 = arith.addf %27, %28 : vector<1x192xf32>
    %30 = vector.extract_strided_slice %15 {offsets = [0, 0], sizes = [1, 96], strides = [1, 1]} : vector<8x96xf32> to vector<1x96xf32>
    %31 = vector.extract_strided_slice %29 {offsets = [0, 0], sizes = [1, 96], strides = [1, 1]} : vector<1x192xf32> to vector<1x96xf32>
    %32 = vector.extract_strided_slice %30 {offsets = [0, 0], sizes = [1, 32], strides = [1, 1]} : vector<1x96xf32> to vector<1x32xf32>
    %33 = vector.extract_strided_slice %31 {offsets = [0, 0], sizes = [1, 32], strides = [1, 1]} : vector<1x96xf32> to vector<1x32xf32>
    %34 = arith.addf %32, %33 : vector<1x32xf32>
    %35 = arith.negf %34 : vector<1x32xf32>
    %36 = math.exp %35 : vector<1x32xf32>
    %cst_23 = arith.constant 1.000000e+00 : f32
    %37 = vector.broadcast %cst_23 : f32 to vector<1x32xf32>
    %38 = arith.addf %37, %36 : vector<1x32xf32>
    %39 = arith.divf %37, %38 : vector<1x32xf32>
    %40 = vector.extract_strided_slice %30 {offsets = [0, 32], sizes = [1, 32], strides = [1, 1]} : vector<1x96xf32> to vector<1x32xf32>
    %41 = vector.extract_strided_slice %31 {offsets = [0, 32], sizes = [1, 32], strides = [1, 1]} : vector<1x96xf32> to vector<1x32xf32>
    %42 = arith.addf %40, %41 : vector<1x32xf32>
    %43 = arith.negf %42 : vector<1x32xf32>
    %44 = math.exp %43 : vector<1x32xf32>
    %cst_24 = arith.constant 1.000000e+00 : f32
    %45 = vector.broadcast %cst_24 : f32 to vector<1x32xf32>
    %46 = arith.addf %45, %44 : vector<1x32xf32>
    %47 = arith.divf %45, %46 : vector<1x32xf32>
    %48 = vector.extract_strided_slice %30 {offsets = [0, 64], sizes = [1, 32], strides = [1, 1]} : vector<1x96xf32> to vector<1x32xf32>
    %49 = vector.extract_strided_slice %31 {offsets = [0, 64], sizes = [1, 32], strides = [1, 1]} : vector<1x96xf32> to vector<1x32xf32>
    %50 = arith.mulf %39, %49 : vector<1x32xf32>
    %51 = arith.addf %48, %50 : vector<1x32xf32>
    %52 = math.tanh %51 : vector<1x32xf32>
    %cst_25 = arith.constant 1.000000e+00 : f32
    %53 = vector.broadcast %cst_25 : f32 to vector<1x32xf32>
    %54 = arith.subf %53, %47 : vector<1x32xf32>
    %55 = arith.mulf %54, %52 : vector<1x32xf32>
    %56 = arith.mulf %47, %22 : vector<1x32xf32>
    %57 = arith.addf %55, %56 : vector<1x32xf32>
    %58 = vector.extract_strided_slice %21 {offsets = [7, 0], sizes = [1, 96], strides = [1, 1]} : vector<8x96xf32> to vector<1x96xf32>
    %59 = vector.extract_strided_slice %29 {offsets = [0, 96], sizes = [1, 96], strides = [1, 1]} : vector<1x192xf32> to vector<1x96xf32>
    %60 = vector.extract_strided_slice %58 {offsets = [0, 0], sizes = [1, 32], strides = [1, 1]} : vector<1x96xf32> to vector<1x32xf32>
    %61 = vector.extract_strided_slice %59 {offsets = [0, 0], sizes = [1, 32], strides = [1, 1]} : vector<1x96xf32> to vector<1x32xf32>
    %62 = arith.addf %60, %61 : vector<1x32xf32>
    %63 = arith.negf %62 : vector<1x32xf32>
    %64 = math.exp %63 : vector<1x32xf32>
    %cst_26 = arith.constant 1.000000e+00 : f32
    %65 = vector.broadcast %cst_26 : f32 to vector<1x32xf32>
    %66 = arith.addf %65, %64 : vector<1x32xf32>
    %67 = arith.divf %65, %66 : vector<1x32xf32>
    %68 = vector.extract_strided_slice %58 {offsets = [0, 32], sizes = [1, 32], strides = [1, 1]} : vector<1x96xf32> to vector<1x32xf32>
    %69 = vector.extract_strided_slice %59 {offsets = [0, 32], sizes = [1, 32], strides = [1, 1]} : vector<1x96xf32> to vector<1x32xf32>
    %70 = arith.addf %68, %69 : vector<1x32xf32>
    %71 = arith.negf %70 : vector<1x32xf32>
    %72 = math.exp %71 : vector<1x32xf32>
    %cst_27 = arith.constant 1.000000e+00 : f32
    %73 = vector.broadcast %cst_27 : f32 to vector<1x32xf32>
    %74 = arith.addf %73, %72 : vector<1x32xf32>
    %75 = arith.divf %73, %74 : vector<1x32xf32>
    %76 = vector.extract_strided_slice %58 {offsets = [0, 64], sizes = [1, 32], strides = [1, 1]} : vector<1x96xf32> to vector<1x32xf32>
    %77 = vector.extract_strided_slice %59 {offsets = [0, 64], sizes = [1, 32], strides = [1, 1]} : vector<1x96xf32> to vector<1x32xf32>
    %78 = arith.mulf %67, %77 : vector<1x32xf32>
    %79 = arith.addf %76, %78 : vector<1x32xf32>
    %80 = math.tanh %79 : vector<1x32xf32>
    %cst_28 = arith.constant 1.000000e+00 : f32
    %81 = vector.broadcast %cst_28 : f32 to vector<1x32xf32>
    %82 = arith.subf %81, %75 : vector<1x32xf32>
    %83 = arith.mulf %82, %80 : vector<1x32xf32>
    %84 = arith.mulf %75, %23 : vector<1x32xf32>
    %85 = arith.addf %83, %84 : vector<1x32xf32>
    %86 = tpu.concatenate %57, %85 in 1 : vector<1x32xf32>, vector<1x32xf32> -> vector<1x64xf32>
    %c0_29 = arith.constant 0 : index
    %c0_30 = arith.constant 0 : index
    %c0_31 = arith.constant 0 : index
    %87 = vector.load %arg3[%c0_29, %c0_30, %c0_31] : memref<2x64x192xf32, #tpu.memory_space<vmem>>, vector<1x64x192xf32>
    %88 = vector.shape_cast %87 : vector<1x64x192xf32> to vector<64x192xf32>
    %cst_32 = arith.constant dense<0.000000e+00> : vector<1x192xf32>
    %89 = tpu.matmul %86, %88, %cst_32 {dimension_numbers = #tpu.dot_dimension_numbers<[1], [0], [0], [1], [0, 0, 1, 1], [], []>} : vector<1x64xf32>, vector<64x192xf32>, vector<1x192xf32> -> vector<1x192xf32>
    %c0_33 = arith.constant 0 : index
    %c0_34 = arith.constant 0 : index
    %90 = vector.load %arg5[%c0_33, %c0_34] : memref<2x192xf32, #tpu.memory_space<vmem>>, vector<1x192xf32>
    %91 = arith.addf %89, %90 : vector<1x192xf32>
    %92 = vector.extract_strided_slice %15 {offsets = [1, 0], sizes = [1, 96], strides = [1, 1]} : vector<8x96xf32> to vector<1x96xf32>
    %93 = vector.extract_strided_slice %91 {offsets = [0, 0], sizes = [1, 96], strides = [1, 1]} : vector<1x192xf32> to vector<1x96xf32>
    %94 = vector.extract_strided_slice %92 {offsets = [0, 0], sizes = [1, 32], strides = [1, 1]} : vector<1x96xf32> to vector<1x32xf32>
    %95 = vector.extract_strided_slice %93 {offsets = [0, 0], sizes = [1, 32], strides = [1, 1]} : vector<1x96xf32> to vector<1x32xf32>
    %96 = arith.addf %94, %95 : vector<1x32xf32>
    %97 = arith.negf %96 : vector<1x32xf32>
    %98 = math.exp %97 : vector<1x32xf32>
    %cst_35 = arith.constant 1.000000e+00 : f32
    %99 = vector.broadcast %cst_35 : f32 to vector<1x32xf32>
    %100 = arith.addf %99, %98 : vector<1x32xf32>
    %101 = arith.divf %99, %100 : vector<1x32xf32>
    %102 = vector.extract_strided_slice %92 {offsets = [0, 32], sizes = [1, 32], strides = [1, 1]} : vector<1x96xf32> to vector<1x32xf32>
    %103 = vector.extract_strided_slice %93 {offsets = [0, 32], sizes = [1, 32], strides = [1, 1]} : vector<1x96xf32> to vector<1x32xf32>
    %104 = arith.addf %102, %103 : vector<1x32xf32>
    %105 = arith.negf %104 : vector<1x32xf32>
    %106 = math.exp %105 : vector<1x32xf32>
    %cst_36 = arith.constant 1.000000e+00 : f32
    %107 = vector.broadcast %cst_36 : f32 to vector<1x32xf32>
    %108 = arith.addf %107, %106 : vector<1x32xf32>
    %109 = arith.divf %107, %108 : vector<1x32xf32>
    %110 = vector.extract_strided_slice %92 {offsets = [0, 64], sizes = [1, 32], strides = [1, 1]} : vector<1x96xf32> to vector<1x32xf32>
    %111 = vector.extract_strided_slice %93 {offsets = [0, 64], sizes = [1, 32], strides = [1, 1]} : vector<1x96xf32> to vector<1x32xf32>
    %112 = arith.mulf %101, %111 : vector<1x32xf32>
    %113 = arith.addf %110, %112 : vector<1x32xf32>
    %114 = math.tanh %113 : vector<1x32xf32>
    %cst_37 = arith.constant 1.000000e+00 : f32
    %115 = vector.broadcast %cst_37 : f32 to vector<1x32xf32>
    %116 = arith.subf %115, %109 : vector<1x32xf32>
    %117 = arith.mulf %116, %114 : vector<1x32xf32>
    %118 = arith.mulf %109, %57 : vector<1x32xf32>
    %119 = arith.addf %117, %118 : vector<1x32xf32>
    %120 = vector.extract_strided_slice %21 {offsets = [6, 0], sizes = [1, 96], strides = [1, 1]} : vector<8x96xf32> to vector<1x96xf32>
    %121 = vector.extract_strided_slice %91 {offsets = [0, 96], sizes = [1, 96], strides = [1, 1]} : vector<1x192xf32> to vector<1x96xf32>
    %122 = vector.extract_strided_slice %120 {offsets = [0, 0], sizes = [1, 32], strides = [1, 1]} : vector<1x96xf32> to vector<1x32xf32>
    %123 = vector.extract_strided_slice %121 {offsets = [0, 0], sizes = [1, 32], strides = [1, 1]} : vector<1x96xf32> to vector<1x32xf32>
    %124 = arith.addf %122, %123 : vector<1x32xf32>
    %125 = arith.negf %124 : vector<1x32xf32>
    %126 = math.exp %125 : vector<1x32xf32>
    %cst_38 = arith.constant 1.000000e+00 : f32
    %127 = vector.broadcast %cst_38 : f32 to vector<1x32xf32>
    %128 = arith.addf %127, %126 : vector<1x32xf32>
    %129 = arith.divf %127, %128 : vector<1x32xf32>
    %130 = vector.extract_strided_slice %120 {offsets = [0, 32], sizes = [1, 32], strides = [1, 1]} : vector<1x96xf32> to vector<1x32xf32>
    %131 = vector.extract_strided_slice %121 {offsets = [0, 32], sizes = [1, 32], strides = [1, 1]} : vector<1x96xf32> to vector<1x32xf32>
    %132 = arith.addf %130, %131 : vector<1x32xf32>
    %133 = arith.negf %132 : vector<1x32xf32>
    %134 = math.exp %133 : vector<1x32xf32>
    %cst_39 = arith.constant 1.000000e+00 : f32
    %135 = vector.broadcast %cst_39 : f32 to vector<1x32xf32>
    %136 = arith.addf %135, %134 : vector<1x32xf32>
    %137 = arith.divf %135, %136 : vector<1x32xf32>
    %138 = vector.extract_strided_slice %120 {offsets = [0, 64], sizes = [1, 32], strides = [1, 1]} : vector<1x96xf32> to vector<1x32xf32>
    %139 = vector.extract_strided_slice %121 {offsets = [0, 64], sizes = [1, 32], strides = [1, 1]} : vector<1x96xf32> to vector<1x32xf32>
    %140 = arith.mulf %129, %139 : vector<1x32xf32>
    %141 = arith.addf %138, %140 : vector<1x32xf32>
    %142 = math.tanh %141 : vector<1x32xf32>
    %cst_40 = arith.constant 1.000000e+00 : f32
    %143 = vector.broadcast %cst_40 : f32 to vector<1x32xf32>
    %144 = arith.subf %143, %137 : vector<1x32xf32>
    %145 = arith.mulf %144, %142 : vector<1x32xf32>
    %146 = arith.mulf %137, %85 : vector<1x32xf32>
    %147 = arith.addf %145, %146 : vector<1x32xf32>
    %148 = tpu.concatenate %119, %147 in 1 : vector<1x32xf32>, vector<1x32xf32> -> vector<1x64xf32>
    %c0_41 = arith.constant 0 : index
    %c0_42 = arith.constant 0 : index
    %c0_43 = arith.constant 0 : index
    %149 = vector.load %arg3[%c0_41, %c0_42, %c0_43] : memref<2x64x192xf32, #tpu.memory_space<vmem>>, vector<1x64x192xf32>
    %150 = vector.shape_cast %149 : vector<1x64x192xf32> to vector<64x192xf32>
    %cst_44 = arith.constant dense<0.000000e+00> : vector<1x192xf32>
    %151 = tpu.matmul %148, %150, %cst_44 {dimension_numbers = #tpu.dot_dimension_numbers<[1], [0], [0], [1], [0, 0, 1, 1], [], []>} : vector<1x64xf32>, vector<64x192xf32>, vector<1x192xf32> -> vector<1x192xf32>
    %c0_45 = arith.constant 0 : index
    %c0_46 = arith.constant 0 : index
    %152 = vector.load %arg5[%c0_45, %c0_46] : memref<2x192xf32, #tpu.memory_space<vmem>>, vector<1x192xf32>
    %153 = arith.addf %151, %152 : vector<1x192xf32>
    %154 = vector.extract_strided_slice %15 {offsets = [2, 0], sizes = [1, 96], strides = [1, 1]} : vector<8x96xf32> to vector<1x96xf32>
    %155 = vector.extract_strided_slice %153 {offsets = [0, 0], sizes = [1, 96], strides = [1, 1]} : vector<1x192xf32> to vector<1x96xf32>
    %156 = vector.extract_strided_slice %154 {offsets = [0, 0], sizes = [1, 32], strides = [1, 1]} : vector<1x96xf32> to vector<1x32xf32>
    %157 = vector.extract_strided_slice %155 {offsets = [0, 0], sizes = [1, 32], strides = [1, 1]} : vector<1x96xf32> to vector<1x32xf32>
    %158 = arith.addf %156, %157 : vector<1x32xf32>
    %159 = arith.negf %158 : vector<1x32xf32>
    %160 = math.exp %159 : vector<1x32xf32>
    %cst_47 = arith.constant 1.000000e+00 : f32
    %161 = vector.broadcast %cst_47 : f32 to vector<1x32xf32>
    %162 = arith.addf %161, %160 : vector<1x32xf32>
    %163 = arith.divf %161, %162 : vector<1x32xf32>
    %164 = vector.extract_strided_slice %154 {offsets = [0, 32], sizes = [1, 32], strides = [1, 1]} : vector<1x96xf32> to vector<1x32xf32>
    %165 = vector.extract_strided_slice %155 {offsets = [0, 32], sizes = [1, 32], strides = [1, 1]} : vector<1x96xf32> to vector<1x32xf32>
    %166 = arith.addf %164, %165 : vector<1x32xf32>
    %167 = arith.negf %166 : vector<1x32xf32>
    %168 = math.exp %167 : vector<1x32xf32>
    %cst_48 = arith.constant 1.000000e+00 : f32
    %169 = vector.broadcast %cst_48 : f32 to vector<1x32xf32>
    %170 = arith.addf %169, %168 : vector<1x32xf32>
    %171 = arith.divf %169, %170 : vector<1x32xf32>
    %172 = vector.extract_strided_slice %154 {offsets = [0, 64], sizes = [1, 32], strides = [1, 1]} : vector<1x96xf32> to vector<1x32xf32>
    %173 = vector.extract_strided_slice %155 {offsets = [0, 64], sizes = [1, 32], strides = [1, 1]} : vector<1x96xf32> to vector<1x32xf32>
    %174 = arith.mulf %163, %173 : vector<1x32xf32>
    %175 = arith.addf %172, %174 : vector<1x32xf32>
    %176 = math.tanh %175 : vector<1x32xf32>
    %cst_49 = arith.constant 1.000000e+00 : f32
    %177 = vector.broadcast %cst_49 : f32 to vector<1x32xf32>
    %178 = arith.subf %177, %171 : vector<1x32xf32>
    %179 = arith.mulf %178, %176 : vector<1x32xf32>
    %180 = arith.mulf %171, %119 : vector<1x32xf32>
    %181 = arith.addf %179, %180 : vector<1x32xf32>
    %182 = vector.extract_strided_slice %21 {offsets = [5, 0], sizes = [1, 96], strides = [1, 1]} : vector<8x96xf32> to vector<1x96xf32>
    %183 = vector.extract_strided_slice %153 {offsets = [0, 96], sizes = [1, 96], strides = [1, 1]} : vector<1x192xf32> to vector<1x96xf32>
    %184 = vector.extract_strided_slice %182 {offsets = [0, 0], sizes = [1, 32], strides = [1, 1]} : vector<1x96xf32> to vector<1x32xf32>
    %185 = vector.extract_strided_slice %183 {offsets = [0, 0], sizes = [1, 32], strides = [1, 1]} : vector<1x96xf32> to vector<1x32xf32>
    %186 = arith.addf %184, %185 : vector<1x32xf32>
    %187 = arith.negf %186 : vector<1x32xf32>
    %188 = math.exp %187 : vector<1x32xf32>
    %cst_50 = arith.constant 1.000000e+00 : f32
    %189 = vector.broadcast %cst_50 : f32 to vector<1x32xf32>
    %190 = arith.addf %189, %188 : vector<1x32xf32>
    %191 = arith.divf %189, %190 : vector<1x32xf32>
    %192 = vector.extract_strided_slice %182 {offsets = [0, 32], sizes = [1, 32], strides = [1, 1]} : vector<1x96xf32> to vector<1x32xf32>
    %193 = vector.extract_strided_slice %183 {offsets = [0, 32], sizes = [1, 32], strides = [1, 1]} : vector<1x96xf32> to vector<1x32xf32>
    %194 = arith.addf %192, %193 : vector<1x32xf32>
    %195 = arith.negf %194 : vector<1x32xf32>
    %196 = math.exp %195 : vector<1x32xf32>
    %cst_51 = arith.constant 1.000000e+00 : f32
    %197 = vector.broadcast %cst_51 : f32 to vector<1x32xf32>
    %198 = arith.addf %197, %196 : vector<1x32xf32>
    %199 = arith.divf %197, %198 : vector<1x32xf32>
    %200 = vector.extract_strided_slice %182 {offsets = [0, 64], sizes = [1, 32], strides = [1, 1]} : vector<1x96xf32> to vector<1x32xf32>
    %201 = vector.extract_strided_slice %183 {offsets = [0, 64], sizes = [1, 32], strides = [1, 1]} : vector<1x96xf32> to vector<1x32xf32>
    %202 = arith.mulf %191, %201 : vector<1x32xf32>
    %203 = arith.addf %200, %202 : vector<1x32xf32>
    %204 = math.tanh %203 : vector<1x32xf32>
    %cst_52 = arith.constant 1.000000e+00 : f32
    %205 = vector.broadcast %cst_52 : f32 to vector<1x32xf32>
    %206 = arith.subf %205, %199 : vector<1x32xf32>
    %207 = arith.mulf %206, %204 : vector<1x32xf32>
    %208 = arith.mulf %199, %147 : vector<1x32xf32>
    %209 = arith.addf %207, %208 : vector<1x32xf32>
    %210 = tpu.concatenate %181, %209 in 1 : vector<1x32xf32>, vector<1x32xf32> -> vector<1x64xf32>
    %c0_53 = arith.constant 0 : index
    %c0_54 = arith.constant 0 : index
    %c0_55 = arith.constant 0 : index
    %211 = vector.load %arg3[%c0_53, %c0_54, %c0_55] : memref<2x64x192xf32, #tpu.memory_space<vmem>>, vector<1x64x192xf32>
    %212 = vector.shape_cast %211 : vector<1x64x192xf32> to vector<64x192xf32>
    %cst_56 = arith.constant dense<0.000000e+00> : vector<1x192xf32>
    %213 = tpu.matmul %210, %212, %cst_56 {dimension_numbers = #tpu.dot_dimension_numbers<[1], [0], [0], [1], [0, 0, 1, 1], [], []>} : vector<1x64xf32>, vector<64x192xf32>, vector<1x192xf32> -> vector<1x192xf32>
    %c0_57 = arith.constant 0 : index
    %c0_58 = arith.constant 0 : index
    %214 = vector.load %arg5[%c0_57, %c0_58] : memref<2x192xf32, #tpu.memory_space<vmem>>, vector<1x192xf32>
    %215 = arith.addf %213, %214 : vector<1x192xf32>
    %216 = vector.extract_strided_slice %15 {offsets = [3, 0], sizes = [1, 96], strides = [1, 1]} : vector<8x96xf32> to vector<1x96xf32>
    %217 = vector.extract_strided_slice %215 {offsets = [0, 0], sizes = [1, 96], strides = [1, 1]} : vector<1x192xf32> to vector<1x96xf32>
    %218 = vector.extract_strided_slice %216 {offsets = [0, 0], sizes = [1, 32], strides = [1, 1]} : vector<1x96xf32> to vector<1x32xf32>
    %219 = vector.extract_strided_slice %217 {offsets = [0, 0], sizes = [1, 32], strides = [1, 1]} : vector<1x96xf32> to vector<1x32xf32>
    %220 = arith.addf %218, %219 : vector<1x32xf32>
    %221 = arith.negf %220 : vector<1x32xf32>
    %222 = math.exp %221 : vector<1x32xf32>
    %cst_59 = arith.constant 1.000000e+00 : f32
    %223 = vector.broadcast %cst_59 : f32 to vector<1x32xf32>
    %224 = arith.addf %223, %222 : vector<1x32xf32>
    %225 = arith.divf %223, %224 : vector<1x32xf32>
    %226 = vector.extract_strided_slice %216 {offsets = [0, 32], sizes = [1, 32], strides = [1, 1]} : vector<1x96xf32> to vector<1x32xf32>
    %227 = vector.extract_strided_slice %217 {offsets = [0, 32], sizes = [1, 32], strides = [1, 1]} : vector<1x96xf32> to vector<1x32xf32>
    %228 = arith.addf %226, %227 : vector<1x32xf32>
    %229 = arith.negf %228 : vector<1x32xf32>
    %230 = math.exp %229 : vector<1x32xf32>
    %cst_60 = arith.constant 1.000000e+00 : f32
    %231 = vector.broadcast %cst_60 : f32 to vector<1x32xf32>
    %232 = arith.addf %231, %230 : vector<1x32xf32>
    %233 = arith.divf %231, %232 : vector<1x32xf32>
    %234 = vector.extract_strided_slice %216 {offsets = [0, 64], sizes = [1, 32], strides = [1, 1]} : vector<1x96xf32> to vector<1x32xf32>
    %235 = vector.extract_strided_slice %217 {offsets = [0, 64], sizes = [1, 32], strides = [1, 1]} : vector<1x96xf32> to vector<1x32xf32>
    %236 = arith.mulf %225, %235 : vector<1x32xf32>
    %237 = arith.addf %234, %236 : vector<1x32xf32>
    %238 = math.tanh %237 : vector<1x32xf32>
    %cst_61 = arith.constant 1.000000e+00 : f32
    %239 = vector.broadcast %cst_61 : f32 to vector<1x32xf32>
    %240 = arith.subf %239, %233 : vector<1x32xf32>
    %241 = arith.mulf %240, %238 : vector<1x32xf32>
    %242 = arith.mulf %233, %181 : vector<1x32xf32>
    %243 = arith.addf %241, %242 : vector<1x32xf32>
    %244 = vector.extract_strided_slice %21 {offsets = [4, 0], sizes = [1, 96], strides = [1, 1]} : vector<8x96xf32> to vector<1x96xf32>
    %245 = vector.extract_strided_slice %215 {offsets = [0, 96], sizes = [1, 96], strides = [1, 1]} : vector<1x192xf32> to vector<1x96xf32>
    %246 = vector.extract_strided_slice %244 {offsets = [0, 0], sizes = [1, 32], strides = [1, 1]} : vector<1x96xf32> to vector<1x32xf32>
    %247 = vector.extract_strided_slice %245 {offsets = [0, 0], sizes = [1, 32], strides = [1, 1]} : vector<1x96xf32> to vector<1x32xf32>
    %248 = arith.addf %246, %247 : vector<1x32xf32>
    %249 = arith.negf %248 : vector<1x32xf32>
    %250 = math.exp %249 : vector<1x32xf32>
    %cst_62 = arith.constant 1.000000e+00 : f32
    %251 = vector.broadcast %cst_62 : f32 to vector<1x32xf32>
    %252 = arith.addf %251, %250 : vector<1x32xf32>
    %253 = arith.divf %251, %252 : vector<1x32xf32>
    %254 = vector.extract_strided_slice %244 {offsets = [0, 32], sizes = [1, 32], strides = [1, 1]} : vector<1x96xf32> to vector<1x32xf32>
    %255 = vector.extract_strided_slice %245 {offsets = [0, 32], sizes = [1, 32], strides = [1, 1]} : vector<1x96xf32> to vector<1x32xf32>
    %256 = arith.addf %254, %255 : vector<1x32xf32>
    %257 = arith.negf %256 : vector<1x32xf32>
    %258 = math.exp %257 : vector<1x32xf32>
    %cst_63 = arith.constant 1.000000e+00 : f32
    %259 = vector.broadcast %cst_63 : f32 to vector<1x32xf32>
    %260 = arith.addf %259, %258 : vector<1x32xf32>
    %261 = arith.divf %259, %260 : vector<1x32xf32>
    %262 = vector.extract_strided_slice %244 {offsets = [0, 64], sizes = [1, 32], strides = [1, 1]} : vector<1x96xf32> to vector<1x32xf32>
    %263 = vector.extract_strided_slice %245 {offsets = [0, 64], sizes = [1, 32], strides = [1, 1]} : vector<1x96xf32> to vector<1x32xf32>
    %264 = arith.mulf %253, %263 : vector<1x32xf32>
    %265 = arith.addf %262, %264 : vector<1x32xf32>
    %266 = math.tanh %265 : vector<1x32xf32>
    %cst_64 = arith.constant 1.000000e+00 : f32
    %267 = vector.broadcast %cst_64 : f32 to vector<1x32xf32>
    %268 = arith.subf %267, %261 : vector<1x32xf32>
    %269 = arith.mulf %268, %266 : vector<1x32xf32>
    %270 = arith.mulf %261, %209 : vector<1x32xf32>
    %271 = arith.addf %269, %270 : vector<1x32xf32>
    %272 = tpu.concatenate %243, %271 in 1 : vector<1x32xf32>, vector<1x32xf32> -> vector<1x64xf32>
    %c0_65 = arith.constant 0 : index
    %c0_66 = arith.constant 0 : index
    %c0_67 = arith.constant 0 : index
    %273 = vector.load %arg3[%c0_65, %c0_66, %c0_67] : memref<2x64x192xf32, #tpu.memory_space<vmem>>, vector<1x64x192xf32>
    %274 = vector.shape_cast %273 : vector<1x64x192xf32> to vector<64x192xf32>
    %cst_68 = arith.constant dense<0.000000e+00> : vector<1x192xf32>
    %275 = tpu.matmul %272, %274, %cst_68 {dimension_numbers = #tpu.dot_dimension_numbers<[1], [0], [0], [1], [0, 0, 1, 1], [], []>} : vector<1x64xf32>, vector<64x192xf32>, vector<1x192xf32> -> vector<1x192xf32>
    %c0_69 = arith.constant 0 : index
    %c0_70 = arith.constant 0 : index
    %276 = vector.load %arg5[%c0_69, %c0_70] : memref<2x192xf32, #tpu.memory_space<vmem>>, vector<1x192xf32>
    %277 = arith.addf %275, %276 : vector<1x192xf32>
    %278 = vector.extract_strided_slice %15 {offsets = [4, 0], sizes = [1, 96], strides = [1, 1]} : vector<8x96xf32> to vector<1x96xf32>
    %279 = vector.extract_strided_slice %277 {offsets = [0, 0], sizes = [1, 96], strides = [1, 1]} : vector<1x192xf32> to vector<1x96xf32>
    %280 = vector.extract_strided_slice %278 {offsets = [0, 0], sizes = [1, 32], strides = [1, 1]} : vector<1x96xf32> to vector<1x32xf32>
    %281 = vector.extract_strided_slice %279 {offsets = [0, 0], sizes = [1, 32], strides = [1, 1]} : vector<1x96xf32> to vector<1x32xf32>
    %282 = arith.addf %280, %281 : vector<1x32xf32>
    %283 = arith.negf %282 : vector<1x32xf32>
    %284 = math.exp %283 : vector<1x32xf32>
    %cst_71 = arith.constant 1.000000e+00 : f32
    %285 = vector.broadcast %cst_71 : f32 to vector<1x32xf32>
    %286 = arith.addf %285, %284 : vector<1x32xf32>
    %287 = arith.divf %285, %286 : vector<1x32xf32>
    %288 = vector.extract_strided_slice %278 {offsets = [0, 32], sizes = [1, 32], strides = [1, 1]} : vector<1x96xf32> to vector<1x32xf32>
    %289 = vector.extract_strided_slice %279 {offsets = [0, 32], sizes = [1, 32], strides = [1, 1]} : vector<1x96xf32> to vector<1x32xf32>
    %290 = arith.addf %288, %289 : vector<1x32xf32>
    %291 = arith.negf %290 : vector<1x32xf32>
    %292 = math.exp %291 : vector<1x32xf32>
    %cst_72 = arith.constant 1.000000e+00 : f32
    %293 = vector.broadcast %cst_72 : f32 to vector<1x32xf32>
    %294 = arith.addf %293, %292 : vector<1x32xf32>
    %295 = arith.divf %293, %294 : vector<1x32xf32>
    %296 = vector.extract_strided_slice %278 {offsets = [0, 64], sizes = [1, 32], strides = [1, 1]} : vector<1x96xf32> to vector<1x32xf32>
    %297 = vector.extract_strided_slice %279 {offsets = [0, 64], sizes = [1, 32], strides = [1, 1]} : vector<1x96xf32> to vector<1x32xf32>
    %298 = arith.mulf %287, %297 : vector<1x32xf32>
    %299 = arith.addf %296, %298 : vector<1x32xf32>
    %300 = math.tanh %299 : vector<1x32xf32>
    %cst_73 = arith.constant 1.000000e+00 : f32
    %301 = vector.broadcast %cst_73 : f32 to vector<1x32xf32>
    %302 = arith.subf %301, %295 : vector<1x32xf32>
    %303 = arith.mulf %302, %300 : vector<1x32xf32>
    %304 = arith.mulf %295, %243 : vector<1x32xf32>
    %305 = arith.addf %303, %304 : vector<1x32xf32>
    %306 = vector.extract_strided_slice %21 {offsets = [3, 0], sizes = [1, 96], strides = [1, 1]} : vector<8x96xf32> to vector<1x96xf32>
    %307 = vector.extract_strided_slice %277 {offsets = [0, 96], sizes = [1, 96], strides = [1, 1]} : vector<1x192xf32> to vector<1x96xf32>
    %308 = vector.extract_strided_slice %306 {offsets = [0, 0], sizes = [1, 32], strides = [1, 1]} : vector<1x96xf32> to vector<1x32xf32>
    %309 = vector.extract_strided_slice %307 {offsets = [0, 0], sizes = [1, 32], strides = [1, 1]} : vector<1x96xf32> to vector<1x32xf32>
    %310 = arith.addf %308, %309 : vector<1x32xf32>
    %311 = arith.negf %310 : vector<1x32xf32>
    %312 = math.exp %311 : vector<1x32xf32>
    %cst_74 = arith.constant 1.000000e+00 : f32
    %313 = vector.broadcast %cst_74 : f32 to vector<1x32xf32>
    %314 = arith.addf %313, %312 : vector<1x32xf32>
    %315 = arith.divf %313, %314 : vector<1x32xf32>
    %316 = vector.extract_strided_slice %306 {offsets = [0, 32], sizes = [1, 32], strides = [1, 1]} : vector<1x96xf32> to vector<1x32xf32>
    %317 = vector.extract_strided_slice %307 {offsets = [0, 32], sizes = [1, 32], strides = [1, 1]} : vector<1x96xf32> to vector<1x32xf32>
    %318 = arith.addf %316, %317 : vector<1x32xf32>
    %319 = arith.negf %318 : vector<1x32xf32>
    %320 = math.exp %319 : vector<1x32xf32>
    %cst_75 = arith.constant 1.000000e+00 : f32
    %321 = vector.broadcast %cst_75 : f32 to vector<1x32xf32>
    %322 = arith.addf %321, %320 : vector<1x32xf32>
    %323 = arith.divf %321, %322 : vector<1x32xf32>
    %324 = vector.extract_strided_slice %306 {offsets = [0, 64], sizes = [1, 32], strides = [1, 1]} : vector<1x96xf32> to vector<1x32xf32>
    %325 = vector.extract_strided_slice %307 {offsets = [0, 64], sizes = [1, 32], strides = [1, 1]} : vector<1x96xf32> to vector<1x32xf32>
    %326 = arith.mulf %315, %325 : vector<1x32xf32>
    %327 = arith.addf %324, %326 : vector<1x32xf32>
    %328 = math.tanh %327 : vector<1x32xf32>
    %cst_76 = arith.constant 1.000000e+00 : f32
    %329 = vector.broadcast %cst_76 : f32 to vector<1x32xf32>
    %330 = arith.subf %329, %323 : vector<1x32xf32>
    %331 = arith.mulf %330, %328 : vector<1x32xf32>
    %332 = arith.mulf %323, %271 : vector<1x32xf32>
    %333 = arith.addf %331, %332 : vector<1x32xf32>
    %334 = tpu.concatenate %305, %333 in 1 : vector<1x32xf32>, vector<1x32xf32> -> vector<1x64xf32>
    %c0_77 = arith.constant 0 : index
    %c0_78 = arith.constant 0 : index
    %c0_79 = arith.constant 0 : index
    %335 = vector.load %arg3[%c0_77, %c0_78, %c0_79] : memref<2x64x192xf32, #tpu.memory_space<vmem>>, vector<1x64x192xf32>
    %336 = vector.shape_cast %335 : vector<1x64x192xf32> to vector<64x192xf32>
    %cst_80 = arith.constant dense<0.000000e+00> : vector<1x192xf32>
    %337 = tpu.matmul %334, %336, %cst_80 {dimension_numbers = #tpu.dot_dimension_numbers<[1], [0], [0], [1], [0, 0, 1, 1], [], []>} : vector<1x64xf32>, vector<64x192xf32>, vector<1x192xf32> -> vector<1x192xf32>
    %c0_81 = arith.constant 0 : index
    %c0_82 = arith.constant 0 : index
    %338 = vector.load %arg5[%c0_81, %c0_82] : memref<2x192xf32, #tpu.memory_space<vmem>>, vector<1x192xf32>
    %339 = arith.addf %337, %338 : vector<1x192xf32>
    %340 = vector.extract_strided_slice %15 {offsets = [5, 0], sizes = [1, 96], strides = [1, 1]} : vector<8x96xf32> to vector<1x96xf32>
    %341 = vector.extract_strided_slice %339 {offsets = [0, 0], sizes = [1, 96], strides = [1, 1]} : vector<1x192xf32> to vector<1x96xf32>
    %342 = vector.extract_strided_slice %340 {offsets = [0, 0], sizes = [1, 32], strides = [1, 1]} : vector<1x96xf32> to vector<1x32xf32>
    %343 = vector.extract_strided_slice %341 {offsets = [0, 0], sizes = [1, 32], strides = [1, 1]} : vector<1x96xf32> to vector<1x32xf32>
    %344 = arith.addf %342, %343 : vector<1x32xf32>
    %345 = arith.negf %344 : vector<1x32xf32>
    %346 = math.exp %345 : vector<1x32xf32>
    %cst_83 = arith.constant 1.000000e+00 : f32
    %347 = vector.broadcast %cst_83 : f32 to vector<1x32xf32>
    %348 = arith.addf %347, %346 : vector<1x32xf32>
    %349 = arith.divf %347, %348 : vector<1x32xf32>
    %350 = vector.extract_strided_slice %340 {offsets = [0, 32], sizes = [1, 32], strides = [1, 1]} : vector<1x96xf32> to vector<1x32xf32>
    %351 = vector.extract_strided_slice %341 {offsets = [0, 32], sizes = [1, 32], strides = [1, 1]} : vector<1x96xf32> to vector<1x32xf32>
    %352 = arith.addf %350, %351 : vector<1x32xf32>
    %353 = arith.negf %352 : vector<1x32xf32>
    %354 = math.exp %353 : vector<1x32xf32>
    %cst_84 = arith.constant 1.000000e+00 : f32
    %355 = vector.broadcast %cst_84 : f32 to vector<1x32xf32>
    %356 = arith.addf %355, %354 : vector<1x32xf32>
    %357 = arith.divf %355, %356 : vector<1x32xf32>
    %358 = vector.extract_strided_slice %340 {offsets = [0, 64], sizes = [1, 32], strides = [1, 1]} : vector<1x96xf32> to vector<1x32xf32>
    %359 = vector.extract_strided_slice %341 {offsets = [0, 64], sizes = [1, 32], strides = [1, 1]} : vector<1x96xf32> to vector<1x32xf32>
    %360 = arith.mulf %349, %359 : vector<1x32xf32>
    %361 = arith.addf %358, %360 : vector<1x32xf32>
    %362 = math.tanh %361 : vector<1x32xf32>
    %cst_85 = arith.constant 1.000000e+00 : f32
    %363 = vector.broadcast %cst_85 : f32 to vector<1x32xf32>
    %364 = arith.subf %363, %357 : vector<1x32xf32>
    %365 = arith.mulf %364, %362 : vector<1x32xf32>
    %366 = arith.mulf %357, %305 : vector<1x32xf32>
    %367 = arith.addf %365, %366 : vector<1x32xf32>
    %368 = vector.extract_strided_slice %21 {offsets = [2, 0], sizes = [1, 96], strides = [1, 1]} : vector<8x96xf32> to vector<1x96xf32>
    %369 = vector.extract_strided_slice %339 {offsets = [0, 96], sizes = [1, 96], strides = [1, 1]} : vector<1x192xf32> to vector<1x96xf32>
    %370 = vector.extract_strided_slice %368 {offsets = [0, 0], sizes = [1, 32], strides = [1, 1]} : vector<1x96xf32> to vector<1x32xf32>
    %371 = vector.extract_strided_slice %369 {offsets = [0, 0], sizes = [1, 32], strides = [1, 1]} : vector<1x96xf32> to vector<1x32xf32>
    %372 = arith.addf %370, %371 : vector<1x32xf32>
    %373 = arith.negf %372 : vector<1x32xf32>
    %374 = math.exp %373 : vector<1x32xf32>
    %cst_86 = arith.constant 1.000000e+00 : f32
    %375 = vector.broadcast %cst_86 : f32 to vector<1x32xf32>
    %376 = arith.addf %375, %374 : vector<1x32xf32>
    %377 = arith.divf %375, %376 : vector<1x32xf32>
    %378 = vector.extract_strided_slice %368 {offsets = [0, 32], sizes = [1, 32], strides = [1, 1]} : vector<1x96xf32> to vector<1x32xf32>
    %379 = vector.extract_strided_slice %369 {offsets = [0, 32], sizes = [1, 32], strides = [1, 1]} : vector<1x96xf32> to vector<1x32xf32>
    %380 = arith.addf %378, %379 : vector<1x32xf32>
    %381 = arith.negf %380 : vector<1x32xf32>
    %382 = math.exp %381 : vector<1x32xf32>
    %cst_87 = arith.constant 1.000000e+00 : f32
    %383 = vector.broadcast %cst_87 : f32 to vector<1x32xf32>
    %384 = arith.addf %383, %382 : vector<1x32xf32>
    %385 = arith.divf %383, %384 : vector<1x32xf32>
    %386 = vector.extract_strided_slice %368 {offsets = [0, 64], sizes = [1, 32], strides = [1, 1]} : vector<1x96xf32> to vector<1x32xf32>
    %387 = vector.extract_strided_slice %369 {offsets = [0, 64], sizes = [1, 32], strides = [1, 1]} : vector<1x96xf32> to vector<1x32xf32>
    %388 = arith.mulf %377, %387 : vector<1x32xf32>
    %389 = arith.addf %386, %388 : vector<1x32xf32>
    %390 = math.tanh %389 : vector<1x32xf32>
    %cst_88 = arith.constant 1.000000e+00 : f32
    %391 = vector.broadcast %cst_88 : f32 to vector<1x32xf32>
    %392 = arith.subf %391, %385 : vector<1x32xf32>
    %393 = arith.mulf %392, %390 : vector<1x32xf32>
    %394 = arith.mulf %385, %333 : vector<1x32xf32>
    %395 = arith.addf %393, %394 : vector<1x32xf32>
    %396 = tpu.concatenate %367, %395 in 1 : vector<1x32xf32>, vector<1x32xf32> -> vector<1x64xf32>
    %c0_89 = arith.constant 0 : index
    %c0_90 = arith.constant 0 : index
    %c0_91 = arith.constant 0 : index
    %397 = vector.load %arg3[%c0_89, %c0_90, %c0_91] : memref<2x64x192xf32, #tpu.memory_space<vmem>>, vector<1x64x192xf32>
    %398 = vector.shape_cast %397 : vector<1x64x192xf32> to vector<64x192xf32>
    %cst_92 = arith.constant dense<0.000000e+00> : vector<1x192xf32>
    %399 = tpu.matmul %396, %398, %cst_92 {dimension_numbers = #tpu.dot_dimension_numbers<[1], [0], [0], [1], [0, 0, 1, 1], [], []>} : vector<1x64xf32>, vector<64x192xf32>, vector<1x192xf32> -> vector<1x192xf32>
    %c0_93 = arith.constant 0 : index
    %c0_94 = arith.constant 0 : index
    %400 = vector.load %arg5[%c0_93, %c0_94] : memref<2x192xf32, #tpu.memory_space<vmem>>, vector<1x192xf32>
    %401 = arith.addf %399, %400 : vector<1x192xf32>
    %402 = vector.extract_strided_slice %15 {offsets = [6, 0], sizes = [1, 96], strides = [1, 1]} : vector<8x96xf32> to vector<1x96xf32>
    %403 = vector.extract_strided_slice %401 {offsets = [0, 0], sizes = [1, 96], strides = [1, 1]} : vector<1x192xf32> to vector<1x96xf32>
    %404 = vector.extract_strided_slice %402 {offsets = [0, 0], sizes = [1, 32], strides = [1, 1]} : vector<1x96xf32> to vector<1x32xf32>
    %405 = vector.extract_strided_slice %403 {offsets = [0, 0], sizes = [1, 32], strides = [1, 1]} : vector<1x96xf32> to vector<1x32xf32>
    %406 = arith.addf %404, %405 : vector<1x32xf32>
    %407 = arith.negf %406 : vector<1x32xf32>
    %408 = math.exp %407 : vector<1x32xf32>
    %cst_95 = arith.constant 1.000000e+00 : f32
    %409 = vector.broadcast %cst_95 : f32 to vector<1x32xf32>
    %410 = arith.addf %409, %408 : vector<1x32xf32>
    %411 = arith.divf %409, %410 : vector<1x32xf32>
    %412 = vector.extract_strided_slice %402 {offsets = [0, 32], sizes = [1, 32], strides = [1, 1]} : vector<1x96xf32> to vector<1x32xf32>
    %413 = vector.extract_strided_slice %403 {offsets = [0, 32], sizes = [1, 32], strides = [1, 1]} : vector<1x96xf32> to vector<1x32xf32>
    %414 = arith.addf %412, %413 : vector<1x32xf32>
    %415 = arith.negf %414 : vector<1x32xf32>
    %416 = math.exp %415 : vector<1x32xf32>
    %cst_96 = arith.constant 1.000000e+00 : f32
    %417 = vector.broadcast %cst_96 : f32 to vector<1x32xf32>
    %418 = arith.addf %417, %416 : vector<1x32xf32>
    %419 = arith.divf %417, %418 : vector<1x32xf32>
    %420 = vector.extract_strided_slice %402 {offsets = [0, 64], sizes = [1, 32], strides = [1, 1]} : vector<1x96xf32> to vector<1x32xf32>
    %421 = vector.extract_strided_slice %403 {offsets = [0, 64], sizes = [1, 32], strides = [1, 1]} : vector<1x96xf32> to vector<1x32xf32>
    %422 = arith.mulf %411, %421 : vector<1x32xf32>
    %423 = arith.addf %420, %422 : vector<1x32xf32>
    %424 = math.tanh %423 : vector<1x32xf32>
    %cst_97 = arith.constant 1.000000e+00 : f32
    %425 = vector.broadcast %cst_97 : f32 to vector<1x32xf32>
    %426 = arith.subf %425, %419 : vector<1x32xf32>
    %427 = arith.mulf %426, %424 : vector<1x32xf32>
    %428 = arith.mulf %419, %367 : vector<1x32xf32>
    %429 = arith.addf %427, %428 : vector<1x32xf32>
    %430 = vector.extract_strided_slice %21 {offsets = [1, 0], sizes = [1, 96], strides = [1, 1]} : vector<8x96xf32> to vector<1x96xf32>
    %431 = vector.extract_strided_slice %401 {offsets = [0, 96], sizes = [1, 96], strides = [1, 1]} : vector<1x192xf32> to vector<1x96xf32>
    %432 = vector.extract_strided_slice %430 {offsets = [0, 0], sizes = [1, 32], strides = [1, 1]} : vector<1x96xf32> to vector<1x32xf32>
    %433 = vector.extract_strided_slice %431 {offsets = [0, 0], sizes = [1, 32], strides = [1, 1]} : vector<1x96xf32> to vector<1x32xf32>
    %434 = arith.addf %432, %433 : vector<1x32xf32>
    %435 = arith.negf %434 : vector<1x32xf32>
    %436 = math.exp %435 : vector<1x32xf32>
    %cst_98 = arith.constant 1.000000e+00 : f32
    %437 = vector.broadcast %cst_98 : f32 to vector<1x32xf32>
    %438 = arith.addf %437, %436 : vector<1x32xf32>
    %439 = arith.divf %437, %438 : vector<1x32xf32>
    %440 = vector.extract_strided_slice %430 {offsets = [0, 32], sizes = [1, 32], strides = [1, 1]} : vector<1x96xf32> to vector<1x32xf32>
    %441 = vector.extract_strided_slice %431 {offsets = [0, 32], sizes = [1, 32], strides = [1, 1]} : vector<1x96xf32> to vector<1x32xf32>
    %442 = arith.addf %440, %441 : vector<1x32xf32>
    %443 = arith.negf %442 : vector<1x32xf32>
    %444 = math.exp %443 : vector<1x32xf32>
    %cst_99 = arith.constant 1.000000e+00 : f32
    %445 = vector.broadcast %cst_99 : f32 to vector<1x32xf32>
    %446 = arith.addf %445, %444 : vector<1x32xf32>
    %447 = arith.divf %445, %446 : vector<1x32xf32>
    %448 = vector.extract_strided_slice %430 {offsets = [0, 64], sizes = [1, 32], strides = [1, 1]} : vector<1x96xf32> to vector<1x32xf32>
    %449 = vector.extract_strided_slice %431 {offsets = [0, 64], sizes = [1, 32], strides = [1, 1]} : vector<1x96xf32> to vector<1x32xf32>
    %450 = arith.mulf %439, %449 : vector<1x32xf32>
    %451 = arith.addf %448, %450 : vector<1x32xf32>
    %452 = math.tanh %451 : vector<1x32xf32>
    %cst_100 = arith.constant 1.000000e+00 : f32
    %453 = vector.broadcast %cst_100 : f32 to vector<1x32xf32>
    %454 = arith.subf %453, %447 : vector<1x32xf32>
    %455 = arith.mulf %454, %452 : vector<1x32xf32>
    %456 = arith.mulf %447, %395 : vector<1x32xf32>
    %457 = arith.addf %455, %456 : vector<1x32xf32>
    %458 = tpu.concatenate %429, %457 in 1 : vector<1x32xf32>, vector<1x32xf32> -> vector<1x64xf32>
    %c0_101 = arith.constant 0 : index
    %c0_102 = arith.constant 0 : index
    %c0_103 = arith.constant 0 : index
    %459 = vector.load %arg3[%c0_101, %c0_102, %c0_103] : memref<2x64x192xf32, #tpu.memory_space<vmem>>, vector<1x64x192xf32>
    %460 = vector.shape_cast %459 : vector<1x64x192xf32> to vector<64x192xf32>
    %cst_104 = arith.constant dense<0.000000e+00> : vector<1x192xf32>
    %461 = tpu.matmul %458, %460, %cst_104 {dimension_numbers = #tpu.dot_dimension_numbers<[1], [0], [0], [1], [0, 0, 1, 1], [], []>} : vector<1x64xf32>, vector<64x192xf32>, vector<1x192xf32> -> vector<1x192xf32>
    %c0_105 = arith.constant 0 : index
    %c0_106 = arith.constant 0 : index
    %462 = vector.load %arg5[%c0_105, %c0_106] : memref<2x192xf32, #tpu.memory_space<vmem>>, vector<1x192xf32>
    %463 = arith.addf %461, %462 : vector<1x192xf32>
    %464 = vector.extract_strided_slice %15 {offsets = [7, 0], sizes = [1, 96], strides = [1, 1]} : vector<8x96xf32> to vector<1x96xf32>
    %465 = vector.extract_strided_slice %463 {offsets = [0, 0], sizes = [1, 96], strides = [1, 1]} : vector<1x192xf32> to vector<1x96xf32>
    %466 = vector.extract_strided_slice %464 {offsets = [0, 0], sizes = [1, 32], strides = [1, 1]} : vector<1x96xf32> to vector<1x32xf32>
    %467 = vector.extract_strided_slice %465 {offsets = [0, 0], sizes = [1, 32], strides = [1, 1]} : vector<1x96xf32> to vector<1x32xf32>
    %468 = arith.addf %466, %467 : vector<1x32xf32>
    %469 = arith.negf %468 : vector<1x32xf32>
    %470 = math.exp %469 : vector<1x32xf32>
    %cst_107 = arith.constant 1.000000e+00 : f32
    %471 = vector.broadcast %cst_107 : f32 to vector<1x32xf32>
    %472 = arith.addf %471, %470 : vector<1x32xf32>
    %473 = arith.divf %471, %472 : vector<1x32xf32>
    %474 = vector.extract_strided_slice %464 {offsets = [0, 32], sizes = [1, 32], strides = [1, 1]} : vector<1x96xf32> to vector<1x32xf32>
    %475 = vector.extract_strided_slice %465 {offsets = [0, 32], sizes = [1, 32], strides = [1, 1]} : vector<1x96xf32> to vector<1x32xf32>
    %476 = arith.addf %474, %475 : vector<1x32xf32>
    %477 = arith.negf %476 : vector<1x32xf32>
    %478 = math.exp %477 : vector<1x32xf32>
    %cst_108 = arith.constant 1.000000e+00 : f32
    %479 = vector.broadcast %cst_108 : f32 to vector<1x32xf32>
    %480 = arith.addf %479, %478 : vector<1x32xf32>
    %481 = arith.divf %479, %480 : vector<1x32xf32>
    %482 = vector.extract_strided_slice %464 {offsets = [0, 64], sizes = [1, 32], strides = [1, 1]} : vector<1x96xf32> to vector<1x32xf32>
    %483 = vector.extract_strided_slice %465 {offsets = [0, 64], sizes = [1, 32], strides = [1, 1]} : vector<1x96xf32> to vector<1x32xf32>
    %484 = arith.mulf %473, %483 : vector<1x32xf32>
    %485 = arith.addf %482, %484 : vector<1x32xf32>
    %486 = math.tanh %485 : vector<1x32xf32>
    %cst_109 = arith.constant 1.000000e+00 : f32
    %487 = vector.broadcast %cst_109 : f32 to vector<1x32xf32>
    %488 = arith.subf %487, %481 : vector<1x32xf32>
    %489 = arith.mulf %488, %486 : vector<1x32xf32>
    %490 = arith.mulf %481, %429 : vector<1x32xf32>
    %491 = arith.addf %489, %490 : vector<1x32xf32>
    %492 = vector.extract_strided_slice %21 {offsets = [0, 0], sizes = [1, 96], strides = [1, 1]} : vector<8x96xf32> to vector<1x96xf32>
    %493 = vector.extract_strided_slice %463 {offsets = [0, 96], sizes = [1, 96], strides = [1, 1]} : vector<1x192xf32> to vector<1x96xf32>
    %494 = vector.extract_strided_slice %492 {offsets = [0, 0], sizes = [1, 32], strides = [1, 1]} : vector<1x96xf32> to vector<1x32xf32>
    %495 = vector.extract_strided_slice %493 {offsets = [0, 0], sizes = [1, 32], strides = [1, 1]} : vector<1x96xf32> to vector<1x32xf32>
    %496 = arith.addf %494, %495 : vector<1x32xf32>
    %497 = arith.negf %496 : vector<1x32xf32>
    %498 = math.exp %497 : vector<1x32xf32>
    %cst_110 = arith.constant 1.000000e+00 : f32
    %499 = vector.broadcast %cst_110 : f32 to vector<1x32xf32>
    %500 = arith.addf %499, %498 : vector<1x32xf32>
    %501 = arith.divf %499, %500 : vector<1x32xf32>
    %502 = vector.extract_strided_slice %492 {offsets = [0, 32], sizes = [1, 32], strides = [1, 1]} : vector<1x96xf32> to vector<1x32xf32>
    %503 = vector.extract_strided_slice %493 {offsets = [0, 32], sizes = [1, 32], strides = [1, 1]} : vector<1x96xf32> to vector<1x32xf32>
    %504 = arith.addf %502, %503 : vector<1x32xf32>
    %505 = arith.negf %504 : vector<1x32xf32>
    %506 = math.exp %505 : vector<1x32xf32>
    %cst_111 = arith.constant 1.000000e+00 : f32
    %507 = vector.broadcast %cst_111 : f32 to vector<1x32xf32>
    %508 = arith.addf %507, %506 : vector<1x32xf32>
    %509 = arith.divf %507, %508 : vector<1x32xf32>
    %510 = vector.extract_strided_slice %492 {offsets = [0, 64], sizes = [1, 32], strides = [1, 1]} : vector<1x96xf32> to vector<1x32xf32>
    %511 = vector.extract_strided_slice %493 {offsets = [0, 64], sizes = [1, 32], strides = [1, 1]} : vector<1x96xf32> to vector<1x32xf32>
    %512 = arith.mulf %501, %511 : vector<1x32xf32>
    %513 = arith.addf %510, %512 : vector<1x32xf32>
    %514 = math.tanh %513 : vector<1x32xf32>
    %cst_112 = arith.constant 1.000000e+00 : f32
    %515 = vector.broadcast %cst_112 : f32 to vector<1x32xf32>
    %516 = arith.subf %515, %509 : vector<1x32xf32>
    %517 = arith.mulf %516, %514 : vector<1x32xf32>
    %518 = arith.mulf %509, %457 : vector<1x32xf32>
    %519 = arith.addf %517, %518 : vector<1x32xf32>
    %520 = tpu.concatenate %57, %119, %181, %243, %305, %367, %429, %491 in 0 : vector<1x32xf32>, vector<1x32xf32>, vector<1x32xf32>, vector<1x32xf32>, vector<1x32xf32>, vector<1x32xf32>, vector<1x32xf32>, vector<1x32xf32> -> vector<8x32xf32>
    %521 = tpu.concatenate %519, %457, %395, %333, %271, %209, %147, %85 in 0 : vector<1x32xf32>, vector<1x32xf32>, vector<1x32xf32>, vector<1x32xf32>, vector<1x32xf32>, vector<1x32xf32>, vector<1x32xf32>, vector<1x32xf32> -> vector<8x32xf32>
    %522 = tpu.concatenate %520, %521 in 1 : vector<8x32xf32>, vector<8x32xf32> -> vector<8x64xf32>
    %c2 = arith.constant 2 : index
    %c0_113 = arith.constant 0 : index
    %c0_114 = arith.constant 0 : index
    %523 = vector.load %arg2[%c2, %c0_113, %c0_114] : memref<4x64x96xf32, #tpu.memory_space<vmem>>, vector<1x64x96xf32>
    %524 = vector.shape_cast %523 : vector<1x64x96xf32> to vector<64x96xf32>
    %cst_115 = arith.constant dense<0.000000e+00> : vector<8x96xf32>
    %525 = tpu.matmul %522, %524, %cst_115 {dimension_numbers = #tpu.dot_dimension_numbers<[1], [0], [0], [1], [0, 0, 1, 1], [], []>} : vector<8x64xf32>, vector<64x96xf32>, vector<8x96xf32> -> vector<8x96xf32>
    %c2_116 = arith.constant 2 : index
    %c0_117 = arith.constant 0 : index
    %526 = vector.load %arg4[%c2_116, %c0_117] : memref<4x96xf32, #tpu.memory_space<vmem>>, vector<1x96xf32>
    %527 = vector.broadcast %526 : vector<1x96xf32> to vector<8x96xf32>
    %528 = arith.addf %525, %527 : vector<8x96xf32>
    %c3 = arith.constant 3 : index
    %c0_118 = arith.constant 0 : index
    %c0_119 = arith.constant 0 : index
    %529 = vector.load %arg2[%c3, %c0_118, %c0_119] : memref<4x64x96xf32, #tpu.memory_space<vmem>>, vector<1x64x96xf32>
    %530 = vector.shape_cast %529 : vector<1x64x96xf32> to vector<64x96xf32>
    %cst_120 = arith.constant dense<0.000000e+00> : vector<8x96xf32>
    %531 = tpu.matmul %522, %530, %cst_120 {dimension_numbers = #tpu.dot_dimension_numbers<[1], [0], [0], [1], [0, 0, 1, 1], [], []>} : vector<8x64xf32>, vector<64x96xf32>, vector<8x96xf32> -> vector<8x96xf32>
    %c3_121 = arith.constant 3 : index
    %c0_122 = arith.constant 0 : index
    %532 = vector.load %arg4[%c3_121, %c0_122] : memref<4x96xf32, #tpu.memory_space<vmem>>, vector<1x96xf32>
    %533 = vector.broadcast %532 : vector<1x96xf32> to vector<8x96xf32>
    %534 = arith.addf %531, %533 : vector<8x96xf32>
    %cst_123 = arith.constant 0.000000e+00 : f32
    %535 = vector.broadcast %cst_123 : f32 to vector<1x32xf32>
    %cst_124 = arith.constant 0.000000e+00 : f32
    %536 = vector.broadcast %cst_124 : f32 to vector<1x32xf32>
    %537 = tpu.concatenate %535, %536 in 1 : vector<1x32xf32>, vector<1x32xf32> -> vector<1x64xf32>
    %c1_125 = arith.constant 1 : index
    %c0_126 = arith.constant 0 : index
    %c0_127 = arith.constant 0 : index
    %538 = vector.load %arg3[%c1_125, %c0_126, %c0_127] : memref<2x64x192xf32, #tpu.memory_space<vmem>>, vector<1x64x192xf32>
    %539 = vector.shape_cast %538 : vector<1x64x192xf32> to vector<64x192xf32>
    %cst_128 = arith.constant dense<0.000000e+00> : vector<1x192xf32>
    %540 = tpu.matmul %537, %539, %cst_128 {dimension_numbers = #tpu.dot_dimension_numbers<[1], [0], [0], [1], [0, 0, 1, 1], [], []>} : vector<1x64xf32>, vector<64x192xf32>, vector<1x192xf32> -> vector<1x192xf32>
    %c1_129 = arith.constant 1 : index
    %c0_130 = arith.constant 0 : index
    %541 = vector.load %arg5[%c1_129, %c0_130] : memref<2x192xf32, #tpu.memory_space<vmem>>, vector<1x192xf32>
    %542 = arith.addf %540, %541 : vector<1x192xf32>
    %543 = vector.extract_strided_slice %528 {offsets = [0, 0], sizes = [1, 96], strides = [1, 1]} : vector<8x96xf32> to vector<1x96xf32>
    %544 = vector.extract_strided_slice %542 {offsets = [0, 0], sizes = [1, 96], strides = [1, 1]} : vector<1x192xf32> to vector<1x96xf32>
    %545 = vector.extract_strided_slice %543 {offsets = [0, 0], sizes = [1, 32], strides = [1, 1]} : vector<1x96xf32> to vector<1x32xf32>
    %546 = vector.extract_strided_slice %544 {offsets = [0, 0], sizes = [1, 32], strides = [1, 1]} : vector<1x96xf32> to vector<1x32xf32>
    %547 = arith.addf %545, %546 : vector<1x32xf32>
    %548 = arith.negf %547 : vector<1x32xf32>
    %549 = math.exp %548 : vector<1x32xf32>
    %cst_131 = arith.constant 1.000000e+00 : f32
    %550 = vector.broadcast %cst_131 : f32 to vector<1x32xf32>
    %551 = arith.addf %550, %549 : vector<1x32xf32>
    %552 = arith.divf %550, %551 : vector<1x32xf32>
    %553 = vector.extract_strided_slice %543 {offsets = [0, 32], sizes = [1, 32], strides = [1, 1]} : vector<1x96xf32> to vector<1x32xf32>
    %554 = vector.extract_strided_slice %544 {offsets = [0, 32], sizes = [1, 32], strides = [1, 1]} : vector<1x96xf32> to vector<1x32xf32>
    %555 = arith.addf %553, %554 : vector<1x32xf32>
    %556 = arith.negf %555 : vector<1x32xf32>
    %557 = math.exp %556 : vector<1x32xf32>
    %cst_132 = arith.constant 1.000000e+00 : f32
    %558 = vector.broadcast %cst_132 : f32 to vector<1x32xf32>
    %559 = arith.addf %558, %557 : vector<1x32xf32>
    %560 = arith.divf %558, %559 : vector<1x32xf32>
    %561 = vector.extract_strided_slice %543 {offsets = [0, 64], sizes = [1, 32], strides = [1, 1]} : vector<1x96xf32> to vector<1x32xf32>
    %562 = vector.extract_strided_slice %544 {offsets = [0, 64], sizes = [1, 32], strides = [1, 1]} : vector<1x96xf32> to vector<1x32xf32>
    %563 = arith.mulf %552, %562 : vector<1x32xf32>
    %564 = arith.addf %561, %563 : vector<1x32xf32>
    %565 = math.tanh %564 : vector<1x32xf32>
    %cst_133 = arith.constant 1.000000e+00 : f32
    %566 = vector.broadcast %cst_133 : f32 to vector<1x32xf32>
    %567 = arith.subf %566, %560 : vector<1x32xf32>
    %568 = arith.mulf %567, %565 : vector<1x32xf32>
    %569 = arith.mulf %560, %535 : vector<1x32xf32>
    %570 = arith.addf %568, %569 : vector<1x32xf32>
    %571 = vector.extract_strided_slice %534 {offsets = [7, 0], sizes = [1, 96], strides = [1, 1]} : vector<8x96xf32> to vector<1x96xf32>
    %572 = vector.extract_strided_slice %542 {offsets = [0, 96], sizes = [1, 96], strides = [1, 1]} : vector<1x192xf32> to vector<1x96xf32>
    %573 = vector.extract_strided_slice %571 {offsets = [0, 0], sizes = [1, 32], strides = [1, 1]} : vector<1x96xf32> to vector<1x32xf32>
    %574 = vector.extract_strided_slice %572 {offsets = [0, 0], sizes = [1, 32], strides = [1, 1]} : vector<1x96xf32> to vector<1x32xf32>
    %575 = arith.addf %573, %574 : vector<1x32xf32>
    %576 = arith.negf %575 : vector<1x32xf32>
    %577 = math.exp %576 : vector<1x32xf32>
    %cst_134 = arith.constant 1.000000e+00 : f32
    %578 = vector.broadcast %cst_134 : f32 to vector<1x32xf32>
    %579 = arith.addf %578, %577 : vector<1x32xf32>
    %580 = arith.divf %578, %579 : vector<1x32xf32>
    %581 = vector.extract_strided_slice %571 {offsets = [0, 32], sizes = [1, 32], strides = [1, 1]} : vector<1x96xf32> to vector<1x32xf32>
    %582 = vector.extract_strided_slice %572 {offsets = [0, 32], sizes = [1, 32], strides = [1, 1]} : vector<1x96xf32> to vector<1x32xf32>
    %583 = arith.addf %581, %582 : vector<1x32xf32>
    %584 = arith.negf %583 : vector<1x32xf32>
    %585 = math.exp %584 : vector<1x32xf32>
    %cst_135 = arith.constant 1.000000e+00 : f32
    %586 = vector.broadcast %cst_135 : f32 to vector<1x32xf32>
    %587 = arith.addf %586, %585 : vector<1x32xf32>
    %588 = arith.divf %586, %587 : vector<1x32xf32>
    %589 = vector.extract_strided_slice %571 {offsets = [0, 64], sizes = [1, 32], strides = [1, 1]} : vector<1x96xf32> to vector<1x32xf32>
    %590 = vector.extract_strided_slice %572 {offsets = [0, 64], sizes = [1, 32], strides = [1, 1]} : vector<1x96xf32> to vector<1x32xf32>
    %591 = arith.mulf %580, %590 : vector<1x32xf32>
    %592 = arith.addf %589, %591 : vector<1x32xf32>
    %593 = math.tanh %592 : vector<1x32xf32>
    %cst_136 = arith.constant 1.000000e+00 : f32
    %594 = vector.broadcast %cst_136 : f32 to vector<1x32xf32>
    %595 = arith.subf %594, %588 : vector<1x32xf32>
    %596 = arith.mulf %595, %593 : vector<1x32xf32>
    %597 = arith.mulf %588, %536 : vector<1x32xf32>
    %598 = arith.addf %596, %597 : vector<1x32xf32>
    %599 = tpu.concatenate %570, %598 in 1 : vector<1x32xf32>, vector<1x32xf32> -> vector<1x64xf32>
    %c1_137 = arith.constant 1 : index
    %c0_138 = arith.constant 0 : index
    %c0_139 = arith.constant 0 : index
    %600 = vector.load %arg3[%c1_137, %c0_138, %c0_139] : memref<2x64x192xf32, #tpu.memory_space<vmem>>, vector<1x64x192xf32>
    %601 = vector.shape_cast %600 : vector<1x64x192xf32> to vector<64x192xf32>
    %cst_140 = arith.constant dense<0.000000e+00> : vector<1x192xf32>
    %602 = tpu.matmul %599, %601, %cst_140 {dimension_numbers = #tpu.dot_dimension_numbers<[1], [0], [0], [1], [0, 0, 1, 1], [], []>} : vector<1x64xf32>, vector<64x192xf32>, vector<1x192xf32> -> vector<1x192xf32>
    %c1_141 = arith.constant 1 : index
    %c0_142 = arith.constant 0 : index
    %603 = vector.load %arg5[%c1_141, %c0_142] : memref<2x192xf32, #tpu.memory_space<vmem>>, vector<1x192xf32>
    %604 = arith.addf %602, %603 : vector<1x192xf32>
    %605 = vector.extract_strided_slice %528 {offsets = [1, 0], sizes = [1, 96], strides = [1, 1]} : vector<8x96xf32> to vector<1x96xf32>
    %606 = vector.extract_strided_slice %604 {offsets = [0, 0], sizes = [1, 96], strides = [1, 1]} : vector<1x192xf32> to vector<1x96xf32>
    %607 = vector.extract_strided_slice %605 {offsets = [0, 0], sizes = [1, 32], strides = [1, 1]} : vector<1x96xf32> to vector<1x32xf32>
    %608 = vector.extract_strided_slice %606 {offsets = [0, 0], sizes = [1, 32], strides = [1, 1]} : vector<1x96xf32> to vector<1x32xf32>
    %609 = arith.addf %607, %608 : vector<1x32xf32>
    %610 = arith.negf %609 : vector<1x32xf32>
    %611 = math.exp %610 : vector<1x32xf32>
    %cst_143 = arith.constant 1.000000e+00 : f32
    %612 = vector.broadcast %cst_143 : f32 to vector<1x32xf32>
    %613 = arith.addf %612, %611 : vector<1x32xf32>
    %614 = arith.divf %612, %613 : vector<1x32xf32>
    %615 = vector.extract_strided_slice %605 {offsets = [0, 32], sizes = [1, 32], strides = [1, 1]} : vector<1x96xf32> to vector<1x32xf32>
    %616 = vector.extract_strided_slice %606 {offsets = [0, 32], sizes = [1, 32], strides = [1, 1]} : vector<1x96xf32> to vector<1x32xf32>
    %617 = arith.addf %615, %616 : vector<1x32xf32>
    %618 = arith.negf %617 : vector<1x32xf32>
    %619 = math.exp %618 : vector<1x32xf32>
    %cst_144 = arith.constant 1.000000e+00 : f32
    %620 = vector.broadcast %cst_144 : f32 to vector<1x32xf32>
    %621 = arith.addf %620, %619 : vector<1x32xf32>
    %622 = arith.divf %620, %621 : vector<1x32xf32>
    %623 = vector.extract_strided_slice %605 {offsets = [0, 64], sizes = [1, 32], strides = [1, 1]} : vector<1x96xf32> to vector<1x32xf32>
    %624 = vector.extract_strided_slice %606 {offsets = [0, 64], sizes = [1, 32], strides = [1, 1]} : vector<1x96xf32> to vector<1x32xf32>
    %625 = arith.mulf %614, %624 : vector<1x32xf32>
    %626 = arith.addf %623, %625 : vector<1x32xf32>
    %627 = math.tanh %626 : vector<1x32xf32>
    %cst_145 = arith.constant 1.000000e+00 : f32
    %628 = vector.broadcast %cst_145 : f32 to vector<1x32xf32>
    %629 = arith.subf %628, %622 : vector<1x32xf32>
    %630 = arith.mulf %629, %627 : vector<1x32xf32>
    %631 = arith.mulf %622, %570 : vector<1x32xf32>
    %632 = arith.addf %630, %631 : vector<1x32xf32>
    %633 = vector.extract_strided_slice %534 {offsets = [6, 0], sizes = [1, 96], strides = [1, 1]} : vector<8x96xf32> to vector<1x96xf32>
    %634 = vector.extract_strided_slice %604 {offsets = [0, 96], sizes = [1, 96], strides = [1, 1]} : vector<1x192xf32> to vector<1x96xf32>
    %635 = vector.extract_strided_slice %633 {offsets = [0, 0], sizes = [1, 32], strides = [1, 1]} : vector<1x96xf32> to vector<1x32xf32>
    %636 = vector.extract_strided_slice %634 {offsets = [0, 0], sizes = [1, 32], strides = [1, 1]} : vector<1x96xf32> to vector<1x32xf32>
    %637 = arith.addf %635, %636 : vector<1x32xf32>
    %638 = arith.negf %637 : vector<1x32xf32>
    %639 = math.exp %638 : vector<1x32xf32>
    %cst_146 = arith.constant 1.000000e+00 : f32
    %640 = vector.broadcast %cst_146 : f32 to vector<1x32xf32>
    %641 = arith.addf %640, %639 : vector<1x32xf32>
    %642 = arith.divf %640, %641 : vector<1x32xf32>
    %643 = vector.extract_strided_slice %633 {offsets = [0, 32], sizes = [1, 32], strides = [1, 1]} : vector<1x96xf32> to vector<1x32xf32>
    %644 = vector.extract_strided_slice %634 {offsets = [0, 32], sizes = [1, 32], strides = [1, 1]} : vector<1x96xf32> to vector<1x32xf32>
    %645 = arith.addf %643, %644 : vector<1x32xf32>
    %646 = arith.negf %645 : vector<1x32xf32>
    %647 = math.exp %646 : vector<1x32xf32>
    %cst_147 = arith.constant 1.000000e+00 : f32
    %648 = vector.broadcast %cst_147 : f32 to vector<1x32xf32>
    %649 = arith.addf %648, %647 : vector<1x32xf32>
    %650 = arith.divf %648, %649 : vector<1x32xf32>
    %651 = vector.extract_strided_slice %633 {offsets = [0, 64], sizes = [1, 32], strides = [1, 1]} : vector<1x96xf32> to vector<1x32xf32>
    %652 = vector.extract_strided_slice %634 {offsets = [0, 64], sizes = [1, 32], strides = [1, 1]} : vector<1x96xf32> to vector<1x32xf32>
    %653 = arith.mulf %642, %652 : vector<1x32xf32>
    %654 = arith.addf %651, %653 : vector<1x32xf32>
    %655 = math.tanh %654 : vector<1x32xf32>
    %cst_148 = arith.constant 1.000000e+00 : f32
    %656 = vector.broadcast %cst_148 : f32 to vector<1x32xf32>
    %657 = arith.subf %656, %650 : vector<1x32xf32>
    %658 = arith.mulf %657, %655 : vector<1x32xf32>
    %659 = arith.mulf %650, %598 : vector<1x32xf32>
    %660 = arith.addf %658, %659 : vector<1x32xf32>
    %661 = tpu.concatenate %632, %660 in 1 : vector<1x32xf32>, vector<1x32xf32> -> vector<1x64xf32>
    %c1_149 = arith.constant 1 : index
    %c0_150 = arith.constant 0 : index
    %c0_151 = arith.constant 0 : index
    %662 = vector.load %arg3[%c1_149, %c0_150, %c0_151] : memref<2x64x192xf32, #tpu.memory_space<vmem>>, vector<1x64x192xf32>
    %663 = vector.shape_cast %662 : vector<1x64x192xf32> to vector<64x192xf32>
    %cst_152 = arith.constant dense<0.000000e+00> : vector<1x192xf32>
    %664 = tpu.matmul %661, %663, %cst_152 {dimension_numbers = #tpu.dot_dimension_numbers<[1], [0], [0], [1], [0, 0, 1, 1], [], []>} : vector<1x64xf32>, vector<64x192xf32>, vector<1x192xf32> -> vector<1x192xf32>
    %c1_153 = arith.constant 1 : index
    %c0_154 = arith.constant 0 : index
    %665 = vector.load %arg5[%c1_153, %c0_154] : memref<2x192xf32, #tpu.memory_space<vmem>>, vector<1x192xf32>
    %666 = arith.addf %664, %665 : vector<1x192xf32>
    %667 = vector.extract_strided_slice %528 {offsets = [2, 0], sizes = [1, 96], strides = [1, 1]} : vector<8x96xf32> to vector<1x96xf32>
    %668 = vector.extract_strided_slice %666 {offsets = [0, 0], sizes = [1, 96], strides = [1, 1]} : vector<1x192xf32> to vector<1x96xf32>
    %669 = vector.extract_strided_slice %667 {offsets = [0, 0], sizes = [1, 32], strides = [1, 1]} : vector<1x96xf32> to vector<1x32xf32>
    %670 = vector.extract_strided_slice %668 {offsets = [0, 0], sizes = [1, 32], strides = [1, 1]} : vector<1x96xf32> to vector<1x32xf32>
    %671 = arith.addf %669, %670 : vector<1x32xf32>
    %672 = arith.negf %671 : vector<1x32xf32>
    %673 = math.exp %672 : vector<1x32xf32>
    %cst_155 = arith.constant 1.000000e+00 : f32
    %674 = vector.broadcast %cst_155 : f32 to vector<1x32xf32>
    %675 = arith.addf %674, %673 : vector<1x32xf32>
    %676 = arith.divf %674, %675 : vector<1x32xf32>
    %677 = vector.extract_strided_slice %667 {offsets = [0, 32], sizes = [1, 32], strides = [1, 1]} : vector<1x96xf32> to vector<1x32xf32>
    %678 = vector.extract_strided_slice %668 {offsets = [0, 32], sizes = [1, 32], strides = [1, 1]} : vector<1x96xf32> to vector<1x32xf32>
    %679 = arith.addf %677, %678 : vector<1x32xf32>
    %680 = arith.negf %679 : vector<1x32xf32>
    %681 = math.exp %680 : vector<1x32xf32>
    %cst_156 = arith.constant 1.000000e+00 : f32
    %682 = vector.broadcast %cst_156 : f32 to vector<1x32xf32>
    %683 = arith.addf %682, %681 : vector<1x32xf32>
    %684 = arith.divf %682, %683 : vector<1x32xf32>
    %685 = vector.extract_strided_slice %667 {offsets = [0, 64], sizes = [1, 32], strides = [1, 1]} : vector<1x96xf32> to vector<1x32xf32>
    %686 = vector.extract_strided_slice %668 {offsets = [0, 64], sizes = [1, 32], strides = [1, 1]} : vector<1x96xf32> to vector<1x32xf32>
    %687 = arith.mulf %676, %686 : vector<1x32xf32>
    %688 = arith.addf %685, %687 : vector<1x32xf32>
    %689 = math.tanh %688 : vector<1x32xf32>
    %cst_157 = arith.constant 1.000000e+00 : f32
    %690 = vector.broadcast %cst_157 : f32 to vector<1x32xf32>
    %691 = arith.subf %690, %684 : vector<1x32xf32>
    %692 = arith.mulf %691, %689 : vector<1x32xf32>
    %693 = arith.mulf %684, %632 : vector<1x32xf32>
    %694 = arith.addf %692, %693 : vector<1x32xf32>
    %695 = vector.extract_strided_slice %534 {offsets = [5, 0], sizes = [1, 96], strides = [1, 1]} : vector<8x96xf32> to vector<1x96xf32>
    %696 = vector.extract_strided_slice %666 {offsets = [0, 96], sizes = [1, 96], strides = [1, 1]} : vector<1x192xf32> to vector<1x96xf32>
    %697 = vector.extract_strided_slice %695 {offsets = [0, 0], sizes = [1, 32], strides = [1, 1]} : vector<1x96xf32> to vector<1x32xf32>
    %698 = vector.extract_strided_slice %696 {offsets = [0, 0], sizes = [1, 32], strides = [1, 1]} : vector<1x96xf32> to vector<1x32xf32>
    %699 = arith.addf %697, %698 : vector<1x32xf32>
    %700 = arith.negf %699 : vector<1x32xf32>
    %701 = math.exp %700 : vector<1x32xf32>
    %cst_158 = arith.constant 1.000000e+00 : f32
    %702 = vector.broadcast %cst_158 : f32 to vector<1x32xf32>
    %703 = arith.addf %702, %701 : vector<1x32xf32>
    %704 = arith.divf %702, %703 : vector<1x32xf32>
    %705 = vector.extract_strided_slice %695 {offsets = [0, 32], sizes = [1, 32], strides = [1, 1]} : vector<1x96xf32> to vector<1x32xf32>
    %706 = vector.extract_strided_slice %696 {offsets = [0, 32], sizes = [1, 32], strides = [1, 1]} : vector<1x96xf32> to vector<1x32xf32>
    %707 = arith.addf %705, %706 : vector<1x32xf32>
    %708 = arith.negf %707 : vector<1x32xf32>
    %709 = math.exp %708 : vector<1x32xf32>
    %cst_159 = arith.constant 1.000000e+00 : f32
    %710 = vector.broadcast %cst_159 : f32 to vector<1x32xf32>
    %711 = arith.addf %710, %709 : vector<1x32xf32>
    %712 = arith.divf %710, %711 : vector<1x32xf32>
    %713 = vector.extract_strided_slice %695 {offsets = [0, 64], sizes = [1, 32], strides = [1, 1]} : vector<1x96xf32> to vector<1x32xf32>
    %714 = vector.extract_strided_slice %696 {offsets = [0, 64], sizes = [1, 32], strides = [1, 1]} : vector<1x96xf32> to vector<1x32xf32>
    %715 = arith.mulf %704, %714 : vector<1x32xf32>
    %716 = arith.addf %713, %715 : vector<1x32xf32>
    %717 = math.tanh %716 : vector<1x32xf32>
    %cst_160 = arith.constant 1.000000e+00 : f32
    %718 = vector.broadcast %cst_160 : f32 to vector<1x32xf32>
    %719 = arith.subf %718, %712 : vector<1x32xf32>
    %720 = arith.mulf %719, %717 : vector<1x32xf32>
    %721 = arith.mulf %712, %660 : vector<1x32xf32>
    %722 = arith.addf %720, %721 : vector<1x32xf32>
    %723 = tpu.concatenate %694, %722 in 1 : vector<1x32xf32>, vector<1x32xf32> -> vector<1x64xf32>
    %c1_161 = arith.constant 1 : index
    %c0_162 = arith.constant 0 : index
    %c0_163 = arith.constant 0 : index
    %724 = vector.load %arg3[%c1_161, %c0_162, %c0_163] : memref<2x64x192xf32, #tpu.memory_space<vmem>>, vector<1x64x192xf32>
    %725 = vector.shape_cast %724 : vector<1x64x192xf32> to vector<64x192xf32>
    %cst_164 = arith.constant dense<0.000000e+00> : vector<1x192xf32>
    %726 = tpu.matmul %723, %725, %cst_164 {dimension_numbers = #tpu.dot_dimension_numbers<[1], [0], [0], [1], [0, 0, 1, 1], [], []>} : vector<1x64xf32>, vector<64x192xf32>, vector<1x192xf32> -> vector<1x192xf32>
    %c1_165 = arith.constant 1 : index
    %c0_166 = arith.constant 0 : index
    %727 = vector.load %arg5[%c1_165, %c0_166] : memref<2x192xf32, #tpu.memory_space<vmem>>, vector<1x192xf32>
    %728 = arith.addf %726, %727 : vector<1x192xf32>
    %729 = vector.extract_strided_slice %528 {offsets = [3, 0], sizes = [1, 96], strides = [1, 1]} : vector<8x96xf32> to vector<1x96xf32>
    %730 = vector.extract_strided_slice %728 {offsets = [0, 0], sizes = [1, 96], strides = [1, 1]} : vector<1x192xf32> to vector<1x96xf32>
    %731 = vector.extract_strided_slice %729 {offsets = [0, 0], sizes = [1, 32], strides = [1, 1]} : vector<1x96xf32> to vector<1x32xf32>
    %732 = vector.extract_strided_slice %730 {offsets = [0, 0], sizes = [1, 32], strides = [1, 1]} : vector<1x96xf32> to vector<1x32xf32>
    %733 = arith.addf %731, %732 : vector<1x32xf32>
    %734 = arith.negf %733 : vector<1x32xf32>
    %735 = math.exp %734 : vector<1x32xf32>
    %cst_167 = arith.constant 1.000000e+00 : f32
    %736 = vector.broadcast %cst_167 : f32 to vector<1x32xf32>
    %737 = arith.addf %736, %735 : vector<1x32xf32>
    %738 = arith.divf %736, %737 : vector<1x32xf32>
    %739 = vector.extract_strided_slice %729 {offsets = [0, 32], sizes = [1, 32], strides = [1, 1]} : vector<1x96xf32> to vector<1x32xf32>
    %740 = vector.extract_strided_slice %730 {offsets = [0, 32], sizes = [1, 32], strides = [1, 1]} : vector<1x96xf32> to vector<1x32xf32>
    %741 = arith.addf %739, %740 : vector<1x32xf32>
    %742 = arith.negf %741 : vector<1x32xf32>
    %743 = math.exp %742 : vector<1x32xf32>
    %cst_168 = arith.constant 1.000000e+00 : f32
    %744 = vector.broadcast %cst_168 : f32 to vector<1x32xf32>
    %745 = arith.addf %744, %743 : vector<1x32xf32>
    %746 = arith.divf %744, %745 : vector<1x32xf32>
    %747 = vector.extract_strided_slice %729 {offsets = [0, 64], sizes = [1, 32], strides = [1, 1]} : vector<1x96xf32> to vector<1x32xf32>
    %748 = vector.extract_strided_slice %730 {offsets = [0, 64], sizes = [1, 32], strides = [1, 1]} : vector<1x96xf32> to vector<1x32xf32>
    %749 = arith.mulf %738, %748 : vector<1x32xf32>
    %750 = arith.addf %747, %749 : vector<1x32xf32>
    %751 = math.tanh %750 : vector<1x32xf32>
    %cst_169 = arith.constant 1.000000e+00 : f32
    %752 = vector.broadcast %cst_169 : f32 to vector<1x32xf32>
    %753 = arith.subf %752, %746 : vector<1x32xf32>
    %754 = arith.mulf %753, %751 : vector<1x32xf32>
    %755 = arith.mulf %746, %694 : vector<1x32xf32>
    %756 = arith.addf %754, %755 : vector<1x32xf32>
    %757 = vector.extract_strided_slice %534 {offsets = [4, 0], sizes = [1, 96], strides = [1, 1]} : vector<8x96xf32> to vector<1x96xf32>
    %758 = vector.extract_strided_slice %728 {offsets = [0, 96], sizes = [1, 96], strides = [1, 1]} : vector<1x192xf32> to vector<1x96xf32>
    %759 = vector.extract_strided_slice %757 {offsets = [0, 0], sizes = [1, 32], strides = [1, 1]} : vector<1x96xf32> to vector<1x32xf32>
    %760 = vector.extract_strided_slice %758 {offsets = [0, 0], sizes = [1, 32], strides = [1, 1]} : vector<1x96xf32> to vector<1x32xf32>
    %761 = arith.addf %759, %760 : vector<1x32xf32>
    %762 = arith.negf %761 : vector<1x32xf32>
    %763 = math.exp %762 : vector<1x32xf32>
    %cst_170 = arith.constant 1.000000e+00 : f32
    %764 = vector.broadcast %cst_170 : f32 to vector<1x32xf32>
    %765 = arith.addf %764, %763 : vector<1x32xf32>
    %766 = arith.divf %764, %765 : vector<1x32xf32>
    %767 = vector.extract_strided_slice %757 {offsets = [0, 32], sizes = [1, 32], strides = [1, 1]} : vector<1x96xf32> to vector<1x32xf32>
    %768 = vector.extract_strided_slice %758 {offsets = [0, 32], sizes = [1, 32], strides = [1, 1]} : vector<1x96xf32> to vector<1x32xf32>
    %769 = arith.addf %767, %768 : vector<1x32xf32>
    %770 = arith.negf %769 : vector<1x32xf32>
    %771 = math.exp %770 : vector<1x32xf32>
    %cst_171 = arith.constant 1.000000e+00 : f32
    %772 = vector.broadcast %cst_171 : f32 to vector<1x32xf32>
    %773 = arith.addf %772, %771 : vector<1x32xf32>
    %774 = arith.divf %772, %773 : vector<1x32xf32>
    %775 = vector.extract_strided_slice %757 {offsets = [0, 64], sizes = [1, 32], strides = [1, 1]} : vector<1x96xf32> to vector<1x32xf32>
    %776 = vector.extract_strided_slice %758 {offsets = [0, 64], sizes = [1, 32], strides = [1, 1]} : vector<1x96xf32> to vector<1x32xf32>
    %777 = arith.mulf %766, %776 : vector<1x32xf32>
    %778 = arith.addf %775, %777 : vector<1x32xf32>
    %779 = math.tanh %778 : vector<1x32xf32>
    %cst_172 = arith.constant 1.000000e+00 : f32
    %780 = vector.broadcast %cst_172 : f32 to vector<1x32xf32>
    %781 = arith.subf %780, %774 : vector<1x32xf32>
    %782 = arith.mulf %781, %779 : vector<1x32xf32>
    %783 = arith.mulf %774, %722 : vector<1x32xf32>
    %784 = arith.addf %782, %783 : vector<1x32xf32>
    %785 = tpu.concatenate %756, %784 in 1 : vector<1x32xf32>, vector<1x32xf32> -> vector<1x64xf32>
    %c1_173 = arith.constant 1 : index
    %c0_174 = arith.constant 0 : index
    %c0_175 = arith.constant 0 : index
    %786 = vector.load %arg3[%c1_173, %c0_174, %c0_175] : memref<2x64x192xf32, #tpu.memory_space<vmem>>, vector<1x64x192xf32>
    %787 = vector.shape_cast %786 : vector<1x64x192xf32> to vector<64x192xf32>
    %cst_176 = arith.constant dense<0.000000e+00> : vector<1x192xf32>
    %788 = tpu.matmul %785, %787, %cst_176 {dimension_numbers = #tpu.dot_dimension_numbers<[1], [0], [0], [1], [0, 0, 1, 1], [], []>} : vector<1x64xf32>, vector<64x192xf32>, vector<1x192xf32> -> vector<1x192xf32>
    %c1_177 = arith.constant 1 : index
    %c0_178 = arith.constant 0 : index
    %789 = vector.load %arg5[%c1_177, %c0_178] : memref<2x192xf32, #tpu.memory_space<vmem>>, vector<1x192xf32>
    %790 = arith.addf %788, %789 : vector<1x192xf32>
    %791 = vector.extract_strided_slice %528 {offsets = [4, 0], sizes = [1, 96], strides = [1, 1]} : vector<8x96xf32> to vector<1x96xf32>
    %792 = vector.extract_strided_slice %790 {offsets = [0, 0], sizes = [1, 96], strides = [1, 1]} : vector<1x192xf32> to vector<1x96xf32>
    %793 = vector.extract_strided_slice %791 {offsets = [0, 0], sizes = [1, 32], strides = [1, 1]} : vector<1x96xf32> to vector<1x32xf32>
    %794 = vector.extract_strided_slice %792 {offsets = [0, 0], sizes = [1, 32], strides = [1, 1]} : vector<1x96xf32> to vector<1x32xf32>
    %795 = arith.addf %793, %794 : vector<1x32xf32>
    %796 = arith.negf %795 : vector<1x32xf32>
    %797 = math.exp %796 : vector<1x32xf32>
    %cst_179 = arith.constant 1.000000e+00 : f32
    %798 = vector.broadcast %cst_179 : f32 to vector<1x32xf32>
    %799 = arith.addf %798, %797 : vector<1x32xf32>
    %800 = arith.divf %798, %799 : vector<1x32xf32>
    %801 = vector.extract_strided_slice %791 {offsets = [0, 32], sizes = [1, 32], strides = [1, 1]} : vector<1x96xf32> to vector<1x32xf32>
    %802 = vector.extract_strided_slice %792 {offsets = [0, 32], sizes = [1, 32], strides = [1, 1]} : vector<1x96xf32> to vector<1x32xf32>
    %803 = arith.addf %801, %802 : vector<1x32xf32>
    %804 = arith.negf %803 : vector<1x32xf32>
    %805 = math.exp %804 : vector<1x32xf32>
    %cst_180 = arith.constant 1.000000e+00 : f32
    %806 = vector.broadcast %cst_180 : f32 to vector<1x32xf32>
    %807 = arith.addf %806, %805 : vector<1x32xf32>
    %808 = arith.divf %806, %807 : vector<1x32xf32>
    %809 = vector.extract_strided_slice %791 {offsets = [0, 64], sizes = [1, 32], strides = [1, 1]} : vector<1x96xf32> to vector<1x32xf32>
    %810 = vector.extract_strided_slice %792 {offsets = [0, 64], sizes = [1, 32], strides = [1, 1]} : vector<1x96xf32> to vector<1x32xf32>
    %811 = arith.mulf %800, %810 : vector<1x32xf32>
    %812 = arith.addf %809, %811 : vector<1x32xf32>
    %813 = math.tanh %812 : vector<1x32xf32>
    %cst_181 = arith.constant 1.000000e+00 : f32
    %814 = vector.broadcast %cst_181 : f32 to vector<1x32xf32>
    %815 = arith.subf %814, %808 : vector<1x32xf32>
    %816 = arith.mulf %815, %813 : vector<1x32xf32>
    %817 = arith.mulf %808, %756 : vector<1x32xf32>
    %818 = arith.addf %816, %817 : vector<1x32xf32>
    %819 = vector.extract_strided_slice %534 {offsets = [3, 0], sizes = [1, 96], strides = [1, 1]} : vector<8x96xf32> to vector<1x96xf32>
    %820 = vector.extract_strided_slice %790 {offsets = [0, 96], sizes = [1, 96], strides = [1, 1]} : vector<1x192xf32> to vector<1x96xf32>
    %821 = vector.extract_strided_slice %819 {offsets = [0, 0], sizes = [1, 32], strides = [1, 1]} : vector<1x96xf32> to vector<1x32xf32>
    %822 = vector.extract_strided_slice %820 {offsets = [0, 0], sizes = [1, 32], strides = [1, 1]} : vector<1x96xf32> to vector<1x32xf32>
    %823 = arith.addf %821, %822 : vector<1x32xf32>
    %824 = arith.negf %823 : vector<1x32xf32>
    %825 = math.exp %824 : vector<1x32xf32>
    %cst_182 = arith.constant 1.000000e+00 : f32
    %826 = vector.broadcast %cst_182 : f32 to vector<1x32xf32>
    %827 = arith.addf %826, %825 : vector<1x32xf32>
    %828 = arith.divf %826, %827 : vector<1x32xf32>
    %829 = vector.extract_strided_slice %819 {offsets = [0, 32], sizes = [1, 32], strides = [1, 1]} : vector<1x96xf32> to vector<1x32xf32>
    %830 = vector.extract_strided_slice %820 {offsets = [0, 32], sizes = [1, 32], strides = [1, 1]} : vector<1x96xf32> to vector<1x32xf32>
    %831 = arith.addf %829, %830 : vector<1x32xf32>
    %832 = arith.negf %831 : vector<1x32xf32>
    %833 = math.exp %832 : vector<1x32xf32>
    %cst_183 = arith.constant 1.000000e+00 : f32
    %834 = vector.broadcast %cst_183 : f32 to vector<1x32xf32>
    %835 = arith.addf %834, %833 : vector<1x32xf32>
    %836 = arith.divf %834, %835 : vector<1x32xf32>
    %837 = vector.extract_strided_slice %819 {offsets = [0, 64], sizes = [1, 32], strides = [1, 1]} : vector<1x96xf32> to vector<1x32xf32>
    %838 = vector.extract_strided_slice %820 {offsets = [0, 64], sizes = [1, 32], strides = [1, 1]} : vector<1x96xf32> to vector<1x32xf32>
    %839 = arith.mulf %828, %838 : vector<1x32xf32>
    %840 = arith.addf %837, %839 : vector<1x32xf32>
    %841 = math.tanh %840 : vector<1x32xf32>
    %cst_184 = arith.constant 1.000000e+00 : f32
    %842 = vector.broadcast %cst_184 : f32 to vector<1x32xf32>
    %843 = arith.subf %842, %836 : vector<1x32xf32>
    %844 = arith.mulf %843, %841 : vector<1x32xf32>
    %845 = arith.mulf %836, %784 : vector<1x32xf32>
    %846 = arith.addf %844, %845 : vector<1x32xf32>
    %847 = tpu.concatenate %818, %846 in 1 : vector<1x32xf32>, vector<1x32xf32> -> vector<1x64xf32>
    %c1_185 = arith.constant 1 : index
    %c0_186 = arith.constant 0 : index
    %c0_187 = arith.constant 0 : index
    %848 = vector.load %arg3[%c1_185, %c0_186, %c0_187] : memref<2x64x192xf32, #tpu.memory_space<vmem>>, vector<1x64x192xf32>
    %849 = vector.shape_cast %848 : vector<1x64x192xf32> to vector<64x192xf32>
    %cst_188 = arith.constant dense<0.000000e+00> : vector<1x192xf32>
    %850 = tpu.matmul %847, %849, %cst_188 {dimension_numbers = #tpu.dot_dimension_numbers<[1], [0], [0], [1], [0, 0, 1, 1], [], []>} : vector<1x64xf32>, vector<64x192xf32>, vector<1x192xf32> -> vector<1x192xf32>
    %c1_189 = arith.constant 1 : index
    %c0_190 = arith.constant 0 : index
    %851 = vector.load %arg5[%c1_189, %c0_190] : memref<2x192xf32, #tpu.memory_space<vmem>>, vector<1x192xf32>
    %852 = arith.addf %850, %851 : vector<1x192xf32>
    %853 = vector.extract_strided_slice %528 {offsets = [5, 0], sizes = [1, 96], strides = [1, 1]} : vector<8x96xf32> to vector<1x96xf32>
    %854 = vector.extract_strided_slice %852 {offsets = [0, 0], sizes = [1, 96], strides = [1, 1]} : vector<1x192xf32> to vector<1x96xf32>
    %855 = vector.extract_strided_slice %853 {offsets = [0, 0], sizes = [1, 32], strides = [1, 1]} : vector<1x96xf32> to vector<1x32xf32>
    %856 = vector.extract_strided_slice %854 {offsets = [0, 0], sizes = [1, 32], strides = [1, 1]} : vector<1x96xf32> to vector<1x32xf32>
    %857 = arith.addf %855, %856 : vector<1x32xf32>
    %858 = arith.negf %857 : vector<1x32xf32>
    %859 = math.exp %858 : vector<1x32xf32>
    %cst_191 = arith.constant 1.000000e+00 : f32
    %860 = vector.broadcast %cst_191 : f32 to vector<1x32xf32>
    %861 = arith.addf %860, %859 : vector<1x32xf32>
    %862 = arith.divf %860, %861 : vector<1x32xf32>
    %863 = vector.extract_strided_slice %853 {offsets = [0, 32], sizes = [1, 32], strides = [1, 1]} : vector<1x96xf32> to vector<1x32xf32>
    %864 = vector.extract_strided_slice %854 {offsets = [0, 32], sizes = [1, 32], strides = [1, 1]} : vector<1x96xf32> to vector<1x32xf32>
    %865 = arith.addf %863, %864 : vector<1x32xf32>
    %866 = arith.negf %865 : vector<1x32xf32>
    %867 = math.exp %866 : vector<1x32xf32>
    %cst_192 = arith.constant 1.000000e+00 : f32
    %868 = vector.broadcast %cst_192 : f32 to vector<1x32xf32>
    %869 = arith.addf %868, %867 : vector<1x32xf32>
    %870 = arith.divf %868, %869 : vector<1x32xf32>
    %871 = vector.extract_strided_slice %853 {offsets = [0, 64], sizes = [1, 32], strides = [1, 1]} : vector<1x96xf32> to vector<1x32xf32>
    %872 = vector.extract_strided_slice %854 {offsets = [0, 64], sizes = [1, 32], strides = [1, 1]} : vector<1x96xf32> to vector<1x32xf32>
    %873 = arith.mulf %862, %872 : vector<1x32xf32>
    %874 = arith.addf %871, %873 : vector<1x32xf32>
    %875 = math.tanh %874 : vector<1x32xf32>
    %cst_193 = arith.constant 1.000000e+00 : f32
    %876 = vector.broadcast %cst_193 : f32 to vector<1x32xf32>
    %877 = arith.subf %876, %870 : vector<1x32xf32>
    %878 = arith.mulf %877, %875 : vector<1x32xf32>
    %879 = arith.mulf %870, %818 : vector<1x32xf32>
    %880 = arith.addf %878, %879 : vector<1x32xf32>
    %881 = vector.extract_strided_slice %534 {offsets = [2, 0], sizes = [1, 96], strides = [1, 1]} : vector<8x96xf32> to vector<1x96xf32>
    %882 = vector.extract_strided_slice %852 {offsets = [0, 96], sizes = [1, 96], strides = [1, 1]} : vector<1x192xf32> to vector<1x96xf32>
    %883 = vector.extract_strided_slice %881 {offsets = [0, 0], sizes = [1, 32], strides = [1, 1]} : vector<1x96xf32> to vector<1x32xf32>
    %884 = vector.extract_strided_slice %882 {offsets = [0, 0], sizes = [1, 32], strides = [1, 1]} : vector<1x96xf32> to vector<1x32xf32>
    %885 = arith.addf %883, %884 : vector<1x32xf32>
    %886 = arith.negf %885 : vector<1x32xf32>
    %887 = math.exp %886 : vector<1x32xf32>
    %cst_194 = arith.constant 1.000000e+00 : f32
    %888 = vector.broadcast %cst_194 : f32 to vector<1x32xf32>
    %889 = arith.addf %888, %887 : vector<1x32xf32>
    %890 = arith.divf %888, %889 : vector<1x32xf32>
    %891 = vector.extract_strided_slice %881 {offsets = [0, 32], sizes = [1, 32], strides = [1, 1]} : vector<1x96xf32> to vector<1x32xf32>
    %892 = vector.extract_strided_slice %882 {offsets = [0, 32], sizes = [1, 32], strides = [1, 1]} : vector<1x96xf32> to vector<1x32xf32>
    %893 = arith.addf %891, %892 : vector<1x32xf32>
    %894 = arith.negf %893 : vector<1x32xf32>
    %895 = math.exp %894 : vector<1x32xf32>
    %cst_195 = arith.constant 1.000000e+00 : f32
    %896 = vector.broadcast %cst_195 : f32 to vector<1x32xf32>
    %897 = arith.addf %896, %895 : vector<1x32xf32>
    %898 = arith.divf %896, %897 : vector<1x32xf32>
    %899 = vector.extract_strided_slice %881 {offsets = [0, 64], sizes = [1, 32], strides = [1, 1]} : vector<1x96xf32> to vector<1x32xf32>
    %900 = vector.extract_strided_slice %882 {offsets = [0, 64], sizes = [1, 32], strides = [1, 1]} : vector<1x96xf32> to vector<1x32xf32>
    %901 = arith.mulf %890, %900 : vector<1x32xf32>
    %902 = arith.addf %899, %901 : vector<1x32xf32>
    %903 = math.tanh %902 : vector<1x32xf32>
    %cst_196 = arith.constant 1.000000e+00 : f32
    %904 = vector.broadcast %cst_196 : f32 to vector<1x32xf32>
    %905 = arith.subf %904, %898 : vector<1x32xf32>
    %906 = arith.mulf %905, %903 : vector<1x32xf32>
    %907 = arith.mulf %898, %846 : vector<1x32xf32>
    %908 = arith.addf %906, %907 : vector<1x32xf32>
    %909 = tpu.concatenate %880, %908 in 1 : vector<1x32xf32>, vector<1x32xf32> -> vector<1x64xf32>
    %c1_197 = arith.constant 1 : index
    %c0_198 = arith.constant 0 : index
    %c0_199 = arith.constant 0 : index
    %910 = vector.load %arg3[%c1_197, %c0_198, %c0_199] : memref<2x64x192xf32, #tpu.memory_space<vmem>>, vector<1x64x192xf32>
    %911 = vector.shape_cast %910 : vector<1x64x192xf32> to vector<64x192xf32>
    %cst_200 = arith.constant dense<0.000000e+00> : vector<1x192xf32>
    %912 = tpu.matmul %909, %911, %cst_200 {dimension_numbers = #tpu.dot_dimension_numbers<[1], [0], [0], [1], [0, 0, 1, 1], [], []>} : vector<1x64xf32>, vector<64x192xf32>, vector<1x192xf32> -> vector<1x192xf32>
    %c1_201 = arith.constant 1 : index
    %c0_202 = arith.constant 0 : index
    %913 = vector.load %arg5[%c1_201, %c0_202] : memref<2x192xf32, #tpu.memory_space<vmem>>, vector<1x192xf32>
    %914 = arith.addf %912, %913 : vector<1x192xf32>
    %915 = vector.extract_strided_slice %528 {offsets = [6, 0], sizes = [1, 96], strides = [1, 1]} : vector<8x96xf32> to vector<1x96xf32>
    %916 = vector.extract_strided_slice %914 {offsets = [0, 0], sizes = [1, 96], strides = [1, 1]} : vector<1x192xf32> to vector<1x96xf32>
    %917 = vector.extract_strided_slice %915 {offsets = [0, 0], sizes = [1, 32], strides = [1, 1]} : vector<1x96xf32> to vector<1x32xf32>
    %918 = vector.extract_strided_slice %916 {offsets = [0, 0], sizes = [1, 32], strides = [1, 1]} : vector<1x96xf32> to vector<1x32xf32>
    %919 = arith.addf %917, %918 : vector<1x32xf32>
    %920 = arith.negf %919 : vector<1x32xf32>
    %921 = math.exp %920 : vector<1x32xf32>
    %cst_203 = arith.constant 1.000000e+00 : f32
    %922 = vector.broadcast %cst_203 : f32 to vector<1x32xf32>
    %923 = arith.addf %922, %921 : vector<1x32xf32>
    %924 = arith.divf %922, %923 : vector<1x32xf32>
    %925 = vector.extract_strided_slice %915 {offsets = [0, 32], sizes = [1, 32], strides = [1, 1]} : vector<1x96xf32> to vector<1x32xf32>
    %926 = vector.extract_strided_slice %916 {offsets = [0, 32], sizes = [1, 32], strides = [1, 1]} : vector<1x96xf32> to vector<1x32xf32>
    %927 = arith.addf %925, %926 : vector<1x32xf32>
    %928 = arith.negf %927 : vector<1x32xf32>
    %929 = math.exp %928 : vector<1x32xf32>
    %cst_204 = arith.constant 1.000000e+00 : f32
    %930 = vector.broadcast %cst_204 : f32 to vector<1x32xf32>
    %931 = arith.addf %930, %929 : vector<1x32xf32>
    %932 = arith.divf %930, %931 : vector<1x32xf32>
    %933 = vector.extract_strided_slice %915 {offsets = [0, 64], sizes = [1, 32], strides = [1, 1]} : vector<1x96xf32> to vector<1x32xf32>
    %934 = vector.extract_strided_slice %916 {offsets = [0, 64], sizes = [1, 32], strides = [1, 1]} : vector<1x96xf32> to vector<1x32xf32>
    %935 = arith.mulf %924, %934 : vector<1x32xf32>
    %936 = arith.addf %933, %935 : vector<1x32xf32>
    %937 = math.tanh %936 : vector<1x32xf32>
    %cst_205 = arith.constant 1.000000e+00 : f32
    %938 = vector.broadcast %cst_205 : f32 to vector<1x32xf32>
    %939 = arith.subf %938, %932 : vector<1x32xf32>
    %940 = arith.mulf %939, %937 : vector<1x32xf32>
    %941 = arith.mulf %932, %880 : vector<1x32xf32>
    %942 = arith.addf %940, %941 : vector<1x32xf32>
    %943 = vector.extract_strided_slice %534 {offsets = [1, 0], sizes = [1, 96], strides = [1, 1]} : vector<8x96xf32> to vector<1x96xf32>
    %944 = vector.extract_strided_slice %914 {offsets = [0, 96], sizes = [1, 96], strides = [1, 1]} : vector<1x192xf32> to vector<1x96xf32>
    %945 = vector.extract_strided_slice %943 {offsets = [0, 0], sizes = [1, 32], strides = [1, 1]} : vector<1x96xf32> to vector<1x32xf32>
    %946 = vector.extract_strided_slice %944 {offsets = [0, 0], sizes = [1, 32], strides = [1, 1]} : vector<1x96xf32> to vector<1x32xf32>
    %947 = arith.addf %945, %946 : vector<1x32xf32>
    %948 = arith.negf %947 : vector<1x32xf32>
    %949 = math.exp %948 : vector<1x32xf32>
    %cst_206 = arith.constant 1.000000e+00 : f32
    %950 = vector.broadcast %cst_206 : f32 to vector<1x32xf32>
    %951 = arith.addf %950, %949 : vector<1x32xf32>
    %952 = arith.divf %950, %951 : vector<1x32xf32>
    %953 = vector.extract_strided_slice %943 {offsets = [0, 32], sizes = [1, 32], strides = [1, 1]} : vector<1x96xf32> to vector<1x32xf32>
    %954 = vector.extract_strided_slice %944 {offsets = [0, 32], sizes = [1, 32], strides = [1, 1]} : vector<1x96xf32> to vector<1x32xf32>
    %955 = arith.addf %953, %954 : vector<1x32xf32>
    %956 = arith.negf %955 : vector<1x32xf32>
    %957 = math.exp %956 : vector<1x32xf32>
    %cst_207 = arith.constant 1.000000e+00 : f32
    %958 = vector.broadcast %cst_207 : f32 to vector<1x32xf32>
    %959 = arith.addf %958, %957 : vector<1x32xf32>
    %960 = arith.divf %958, %959 : vector<1x32xf32>
    %961 = vector.extract_strided_slice %943 {offsets = [0, 64], sizes = [1, 32], strides = [1, 1]} : vector<1x96xf32> to vector<1x32xf32>
    %962 = vector.extract_strided_slice %944 {offsets = [0, 64], sizes = [1, 32], strides = [1, 1]} : vector<1x96xf32> to vector<1x32xf32>
    %963 = arith.mulf %952, %962 : vector<1x32xf32>
    %964 = arith.addf %961, %963 : vector<1x32xf32>
    %965 = math.tanh %964 : vector<1x32xf32>
    %cst_208 = arith.constant 1.000000e+00 : f32
    %966 = vector.broadcast %cst_208 : f32 to vector<1x32xf32>
    %967 = arith.subf %966, %960 : vector<1x32xf32>
    %968 = arith.mulf %967, %965 : vector<1x32xf32>
    %969 = arith.mulf %960, %908 : vector<1x32xf32>
    %970 = arith.addf %968, %969 : vector<1x32xf32>
    %971 = tpu.concatenate %942, %970 in 1 : vector<1x32xf32>, vector<1x32xf32> -> vector<1x64xf32>
    %c1_209 = arith.constant 1 : index
    %c0_210 = arith.constant 0 : index
    %c0_211 = arith.constant 0 : index
    %972 = vector.load %arg3[%c1_209, %c0_210, %c0_211] : memref<2x64x192xf32, #tpu.memory_space<vmem>>, vector<1x64x192xf32>
    %973 = vector.shape_cast %972 : vector<1x64x192xf32> to vector<64x192xf32>
    %cst_212 = arith.constant dense<0.000000e+00> : vector<1x192xf32>
    %974 = tpu.matmul %971, %973, %cst_212 {dimension_numbers = #tpu.dot_dimension_numbers<[1], [0], [0], [1], [0, 0, 1, 1], [], []>} : vector<1x64xf32>, vector<64x192xf32>, vector<1x192xf32> -> vector<1x192xf32>
    %c1_213 = arith.constant 1 : index
    %c0_214 = arith.constant 0 : index
    %975 = vector.load %arg5[%c1_213, %c0_214] : memref<2x192xf32, #tpu.memory_space<vmem>>, vector<1x192xf32>
    %976 = arith.addf %974, %975 : vector<1x192xf32>
    %977 = vector.extract_strided_slice %528 {offsets = [7, 0], sizes = [1, 96], strides = [1, 1]} : vector<8x96xf32> to vector<1x96xf32>
    %978 = vector.extract_strided_slice %976 {offsets = [0, 0], sizes = [1, 96], strides = [1, 1]} : vector<1x192xf32> to vector<1x96xf32>
    %979 = vector.extract_strided_slice %977 {offsets = [0, 0], sizes = [1, 32], strides = [1, 1]} : vector<1x96xf32> to vector<1x32xf32>
    %980 = vector.extract_strided_slice %978 {offsets = [0, 0], sizes = [1, 32], strides = [1, 1]} : vector<1x96xf32> to vector<1x32xf32>
    %981 = arith.addf %979, %980 : vector<1x32xf32>
    %982 = arith.negf %981 : vector<1x32xf32>
    %983 = math.exp %982 : vector<1x32xf32>
    %cst_215 = arith.constant 1.000000e+00 : f32
    %984 = vector.broadcast %cst_215 : f32 to vector<1x32xf32>
    %985 = arith.addf %984, %983 : vector<1x32xf32>
    %986 = arith.divf %984, %985 : vector<1x32xf32>
    %987 = vector.extract_strided_slice %977 {offsets = [0, 32], sizes = [1, 32], strides = [1, 1]} : vector<1x96xf32> to vector<1x32xf32>
    %988 = vector.extract_strided_slice %978 {offsets = [0, 32], sizes = [1, 32], strides = [1, 1]} : vector<1x96xf32> to vector<1x32xf32>
    %989 = arith.addf %987, %988 : vector<1x32xf32>
    %990 = arith.negf %989 : vector<1x32xf32>
    %991 = math.exp %990 : vector<1x32xf32>
    %cst_216 = arith.constant 1.000000e+00 : f32
    %992 = vector.broadcast %cst_216 : f32 to vector<1x32xf32>
    %993 = arith.addf %992, %991 : vector<1x32xf32>
    %994 = arith.divf %992, %993 : vector<1x32xf32>
    %995 = vector.extract_strided_slice %977 {offsets = [0, 64], sizes = [1, 32], strides = [1, 1]} : vector<1x96xf32> to vector<1x32xf32>
    %996 = vector.extract_strided_slice %978 {offsets = [0, 64], sizes = [1, 32], strides = [1, 1]} : vector<1x96xf32> to vector<1x32xf32>
    %997 = arith.mulf %986, %996 : vector<1x32xf32>
    %998 = arith.addf %995, %997 : vector<1x32xf32>
    %999 = math.tanh %998 : vector<1x32xf32>
    %cst_217 = arith.constant 1.000000e+00 : f32
    %1000 = vector.broadcast %cst_217 : f32 to vector<1x32xf32>
    %1001 = arith.subf %1000, %994 : vector<1x32xf32>
    %1002 = arith.mulf %1001, %999 : vector<1x32xf32>
    %1003 = arith.mulf %994, %942 : vector<1x32xf32>
    %1004 = arith.addf %1002, %1003 : vector<1x32xf32>
    %1005 = vector.extract_strided_slice %534 {offsets = [0, 0], sizes = [1, 96], strides = [1, 1]} : vector<8x96xf32> to vector<1x96xf32>
    %1006 = vector.extract_strided_slice %976 {offsets = [0, 96], sizes = [1, 96], strides = [1, 1]} : vector<1x192xf32> to vector<1x96xf32>
    %1007 = vector.extract_strided_slice %1005 {offsets = [0, 0], sizes = [1, 32], strides = [1, 1]} : vector<1x96xf32> to vector<1x32xf32>
    %1008 = vector.extract_strided_slice %1006 {offsets = [0, 0], sizes = [1, 32], strides = [1, 1]} : vector<1x96xf32> to vector<1x32xf32>
    %1009 = arith.addf %1007, %1008 : vector<1x32xf32>
    %1010 = arith.negf %1009 : vector<1x32xf32>
    %1011 = math.exp %1010 : vector<1x32xf32>
    %cst_218 = arith.constant 1.000000e+00 : f32
    %1012 = vector.broadcast %cst_218 : f32 to vector<1x32xf32>
    %1013 = arith.addf %1012, %1011 : vector<1x32xf32>
    %1014 = arith.divf %1012, %1013 : vector<1x32xf32>
    %1015 = vector.extract_strided_slice %1005 {offsets = [0, 32], sizes = [1, 32], strides = [1, 1]} : vector<1x96xf32> to vector<1x32xf32>
    %1016 = vector.extract_strided_slice %1006 {offsets = [0, 32], sizes = [1, 32], strides = [1, 1]} : vector<1x96xf32> to vector<1x32xf32>
    %1017 = arith.addf %1015, %1016 : vector<1x32xf32>
    %1018 = arith.negf %1017 : vector<1x32xf32>
    %1019 = math.exp %1018 : vector<1x32xf32>
    %cst_219 = arith.constant 1.000000e+00 : f32
    %1020 = vector.broadcast %cst_219 : f32 to vector<1x32xf32>
    %1021 = arith.addf %1020, %1019 : vector<1x32xf32>
    %1022 = arith.divf %1020, %1021 : vector<1x32xf32>
    %1023 = vector.extract_strided_slice %1005 {offsets = [0, 64], sizes = [1, 32], strides = [1, 1]} : vector<1x96xf32> to vector<1x32xf32>
    %1024 = vector.extract_strided_slice %1006 {offsets = [0, 64], sizes = [1, 32], strides = [1, 1]} : vector<1x96xf32> to vector<1x32xf32>
    %1025 = arith.mulf %1014, %1024 : vector<1x32xf32>
    %1026 = arith.addf %1023, %1025 : vector<1x32xf32>
    %1027 = math.tanh %1026 : vector<1x32xf32>
    %cst_220 = arith.constant 1.000000e+00 : f32
    %1028 = vector.broadcast %cst_220 : f32 to vector<1x32xf32>
    %1029 = arith.subf %1028, %1022 : vector<1x32xf32>
    %1030 = arith.mulf %1029, %1027 : vector<1x32xf32>
    %1031 = arith.mulf %1022, %970 : vector<1x32xf32>
    %1032 = arith.addf %1030, %1031 : vector<1x32xf32>
    %1033 = tpu.concatenate %570, %632, %694, %756, %818, %880, %942, %1004 in 0 : vector<1x32xf32>, vector<1x32xf32>, vector<1x32xf32>, vector<1x32xf32>, vector<1x32xf32>, vector<1x32xf32>, vector<1x32xf32>, vector<1x32xf32> -> vector<8x32xf32>
    %1034 = tpu.concatenate %1032, %970, %908, %846, %784, %722, %660, %598 in 0 : vector<1x32xf32>, vector<1x32xf32>, vector<1x32xf32>, vector<1x32xf32>, vector<1x32xf32>, vector<1x32xf32>, vector<1x32xf32>, vector<1x32xf32> -> vector<8x32xf32>
    %1035 = arith.addf %1033, %1034 : vector<8x32xf32>
    %1036 = tpu.transpose %1035, [1, 0] : vector<8x32xf32> -> vector<32x8xf32>
    %c0_221 = arith.constant 0 : index
    %c0_222 = arith.constant 0 : index
    %1037 = vector.load %arg10[%c0_221, %c0_222] : memref<32x32xf32, #tpu.memory_space<vmem>>, vector<32x32xf32>
    %cst_223 = arith.constant dense<0.000000e+00> : vector<8x32xf32>
    %1038 = tpu.matmul %1035, %1037, %cst_223 {dimension_numbers = #tpu.dot_dimension_numbers<[1], [0], [0], [1], [0, 0, 1, 1], [], []>} : vector<8x32xf32>, vector<32x32xf32>, vector<8x32xf32> -> vector<8x32xf32>
    %1039 = tpu.iota {dimensions = array<i32: 1>} : vector<1x48xi32>
    %1040 = arith.sitofp %1039 : vector<1x48xi32> to vector<1x48xf32>
    %1041 = tpu.iota {dimensions = array<i32: 1>} : vector<1x128xi32>
    %cst_224 = arith.constant 1.000000e+00 : f32
    %1042 = vector.broadcast %cst_224 : f32 to vector<1x48xf32>
    %1043 = arith.cmpf oeq, %1040, %1042 : vector<1x48xf32>
    %1044 = arith.extui %1043 : vector<1x48xi1> to vector<1x48xi32>
    %1045 = arith.sitofp %1044 : vector<1x48xi32> to vector<1x48xf32>
    %c0_i32 = arith.constant 0 : i32
    %1046 = vector.broadcast %c0_i32 : i32 to vector<1x128xi32>
    %cst_225 = arith.constant 0.000000e+00 : f32
    %1047 = vector.broadcast %cst_225 : f32 to vector<1x128xf32>
    %1048 = tpu.concatenate %1045, %491 in 1 : vector<1x48xf32>, vector<1x32xf32> -> vector<1x80xf32>
    %c0_226 = arith.constant 0 : index
    %c0_227 = arith.constant 0 : index
    %1049 = vector.load %arg6[%c0_226, %c0_227] : memref<80x192xf32, #tpu.memory_space<vmem>>, vector<80x192xf32>
    %cst_228 = arith.constant dense<0.000000e+00> : vector<1x192xf32>
    %1050 = tpu.matmul %1048, %1049, %cst_228 {dimension_numbers = #tpu.dot_dimension_numbers<[1], [0], [0], [1], [0, 0, 1, 1], [], []>} : vector<1x80xf32>, vector<80x192xf32>, vector<1x192xf32> -> vector<1x192xf32>
    %c0_229 = arith.constant 0 : index
    %c0_230 = arith.constant 0 : index
    %1051 = vector.load %arg8[%c0_229, %c0_230] : memref<2x192xf32, #tpu.memory_space<vmem>>, vector<1x192xf32>
    %1052 = arith.addf %1050, %1051 : vector<1x192xf32>
    %1053 = vector.extract_strided_slice %1052 {offsets = [0, 0], sizes = [1, 96], strides = [1, 1]} : vector<1x192xf32> to vector<1x96xf32>
    %1054 = vector.extract_strided_slice %1052 {offsets = [0, 96], sizes = [1, 96], strides = [1, 1]} : vector<1x192xf32> to vector<1x96xf32>
    %1055 = vector.extract_strided_slice %1053 {offsets = [0, 0], sizes = [1, 32], strides = [1, 1]} : vector<1x96xf32> to vector<1x32xf32>
    %1056 = vector.extract_strided_slice %1054 {offsets = [0, 0], sizes = [1, 32], strides = [1, 1]} : vector<1x96xf32> to vector<1x32xf32>
    %1057 = arith.addf %1055, %1056 : vector<1x32xf32>
    %1058 = arith.negf %1057 : vector<1x32xf32>
    %1059 = math.exp %1058 : vector<1x32xf32>
    %cst_231 = arith.constant 1.000000e+00 : f32
    %1060 = vector.broadcast %cst_231 : f32 to vector<1x32xf32>
    %1061 = arith.addf %1060, %1059 : vector<1x32xf32>
    %1062 = arith.divf %1060, %1061 : vector<1x32xf32>
    %1063 = vector.extract_strided_slice %1053 {offsets = [0, 32], sizes = [1, 32], strides = [1, 1]} : vector<1x96xf32> to vector<1x32xf32>
    %1064 = vector.extract_strided_slice %1054 {offsets = [0, 32], sizes = [1, 32], strides = [1, 1]} : vector<1x96xf32> to vector<1x32xf32>
    %1065 = arith.addf %1063, %1064 : vector<1x32xf32>
    %1066 = arith.negf %1065 : vector<1x32xf32>
    %1067 = math.exp %1066 : vector<1x32xf32>
    %cst_232 = arith.constant 1.000000e+00 : f32
    %1068 = vector.broadcast %cst_232 : f32 to vector<1x32xf32>
    %1069 = arith.addf %1068, %1067 : vector<1x32xf32>
    %1070 = arith.divf %1068, %1069 : vector<1x32xf32>
    %1071 = vector.extract_strided_slice %1053 {offsets = [0, 64], sizes = [1, 32], strides = [1, 1]} : vector<1x96xf32> to vector<1x32xf32>
    %1072 = vector.extract_strided_slice %1054 {offsets = [0, 64], sizes = [1, 32], strides = [1, 1]} : vector<1x96xf32> to vector<1x32xf32>
    %1073 = arith.mulf %1062, %1072 : vector<1x32xf32>
    %1074 = arith.addf %1071, %1073 : vector<1x32xf32>
    %1075 = math.tanh %1074 : vector<1x32xf32>
    %cst_233 = arith.constant 1.000000e+00 : f32
    %1076 = vector.broadcast %cst_233 : f32 to vector<1x32xf32>
    %1077 = arith.subf %1076, %1070 : vector<1x32xf32>
    %1078 = arith.mulf %1077, %1075 : vector<1x32xf32>
    %1079 = arith.mulf %1070, %491 : vector<1x32xf32>
    %1080 = arith.addf %1078, %1079 : vector<1x32xf32>
    %1081 = tpu.concatenate %1080, %519 in 1 : vector<1x32xf32>, vector<1x32xf32> -> vector<1x64xf32>
    %c0_234 = arith.constant 0 : index
    %c0_235 = arith.constant 0 : index
    %c0_236 = arith.constant 0 : index
    %1082 = vector.load %arg7[%c0_234, %c0_235, %c0_236] : memref<1x64x192xf32, #tpu.memory_space<vmem>>, vector<1x64x192xf32>
    %1083 = vector.shape_cast %1082 : vector<1x64x192xf32> to vector<64x192xf32>
    %cst_237 = arith.constant dense<0.000000e+00> : vector<1x192xf32>
    %1084 = tpu.matmul %1081, %1083, %cst_237 {dimension_numbers = #tpu.dot_dimension_numbers<[1], [0], [0], [1], [0, 0, 1, 1], [], []>} : vector<1x64xf32>, vector<64x192xf32>, vector<1x192xf32> -> vector<1x192xf32>
    %c1_238 = arith.constant 1 : index
    %c0_239 = arith.constant 0 : index
    %1085 = vector.load %arg8[%c1_238, %c0_239] : memref<2x192xf32, #tpu.memory_space<vmem>>, vector<1x192xf32>
    %1086 = arith.addf %1084, %1085 : vector<1x192xf32>
    %1087 = vector.extract_strided_slice %1086 {offsets = [0, 0], sizes = [1, 96], strides = [1, 1]} : vector<1x192xf32> to vector<1x96xf32>
    %1088 = vector.extract_strided_slice %1086 {offsets = [0, 96], sizes = [1, 96], strides = [1, 1]} : vector<1x192xf32> to vector<1x96xf32>
    %1089 = vector.extract_strided_slice %1087 {offsets = [0, 0], sizes = [1, 32], strides = [1, 1]} : vector<1x96xf32> to vector<1x32xf32>
    %1090 = vector.extract_strided_slice %1088 {offsets = [0, 0], sizes = [1, 32], strides = [1, 1]} : vector<1x96xf32> to vector<1x32xf32>
    %1091 = arith.addf %1089, %1090 : vector<1x32xf32>
    %1092 = arith.negf %1091 : vector<1x32xf32>
    %1093 = math.exp %1092 : vector<1x32xf32>
    %cst_240 = arith.constant 1.000000e+00 : f32
    %1094 = vector.broadcast %cst_240 : f32 to vector<1x32xf32>
    %1095 = arith.addf %1094, %1093 : vector<1x32xf32>
    %1096 = arith.divf %1094, %1095 : vector<1x32xf32>
    %1097 = vector.extract_strided_slice %1087 {offsets = [0, 32], sizes = [1, 32], strides = [1, 1]} : vector<1x96xf32> to vector<1x32xf32>
    %1098 = vector.extract_strided_slice %1088 {offsets = [0, 32], sizes = [1, 32], strides = [1, 1]} : vector<1x96xf32> to vector<1x32xf32>
    %1099 = arith.addf %1097, %1098 : vector<1x32xf32>
    %1100 = arith.negf %1099 : vector<1x32xf32>
    %1101 = math.exp %1100 : vector<1x32xf32>
    %cst_241 = arith.constant 1.000000e+00 : f32
    %1102 = vector.broadcast %cst_241 : f32 to vector<1x32xf32>
    %1103 = arith.addf %1102, %1101 : vector<1x32xf32>
    %1104 = arith.divf %1102, %1103 : vector<1x32xf32>
    %1105 = vector.extract_strided_slice %1087 {offsets = [0, 64], sizes = [1, 32], strides = [1, 1]} : vector<1x96xf32> to vector<1x32xf32>
    %1106 = vector.extract_strided_slice %1088 {offsets = [0, 64], sizes = [1, 32], strides = [1, 1]} : vector<1x96xf32> to vector<1x32xf32>
    %1107 = arith.mulf %1096, %1106 : vector<1x32xf32>
    %1108 = arith.addf %1105, %1107 : vector<1x32xf32>
    %1109 = math.tanh %1108 : vector<1x32xf32>
    %cst_242 = arith.constant 1.000000e+00 : f32
    %1110 = vector.broadcast %cst_242 : f32 to vector<1x32xf32>
    %1111 = arith.subf %1110, %1104 : vector<1x32xf32>
    %1112 = arith.mulf %1111, %1109 : vector<1x32xf32>
    %1113 = arith.mulf %1104, %519 : vector<1x32xf32>
    %1114 = arith.addf %1112, %1113 : vector<1x32xf32>
    %cst_243 = arith.constant dense<0.000000e+00> : vector<1x8xf32>
    %1115 = tpu.matmul %1114, %1036, %cst_243 {dimension_numbers = #tpu.dot_dimension_numbers<[1], [0], [0], [1], [0, 0, 1, 1], [], []>} : vector<1x32xf32>, vector<32x8xf32>, vector<1x8xf32> -> vector<1x8xf32>
    %cst_244 = arith.constant dense<0xFF800000> : vector<1xf32>
    %1116 = vector.multi_reduction <maximumf>, %1115, %cst_244 [1] : vector<1x8xf32> to vector<1xf32>
    %1117 = vector.shape_cast %1116 : vector<1xf32> to vector<1x1xf32>
    %1118 = vector.broadcast %1117 : vector<1x1xf32> to vector<1x8xf32>
    %1119 = arith.subf %1115, %1118 : vector<1x8xf32>
    %1120 = math.exp %1119 : vector<1x8xf32>
    %cst_245 = arith.constant dense<0.000000e+00> : vector<1xf32>
    %1121 = vector.multi_reduction <add>, %1120, %cst_245 [1] : vector<1x8xf32> to vector<1xf32>
    %1122 = vector.shape_cast %1121 : vector<1xf32> to vector<1x1xf32>
    %1123 = tpu.reciprocal %1122 {approx = true} : vector<1x1xf32> -> vector<1x1xf32>
    %1124 = vector.broadcast %1123 : vector<1x1xf32> to vector<1x8xf32>
    %1125 = arith.mulf %1120, %1124 : vector<1x8xf32>
    %c0_246 = arith.constant 0 : index
    %c0_247 = arith.constant 0 : index
    %1126 = vector.load %arg9[%c0_246, %c0_247] : memref<32x32xf32, #tpu.memory_space<vmem>>, vector<32x32xf32>
    %cst_248 = arith.constant dense<0.000000e+00> : vector<1x32xf32>
    %1127 = tpu.matmul %1114, %1126, %cst_248 {dimension_numbers = #tpu.dot_dimension_numbers<[1], [0], [0], [1], [0, 0, 1, 1], [], []>} : vector<1x32xf32>, vector<32x32xf32>, vector<1x32xf32> -> vector<1x32xf32>
    %cst_249 = arith.constant dense<0.000000e+00> : vector<1x32xf32>
    %1128 = tpu.matmul %1125, %1038, %cst_249 {dimension_numbers = #tpu.dot_dimension_numbers<[1], [0], [0], [1], [0, 0, 1, 1], [], []>} : vector<1x8xf32>, vector<8x32xf32>, vector<1x32xf32> -> vector<1x32xf32>
    %1129 = arith.addf %1127, %1128 : vector<1x32xf32>
    %c0_250 = arith.constant 0 : index
    %c0_251 = arith.constant 0 : index
    %1130 = vector.load %arg11[%c0_250, %c0_251] : memref<1x32xf32, #tpu.memory_space<vmem>>, vector<1x32xf32>
    %1131 = arith.addf %1129, %1130 : vector<1x32xf32>
    %1132 = math.tanh %1131 : vector<1x32xf32>
    %c0_252 = arith.constant 0 : index
    %c0_253 = arith.constant 0 : index
    %1133 = vector.load %arg12[%c0_252, %c0_253] : memref<32x48xf32, #tpu.memory_space<vmem>>, vector<32x48xf32>
    %cst_254 = arith.constant dense<0.000000e+00> : vector<1x48xf32>
    %1134 = tpu.matmul %1132, %1133, %cst_254 {dimension_numbers = #tpu.dot_dimension_numbers<[1], [0], [0], [1], [0, 0, 1, 1], [], []>} : vector<1x32xf32>, vector<32x48xf32>, vector<1x48xf32> -> vector<1x48xf32>
    %c0_255 = arith.constant 0 : index
    %c0_256 = arith.constant 0 : index
    %1135 = vector.load %arg13[%c0_255, %c0_256] : memref<1x48xf32, #tpu.memory_space<vmem>>, vector<1x48xf32>
    %1136 = arith.addf %1134, %1135 : vector<1x48xf32>
    %cst_257 = arith.constant dense<0xFF800000> : vector<1xf32>
    %1137 = vector.multi_reduction <maximumf>, %1136, %cst_257 [1] : vector<1x48xf32> to vector<1xf32>
    %1138 = vector.shape_cast %1137 : vector<1xf32> to vector<1x1xf32>
    %1139 = vector.broadcast %1138 : vector<1x1xf32> to vector<1x48xf32>
    %1140 = arith.subf %1136, %1139 : vector<1x48xf32>
    %1141 = math.exp %1140 : vector<1x48xf32>
    %cst_258 = arith.constant dense<0.000000e+00> : vector<1xf32>
    %1142 = vector.multi_reduction <add>, %1141, %cst_258 [1] : vector<1x48xf32> to vector<1xf32>
    %1143 = vector.shape_cast %1142 : vector<1xf32> to vector<1x1xf32>
    %cst_259 = arith.constant 1.000000e+00 : f32
    %1144 = vector.broadcast %cst_259 : f32 to vector<1x1xf32>
    %1145 = arith.divf %1144, %1143 : vector<1x1xf32>
    %1146 = vector.broadcast %1138 : vector<1x1xf32> to vector<1x48xf32>
    %1147 = arith.cmpf oge, %1136, %1146 : vector<1x48xf32>
    %cst_260 = arith.constant 4.800000e+01 : f32
    %1148 = vector.broadcast %cst_260 : f32 to vector<1x48xf32>
    %1149 = arith.select %1147, %1040, %1148 : vector<1x48xi1>, vector<1x48xf32>
    %cst_261 = arith.constant dense<0x7F800000> : vector<1xf32>
    %1150 = vector.multi_reduction <minimumf>, %1149, %cst_261 [1] : vector<1x48xf32> to vector<1xf32>
    %1151 = vector.shape_cast %1150 : vector<1xf32> to vector<1x1xf32>
    %c0_i32_262 = arith.constant 0 : i32
    %1152 = vector.broadcast %c0_i32_262 : i32 to vector<1x128xi32>
    %1153 = arith.cmpi eq, %1041, %1152 : vector<1x128xi32>
    %1154 = arith.fptosi %1151 : vector<1x1xf32> to vector<1x1xi32>
    %1155 = vector.shape_cast %1154 : vector<1x1xi32> to vector<1x1xi32>
    %1156 = vector.broadcast %1155 : vector<1x1xi32> to vector<1x128xi32>
    %1157 = arith.select %1153, %1156, %1046 : vector<1x128xi1>, vector<1x128xi32>
    %c0_i32_263 = arith.constant 0 : i32
    %1158 = vector.broadcast %c0_i32_263 : i32 to vector<1x128xi32>
    %1159 = arith.cmpi eq, %1041, %1158 : vector<1x128xi32>
    %1160 = vector.shape_cast %1145 : vector<1x1xf32> to vector<1x1xf32>
    %1161 = vector.broadcast %1160 : vector<1x1xf32> to vector<1x128xf32>
    %1162 = arith.select %1159, %1161, %1047 : vector<1x128xi1>, vector<1x128xf32>
    %1163 = vector.broadcast %1151 : vector<1x1xf32> to vector<1x48xf32>
    %1164 = arith.cmpf oeq, %1040, %1163 : vector<1x48xf32>
    %1165 = arith.extui %1164 : vector<1x48xi1> to vector<1x48xi32>
    %1166 = arith.sitofp %1165 : vector<1x48xi32> to vector<1x48xf32>
    %1167 = tpu.concatenate %1166, %1080 in 1 : vector<1x48xf32>, vector<1x32xf32> -> vector<1x80xf32>
    %c0_264 = arith.constant 0 : index
    %c0_265 = arith.constant 0 : index
    %1168 = vector.load %arg6[%c0_264, %c0_265] : memref<80x192xf32, #tpu.memory_space<vmem>>, vector<80x192xf32>
    %cst_266 = arith.constant dense<0.000000e+00> : vector<1x192xf32>
    %1169 = tpu.matmul %1167, %1168, %cst_266 {dimension_numbers = #tpu.dot_dimension_numbers<[1], [0], [0], [1], [0, 0, 1, 1], [], []>} : vector<1x80xf32>, vector<80x192xf32>, vector<1x192xf32> -> vector<1x192xf32>
    %c0_267 = arith.constant 0 : index
    %c0_268 = arith.constant 0 : index
    %1170 = vector.load %arg8[%c0_267, %c0_268] : memref<2x192xf32, #tpu.memory_space<vmem>>, vector<1x192xf32>
    %1171 = arith.addf %1169, %1170 : vector<1x192xf32>
    %1172 = vector.extract_strided_slice %1171 {offsets = [0, 0], sizes = [1, 96], strides = [1, 1]} : vector<1x192xf32> to vector<1x96xf32>
    %1173 = vector.extract_strided_slice %1171 {offsets = [0, 96], sizes = [1, 96], strides = [1, 1]} : vector<1x192xf32> to vector<1x96xf32>
    %1174 = vector.extract_strided_slice %1172 {offsets = [0, 0], sizes = [1, 32], strides = [1, 1]} : vector<1x96xf32> to vector<1x32xf32>
    %1175 = vector.extract_strided_slice %1173 {offsets = [0, 0], sizes = [1, 32], strides = [1, 1]} : vector<1x96xf32> to vector<1x32xf32>
    %1176 = arith.addf %1174, %1175 : vector<1x32xf32>
    %1177 = arith.negf %1176 : vector<1x32xf32>
    %1178 = math.exp %1177 : vector<1x32xf32>
    %cst_269 = arith.constant 1.000000e+00 : f32
    %1179 = vector.broadcast %cst_269 : f32 to vector<1x32xf32>
    %1180 = arith.addf %1179, %1178 : vector<1x32xf32>
    %1181 = arith.divf %1179, %1180 : vector<1x32xf32>
    %1182 = vector.extract_strided_slice %1172 {offsets = [0, 32], sizes = [1, 32], strides = [1, 1]} : vector<1x96xf32> to vector<1x32xf32>
    %1183 = vector.extract_strided_slice %1173 {offsets = [0, 32], sizes = [1, 32], strides = [1, 1]} : vector<1x96xf32> to vector<1x32xf32>
    %1184 = arith.addf %1182, %1183 : vector<1x32xf32>
    %1185 = arith.negf %1184 : vector<1x32xf32>
    %1186 = math.exp %1185 : vector<1x32xf32>
    %cst_270 = arith.constant 1.000000e+00 : f32
    %1187 = vector.broadcast %cst_270 : f32 to vector<1x32xf32>
    %1188 = arith.addf %1187, %1186 : vector<1x32xf32>
    %1189 = arith.divf %1187, %1188 : vector<1x32xf32>
    %1190 = vector.extract_strided_slice %1172 {offsets = [0, 64], sizes = [1, 32], strides = [1, 1]} : vector<1x96xf32> to vector<1x32xf32>
    %1191 = vector.extract_strided_slice %1173 {offsets = [0, 64], sizes = [1, 32], strides = [1, 1]} : vector<1x96xf32> to vector<1x32xf32>
    %1192 = arith.mulf %1181, %1191 : vector<1x32xf32>
    %1193 = arith.addf %1190, %1192 : vector<1x32xf32>
    %1194 = math.tanh %1193 : vector<1x32xf32>
    %cst_271 = arith.constant 1.000000e+00 : f32
    %1195 = vector.broadcast %cst_271 : f32 to vector<1x32xf32>
    %1196 = arith.subf %1195, %1189 : vector<1x32xf32>
    %1197 = arith.mulf %1196, %1194 : vector<1x32xf32>
    %1198 = arith.mulf %1189, %1080 : vector<1x32xf32>
    %1199 = arith.addf %1197, %1198 : vector<1x32xf32>
    %1200 = tpu.concatenate %1199, %1114 in 1 : vector<1x32xf32>, vector<1x32xf32> -> vector<1x64xf32>
    %c0_272 = arith.constant 0 : index
    %c0_273 = arith.constant 0 : index
    %c0_274 = arith.constant 0 : index
    %1201 = vector.load %arg7[%c0_272, %c0_273, %c0_274] : memref<1x64x192xf32, #tpu.memory_space<vmem>>, vector<1x64x192xf32>
    %1202 = vector.shape_cast %1201 : vector<1x64x192xf32> to vector<64x192xf32>
    %cst_275 = arith.constant dense<0.000000e+00> : vector<1x192xf32>
    %1203 = tpu.matmul %1200, %1202, %cst_275 {dimension_numbers = #tpu.dot_dimension_numbers<[1], [0], [0], [1], [0, 0, 1, 1], [], []>} : vector<1x64xf32>, vector<64x192xf32>, vector<1x192xf32> -> vector<1x192xf32>
    %c1_276 = arith.constant 1 : index
    %c0_277 = arith.constant 0 : index
    %1204 = vector.load %arg8[%c1_276, %c0_277] : memref<2x192xf32, #tpu.memory_space<vmem>>, vector<1x192xf32>
    %1205 = arith.addf %1203, %1204 : vector<1x192xf32>
    %1206 = vector.extract_strided_slice %1205 {offsets = [0, 0], sizes = [1, 96], strides = [1, 1]} : vector<1x192xf32> to vector<1x96xf32>
    %1207 = vector.extract_strided_slice %1205 {offsets = [0, 96], sizes = [1, 96], strides = [1, 1]} : vector<1x192xf32> to vector<1x96xf32>
    %1208 = vector.extract_strided_slice %1206 {offsets = [0, 0], sizes = [1, 32], strides = [1, 1]} : vector<1x96xf32> to vector<1x32xf32>
    %1209 = vector.extract_strided_slice %1207 {offsets = [0, 0], sizes = [1, 32], strides = [1, 1]} : vector<1x96xf32> to vector<1x32xf32>
    %1210 = arith.addf %1208, %1209 : vector<1x32xf32>
    %1211 = arith.negf %1210 : vector<1x32xf32>
    %1212 = math.exp %1211 : vector<1x32xf32>
    %cst_278 = arith.constant 1.000000e+00 : f32
    %1213 = vector.broadcast %cst_278 : f32 to vector<1x32xf32>
    %1214 = arith.addf %1213, %1212 : vector<1x32xf32>
    %1215 = arith.divf %1213, %1214 : vector<1x32xf32>
    %1216 = vector.extract_strided_slice %1206 {offsets = [0, 32], sizes = [1, 32], strides = [1, 1]} : vector<1x96xf32> to vector<1x32xf32>
    %1217 = vector.extract_strided_slice %1207 {offsets = [0, 32], sizes = [1, 32], strides = [1, 1]} : vector<1x96xf32> to vector<1x32xf32>
    %1218 = arith.addf %1216, %1217 : vector<1x32xf32>
    %1219 = arith.negf %1218 : vector<1x32xf32>
    %1220 = math.exp %1219 : vector<1x32xf32>
    %cst_279 = arith.constant 1.000000e+00 : f32
    %1221 = vector.broadcast %cst_279 : f32 to vector<1x32xf32>
    %1222 = arith.addf %1221, %1220 : vector<1x32xf32>
    %1223 = arith.divf %1221, %1222 : vector<1x32xf32>
    %1224 = vector.extract_strided_slice %1206 {offsets = [0, 64], sizes = [1, 32], strides = [1, 1]} : vector<1x96xf32> to vector<1x32xf32>
    %1225 = vector.extract_strided_slice %1207 {offsets = [0, 64], sizes = [1, 32], strides = [1, 1]} : vector<1x96xf32> to vector<1x32xf32>
    %1226 = arith.mulf %1215, %1225 : vector<1x32xf32>
    %1227 = arith.addf %1224, %1226 : vector<1x32xf32>
    %1228 = math.tanh %1227 : vector<1x32xf32>
    %cst_280 = arith.constant 1.000000e+00 : f32
    %1229 = vector.broadcast %cst_280 : f32 to vector<1x32xf32>
    %1230 = arith.subf %1229, %1223 : vector<1x32xf32>
    %1231 = arith.mulf %1230, %1228 : vector<1x32xf32>
    %1232 = arith.mulf %1223, %1114 : vector<1x32xf32>
    %1233 = arith.addf %1231, %1232 : vector<1x32xf32>
    %cst_281 = arith.constant dense<0.000000e+00> : vector<1x8xf32>
    %1234 = tpu.matmul %1233, %1036, %cst_281 {dimension_numbers = #tpu.dot_dimension_numbers<[1], [0], [0], [1], [0, 0, 1, 1], [], []>} : vector<1x32xf32>, vector<32x8xf32>, vector<1x8xf32> -> vector<1x8xf32>
    %cst_282 = arith.constant dense<0xFF800000> : vector<1xf32>
    %1235 = vector.multi_reduction <maximumf>, %1234, %cst_282 [1] : vector<1x8xf32> to vector<1xf32>
    %1236 = vector.shape_cast %1235 : vector<1xf32> to vector<1x1xf32>
    %1237 = vector.broadcast %1236 : vector<1x1xf32> to vector<1x8xf32>
    %1238 = arith.subf %1234, %1237 : vector<1x8xf32>
    %1239 = math.exp %1238 : vector<1x8xf32>
    %cst_283 = arith.constant dense<0.000000e+00> : vector<1xf32>
    %1240 = vector.multi_reduction <add>, %1239, %cst_283 [1] : vector<1x8xf32> to vector<1xf32>
    %1241 = vector.shape_cast %1240 : vector<1xf32> to vector<1x1xf32>
    %1242 = tpu.reciprocal %1241 {approx = true} : vector<1x1xf32> -> vector<1x1xf32>
    %1243 = vector.broadcast %1242 : vector<1x1xf32> to vector<1x8xf32>
    %1244 = arith.mulf %1239, %1243 : vector<1x8xf32>
    %c0_284 = arith.constant 0 : index
    %c0_285 = arith.constant 0 : index
    %1245 = vector.load %arg9[%c0_284, %c0_285] : memref<32x32xf32, #tpu.memory_space<vmem>>, vector<32x32xf32>
    %cst_286 = arith.constant dense<0.000000e+00> : vector<1x32xf32>
    %1246 = tpu.matmul %1233, %1245, %cst_286 {dimension_numbers = #tpu.dot_dimension_numbers<[1], [0], [0], [1], [0, 0, 1, 1], [], []>} : vector<1x32xf32>, vector<32x32xf32>, vector<1x32xf32> -> vector<1x32xf32>
    %cst_287 = arith.constant dense<0.000000e+00> : vector<1x32xf32>
    %1247 = tpu.matmul %1244, %1038, %cst_287 {dimension_numbers = #tpu.dot_dimension_numbers<[1], [0], [0], [1], [0, 0, 1, 1], [], []>} : vector<1x8xf32>, vector<8x32xf32>, vector<1x32xf32> -> vector<1x32xf32>
    %1248 = arith.addf %1246, %1247 : vector<1x32xf32>
    %c0_288 = arith.constant 0 : index
    %c0_289 = arith.constant 0 : index
    %1249 = vector.load %arg11[%c0_288, %c0_289] : memref<1x32xf32, #tpu.memory_space<vmem>>, vector<1x32xf32>
    %1250 = arith.addf %1248, %1249 : vector<1x32xf32>
    %1251 = math.tanh %1250 : vector<1x32xf32>
    %c0_290 = arith.constant 0 : index
    %c0_291 = arith.constant 0 : index
    %1252 = vector.load %arg12[%c0_290, %c0_291] : memref<32x48xf32, #tpu.memory_space<vmem>>, vector<32x48xf32>
    %cst_292 = arith.constant dense<0.000000e+00> : vector<1x48xf32>
    %1253 = tpu.matmul %1251, %1252, %cst_292 {dimension_numbers = #tpu.dot_dimension_numbers<[1], [0], [0], [1], [0, 0, 1, 1], [], []>} : vector<1x32xf32>, vector<32x48xf32>, vector<1x48xf32> -> vector<1x48xf32>
    %c0_293 = arith.constant 0 : index
    %c0_294 = arith.constant 0 : index
    %1254 = vector.load %arg13[%c0_293, %c0_294] : memref<1x48xf32, #tpu.memory_space<vmem>>, vector<1x48xf32>
    %1255 = arith.addf %1253, %1254 : vector<1x48xf32>
    %cst_295 = arith.constant dense<0xFF800000> : vector<1xf32>
    %1256 = vector.multi_reduction <maximumf>, %1255, %cst_295 [1] : vector<1x48xf32> to vector<1xf32>
    %1257 = vector.shape_cast %1256 : vector<1xf32> to vector<1x1xf32>
    %1258 = vector.broadcast %1257 : vector<1x1xf32> to vector<1x48xf32>
    %1259 = arith.subf %1255, %1258 : vector<1x48xf32>
    %1260 = math.exp %1259 : vector<1x48xf32>
    %cst_296 = arith.constant dense<0.000000e+00> : vector<1xf32>
    %1261 = vector.multi_reduction <add>, %1260, %cst_296 [1] : vector<1x48xf32> to vector<1xf32>
    %1262 = vector.shape_cast %1261 : vector<1xf32> to vector<1x1xf32>
    %cst_297 = arith.constant 1.000000e+00 : f32
    %1263 = vector.broadcast %cst_297 : f32 to vector<1x1xf32>
    %1264 = arith.divf %1263, %1262 : vector<1x1xf32>
    %1265 = vector.broadcast %1257 : vector<1x1xf32> to vector<1x48xf32>
    %1266 = arith.cmpf oge, %1255, %1265 : vector<1x48xf32>
    %cst_298 = arith.constant 4.800000e+01 : f32
    %1267 = vector.broadcast %cst_298 : f32 to vector<1x48xf32>
    %1268 = arith.select %1266, %1040, %1267 : vector<1x48xi1>, vector<1x48xf32>
    %cst_299 = arith.constant dense<0x7F800000> : vector<1xf32>
    %1269 = vector.multi_reduction <minimumf>, %1268, %cst_299 [1] : vector<1x48xf32> to vector<1xf32>
    %1270 = vector.shape_cast %1269 : vector<1xf32> to vector<1x1xf32>
    %c1_i32 = arith.constant 1 : i32
    %1271 = vector.broadcast %c1_i32 : i32 to vector<1x128xi32>
    %1272 = arith.cmpi eq, %1041, %1271 : vector<1x128xi32>
    %1273 = arith.fptosi %1270 : vector<1x1xf32> to vector<1x1xi32>
    %1274 = vector.shape_cast %1273 : vector<1x1xi32> to vector<1x1xi32>
    %1275 = vector.broadcast %1274 : vector<1x1xi32> to vector<1x128xi32>
    %1276 = arith.select %1272, %1275, %1157 : vector<1x128xi1>, vector<1x128xi32>
    %c1_i32_300 = arith.constant 1 : i32
    %1277 = vector.broadcast %c1_i32_300 : i32 to vector<1x128xi32>
    %1278 = arith.cmpi eq, %1041, %1277 : vector<1x128xi32>
    %1279 = vector.shape_cast %1264 : vector<1x1xf32> to vector<1x1xf32>
    %1280 = vector.broadcast %1279 : vector<1x1xf32> to vector<1x128xf32>
    %1281 = arith.select %1278, %1280, %1162 : vector<1x128xi1>, vector<1x128xf32>
    %1282 = vector.broadcast %1270 : vector<1x1xf32> to vector<1x48xf32>
    %1283 = arith.cmpf oeq, %1040, %1282 : vector<1x48xf32>
    %1284 = arith.extui %1283 : vector<1x48xi1> to vector<1x48xi32>
    %1285 = arith.sitofp %1284 : vector<1x48xi32> to vector<1x48xf32>
    %1286 = tpu.concatenate %1285, %1199 in 1 : vector<1x48xf32>, vector<1x32xf32> -> vector<1x80xf32>
    %c0_301 = arith.constant 0 : index
    %c0_302 = arith.constant 0 : index
    %1287 = vector.load %arg6[%c0_301, %c0_302] : memref<80x192xf32, #tpu.memory_space<vmem>>, vector<80x192xf32>
    %cst_303 = arith.constant dense<0.000000e+00> : vector<1x192xf32>
    %1288 = tpu.matmul %1286, %1287, %cst_303 {dimension_numbers = #tpu.dot_dimension_numbers<[1], [0], [0], [1], [0, 0, 1, 1], [], []>} : vector<1x80xf32>, vector<80x192xf32>, vector<1x192xf32> -> vector<1x192xf32>
    %c0_304 = arith.constant 0 : index
    %c0_305 = arith.constant 0 : index
    %1289 = vector.load %arg8[%c0_304, %c0_305] : memref<2x192xf32, #tpu.memory_space<vmem>>, vector<1x192xf32>
    %1290 = arith.addf %1288, %1289 : vector<1x192xf32>
    %1291 = vector.extract_strided_slice %1290 {offsets = [0, 0], sizes = [1, 96], strides = [1, 1]} : vector<1x192xf32> to vector<1x96xf32>
    %1292 = vector.extract_strided_slice %1290 {offsets = [0, 96], sizes = [1, 96], strides = [1, 1]} : vector<1x192xf32> to vector<1x96xf32>
    %1293 = vector.extract_strided_slice %1291 {offsets = [0, 0], sizes = [1, 32], strides = [1, 1]} : vector<1x96xf32> to vector<1x32xf32>
    %1294 = vector.extract_strided_slice %1292 {offsets = [0, 0], sizes = [1, 32], strides = [1, 1]} : vector<1x96xf32> to vector<1x32xf32>
    %1295 = arith.addf %1293, %1294 : vector<1x32xf32>
    %1296 = arith.negf %1295 : vector<1x32xf32>
    %1297 = math.exp %1296 : vector<1x32xf32>
    %cst_306 = arith.constant 1.000000e+00 : f32
    %1298 = vector.broadcast %cst_306 : f32 to vector<1x32xf32>
    %1299 = arith.addf %1298, %1297 : vector<1x32xf32>
    %1300 = arith.divf %1298, %1299 : vector<1x32xf32>
    %1301 = vector.extract_strided_slice %1291 {offsets = [0, 32], sizes = [1, 32], strides = [1, 1]} : vector<1x96xf32> to vector<1x32xf32>
    %1302 = vector.extract_strided_slice %1292 {offsets = [0, 32], sizes = [1, 32], strides = [1, 1]} : vector<1x96xf32> to vector<1x32xf32>
    %1303 = arith.addf %1301, %1302 : vector<1x32xf32>
    %1304 = arith.negf %1303 : vector<1x32xf32>
    %1305 = math.exp %1304 : vector<1x32xf32>
    %cst_307 = arith.constant 1.000000e+00 : f32
    %1306 = vector.broadcast %cst_307 : f32 to vector<1x32xf32>
    %1307 = arith.addf %1306, %1305 : vector<1x32xf32>
    %1308 = arith.divf %1306, %1307 : vector<1x32xf32>
    %1309 = vector.extract_strided_slice %1291 {offsets = [0, 64], sizes = [1, 32], strides = [1, 1]} : vector<1x96xf32> to vector<1x32xf32>
    %1310 = vector.extract_strided_slice %1292 {offsets = [0, 64], sizes = [1, 32], strides = [1, 1]} : vector<1x96xf32> to vector<1x32xf32>
    %1311 = arith.mulf %1300, %1310 : vector<1x32xf32>
    %1312 = arith.addf %1309, %1311 : vector<1x32xf32>
    %1313 = math.tanh %1312 : vector<1x32xf32>
    %cst_308 = arith.constant 1.000000e+00 : f32
    %1314 = vector.broadcast %cst_308 : f32 to vector<1x32xf32>
    %1315 = arith.subf %1314, %1308 : vector<1x32xf32>
    %1316 = arith.mulf %1315, %1313 : vector<1x32xf32>
    %1317 = arith.mulf %1308, %1199 : vector<1x32xf32>
    %1318 = arith.addf %1316, %1317 : vector<1x32xf32>
    %1319 = tpu.concatenate %1318, %1233 in 1 : vector<1x32xf32>, vector<1x32xf32> -> vector<1x64xf32>
    %c0_309 = arith.constant 0 : index
    %c0_310 = arith.constant 0 : index
    %c0_311 = arith.constant 0 : index
    %1320 = vector.load %arg7[%c0_309, %c0_310, %c0_311] : memref<1x64x192xf32, #tpu.memory_space<vmem>>, vector<1x64x192xf32>
    %1321 = vector.shape_cast %1320 : vector<1x64x192xf32> to vector<64x192xf32>
    %cst_312 = arith.constant dense<0.000000e+00> : vector<1x192xf32>
    %1322 = tpu.matmul %1319, %1321, %cst_312 {dimension_numbers = #tpu.dot_dimension_numbers<[1], [0], [0], [1], [0, 0, 1, 1], [], []>} : vector<1x64xf32>, vector<64x192xf32>, vector<1x192xf32> -> vector<1x192xf32>
    %c1_313 = arith.constant 1 : index
    %c0_314 = arith.constant 0 : index
    %1323 = vector.load %arg8[%c1_313, %c0_314] : memref<2x192xf32, #tpu.memory_space<vmem>>, vector<1x192xf32>
    %1324 = arith.addf %1322, %1323 : vector<1x192xf32>
    %1325 = vector.extract_strided_slice %1324 {offsets = [0, 0], sizes = [1, 96], strides = [1, 1]} : vector<1x192xf32> to vector<1x96xf32>
    %1326 = vector.extract_strided_slice %1324 {offsets = [0, 96], sizes = [1, 96], strides = [1, 1]} : vector<1x192xf32> to vector<1x96xf32>
    %1327 = vector.extract_strided_slice %1325 {offsets = [0, 0], sizes = [1, 32], strides = [1, 1]} : vector<1x96xf32> to vector<1x32xf32>
    %1328 = vector.extract_strided_slice %1326 {offsets = [0, 0], sizes = [1, 32], strides = [1, 1]} : vector<1x96xf32> to vector<1x32xf32>
    %1329 = arith.addf %1327, %1328 : vector<1x32xf32>
    %1330 = arith.negf %1329 : vector<1x32xf32>
    %1331 = math.exp %1330 : vector<1x32xf32>
    %cst_315 = arith.constant 1.000000e+00 : f32
    %1332 = vector.broadcast %cst_315 : f32 to vector<1x32xf32>
    %1333 = arith.addf %1332, %1331 : vector<1x32xf32>
    %1334 = arith.divf %1332, %1333 : vector<1x32xf32>
    %1335 = vector.extract_strided_slice %1325 {offsets = [0, 32], sizes = [1, 32], strides = [1, 1]} : vector<1x96xf32> to vector<1x32xf32>
    %1336 = vector.extract_strided_slice %1326 {offsets = [0, 32], sizes = [1, 32], strides = [1, 1]} : vector<1x96xf32> to vector<1x32xf32>
    %1337 = arith.addf %1335, %1336 : vector<1x32xf32>
    %1338 = arith.negf %1337 : vector<1x32xf32>
    %1339 = math.exp %1338 : vector<1x32xf32>
    %cst_316 = arith.constant 1.000000e+00 : f32
    %1340 = vector.broadcast %cst_316 : f32 to vector<1x32xf32>
    %1341 = arith.addf %1340, %1339 : vector<1x32xf32>
    %1342 = arith.divf %1340, %1341 : vector<1x32xf32>
    %1343 = vector.extract_strided_slice %1325 {offsets = [0, 64], sizes = [1, 32], strides = [1, 1]} : vector<1x96xf32> to vector<1x32xf32>
    %1344 = vector.extract_strided_slice %1326 {offsets = [0, 64], sizes = [1, 32], strides = [1, 1]} : vector<1x96xf32> to vector<1x32xf32>
    %1345 = arith.mulf %1334, %1344 : vector<1x32xf32>
    %1346 = arith.addf %1343, %1345 : vector<1x32xf32>
    %1347 = math.tanh %1346 : vector<1x32xf32>
    %cst_317 = arith.constant 1.000000e+00 : f32
    %1348 = vector.broadcast %cst_317 : f32 to vector<1x32xf32>
    %1349 = arith.subf %1348, %1342 : vector<1x32xf32>
    %1350 = arith.mulf %1349, %1347 : vector<1x32xf32>
    %1351 = arith.mulf %1342, %1233 : vector<1x32xf32>
    %1352 = arith.addf %1350, %1351 : vector<1x32xf32>
    %cst_318 = arith.constant dense<0.000000e+00> : vector<1x8xf32>
    %1353 = tpu.matmul %1352, %1036, %cst_318 {dimension_numbers = #tpu.dot_dimension_numbers<[1], [0], [0], [1], [0, 0, 1, 1], [], []>} : vector<1x32xf32>, vector<32x8xf32>, vector<1x8xf32> -> vector<1x8xf32>
    %cst_319 = arith.constant dense<0xFF800000> : vector<1xf32>
    %1354 = vector.multi_reduction <maximumf>, %1353, %cst_319 [1] : vector<1x8xf32> to vector<1xf32>
    %1355 = vector.shape_cast %1354 : vector<1xf32> to vector<1x1xf32>
    %1356 = vector.broadcast %1355 : vector<1x1xf32> to vector<1x8xf32>
    %1357 = arith.subf %1353, %1356 : vector<1x8xf32>
    %1358 = math.exp %1357 : vector<1x8xf32>
    %cst_320 = arith.constant dense<0.000000e+00> : vector<1xf32>
    %1359 = vector.multi_reduction <add>, %1358, %cst_320 [1] : vector<1x8xf32> to vector<1xf32>
    %1360 = vector.shape_cast %1359 : vector<1xf32> to vector<1x1xf32>
    %1361 = tpu.reciprocal %1360 {approx = true} : vector<1x1xf32> -> vector<1x1xf32>
    %1362 = vector.broadcast %1361 : vector<1x1xf32> to vector<1x8xf32>
    %1363 = arith.mulf %1358, %1362 : vector<1x8xf32>
    %c0_321 = arith.constant 0 : index
    %c0_322 = arith.constant 0 : index
    %1364 = vector.load %arg9[%c0_321, %c0_322] : memref<32x32xf32, #tpu.memory_space<vmem>>, vector<32x32xf32>
    %cst_323 = arith.constant dense<0.000000e+00> : vector<1x32xf32>
    %1365 = tpu.matmul %1352, %1364, %cst_323 {dimension_numbers = #tpu.dot_dimension_numbers<[1], [0], [0], [1], [0, 0, 1, 1], [], []>} : vector<1x32xf32>, vector<32x32xf32>, vector<1x32xf32> -> vector<1x32xf32>
    %cst_324 = arith.constant dense<0.000000e+00> : vector<1x32xf32>
    %1366 = tpu.matmul %1363, %1038, %cst_324 {dimension_numbers = #tpu.dot_dimension_numbers<[1], [0], [0], [1], [0, 0, 1, 1], [], []>} : vector<1x8xf32>, vector<8x32xf32>, vector<1x32xf32> -> vector<1x32xf32>
    %1367 = arith.addf %1365, %1366 : vector<1x32xf32>
    %c0_325 = arith.constant 0 : index
    %c0_326 = arith.constant 0 : index
    %1368 = vector.load %arg11[%c0_325, %c0_326] : memref<1x32xf32, #tpu.memory_space<vmem>>, vector<1x32xf32>
    %1369 = arith.addf %1367, %1368 : vector<1x32xf32>
    %1370 = math.tanh %1369 : vector<1x32xf32>
    %c0_327 = arith.constant 0 : index
    %c0_328 = arith.constant 0 : index
    %1371 = vector.load %arg12[%c0_327, %c0_328] : memref<32x48xf32, #tpu.memory_space<vmem>>, vector<32x48xf32>
    %cst_329 = arith.constant dense<0.000000e+00> : vector<1x48xf32>
    %1372 = tpu.matmul %1370, %1371, %cst_329 {dimension_numbers = #tpu.dot_dimension_numbers<[1], [0], [0], [1], [0, 0, 1, 1], [], []>} : vector<1x32xf32>, vector<32x48xf32>, vector<1x48xf32> -> vector<1x48xf32>
    %c0_330 = arith.constant 0 : index
    %c0_331 = arith.constant 0 : index
    %1373 = vector.load %arg13[%c0_330, %c0_331] : memref<1x48xf32, #tpu.memory_space<vmem>>, vector<1x48xf32>
    %1374 = arith.addf %1372, %1373 : vector<1x48xf32>
    %cst_332 = arith.constant dense<0xFF800000> : vector<1xf32>
    %1375 = vector.multi_reduction <maximumf>, %1374, %cst_332 [1] : vector<1x48xf32> to vector<1xf32>
    %1376 = vector.shape_cast %1375 : vector<1xf32> to vector<1x1xf32>
    %1377 = vector.broadcast %1376 : vector<1x1xf32> to vector<1x48xf32>
    %1378 = arith.subf %1374, %1377 : vector<1x48xf32>
    %1379 = math.exp %1378 : vector<1x48xf32>
    %cst_333 = arith.constant dense<0.000000e+00> : vector<1xf32>
    %1380 = vector.multi_reduction <add>, %1379, %cst_333 [1] : vector<1x48xf32> to vector<1xf32>
    %1381 = vector.shape_cast %1380 : vector<1xf32> to vector<1x1xf32>
    %cst_334 = arith.constant 1.000000e+00 : f32
    %1382 = vector.broadcast %cst_334 : f32 to vector<1x1xf32>
    %1383 = arith.divf %1382, %1381 : vector<1x1xf32>
    %1384 = vector.broadcast %1376 : vector<1x1xf32> to vector<1x48xf32>
    %1385 = arith.cmpf oge, %1374, %1384 : vector<1x48xf32>
    %cst_335 = arith.constant 4.800000e+01 : f32
    %1386 = vector.broadcast %cst_335 : f32 to vector<1x48xf32>
    %1387 = arith.select %1385, %1040, %1386 : vector<1x48xi1>, vector<1x48xf32>
    %cst_336 = arith.constant dense<0x7F800000> : vector<1xf32>
    %1388 = vector.multi_reduction <minimumf>, %1387, %cst_336 [1] : vector<1x48xf32> to vector<1xf32>
    %1389 = vector.shape_cast %1388 : vector<1xf32> to vector<1x1xf32>
    %c2_i32 = arith.constant 2 : i32
    %1390 = vector.broadcast %c2_i32 : i32 to vector<1x128xi32>
    %1391 = arith.cmpi eq, %1041, %1390 : vector<1x128xi32>
    %1392 = arith.fptosi %1389 : vector<1x1xf32> to vector<1x1xi32>
    %1393 = vector.shape_cast %1392 : vector<1x1xi32> to vector<1x1xi32>
    %1394 = vector.broadcast %1393 : vector<1x1xi32> to vector<1x128xi32>
    %1395 = arith.select %1391, %1394, %1276 : vector<1x128xi1>, vector<1x128xi32>
    %c2_i32_337 = arith.constant 2 : i32
    %1396 = vector.broadcast %c2_i32_337 : i32 to vector<1x128xi32>
    %1397 = arith.cmpi eq, %1041, %1396 : vector<1x128xi32>
    %1398 = vector.shape_cast %1383 : vector<1x1xf32> to vector<1x1xf32>
    %1399 = vector.broadcast %1398 : vector<1x1xf32> to vector<1x128xf32>
    %1400 = arith.select %1397, %1399, %1281 : vector<1x128xi1>, vector<1x128xf32>
    %1401 = vector.broadcast %1389 : vector<1x1xf32> to vector<1x48xf32>
    %1402 = arith.cmpf oeq, %1040, %1401 : vector<1x48xf32>
    %1403 = arith.extui %1402 : vector<1x48xi1> to vector<1x48xi32>
    %1404 = arith.sitofp %1403 : vector<1x48xi32> to vector<1x48xf32>
    %1405 = tpu.concatenate %1404, %1318 in 1 : vector<1x48xf32>, vector<1x32xf32> -> vector<1x80xf32>
    %c0_338 = arith.constant 0 : index
    %c0_339 = arith.constant 0 : index
    %1406 = vector.load %arg6[%c0_338, %c0_339] : memref<80x192xf32, #tpu.memory_space<vmem>>, vector<80x192xf32>
    %cst_340 = arith.constant dense<0.000000e+00> : vector<1x192xf32>
    %1407 = tpu.matmul %1405, %1406, %cst_340 {dimension_numbers = #tpu.dot_dimension_numbers<[1], [0], [0], [1], [0, 0, 1, 1], [], []>} : vector<1x80xf32>, vector<80x192xf32>, vector<1x192xf32> -> vector<1x192xf32>
    %c0_341 = arith.constant 0 : index
    %c0_342 = arith.constant 0 : index
    %1408 = vector.load %arg8[%c0_341, %c0_342] : memref<2x192xf32, #tpu.memory_space<vmem>>, vector<1x192xf32>
    %1409 = arith.addf %1407, %1408 : vector<1x192xf32>
    %1410 = vector.extract_strided_slice %1409 {offsets = [0, 0], sizes = [1, 96], strides = [1, 1]} : vector<1x192xf32> to vector<1x96xf32>
    %1411 = vector.extract_strided_slice %1409 {offsets = [0, 96], sizes = [1, 96], strides = [1, 1]} : vector<1x192xf32> to vector<1x96xf32>
    %1412 = vector.extract_strided_slice %1410 {offsets = [0, 0], sizes = [1, 32], strides = [1, 1]} : vector<1x96xf32> to vector<1x32xf32>
    %1413 = vector.extract_strided_slice %1411 {offsets = [0, 0], sizes = [1, 32], strides = [1, 1]} : vector<1x96xf32> to vector<1x32xf32>
    %1414 = arith.addf %1412, %1413 : vector<1x32xf32>
    %1415 = arith.negf %1414 : vector<1x32xf32>
    %1416 = math.exp %1415 : vector<1x32xf32>
    %cst_343 = arith.constant 1.000000e+00 : f32
    %1417 = vector.broadcast %cst_343 : f32 to vector<1x32xf32>
    %1418 = arith.addf %1417, %1416 : vector<1x32xf32>
    %1419 = arith.divf %1417, %1418 : vector<1x32xf32>
    %1420 = vector.extract_strided_slice %1410 {offsets = [0, 32], sizes = [1, 32], strides = [1, 1]} : vector<1x96xf32> to vector<1x32xf32>
    %1421 = vector.extract_strided_slice %1411 {offsets = [0, 32], sizes = [1, 32], strides = [1, 1]} : vector<1x96xf32> to vector<1x32xf32>
    %1422 = arith.addf %1420, %1421 : vector<1x32xf32>
    %1423 = arith.negf %1422 : vector<1x32xf32>
    %1424 = math.exp %1423 : vector<1x32xf32>
    %cst_344 = arith.constant 1.000000e+00 : f32
    %1425 = vector.broadcast %cst_344 : f32 to vector<1x32xf32>
    %1426 = arith.addf %1425, %1424 : vector<1x32xf32>
    %1427 = arith.divf %1425, %1426 : vector<1x32xf32>
    %1428 = vector.extract_strided_slice %1410 {offsets = [0, 64], sizes = [1, 32], strides = [1, 1]} : vector<1x96xf32> to vector<1x32xf32>
    %1429 = vector.extract_strided_slice %1411 {offsets = [0, 64], sizes = [1, 32], strides = [1, 1]} : vector<1x96xf32> to vector<1x32xf32>
    %1430 = arith.mulf %1419, %1429 : vector<1x32xf32>
    %1431 = arith.addf %1428, %1430 : vector<1x32xf32>
    %1432 = math.tanh %1431 : vector<1x32xf32>
    %cst_345 = arith.constant 1.000000e+00 : f32
    %1433 = vector.broadcast %cst_345 : f32 to vector<1x32xf32>
    %1434 = arith.subf %1433, %1427 : vector<1x32xf32>
    %1435 = arith.mulf %1434, %1432 : vector<1x32xf32>
    %1436 = arith.mulf %1427, %1318 : vector<1x32xf32>
    %1437 = arith.addf %1435, %1436 : vector<1x32xf32>
    %1438 = tpu.concatenate %1437, %1352 in 1 : vector<1x32xf32>, vector<1x32xf32> -> vector<1x64xf32>
    %c0_346 = arith.constant 0 : index
    %c0_347 = arith.constant 0 : index
    %c0_348 = arith.constant 0 : index
    %1439 = vector.load %arg7[%c0_346, %c0_347, %c0_348] : memref<1x64x192xf32, #tpu.memory_space<vmem>>, vector<1x64x192xf32>
    %1440 = vector.shape_cast %1439 : vector<1x64x192xf32> to vector<64x192xf32>
    %cst_349 = arith.constant dense<0.000000e+00> : vector<1x192xf32>
    %1441 = tpu.matmul %1438, %1440, %cst_349 {dimension_numbers = #tpu.dot_dimension_numbers<[1], [0], [0], [1], [0, 0, 1, 1], [], []>} : vector<1x64xf32>, vector<64x192xf32>, vector<1x192xf32> -> vector<1x192xf32>
    %c1_350 = arith.constant 1 : index
    %c0_351 = arith.constant 0 : index
    %1442 = vector.load %arg8[%c1_350, %c0_351] : memref<2x192xf32, #tpu.memory_space<vmem>>, vector<1x192xf32>
    %1443 = arith.addf %1441, %1442 : vector<1x192xf32>
    %1444 = vector.extract_strided_slice %1443 {offsets = [0, 0], sizes = [1, 96], strides = [1, 1]} : vector<1x192xf32> to vector<1x96xf32>
    %1445 = vector.extract_strided_slice %1443 {offsets = [0, 96], sizes = [1, 96], strides = [1, 1]} : vector<1x192xf32> to vector<1x96xf32>
    %1446 = vector.extract_strided_slice %1444 {offsets = [0, 0], sizes = [1, 32], strides = [1, 1]} : vector<1x96xf32> to vector<1x32xf32>
    %1447 = vector.extract_strided_slice %1445 {offsets = [0, 0], sizes = [1, 32], strides = [1, 1]} : vector<1x96xf32> to vector<1x32xf32>
    %1448 = arith.addf %1446, %1447 : vector<1x32xf32>
    %1449 = arith.negf %1448 : vector<1x32xf32>
    %1450 = math.exp %1449 : vector<1x32xf32>
    %cst_352 = arith.constant 1.000000e+00 : f32
    %1451 = vector.broadcast %cst_352 : f32 to vector<1x32xf32>
    %1452 = arith.addf %1451, %1450 : vector<1x32xf32>
    %1453 = arith.divf %1451, %1452 : vector<1x32xf32>
    %1454 = vector.extract_strided_slice %1444 {offsets = [0, 32], sizes = [1, 32], strides = [1, 1]} : vector<1x96xf32> to vector<1x32xf32>
    %1455 = vector.extract_strided_slice %1445 {offsets = [0, 32], sizes = [1, 32], strides = [1, 1]} : vector<1x96xf32> to vector<1x32xf32>
    %1456 = arith.addf %1454, %1455 : vector<1x32xf32>
    %1457 = arith.negf %1456 : vector<1x32xf32>
    %1458 = math.exp %1457 : vector<1x32xf32>
    %cst_353 = arith.constant 1.000000e+00 : f32
    %1459 = vector.broadcast %cst_353 : f32 to vector<1x32xf32>
    %1460 = arith.addf %1459, %1458 : vector<1x32xf32>
    %1461 = arith.divf %1459, %1460 : vector<1x32xf32>
    %1462 = vector.extract_strided_slice %1444 {offsets = [0, 64], sizes = [1, 32], strides = [1, 1]} : vector<1x96xf32> to vector<1x32xf32>
    %1463 = vector.extract_strided_slice %1445 {offsets = [0, 64], sizes = [1, 32], strides = [1, 1]} : vector<1x96xf32> to vector<1x32xf32>
    %1464 = arith.mulf %1453, %1463 : vector<1x32xf32>
    %1465 = arith.addf %1462, %1464 : vector<1x32xf32>
    %1466 = math.tanh %1465 : vector<1x32xf32>
    %cst_354 = arith.constant 1.000000e+00 : f32
    %1467 = vector.broadcast %cst_354 : f32 to vector<1x32xf32>
    %1468 = arith.subf %1467, %1461 : vector<1x32xf32>
    %1469 = arith.mulf %1468, %1466 : vector<1x32xf32>
    %1470 = arith.mulf %1461, %1352 : vector<1x32xf32>
    %1471 = arith.addf %1469, %1470 : vector<1x32xf32>
    %cst_355 = arith.constant dense<0.000000e+00> : vector<1x8xf32>
    %1472 = tpu.matmul %1471, %1036, %cst_355 {dimension_numbers = #tpu.dot_dimension_numbers<[1], [0], [0], [1], [0, 0, 1, 1], [], []>} : vector<1x32xf32>, vector<32x8xf32>, vector<1x8xf32> -> vector<1x8xf32>
    %cst_356 = arith.constant dense<0xFF800000> : vector<1xf32>
    %1473 = vector.multi_reduction <maximumf>, %1472, %cst_356 [1] : vector<1x8xf32> to vector<1xf32>
    %1474 = vector.shape_cast %1473 : vector<1xf32> to vector<1x1xf32>
    %1475 = vector.broadcast %1474 : vector<1x1xf32> to vector<1x8xf32>
    %1476 = arith.subf %1472, %1475 : vector<1x8xf32>
    %1477 = math.exp %1476 : vector<1x8xf32>
    %cst_357 = arith.constant dense<0.000000e+00> : vector<1xf32>
    %1478 = vector.multi_reduction <add>, %1477, %cst_357 [1] : vector<1x8xf32> to vector<1xf32>
    %1479 = vector.shape_cast %1478 : vector<1xf32> to vector<1x1xf32>
    %1480 = tpu.reciprocal %1479 {approx = true} : vector<1x1xf32> -> vector<1x1xf32>
    %1481 = vector.broadcast %1480 : vector<1x1xf32> to vector<1x8xf32>
    %1482 = arith.mulf %1477, %1481 : vector<1x8xf32>
    %c0_358 = arith.constant 0 : index
    %c0_359 = arith.constant 0 : index
    %1483 = vector.load %arg9[%c0_358, %c0_359] : memref<32x32xf32, #tpu.memory_space<vmem>>, vector<32x32xf32>
    %cst_360 = arith.constant dense<0.000000e+00> : vector<1x32xf32>
    %1484 = tpu.matmul %1471, %1483, %cst_360 {dimension_numbers = #tpu.dot_dimension_numbers<[1], [0], [0], [1], [0, 0, 1, 1], [], []>} : vector<1x32xf32>, vector<32x32xf32>, vector<1x32xf32> -> vector<1x32xf32>
    %cst_361 = arith.constant dense<0.000000e+00> : vector<1x32xf32>
    %1485 = tpu.matmul %1482, %1038, %cst_361 {dimension_numbers = #tpu.dot_dimension_numbers<[1], [0], [0], [1], [0, 0, 1, 1], [], []>} : vector<1x8xf32>, vector<8x32xf32>, vector<1x32xf32> -> vector<1x32xf32>
    %1486 = arith.addf %1484, %1485 : vector<1x32xf32>
    %c0_362 = arith.constant 0 : index
    %c0_363 = arith.constant 0 : index
    %1487 = vector.load %arg11[%c0_362, %c0_363] : memref<1x32xf32, #tpu.memory_space<vmem>>, vector<1x32xf32>
    %1488 = arith.addf %1486, %1487 : vector<1x32xf32>
    %1489 = math.tanh %1488 : vector<1x32xf32>
    %c0_364 = arith.constant 0 : index
    %c0_365 = arith.constant 0 : index
    %1490 = vector.load %arg12[%c0_364, %c0_365] : memref<32x48xf32, #tpu.memory_space<vmem>>, vector<32x48xf32>
    %cst_366 = arith.constant dense<0.000000e+00> : vector<1x48xf32>
    %1491 = tpu.matmul %1489, %1490, %cst_366 {dimension_numbers = #tpu.dot_dimension_numbers<[1], [0], [0], [1], [0, 0, 1, 1], [], []>} : vector<1x32xf32>, vector<32x48xf32>, vector<1x48xf32> -> vector<1x48xf32>
    %c0_367 = arith.constant 0 : index
    %c0_368 = arith.constant 0 : index
    %1492 = vector.load %arg13[%c0_367, %c0_368] : memref<1x48xf32, #tpu.memory_space<vmem>>, vector<1x48xf32>
    %1493 = arith.addf %1491, %1492 : vector<1x48xf32>
    %cst_369 = arith.constant dense<0xFF800000> : vector<1xf32>
    %1494 = vector.multi_reduction <maximumf>, %1493, %cst_369 [1] : vector<1x48xf32> to vector<1xf32>
    %1495 = vector.shape_cast %1494 : vector<1xf32> to vector<1x1xf32>
    %1496 = vector.broadcast %1495 : vector<1x1xf32> to vector<1x48xf32>
    %1497 = arith.subf %1493, %1496 : vector<1x48xf32>
    %1498 = math.exp %1497 : vector<1x48xf32>
    %cst_370 = arith.constant dense<0.000000e+00> : vector<1xf32>
    %1499 = vector.multi_reduction <add>, %1498, %cst_370 [1] : vector<1x48xf32> to vector<1xf32>
    %1500 = vector.shape_cast %1499 : vector<1xf32> to vector<1x1xf32>
    %cst_371 = arith.constant 1.000000e+00 : f32
    %1501 = vector.broadcast %cst_371 : f32 to vector<1x1xf32>
    %1502 = arith.divf %1501, %1500 : vector<1x1xf32>
    %1503 = vector.broadcast %1495 : vector<1x1xf32> to vector<1x48xf32>
    %1504 = arith.cmpf oge, %1493, %1503 : vector<1x48xf32>
    %cst_372 = arith.constant 4.800000e+01 : f32
    %1505 = vector.broadcast %cst_372 : f32 to vector<1x48xf32>
    %1506 = arith.select %1504, %1040, %1505 : vector<1x48xi1>, vector<1x48xf32>
    %cst_373 = arith.constant dense<0x7F800000> : vector<1xf32>
    %1507 = vector.multi_reduction <minimumf>, %1506, %cst_373 [1] : vector<1x48xf32> to vector<1xf32>
    %1508 = vector.shape_cast %1507 : vector<1xf32> to vector<1x1xf32>
    %c3_i32 = arith.constant 3 : i32
    %1509 = vector.broadcast %c3_i32 : i32 to vector<1x128xi32>
    %1510 = arith.cmpi eq, %1041, %1509 : vector<1x128xi32>
    %1511 = arith.fptosi %1508 : vector<1x1xf32> to vector<1x1xi32>
    %1512 = vector.shape_cast %1511 : vector<1x1xi32> to vector<1x1xi32>
    %1513 = vector.broadcast %1512 : vector<1x1xi32> to vector<1x128xi32>
    %1514 = arith.select %1510, %1513, %1395 : vector<1x128xi1>, vector<1x128xi32>
    %c3_i32_374 = arith.constant 3 : i32
    %1515 = vector.broadcast %c3_i32_374 : i32 to vector<1x128xi32>
    %1516 = arith.cmpi eq, %1041, %1515 : vector<1x128xi32>
    %1517 = vector.shape_cast %1502 : vector<1x1xf32> to vector<1x1xf32>
    %1518 = vector.broadcast %1517 : vector<1x1xf32> to vector<1x128xf32>
    %1519 = arith.select %1516, %1518, %1400 : vector<1x128xi1>, vector<1x128xf32>
    %1520 = vector.broadcast %1508 : vector<1x1xf32> to vector<1x48xf32>
    %1521 = arith.cmpf oeq, %1040, %1520 : vector<1x48xf32>
    %1522 = arith.extui %1521 : vector<1x48xi1> to vector<1x48xi32>
    %1523 = arith.sitofp %1522 : vector<1x48xi32> to vector<1x48xf32>
    %1524 = tpu.concatenate %1523, %1437 in 1 : vector<1x48xf32>, vector<1x32xf32> -> vector<1x80xf32>
    %c0_375 = arith.constant 0 : index
    %c0_376 = arith.constant 0 : index
    %1525 = vector.load %arg6[%c0_375, %c0_376] : memref<80x192xf32, #tpu.memory_space<vmem>>, vector<80x192xf32>
    %cst_377 = arith.constant dense<0.000000e+00> : vector<1x192xf32>
    %1526 = tpu.matmul %1524, %1525, %cst_377 {dimension_numbers = #tpu.dot_dimension_numbers<[1], [0], [0], [1], [0, 0, 1, 1], [], []>} : vector<1x80xf32>, vector<80x192xf32>, vector<1x192xf32> -> vector<1x192xf32>
    %c0_378 = arith.constant 0 : index
    %c0_379 = arith.constant 0 : index
    %1527 = vector.load %arg8[%c0_378, %c0_379] : memref<2x192xf32, #tpu.memory_space<vmem>>, vector<1x192xf32>
    %1528 = arith.addf %1526, %1527 : vector<1x192xf32>
    %1529 = vector.extract_strided_slice %1528 {offsets = [0, 0], sizes = [1, 96], strides = [1, 1]} : vector<1x192xf32> to vector<1x96xf32>
    %1530 = vector.extract_strided_slice %1528 {offsets = [0, 96], sizes = [1, 96], strides = [1, 1]} : vector<1x192xf32> to vector<1x96xf32>
    %1531 = vector.extract_strided_slice %1529 {offsets = [0, 0], sizes = [1, 32], strides = [1, 1]} : vector<1x96xf32> to vector<1x32xf32>
    %1532 = vector.extract_strided_slice %1530 {offsets = [0, 0], sizes = [1, 32], strides = [1, 1]} : vector<1x96xf32> to vector<1x32xf32>
    %1533 = arith.addf %1531, %1532 : vector<1x32xf32>
    %1534 = arith.negf %1533 : vector<1x32xf32>
    %1535 = math.exp %1534 : vector<1x32xf32>
    %cst_380 = arith.constant 1.000000e+00 : f32
    %1536 = vector.broadcast %cst_380 : f32 to vector<1x32xf32>
    %1537 = arith.addf %1536, %1535 : vector<1x32xf32>
    %1538 = arith.divf %1536, %1537 : vector<1x32xf32>
    %1539 = vector.extract_strided_slice %1529 {offsets = [0, 32], sizes = [1, 32], strides = [1, 1]} : vector<1x96xf32> to vector<1x32xf32>
    %1540 = vector.extract_strided_slice %1530 {offsets = [0, 32], sizes = [1, 32], strides = [1, 1]} : vector<1x96xf32> to vector<1x32xf32>
    %1541 = arith.addf %1539, %1540 : vector<1x32xf32>
    %1542 = arith.negf %1541 : vector<1x32xf32>
    %1543 = math.exp %1542 : vector<1x32xf32>
    %cst_381 = arith.constant 1.000000e+00 : f32
    %1544 = vector.broadcast %cst_381 : f32 to vector<1x32xf32>
    %1545 = arith.addf %1544, %1543 : vector<1x32xf32>
    %1546 = arith.divf %1544, %1545 : vector<1x32xf32>
    %1547 = vector.extract_strided_slice %1529 {offsets = [0, 64], sizes = [1, 32], strides = [1, 1]} : vector<1x96xf32> to vector<1x32xf32>
    %1548 = vector.extract_strided_slice %1530 {offsets = [0, 64], sizes = [1, 32], strides = [1, 1]} : vector<1x96xf32> to vector<1x32xf32>
    %1549 = arith.mulf %1538, %1548 : vector<1x32xf32>
    %1550 = arith.addf %1547, %1549 : vector<1x32xf32>
    %1551 = math.tanh %1550 : vector<1x32xf32>
    %cst_382 = arith.constant 1.000000e+00 : f32
    %1552 = vector.broadcast %cst_382 : f32 to vector<1x32xf32>
    %1553 = arith.subf %1552, %1546 : vector<1x32xf32>
    %1554 = arith.mulf %1553, %1551 : vector<1x32xf32>
    %1555 = arith.mulf %1546, %1437 : vector<1x32xf32>
    %1556 = arith.addf %1554, %1555 : vector<1x32xf32>
    %1557 = tpu.concatenate %1556, %1471 in 1 : vector<1x32xf32>, vector<1x32xf32> -> vector<1x64xf32>
    %c0_383 = arith.constant 0 : index
    %c0_384 = arith.constant 0 : index
    %c0_385 = arith.constant 0 : index
    %1558 = vector.load %arg7[%c0_383, %c0_384, %c0_385] : memref<1x64x192xf32, #tpu.memory_space<vmem>>, vector<1x64x192xf32>
    %1559 = vector.shape_cast %1558 : vector<1x64x192xf32> to vector<64x192xf32>
    %cst_386 = arith.constant dense<0.000000e+00> : vector<1x192xf32>
    %1560 = tpu.matmul %1557, %1559, %cst_386 {dimension_numbers = #tpu.dot_dimension_numbers<[1], [0], [0], [1], [0, 0, 1, 1], [], []>} : vector<1x64xf32>, vector<64x192xf32>, vector<1x192xf32> -> vector<1x192xf32>
    %c1_387 = arith.constant 1 : index
    %c0_388 = arith.constant 0 : index
    %1561 = vector.load %arg8[%c1_387, %c0_388] : memref<2x192xf32, #tpu.memory_space<vmem>>, vector<1x192xf32>
    %1562 = arith.addf %1560, %1561 : vector<1x192xf32>
    %1563 = vector.extract_strided_slice %1562 {offsets = [0, 0], sizes = [1, 96], strides = [1, 1]} : vector<1x192xf32> to vector<1x96xf32>
    %1564 = vector.extract_strided_slice %1562 {offsets = [0, 96], sizes = [1, 96], strides = [1, 1]} : vector<1x192xf32> to vector<1x96xf32>
    %1565 = vector.extract_strided_slice %1563 {offsets = [0, 0], sizes = [1, 32], strides = [1, 1]} : vector<1x96xf32> to vector<1x32xf32>
    %1566 = vector.extract_strided_slice %1564 {offsets = [0, 0], sizes = [1, 32], strides = [1, 1]} : vector<1x96xf32> to vector<1x32xf32>
    %1567 = arith.addf %1565, %1566 : vector<1x32xf32>
    %1568 = arith.negf %1567 : vector<1x32xf32>
    %1569 = math.exp %1568 : vector<1x32xf32>
    %cst_389 = arith.constant 1.000000e+00 : f32
    %1570 = vector.broadcast %cst_389 : f32 to vector<1x32xf32>
    %1571 = arith.addf %1570, %1569 : vector<1x32xf32>
    %1572 = arith.divf %1570, %1571 : vector<1x32xf32>
    %1573 = vector.extract_strided_slice %1563 {offsets = [0, 32], sizes = [1, 32], strides = [1, 1]} : vector<1x96xf32> to vector<1x32xf32>
    %1574 = vector.extract_strided_slice %1564 {offsets = [0, 32], sizes = [1, 32], strides = [1, 1]} : vector<1x96xf32> to vector<1x32xf32>
    %1575 = arith.addf %1573, %1574 : vector<1x32xf32>
    %1576 = arith.negf %1575 : vector<1x32xf32>
    %1577 = math.exp %1576 : vector<1x32xf32>
    %cst_390 = arith.constant 1.000000e+00 : f32
    %1578 = vector.broadcast %cst_390 : f32 to vector<1x32xf32>
    %1579 = arith.addf %1578, %1577 : vector<1x32xf32>
    %1580 = arith.divf %1578, %1579 : vector<1x32xf32>
    %1581 = vector.extract_strided_slice %1563 {offsets = [0, 64], sizes = [1, 32], strides = [1, 1]} : vector<1x96xf32> to vector<1x32xf32>
    %1582 = vector.extract_strided_slice %1564 {offsets = [0, 64], sizes = [1, 32], strides = [1, 1]} : vector<1x96xf32> to vector<1x32xf32>
    %1583 = arith.mulf %1572, %1582 : vector<1x32xf32>
    %1584 = arith.addf %1581, %1583 : vector<1x32xf32>
    %1585 = math.tanh %1584 : vector<1x32xf32>
    %cst_391 = arith.constant 1.000000e+00 : f32
    %1586 = vector.broadcast %cst_391 : f32 to vector<1x32xf32>
    %1587 = arith.subf %1586, %1580 : vector<1x32xf32>
    %1588 = arith.mulf %1587, %1585 : vector<1x32xf32>
    %1589 = arith.mulf %1580, %1471 : vector<1x32xf32>
    %1590 = arith.addf %1588, %1589 : vector<1x32xf32>
    %cst_392 = arith.constant dense<0.000000e+00> : vector<1x8xf32>
    %1591 = tpu.matmul %1590, %1036, %cst_392 {dimension_numbers = #tpu.dot_dimension_numbers<[1], [0], [0], [1], [0, 0, 1, 1], [], []>} : vector<1x32xf32>, vector<32x8xf32>, vector<1x8xf32> -> vector<1x8xf32>
    %cst_393 = arith.constant dense<0xFF800000> : vector<1xf32>
    %1592 = vector.multi_reduction <maximumf>, %1591, %cst_393 [1] : vector<1x8xf32> to vector<1xf32>
    %1593 = vector.shape_cast %1592 : vector<1xf32> to vector<1x1xf32>
    %1594 = vector.broadcast %1593 : vector<1x1xf32> to vector<1x8xf32>
    %1595 = arith.subf %1591, %1594 : vector<1x8xf32>
    %1596 = math.exp %1595 : vector<1x8xf32>
    %cst_394 = arith.constant dense<0.000000e+00> : vector<1xf32>
    %1597 = vector.multi_reduction <add>, %1596, %cst_394 [1] : vector<1x8xf32> to vector<1xf32>
    %1598 = vector.shape_cast %1597 : vector<1xf32> to vector<1x1xf32>
    %1599 = tpu.reciprocal %1598 {approx = true} : vector<1x1xf32> -> vector<1x1xf32>
    %1600 = vector.broadcast %1599 : vector<1x1xf32> to vector<1x8xf32>
    %1601 = arith.mulf %1596, %1600 : vector<1x8xf32>
    %c0_395 = arith.constant 0 : index
    %c0_396 = arith.constant 0 : index
    %1602 = vector.load %arg9[%c0_395, %c0_396] : memref<32x32xf32, #tpu.memory_space<vmem>>, vector<32x32xf32>
    %cst_397 = arith.constant dense<0.000000e+00> : vector<1x32xf32>
    %1603 = tpu.matmul %1590, %1602, %cst_397 {dimension_numbers = #tpu.dot_dimension_numbers<[1], [0], [0], [1], [0, 0, 1, 1], [], []>} : vector<1x32xf32>, vector<32x32xf32>, vector<1x32xf32> -> vector<1x32xf32>
    %cst_398 = arith.constant dense<0.000000e+00> : vector<1x32xf32>
    %1604 = tpu.matmul %1601, %1038, %cst_398 {dimension_numbers = #tpu.dot_dimension_numbers<[1], [0], [0], [1], [0, 0, 1, 1], [], []>} : vector<1x8xf32>, vector<8x32xf32>, vector<1x32xf32> -> vector<1x32xf32>
    %1605 = arith.addf %1603, %1604 : vector<1x32xf32>
    %c0_399 = arith.constant 0 : index
    %c0_400 = arith.constant 0 : index
    %1606 = vector.load %arg11[%c0_399, %c0_400] : memref<1x32xf32, #tpu.memory_space<vmem>>, vector<1x32xf32>
    %1607 = arith.addf %1605, %1606 : vector<1x32xf32>
    %1608 = math.tanh %1607 : vector<1x32xf32>
    %c0_401 = arith.constant 0 : index
    %c0_402 = arith.constant 0 : index
    %1609 = vector.load %arg12[%c0_401, %c0_402] : memref<32x48xf32, #tpu.memory_space<vmem>>, vector<32x48xf32>
    %cst_403 = arith.constant dense<0.000000e+00> : vector<1x48xf32>
    %1610 = tpu.matmul %1608, %1609, %cst_403 {dimension_numbers = #tpu.dot_dimension_numbers<[1], [0], [0], [1], [0, 0, 1, 1], [], []>} : vector<1x32xf32>, vector<32x48xf32>, vector<1x48xf32> -> vector<1x48xf32>
    %c0_404 = arith.constant 0 : index
    %c0_405 = arith.constant 0 : index
    %1611 = vector.load %arg13[%c0_404, %c0_405] : memref<1x48xf32, #tpu.memory_space<vmem>>, vector<1x48xf32>
    %1612 = arith.addf %1610, %1611 : vector<1x48xf32>
    %cst_406 = arith.constant dense<0xFF800000> : vector<1xf32>
    %1613 = vector.multi_reduction <maximumf>, %1612, %cst_406 [1] : vector<1x48xf32> to vector<1xf32>
    %1614 = vector.shape_cast %1613 : vector<1xf32> to vector<1x1xf32>
    %1615 = vector.broadcast %1614 : vector<1x1xf32> to vector<1x48xf32>
    %1616 = arith.subf %1612, %1615 : vector<1x48xf32>
    %1617 = math.exp %1616 : vector<1x48xf32>
    %cst_407 = arith.constant dense<0.000000e+00> : vector<1xf32>
    %1618 = vector.multi_reduction <add>, %1617, %cst_407 [1] : vector<1x48xf32> to vector<1xf32>
    %1619 = vector.shape_cast %1618 : vector<1xf32> to vector<1x1xf32>
    %cst_408 = arith.constant 1.000000e+00 : f32
    %1620 = vector.broadcast %cst_408 : f32 to vector<1x1xf32>
    %1621 = arith.divf %1620, %1619 : vector<1x1xf32>
    %1622 = vector.broadcast %1614 : vector<1x1xf32> to vector<1x48xf32>
    %1623 = arith.cmpf oge, %1612, %1622 : vector<1x48xf32>
    %cst_409 = arith.constant 4.800000e+01 : f32
    %1624 = vector.broadcast %cst_409 : f32 to vector<1x48xf32>
    %1625 = arith.select %1623, %1040, %1624 : vector<1x48xi1>, vector<1x48xf32>
    %cst_410 = arith.constant dense<0x7F800000> : vector<1xf32>
    %1626 = vector.multi_reduction <minimumf>, %1625, %cst_410 [1] : vector<1x48xf32> to vector<1xf32>
    %1627 = vector.shape_cast %1626 : vector<1xf32> to vector<1x1xf32>
    %c4_i32 = arith.constant 4 : i32
    %1628 = vector.broadcast %c4_i32 : i32 to vector<1x128xi32>
    %1629 = arith.cmpi eq, %1041, %1628 : vector<1x128xi32>
    %1630 = arith.fptosi %1627 : vector<1x1xf32> to vector<1x1xi32>
    %1631 = vector.shape_cast %1630 : vector<1x1xi32> to vector<1x1xi32>
    %1632 = vector.broadcast %1631 : vector<1x1xi32> to vector<1x128xi32>
    %1633 = arith.select %1629, %1632, %1514 : vector<1x128xi1>, vector<1x128xi32>
    %c4_i32_411 = arith.constant 4 : i32
    %1634 = vector.broadcast %c4_i32_411 : i32 to vector<1x128xi32>
    %1635 = arith.cmpi eq, %1041, %1634 : vector<1x128xi32>
    %1636 = vector.shape_cast %1621 : vector<1x1xf32> to vector<1x1xf32>
    %1637 = vector.broadcast %1636 : vector<1x1xf32> to vector<1x128xf32>
    %1638 = arith.select %1635, %1637, %1519 : vector<1x128xi1>, vector<1x128xf32>
    %1639 = vector.broadcast %1627 : vector<1x1xf32> to vector<1x48xf32>
    %1640 = arith.cmpf oeq, %1040, %1639 : vector<1x48xf32>
    %1641 = arith.extui %1640 : vector<1x48xi1> to vector<1x48xi32>
    %1642 = arith.sitofp %1641 : vector<1x48xi32> to vector<1x48xf32>
    %1643 = tpu.concatenate %1642, %1556 in 1 : vector<1x48xf32>, vector<1x32xf32> -> vector<1x80xf32>
    %c0_412 = arith.constant 0 : index
    %c0_413 = arith.constant 0 : index
    %1644 = vector.load %arg6[%c0_412, %c0_413] : memref<80x192xf32, #tpu.memory_space<vmem>>, vector<80x192xf32>
    %cst_414 = arith.constant dense<0.000000e+00> : vector<1x192xf32>
    %1645 = tpu.matmul %1643, %1644, %cst_414 {dimension_numbers = #tpu.dot_dimension_numbers<[1], [0], [0], [1], [0, 0, 1, 1], [], []>} : vector<1x80xf32>, vector<80x192xf32>, vector<1x192xf32> -> vector<1x192xf32>
    %c0_415 = arith.constant 0 : index
    %c0_416 = arith.constant 0 : index
    %1646 = vector.load %arg8[%c0_415, %c0_416] : memref<2x192xf32, #tpu.memory_space<vmem>>, vector<1x192xf32>
    %1647 = arith.addf %1645, %1646 : vector<1x192xf32>
    %1648 = vector.extract_strided_slice %1647 {offsets = [0, 0], sizes = [1, 96], strides = [1, 1]} : vector<1x192xf32> to vector<1x96xf32>
    %1649 = vector.extract_strided_slice %1647 {offsets = [0, 96], sizes = [1, 96], strides = [1, 1]} : vector<1x192xf32> to vector<1x96xf32>
    %1650 = vector.extract_strided_slice %1648 {offsets = [0, 0], sizes = [1, 32], strides = [1, 1]} : vector<1x96xf32> to vector<1x32xf32>
    %1651 = vector.extract_strided_slice %1649 {offsets = [0, 0], sizes = [1, 32], strides = [1, 1]} : vector<1x96xf32> to vector<1x32xf32>
    %1652 = arith.addf %1650, %1651 : vector<1x32xf32>
    %1653 = arith.negf %1652 : vector<1x32xf32>
    %1654 = math.exp %1653 : vector<1x32xf32>
    %cst_417 = arith.constant 1.000000e+00 : f32
    %1655 = vector.broadcast %cst_417 : f32 to vector<1x32xf32>
    %1656 = arith.addf %1655, %1654 : vector<1x32xf32>
    %1657 = arith.divf %1655, %1656 : vector<1x32xf32>
    %1658 = vector.extract_strided_slice %1648 {offsets = [0, 32], sizes = [1, 32], strides = [1, 1]} : vector<1x96xf32> to vector<1x32xf32>
    %1659 = vector.extract_strided_slice %1649 {offsets = [0, 32], sizes = [1, 32], strides = [1, 1]} : vector<1x96xf32> to vector<1x32xf32>
    %1660 = arith.addf %1658, %1659 : vector<1x32xf32>
    %1661 = arith.negf %1660 : vector<1x32xf32>
    %1662 = math.exp %1661 : vector<1x32xf32>
    %cst_418 = arith.constant 1.000000e+00 : f32
    %1663 = vector.broadcast %cst_418 : f32 to vector<1x32xf32>
    %1664 = arith.addf %1663, %1662 : vector<1x32xf32>
    %1665 = arith.divf %1663, %1664 : vector<1x32xf32>
    %1666 = vector.extract_strided_slice %1648 {offsets = [0, 64], sizes = [1, 32], strides = [1, 1]} : vector<1x96xf32> to vector<1x32xf32>
    %1667 = vector.extract_strided_slice %1649 {offsets = [0, 64], sizes = [1, 32], strides = [1, 1]} : vector<1x96xf32> to vector<1x32xf32>
    %1668 = arith.mulf %1657, %1667 : vector<1x32xf32>
    %1669 = arith.addf %1666, %1668 : vector<1x32xf32>
    %1670 = math.tanh %1669 : vector<1x32xf32>
    %cst_419 = arith.constant 1.000000e+00 : f32
    %1671 = vector.broadcast %cst_419 : f32 to vector<1x32xf32>
    %1672 = arith.subf %1671, %1665 : vector<1x32xf32>
    %1673 = arith.mulf %1672, %1670 : vector<1x32xf32>
    %1674 = arith.mulf %1665, %1556 : vector<1x32xf32>
    %1675 = arith.addf %1673, %1674 : vector<1x32xf32>
    %1676 = tpu.concatenate %1675, %1590 in 1 : vector<1x32xf32>, vector<1x32xf32> -> vector<1x64xf32>
    %c0_420 = arith.constant 0 : index
    %c0_421 = arith.constant 0 : index
    %c0_422 = arith.constant 0 : index
    %1677 = vector.load %arg7[%c0_420, %c0_421, %c0_422] : memref<1x64x192xf32, #tpu.memory_space<vmem>>, vector<1x64x192xf32>
    %1678 = vector.shape_cast %1677 : vector<1x64x192xf32> to vector<64x192xf32>
    %cst_423 = arith.constant dense<0.000000e+00> : vector<1x192xf32>
    %1679 = tpu.matmul %1676, %1678, %cst_423 {dimension_numbers = #tpu.dot_dimension_numbers<[1], [0], [0], [1], [0, 0, 1, 1], [], []>} : vector<1x64xf32>, vector<64x192xf32>, vector<1x192xf32> -> vector<1x192xf32>
    %c1_424 = arith.constant 1 : index
    %c0_425 = arith.constant 0 : index
    %1680 = vector.load %arg8[%c1_424, %c0_425] : memref<2x192xf32, #tpu.memory_space<vmem>>, vector<1x192xf32>
    %1681 = arith.addf %1679, %1680 : vector<1x192xf32>
    %1682 = vector.extract_strided_slice %1681 {offsets = [0, 0], sizes = [1, 96], strides = [1, 1]} : vector<1x192xf32> to vector<1x96xf32>
    %1683 = vector.extract_strided_slice %1681 {offsets = [0, 96], sizes = [1, 96], strides = [1, 1]} : vector<1x192xf32> to vector<1x96xf32>
    %1684 = vector.extract_strided_slice %1682 {offsets = [0, 0], sizes = [1, 32], strides = [1, 1]} : vector<1x96xf32> to vector<1x32xf32>
    %1685 = vector.extract_strided_slice %1683 {offsets = [0, 0], sizes = [1, 32], strides = [1, 1]} : vector<1x96xf32> to vector<1x32xf32>
    %1686 = arith.addf %1684, %1685 : vector<1x32xf32>
    %1687 = arith.negf %1686 : vector<1x32xf32>
    %1688 = math.exp %1687 : vector<1x32xf32>
    %cst_426 = arith.constant 1.000000e+00 : f32
    %1689 = vector.broadcast %cst_426 : f32 to vector<1x32xf32>
    %1690 = arith.addf %1689, %1688 : vector<1x32xf32>
    %1691 = arith.divf %1689, %1690 : vector<1x32xf32>
    %1692 = vector.extract_strided_slice %1682 {offsets = [0, 32], sizes = [1, 32], strides = [1, 1]} : vector<1x96xf32> to vector<1x32xf32>
    %1693 = vector.extract_strided_slice %1683 {offsets = [0, 32], sizes = [1, 32], strides = [1, 1]} : vector<1x96xf32> to vector<1x32xf32>
    %1694 = arith.addf %1692, %1693 : vector<1x32xf32>
    %1695 = arith.negf %1694 : vector<1x32xf32>
    %1696 = math.exp %1695 : vector<1x32xf32>
    %cst_427 = arith.constant 1.000000e+00 : f32
    %1697 = vector.broadcast %cst_427 : f32 to vector<1x32xf32>
    %1698 = arith.addf %1697, %1696 : vector<1x32xf32>
    %1699 = arith.divf %1697, %1698 : vector<1x32xf32>
    %1700 = vector.extract_strided_slice %1682 {offsets = [0, 64], sizes = [1, 32], strides = [1, 1]} : vector<1x96xf32> to vector<1x32xf32>
    %1701 = vector.extract_strided_slice %1683 {offsets = [0, 64], sizes = [1, 32], strides = [1, 1]} : vector<1x96xf32> to vector<1x32xf32>
    %1702 = arith.mulf %1691, %1701 : vector<1x32xf32>
    %1703 = arith.addf %1700, %1702 : vector<1x32xf32>
    %1704 = math.tanh %1703 : vector<1x32xf32>
    %cst_428 = arith.constant 1.000000e+00 : f32
    %1705 = vector.broadcast %cst_428 : f32 to vector<1x32xf32>
    %1706 = arith.subf %1705, %1699 : vector<1x32xf32>
    %1707 = arith.mulf %1706, %1704 : vector<1x32xf32>
    %1708 = arith.mulf %1699, %1590 : vector<1x32xf32>
    %1709 = arith.addf %1707, %1708 : vector<1x32xf32>
    %cst_429 = arith.constant dense<0.000000e+00> : vector<1x8xf32>
    %1710 = tpu.matmul %1709, %1036, %cst_429 {dimension_numbers = #tpu.dot_dimension_numbers<[1], [0], [0], [1], [0, 0, 1, 1], [], []>} : vector<1x32xf32>, vector<32x8xf32>, vector<1x8xf32> -> vector<1x8xf32>
    %cst_430 = arith.constant dense<0xFF800000> : vector<1xf32>
    %1711 = vector.multi_reduction <maximumf>, %1710, %cst_430 [1] : vector<1x8xf32> to vector<1xf32>
    %1712 = vector.shape_cast %1711 : vector<1xf32> to vector<1x1xf32>
    %1713 = vector.broadcast %1712 : vector<1x1xf32> to vector<1x8xf32>
    %1714 = arith.subf %1710, %1713 : vector<1x8xf32>
    %1715 = math.exp %1714 : vector<1x8xf32>
    %cst_431 = arith.constant dense<0.000000e+00> : vector<1xf32>
    %1716 = vector.multi_reduction <add>, %1715, %cst_431 [1] : vector<1x8xf32> to vector<1xf32>
    %1717 = vector.shape_cast %1716 : vector<1xf32> to vector<1x1xf32>
    %1718 = tpu.reciprocal %1717 {approx = true} : vector<1x1xf32> -> vector<1x1xf32>
    %1719 = vector.broadcast %1718 : vector<1x1xf32> to vector<1x8xf32>
    %1720 = arith.mulf %1715, %1719 : vector<1x8xf32>
    %c0_432 = arith.constant 0 : index
    %c0_433 = arith.constant 0 : index
    %1721 = vector.load %arg9[%c0_432, %c0_433] : memref<32x32xf32, #tpu.memory_space<vmem>>, vector<32x32xf32>
    %cst_434 = arith.constant dense<0.000000e+00> : vector<1x32xf32>
    %1722 = tpu.matmul %1709, %1721, %cst_434 {dimension_numbers = #tpu.dot_dimension_numbers<[1], [0], [0], [1], [0, 0, 1, 1], [], []>} : vector<1x32xf32>, vector<32x32xf32>, vector<1x32xf32> -> vector<1x32xf32>
    %cst_435 = arith.constant dense<0.000000e+00> : vector<1x32xf32>
    %1723 = tpu.matmul %1720, %1038, %cst_435 {dimension_numbers = #tpu.dot_dimension_numbers<[1], [0], [0], [1], [0, 0, 1, 1], [], []>} : vector<1x8xf32>, vector<8x32xf32>, vector<1x32xf32> -> vector<1x32xf32>
    %1724 = arith.addf %1722, %1723 : vector<1x32xf32>
    %c0_436 = arith.constant 0 : index
    %c0_437 = arith.constant 0 : index
    %1725 = vector.load %arg11[%c0_436, %c0_437] : memref<1x32xf32, #tpu.memory_space<vmem>>, vector<1x32xf32>
    %1726 = arith.addf %1724, %1725 : vector<1x32xf32>
    %1727 = math.tanh %1726 : vector<1x32xf32>
    %c0_438 = arith.constant 0 : index
    %c0_439 = arith.constant 0 : index
    %1728 = vector.load %arg12[%c0_438, %c0_439] : memref<32x48xf32, #tpu.memory_space<vmem>>, vector<32x48xf32>
    %cst_440 = arith.constant dense<0.000000e+00> : vector<1x48xf32>
    %1729 = tpu.matmul %1727, %1728, %cst_440 {dimension_numbers = #tpu.dot_dimension_numbers<[1], [0], [0], [1], [0, 0, 1, 1], [], []>} : vector<1x32xf32>, vector<32x48xf32>, vector<1x48xf32> -> vector<1x48xf32>
    %c0_441 = arith.constant 0 : index
    %c0_442 = arith.constant 0 : index
    %1730 = vector.load %arg13[%c0_441, %c0_442] : memref<1x48xf32, #tpu.memory_space<vmem>>, vector<1x48xf32>
    %1731 = arith.addf %1729, %1730 : vector<1x48xf32>
    %cst_443 = arith.constant dense<0xFF800000> : vector<1xf32>
    %1732 = vector.multi_reduction <maximumf>, %1731, %cst_443 [1] : vector<1x48xf32> to vector<1xf32>
    %1733 = vector.shape_cast %1732 : vector<1xf32> to vector<1x1xf32>
    %1734 = vector.broadcast %1733 : vector<1x1xf32> to vector<1x48xf32>
    %1735 = arith.subf %1731, %1734 : vector<1x48xf32>
    %1736 = math.exp %1735 : vector<1x48xf32>
    %cst_444 = arith.constant dense<0.000000e+00> : vector<1xf32>
    %1737 = vector.multi_reduction <add>, %1736, %cst_444 [1] : vector<1x48xf32> to vector<1xf32>
    %1738 = vector.shape_cast %1737 : vector<1xf32> to vector<1x1xf32>
    %cst_445 = arith.constant 1.000000e+00 : f32
    %1739 = vector.broadcast %cst_445 : f32 to vector<1x1xf32>
    %1740 = arith.divf %1739, %1738 : vector<1x1xf32>
    %1741 = vector.broadcast %1733 : vector<1x1xf32> to vector<1x48xf32>
    %1742 = arith.cmpf oge, %1731, %1741 : vector<1x48xf32>
    %cst_446 = arith.constant 4.800000e+01 : f32
    %1743 = vector.broadcast %cst_446 : f32 to vector<1x48xf32>
    %1744 = arith.select %1742, %1040, %1743 : vector<1x48xi1>, vector<1x48xf32>
    %cst_447 = arith.constant dense<0x7F800000> : vector<1xf32>
    %1745 = vector.multi_reduction <minimumf>, %1744, %cst_447 [1] : vector<1x48xf32> to vector<1xf32>
    %1746 = vector.shape_cast %1745 : vector<1xf32> to vector<1x1xf32>
    %c5_i32 = arith.constant 5 : i32
    %1747 = vector.broadcast %c5_i32 : i32 to vector<1x128xi32>
    %1748 = arith.cmpi eq, %1041, %1747 : vector<1x128xi32>
    %1749 = arith.fptosi %1746 : vector<1x1xf32> to vector<1x1xi32>
    %1750 = vector.shape_cast %1749 : vector<1x1xi32> to vector<1x1xi32>
    %1751 = vector.broadcast %1750 : vector<1x1xi32> to vector<1x128xi32>
    %1752 = arith.select %1748, %1751, %1633 : vector<1x128xi1>, vector<1x128xi32>
    %c5_i32_448 = arith.constant 5 : i32
    %1753 = vector.broadcast %c5_i32_448 : i32 to vector<1x128xi32>
    %1754 = arith.cmpi eq, %1041, %1753 : vector<1x128xi32>
    %1755 = vector.shape_cast %1740 : vector<1x1xf32> to vector<1x1xf32>
    %1756 = vector.broadcast %1755 : vector<1x1xf32> to vector<1x128xf32>
    %1757 = arith.select %1754, %1756, %1638 : vector<1x128xi1>, vector<1x128xf32>
    %1758 = vector.broadcast %1746 : vector<1x1xf32> to vector<1x48xf32>
    %1759 = arith.cmpf oeq, %1040, %1758 : vector<1x48xf32>
    %1760 = arith.extui %1759 : vector<1x48xi1> to vector<1x48xi32>
    %1761 = arith.sitofp %1760 : vector<1x48xi32> to vector<1x48xf32>
    %1762 = tpu.concatenate %1761, %1675 in 1 : vector<1x48xf32>, vector<1x32xf32> -> vector<1x80xf32>
    %c0_449 = arith.constant 0 : index
    %c0_450 = arith.constant 0 : index
    %1763 = vector.load %arg6[%c0_449, %c0_450] : memref<80x192xf32, #tpu.memory_space<vmem>>, vector<80x192xf32>
    %cst_451 = arith.constant dense<0.000000e+00> : vector<1x192xf32>
    %1764 = tpu.matmul %1762, %1763, %cst_451 {dimension_numbers = #tpu.dot_dimension_numbers<[1], [0], [0], [1], [0, 0, 1, 1], [], []>} : vector<1x80xf32>, vector<80x192xf32>, vector<1x192xf32> -> vector<1x192xf32>
    %c0_452 = arith.constant 0 : index
    %c0_453 = arith.constant 0 : index
    %1765 = vector.load %arg8[%c0_452, %c0_453] : memref<2x192xf32, #tpu.memory_space<vmem>>, vector<1x192xf32>
    %1766 = arith.addf %1764, %1765 : vector<1x192xf32>
    %1767 = vector.extract_strided_slice %1766 {offsets = [0, 0], sizes = [1, 96], strides = [1, 1]} : vector<1x192xf32> to vector<1x96xf32>
    %1768 = vector.extract_strided_slice %1766 {offsets = [0, 96], sizes = [1, 96], strides = [1, 1]} : vector<1x192xf32> to vector<1x96xf32>
    %1769 = vector.extract_strided_slice %1767 {offsets = [0, 0], sizes = [1, 32], strides = [1, 1]} : vector<1x96xf32> to vector<1x32xf32>
    %1770 = vector.extract_strided_slice %1768 {offsets = [0, 0], sizes = [1, 32], strides = [1, 1]} : vector<1x96xf32> to vector<1x32xf32>
    %1771 = arith.addf %1769, %1770 : vector<1x32xf32>
    %1772 = arith.negf %1771 : vector<1x32xf32>
    %1773 = math.exp %1772 : vector<1x32xf32>
    %cst_454 = arith.constant 1.000000e+00 : f32
    %1774 = vector.broadcast %cst_454 : f32 to vector<1x32xf32>
    %1775 = arith.addf %1774, %1773 : vector<1x32xf32>
    %1776 = arith.divf %1774, %1775 : vector<1x32xf32>
    %1777 = vector.extract_strided_slice %1767 {offsets = [0, 32], sizes = [1, 32], strides = [1, 1]} : vector<1x96xf32> to vector<1x32xf32>
    %1778 = vector.extract_strided_slice %1768 {offsets = [0, 32], sizes = [1, 32], strides = [1, 1]} : vector<1x96xf32> to vector<1x32xf32>
    %1779 = arith.addf %1777, %1778 : vector<1x32xf32>
    %1780 = arith.negf %1779 : vector<1x32xf32>
    %1781 = math.exp %1780 : vector<1x32xf32>
    %cst_455 = arith.constant 1.000000e+00 : f32
    %1782 = vector.broadcast %cst_455 : f32 to vector<1x32xf32>
    %1783 = arith.addf %1782, %1781 : vector<1x32xf32>
    %1784 = arith.divf %1782, %1783 : vector<1x32xf32>
    %1785 = vector.extract_strided_slice %1767 {offsets = [0, 64], sizes = [1, 32], strides = [1, 1]} : vector<1x96xf32> to vector<1x32xf32>
    %1786 = vector.extract_strided_slice %1768 {offsets = [0, 64], sizes = [1, 32], strides = [1, 1]} : vector<1x96xf32> to vector<1x32xf32>
    %1787 = arith.mulf %1776, %1786 : vector<1x32xf32>
    %1788 = arith.addf %1785, %1787 : vector<1x32xf32>
    %1789 = math.tanh %1788 : vector<1x32xf32>
    %cst_456 = arith.constant 1.000000e+00 : f32
    %1790 = vector.broadcast %cst_456 : f32 to vector<1x32xf32>
    %1791 = arith.subf %1790, %1784 : vector<1x32xf32>
    %1792 = arith.mulf %1791, %1789 : vector<1x32xf32>
    %1793 = arith.mulf %1784, %1675 : vector<1x32xf32>
    %1794 = arith.addf %1792, %1793 : vector<1x32xf32>
    %1795 = tpu.concatenate %1794, %1709 in 1 : vector<1x32xf32>, vector<1x32xf32> -> vector<1x64xf32>
    %c0_457 = arith.constant 0 : index
    %c0_458 = arith.constant 0 : index
    %c0_459 = arith.constant 0 : index
    %1796 = vector.load %arg7[%c0_457, %c0_458, %c0_459] : memref<1x64x192xf32, #tpu.memory_space<vmem>>, vector<1x64x192xf32>
    %1797 = vector.shape_cast %1796 : vector<1x64x192xf32> to vector<64x192xf32>
    %cst_460 = arith.constant dense<0.000000e+00> : vector<1x192xf32>
    %1798 = tpu.matmul %1795, %1797, %cst_460 {dimension_numbers = #tpu.dot_dimension_numbers<[1], [0], [0], [1], [0, 0, 1, 1], [], []>} : vector<1x64xf32>, vector<64x192xf32>, vector<1x192xf32> -> vector<1x192xf32>
    %c1_461 = arith.constant 1 : index
    %c0_462 = arith.constant 0 : index
    %1799 = vector.load %arg8[%c1_461, %c0_462] : memref<2x192xf32, #tpu.memory_space<vmem>>, vector<1x192xf32>
    %1800 = arith.addf %1798, %1799 : vector<1x192xf32>
    %1801 = vector.extract_strided_slice %1800 {offsets = [0, 0], sizes = [1, 96], strides = [1, 1]} : vector<1x192xf32> to vector<1x96xf32>
    %1802 = vector.extract_strided_slice %1800 {offsets = [0, 96], sizes = [1, 96], strides = [1, 1]} : vector<1x192xf32> to vector<1x96xf32>
    %1803 = vector.extract_strided_slice %1801 {offsets = [0, 0], sizes = [1, 32], strides = [1, 1]} : vector<1x96xf32> to vector<1x32xf32>
    %1804 = vector.extract_strided_slice %1802 {offsets = [0, 0], sizes = [1, 32], strides = [1, 1]} : vector<1x96xf32> to vector<1x32xf32>
    %1805 = arith.addf %1803, %1804 : vector<1x32xf32>
    %1806 = arith.negf %1805 : vector<1x32xf32>
    %1807 = math.exp %1806 : vector<1x32xf32>
    %cst_463 = arith.constant 1.000000e+00 : f32
    %1808 = vector.broadcast %cst_463 : f32 to vector<1x32xf32>
    %1809 = arith.addf %1808, %1807 : vector<1x32xf32>
    %1810 = arith.divf %1808, %1809 : vector<1x32xf32>
    %1811 = vector.extract_strided_slice %1801 {offsets = [0, 32], sizes = [1, 32], strides = [1, 1]} : vector<1x96xf32> to vector<1x32xf32>
    %1812 = vector.extract_strided_slice %1802 {offsets = [0, 32], sizes = [1, 32], strides = [1, 1]} : vector<1x96xf32> to vector<1x32xf32>
    %1813 = arith.addf %1811, %1812 : vector<1x32xf32>
    %1814 = arith.negf %1813 : vector<1x32xf32>
    %1815 = math.exp %1814 : vector<1x32xf32>
    %cst_464 = arith.constant 1.000000e+00 : f32
    %1816 = vector.broadcast %cst_464 : f32 to vector<1x32xf32>
    %1817 = arith.addf %1816, %1815 : vector<1x32xf32>
    %1818 = arith.divf %1816, %1817 : vector<1x32xf32>
    %1819 = vector.extract_strided_slice %1801 {offsets = [0, 64], sizes = [1, 32], strides = [1, 1]} : vector<1x96xf32> to vector<1x32xf32>
    %1820 = vector.extract_strided_slice %1802 {offsets = [0, 64], sizes = [1, 32], strides = [1, 1]} : vector<1x96xf32> to vector<1x32xf32>
    %1821 = arith.mulf %1810, %1820 : vector<1x32xf32>
    %1822 = arith.addf %1819, %1821 : vector<1x32xf32>
    %1823 = math.tanh %1822 : vector<1x32xf32>
    %cst_465 = arith.constant 1.000000e+00 : f32
    %1824 = vector.broadcast %cst_465 : f32 to vector<1x32xf32>
    %1825 = arith.subf %1824, %1818 : vector<1x32xf32>
    %1826 = arith.mulf %1825, %1823 : vector<1x32xf32>
    %1827 = arith.mulf %1818, %1709 : vector<1x32xf32>
    %1828 = arith.addf %1826, %1827 : vector<1x32xf32>
    %cst_466 = arith.constant dense<0.000000e+00> : vector<1x8xf32>
    %1829 = tpu.matmul %1828, %1036, %cst_466 {dimension_numbers = #tpu.dot_dimension_numbers<[1], [0], [0], [1], [0, 0, 1, 1], [], []>} : vector<1x32xf32>, vector<32x8xf32>, vector<1x8xf32> -> vector<1x8xf32>
    %cst_467 = arith.constant dense<0xFF800000> : vector<1xf32>
    %1830 = vector.multi_reduction <maximumf>, %1829, %cst_467 [1] : vector<1x8xf32> to vector<1xf32>
    %1831 = vector.shape_cast %1830 : vector<1xf32> to vector<1x1xf32>
    %1832 = vector.broadcast %1831 : vector<1x1xf32> to vector<1x8xf32>
    %1833 = arith.subf %1829, %1832 : vector<1x8xf32>
    %1834 = math.exp %1833 : vector<1x8xf32>
    %cst_468 = arith.constant dense<0.000000e+00> : vector<1xf32>
    %1835 = vector.multi_reduction <add>, %1834, %cst_468 [1] : vector<1x8xf32> to vector<1xf32>
    %1836 = vector.shape_cast %1835 : vector<1xf32> to vector<1x1xf32>
    %1837 = tpu.reciprocal %1836 {approx = true} : vector<1x1xf32> -> vector<1x1xf32>
    %1838 = vector.broadcast %1837 : vector<1x1xf32> to vector<1x8xf32>
    %1839 = arith.mulf %1834, %1838 : vector<1x8xf32>
    %c0_469 = arith.constant 0 : index
    %c0_470 = arith.constant 0 : index
    %1840 = vector.load %arg9[%c0_469, %c0_470] : memref<32x32xf32, #tpu.memory_space<vmem>>, vector<32x32xf32>
    %cst_471 = arith.constant dense<0.000000e+00> : vector<1x32xf32>
    %1841 = tpu.matmul %1828, %1840, %cst_471 {dimension_numbers = #tpu.dot_dimension_numbers<[1], [0], [0], [1], [0, 0, 1, 1], [], []>} : vector<1x32xf32>, vector<32x32xf32>, vector<1x32xf32> -> vector<1x32xf32>
    %cst_472 = arith.constant dense<0.000000e+00> : vector<1x32xf32>
    %1842 = tpu.matmul %1839, %1038, %cst_472 {dimension_numbers = #tpu.dot_dimension_numbers<[1], [0], [0], [1], [0, 0, 1, 1], [], []>} : vector<1x8xf32>, vector<8x32xf32>, vector<1x32xf32> -> vector<1x32xf32>
    %1843 = arith.addf %1841, %1842 : vector<1x32xf32>
    %c0_473 = arith.constant 0 : index
    %c0_474 = arith.constant 0 : index
    %1844 = vector.load %arg11[%c0_473, %c0_474] : memref<1x32xf32, #tpu.memory_space<vmem>>, vector<1x32xf32>
    %1845 = arith.addf %1843, %1844 : vector<1x32xf32>
    %1846 = math.tanh %1845 : vector<1x32xf32>
    %c0_475 = arith.constant 0 : index
    %c0_476 = arith.constant 0 : index
    %1847 = vector.load %arg12[%c0_475, %c0_476] : memref<32x48xf32, #tpu.memory_space<vmem>>, vector<32x48xf32>
    %cst_477 = arith.constant dense<0.000000e+00> : vector<1x48xf32>
    %1848 = tpu.matmul %1846, %1847, %cst_477 {dimension_numbers = #tpu.dot_dimension_numbers<[1], [0], [0], [1], [0, 0, 1, 1], [], []>} : vector<1x32xf32>, vector<32x48xf32>, vector<1x48xf32> -> vector<1x48xf32>
    %c0_478 = arith.constant 0 : index
    %c0_479 = arith.constant 0 : index
    %1849 = vector.load %arg13[%c0_478, %c0_479] : memref<1x48xf32, #tpu.memory_space<vmem>>, vector<1x48xf32>
    %1850 = arith.addf %1848, %1849 : vector<1x48xf32>
    %cst_480 = arith.constant dense<0xFF800000> : vector<1xf32>
    %1851 = vector.multi_reduction <maximumf>, %1850, %cst_480 [1] : vector<1x48xf32> to vector<1xf32>
    %1852 = vector.shape_cast %1851 : vector<1xf32> to vector<1x1xf32>
    %1853 = vector.broadcast %1852 : vector<1x1xf32> to vector<1x48xf32>
    %1854 = arith.subf %1850, %1853 : vector<1x48xf32>
    %1855 = math.exp %1854 : vector<1x48xf32>
    %cst_481 = arith.constant dense<0.000000e+00> : vector<1xf32>
    %1856 = vector.multi_reduction <add>, %1855, %cst_481 [1] : vector<1x48xf32> to vector<1xf32>
    %1857 = vector.shape_cast %1856 : vector<1xf32> to vector<1x1xf32>
    %cst_482 = arith.constant 1.000000e+00 : f32
    %1858 = vector.broadcast %cst_482 : f32 to vector<1x1xf32>
    %1859 = arith.divf %1858, %1857 : vector<1x1xf32>
    %1860 = vector.broadcast %1852 : vector<1x1xf32> to vector<1x48xf32>
    %1861 = arith.cmpf oge, %1850, %1860 : vector<1x48xf32>
    %cst_483 = arith.constant 4.800000e+01 : f32
    %1862 = vector.broadcast %cst_483 : f32 to vector<1x48xf32>
    %1863 = arith.select %1861, %1040, %1862 : vector<1x48xi1>, vector<1x48xf32>
    %cst_484 = arith.constant dense<0x7F800000> : vector<1xf32>
    %1864 = vector.multi_reduction <minimumf>, %1863, %cst_484 [1] : vector<1x48xf32> to vector<1xf32>
    %1865 = vector.shape_cast %1864 : vector<1xf32> to vector<1x1xf32>
    %c6_i32 = arith.constant 6 : i32
    %1866 = vector.broadcast %c6_i32 : i32 to vector<1x128xi32>
    %1867 = arith.cmpi eq, %1041, %1866 : vector<1x128xi32>
    %1868 = arith.fptosi %1865 : vector<1x1xf32> to vector<1x1xi32>
    %1869 = vector.shape_cast %1868 : vector<1x1xi32> to vector<1x1xi32>
    %1870 = vector.broadcast %1869 : vector<1x1xi32> to vector<1x128xi32>
    %1871 = arith.select %1867, %1870, %1752 : vector<1x128xi1>, vector<1x128xi32>
    %c6_i32_485 = arith.constant 6 : i32
    %1872 = vector.broadcast %c6_i32_485 : i32 to vector<1x128xi32>
    %1873 = arith.cmpi eq, %1041, %1872 : vector<1x128xi32>
    %1874 = vector.shape_cast %1859 : vector<1x1xf32> to vector<1x1xf32>
    %1875 = vector.broadcast %1874 : vector<1x1xf32> to vector<1x128xf32>
    %1876 = arith.select %1873, %1875, %1757 : vector<1x128xi1>, vector<1x128xf32>
    %1877 = vector.broadcast %1865 : vector<1x1xf32> to vector<1x48xf32>
    %1878 = arith.cmpf oeq, %1040, %1877 : vector<1x48xf32>
    %1879 = arith.extui %1878 : vector<1x48xi1> to vector<1x48xi32>
    %1880 = arith.sitofp %1879 : vector<1x48xi32> to vector<1x48xf32>
    %1881 = tpu.concatenate %1880, %1794 in 1 : vector<1x48xf32>, vector<1x32xf32> -> vector<1x80xf32>
    %c0_486 = arith.constant 0 : index
    %c0_487 = arith.constant 0 : index
    %1882 = vector.load %arg6[%c0_486, %c0_487] : memref<80x192xf32, #tpu.memory_space<vmem>>, vector<80x192xf32>
    %cst_488 = arith.constant dense<0.000000e+00> : vector<1x192xf32>
    %1883 = tpu.matmul %1881, %1882, %cst_488 {dimension_numbers = #tpu.dot_dimension_numbers<[1], [0], [0], [1], [0, 0, 1, 1], [], []>} : vector<1x80xf32>, vector<80x192xf32>, vector<1x192xf32> -> vector<1x192xf32>
    %c0_489 = arith.constant 0 : index
    %c0_490 = arith.constant 0 : index
    %1884 = vector.load %arg8[%c0_489, %c0_490] : memref<2x192xf32, #tpu.memory_space<vmem>>, vector<1x192xf32>
    %1885 = arith.addf %1883, %1884 : vector<1x192xf32>
    %1886 = vector.extract_strided_slice %1885 {offsets = [0, 0], sizes = [1, 96], strides = [1, 1]} : vector<1x192xf32> to vector<1x96xf32>
    %1887 = vector.extract_strided_slice %1885 {offsets = [0, 96], sizes = [1, 96], strides = [1, 1]} : vector<1x192xf32> to vector<1x96xf32>
    %1888 = vector.extract_strided_slice %1886 {offsets = [0, 0], sizes = [1, 32], strides = [1, 1]} : vector<1x96xf32> to vector<1x32xf32>
    %1889 = vector.extract_strided_slice %1887 {offsets = [0, 0], sizes = [1, 32], strides = [1, 1]} : vector<1x96xf32> to vector<1x32xf32>
    %1890 = arith.addf %1888, %1889 : vector<1x32xf32>
    %1891 = arith.negf %1890 : vector<1x32xf32>
    %1892 = math.exp %1891 : vector<1x32xf32>
    %cst_491 = arith.constant 1.000000e+00 : f32
    %1893 = vector.broadcast %cst_491 : f32 to vector<1x32xf32>
    %1894 = arith.addf %1893, %1892 : vector<1x32xf32>
    %1895 = arith.divf %1893, %1894 : vector<1x32xf32>
    %1896 = vector.extract_strided_slice %1886 {offsets = [0, 32], sizes = [1, 32], strides = [1, 1]} : vector<1x96xf32> to vector<1x32xf32>
    %1897 = vector.extract_strided_slice %1887 {offsets = [0, 32], sizes = [1, 32], strides = [1, 1]} : vector<1x96xf32> to vector<1x32xf32>
    %1898 = arith.addf %1896, %1897 : vector<1x32xf32>
    %1899 = arith.negf %1898 : vector<1x32xf32>
    %1900 = math.exp %1899 : vector<1x32xf32>
    %cst_492 = arith.constant 1.000000e+00 : f32
    %1901 = vector.broadcast %cst_492 : f32 to vector<1x32xf32>
    %1902 = arith.addf %1901, %1900 : vector<1x32xf32>
    %1903 = arith.divf %1901, %1902 : vector<1x32xf32>
    %1904 = vector.extract_strided_slice %1886 {offsets = [0, 64], sizes = [1, 32], strides = [1, 1]} : vector<1x96xf32> to vector<1x32xf32>
    %1905 = vector.extract_strided_slice %1887 {offsets = [0, 64], sizes = [1, 32], strides = [1, 1]} : vector<1x96xf32> to vector<1x32xf32>
    %1906 = arith.mulf %1895, %1905 : vector<1x32xf32>
    %1907 = arith.addf %1904, %1906 : vector<1x32xf32>
    %1908 = math.tanh %1907 : vector<1x32xf32>
    %cst_493 = arith.constant 1.000000e+00 : f32
    %1909 = vector.broadcast %cst_493 : f32 to vector<1x32xf32>
    %1910 = arith.subf %1909, %1903 : vector<1x32xf32>
    %1911 = arith.mulf %1910, %1908 : vector<1x32xf32>
    %1912 = arith.mulf %1903, %1794 : vector<1x32xf32>
    %1913 = arith.addf %1911, %1912 : vector<1x32xf32>
    %1914 = tpu.concatenate %1913, %1828 in 1 : vector<1x32xf32>, vector<1x32xf32> -> vector<1x64xf32>
    %c0_494 = arith.constant 0 : index
    %c0_495 = arith.constant 0 : index
    %c0_496 = arith.constant 0 : index
    %1915 = vector.load %arg7[%c0_494, %c0_495, %c0_496] : memref<1x64x192xf32, #tpu.memory_space<vmem>>, vector<1x64x192xf32>
    %1916 = vector.shape_cast %1915 : vector<1x64x192xf32> to vector<64x192xf32>
    %cst_497 = arith.constant dense<0.000000e+00> : vector<1x192xf32>
    %1917 = tpu.matmul %1914, %1916, %cst_497 {dimension_numbers = #tpu.dot_dimension_numbers<[1], [0], [0], [1], [0, 0, 1, 1], [], []>} : vector<1x64xf32>, vector<64x192xf32>, vector<1x192xf32> -> vector<1x192xf32>
    %c1_498 = arith.constant 1 : index
    %c0_499 = arith.constant 0 : index
    %1918 = vector.load %arg8[%c1_498, %c0_499] : memref<2x192xf32, #tpu.memory_space<vmem>>, vector<1x192xf32>
    %1919 = arith.addf %1917, %1918 : vector<1x192xf32>
    %1920 = vector.extract_strided_slice %1919 {offsets = [0, 0], sizes = [1, 96], strides = [1, 1]} : vector<1x192xf32> to vector<1x96xf32>
    %1921 = vector.extract_strided_slice %1919 {offsets = [0, 96], sizes = [1, 96], strides = [1, 1]} : vector<1x192xf32> to vector<1x96xf32>
    %1922 = vector.extract_strided_slice %1920 {offsets = [0, 0], sizes = [1, 32], strides = [1, 1]} : vector<1x96xf32> to vector<1x32xf32>
    %1923 = vector.extract_strided_slice %1921 {offsets = [0, 0], sizes = [1, 32], strides = [1, 1]} : vector<1x96xf32> to vector<1x32xf32>
    %1924 = arith.addf %1922, %1923 : vector<1x32xf32>
    %1925 = arith.negf %1924 : vector<1x32xf32>
    %1926 = math.exp %1925 : vector<1x32xf32>
    %cst_500 = arith.constant 1.000000e+00 : f32
    %1927 = vector.broadcast %cst_500 : f32 to vector<1x32xf32>
    %1928 = arith.addf %1927, %1926 : vector<1x32xf32>
    %1929 = arith.divf %1927, %1928 : vector<1x32xf32>
    %1930 = vector.extract_strided_slice %1920 {offsets = [0, 32], sizes = [1, 32], strides = [1, 1]} : vector<1x96xf32> to vector<1x32xf32>
    %1931 = vector.extract_strided_slice %1921 {offsets = [0, 32], sizes = [1, 32], strides = [1, 1]} : vector<1x96xf32> to vector<1x32xf32>
    %1932 = arith.addf %1930, %1931 : vector<1x32xf32>
    %1933 = arith.negf %1932 : vector<1x32xf32>
    %1934 = math.exp %1933 : vector<1x32xf32>
    %cst_501 = arith.constant 1.000000e+00 : f32
    %1935 = vector.broadcast %cst_501 : f32 to vector<1x32xf32>
    %1936 = arith.addf %1935, %1934 : vector<1x32xf32>
    %1937 = arith.divf %1935, %1936 : vector<1x32xf32>
    %1938 = vector.extract_strided_slice %1920 {offsets = [0, 64], sizes = [1, 32], strides = [1, 1]} : vector<1x96xf32> to vector<1x32xf32>
    %1939 = vector.extract_strided_slice %1921 {offsets = [0, 64], sizes = [1, 32], strides = [1, 1]} : vector<1x96xf32> to vector<1x32xf32>
    %1940 = arith.mulf %1929, %1939 : vector<1x32xf32>
    %1941 = arith.addf %1938, %1940 : vector<1x32xf32>
    %1942 = math.tanh %1941 : vector<1x32xf32>
    %cst_502 = arith.constant 1.000000e+00 : f32
    %1943 = vector.broadcast %cst_502 : f32 to vector<1x32xf32>
    %1944 = arith.subf %1943, %1937 : vector<1x32xf32>
    %1945 = arith.mulf %1944, %1942 : vector<1x32xf32>
    %1946 = arith.mulf %1937, %1828 : vector<1x32xf32>
    %1947 = arith.addf %1945, %1946 : vector<1x32xf32>
    %cst_503 = arith.constant dense<0.000000e+00> : vector<1x8xf32>
    %1948 = tpu.matmul %1947, %1036, %cst_503 {dimension_numbers = #tpu.dot_dimension_numbers<[1], [0], [0], [1], [0, 0, 1, 1], [], []>} : vector<1x32xf32>, vector<32x8xf32>, vector<1x8xf32> -> vector<1x8xf32>
    %cst_504 = arith.constant dense<0xFF800000> : vector<1xf32>
    %1949 = vector.multi_reduction <maximumf>, %1948, %cst_504 [1] : vector<1x8xf32> to vector<1xf32>
    %1950 = vector.shape_cast %1949 : vector<1xf32> to vector<1x1xf32>
    %1951 = vector.broadcast %1950 : vector<1x1xf32> to vector<1x8xf32>
    %1952 = arith.subf %1948, %1951 : vector<1x8xf32>
    %1953 = math.exp %1952 : vector<1x8xf32>
    %cst_505 = arith.constant dense<0.000000e+00> : vector<1xf32>
    %1954 = vector.multi_reduction <add>, %1953, %cst_505 [1] : vector<1x8xf32> to vector<1xf32>
    %1955 = vector.shape_cast %1954 : vector<1xf32> to vector<1x1xf32>
    %1956 = tpu.reciprocal %1955 {approx = true} : vector<1x1xf32> -> vector<1x1xf32>
    %1957 = vector.broadcast %1956 : vector<1x1xf32> to vector<1x8xf32>
    %1958 = arith.mulf %1953, %1957 : vector<1x8xf32>
    %c0_506 = arith.constant 0 : index
    %c0_507 = arith.constant 0 : index
    %1959 = vector.load %arg9[%c0_506, %c0_507] : memref<32x32xf32, #tpu.memory_space<vmem>>, vector<32x32xf32>
    %cst_508 = arith.constant dense<0.000000e+00> : vector<1x32xf32>
    %1960 = tpu.matmul %1947, %1959, %cst_508 {dimension_numbers = #tpu.dot_dimension_numbers<[1], [0], [0], [1], [0, 0, 1, 1], [], []>} : vector<1x32xf32>, vector<32x32xf32>, vector<1x32xf32> -> vector<1x32xf32>
    %cst_509 = arith.constant dense<0.000000e+00> : vector<1x32xf32>
    %1961 = tpu.matmul %1958, %1038, %cst_509 {dimension_numbers = #tpu.dot_dimension_numbers<[1], [0], [0], [1], [0, 0, 1, 1], [], []>} : vector<1x8xf32>, vector<8x32xf32>, vector<1x32xf32> -> vector<1x32xf32>
    %1962 = arith.addf %1960, %1961 : vector<1x32xf32>
    %c0_510 = arith.constant 0 : index
    %c0_511 = arith.constant 0 : index
    %1963 = vector.load %arg11[%c0_510, %c0_511] : memref<1x32xf32, #tpu.memory_space<vmem>>, vector<1x32xf32>
    %1964 = arith.addf %1962, %1963 : vector<1x32xf32>
    %1965 = math.tanh %1964 : vector<1x32xf32>
    %c0_512 = arith.constant 0 : index
    %c0_513 = arith.constant 0 : index
    %1966 = vector.load %arg12[%c0_512, %c0_513] : memref<32x48xf32, #tpu.memory_space<vmem>>, vector<32x48xf32>
    %cst_514 = arith.constant dense<0.000000e+00> : vector<1x48xf32>
    %1967 = tpu.matmul %1965, %1966, %cst_514 {dimension_numbers = #tpu.dot_dimension_numbers<[1], [0], [0], [1], [0, 0, 1, 1], [], []>} : vector<1x32xf32>, vector<32x48xf32>, vector<1x48xf32> -> vector<1x48xf32>
    %c0_515 = arith.constant 0 : index
    %c0_516 = arith.constant 0 : index
    %1968 = vector.load %arg13[%c0_515, %c0_516] : memref<1x48xf32, #tpu.memory_space<vmem>>, vector<1x48xf32>
    %1969 = arith.addf %1967, %1968 : vector<1x48xf32>
    %cst_517 = arith.constant dense<0xFF800000> : vector<1xf32>
    %1970 = vector.multi_reduction <maximumf>, %1969, %cst_517 [1] : vector<1x48xf32> to vector<1xf32>
    %1971 = vector.shape_cast %1970 : vector<1xf32> to vector<1x1xf32>
    %1972 = vector.broadcast %1971 : vector<1x1xf32> to vector<1x48xf32>
    %1973 = arith.subf %1969, %1972 : vector<1x48xf32>
    %1974 = math.exp %1973 : vector<1x48xf32>
    %cst_518 = arith.constant dense<0.000000e+00> : vector<1xf32>
    %1975 = vector.multi_reduction <add>, %1974, %cst_518 [1] : vector<1x48xf32> to vector<1xf32>
    %1976 = vector.shape_cast %1975 : vector<1xf32> to vector<1x1xf32>
    %cst_519 = arith.constant 1.000000e+00 : f32
    %1977 = vector.broadcast %cst_519 : f32 to vector<1x1xf32>
    %1978 = arith.divf %1977, %1976 : vector<1x1xf32>
    %1979 = vector.broadcast %1971 : vector<1x1xf32> to vector<1x48xf32>
    %1980 = arith.cmpf oge, %1969, %1979 : vector<1x48xf32>
    %cst_520 = arith.constant 4.800000e+01 : f32
    %1981 = vector.broadcast %cst_520 : f32 to vector<1x48xf32>
    %1982 = arith.select %1980, %1040, %1981 : vector<1x48xi1>, vector<1x48xf32>
    %cst_521 = arith.constant dense<0x7F800000> : vector<1xf32>
    %1983 = vector.multi_reduction <minimumf>, %1982, %cst_521 [1] : vector<1x48xf32> to vector<1xf32>
    %1984 = vector.shape_cast %1983 : vector<1xf32> to vector<1x1xf32>
    %c7_i32 = arith.constant 7 : i32
    %1985 = vector.broadcast %c7_i32 : i32 to vector<1x128xi32>
    %1986 = arith.cmpi eq, %1041, %1985 : vector<1x128xi32>
    %1987 = arith.fptosi %1984 : vector<1x1xf32> to vector<1x1xi32>
    %1988 = vector.shape_cast %1987 : vector<1x1xi32> to vector<1x1xi32>
    %1989 = vector.broadcast %1988 : vector<1x1xi32> to vector<1x128xi32>
    %1990 = arith.select %1986, %1989, %1871 : vector<1x128xi1>, vector<1x128xi32>
    %c7_i32_522 = arith.constant 7 : i32
    %1991 = vector.broadcast %c7_i32_522 : i32 to vector<1x128xi32>
    %1992 = arith.cmpi eq, %1041, %1991 : vector<1x128xi32>
    %1993 = vector.shape_cast %1978 : vector<1x1xf32> to vector<1x1xf32>
    %1994 = vector.broadcast %1993 : vector<1x1xf32> to vector<1x128xf32>
    %1995 = arith.select %1992, %1994, %1876 : vector<1x128xi1>, vector<1x128xf32>
    %1996 = vector.broadcast %1984 : vector<1x1xf32> to vector<1x48xf32>
    %1997 = arith.cmpf oeq, %1040, %1996 : vector<1x48xf32>
    %1998 = arith.extui %1997 : vector<1x48xi1> to vector<1x48xi32>
    %1999 = arith.sitofp %1998 : vector<1x48xi32> to vector<1x48xf32>
    %2000 = tpu.concatenate %1999, %1913 in 1 : vector<1x48xf32>, vector<1x32xf32> -> vector<1x80xf32>
    %c0_523 = arith.constant 0 : index
    %c0_524 = arith.constant 0 : index
    %2001 = vector.load %arg6[%c0_523, %c0_524] : memref<80x192xf32, #tpu.memory_space<vmem>>, vector<80x192xf32>
    %cst_525 = arith.constant dense<0.000000e+00> : vector<1x192xf32>
    %2002 = tpu.matmul %2000, %2001, %cst_525 {dimension_numbers = #tpu.dot_dimension_numbers<[1], [0], [0], [1], [0, 0, 1, 1], [], []>} : vector<1x80xf32>, vector<80x192xf32>, vector<1x192xf32> -> vector<1x192xf32>
    %c0_526 = arith.constant 0 : index
    %c0_527 = arith.constant 0 : index
    %2003 = vector.load %arg8[%c0_526, %c0_527] : memref<2x192xf32, #tpu.memory_space<vmem>>, vector<1x192xf32>
    %2004 = arith.addf %2002, %2003 : vector<1x192xf32>
    %2005 = vector.extract_strided_slice %2004 {offsets = [0, 0], sizes = [1, 96], strides = [1, 1]} : vector<1x192xf32> to vector<1x96xf32>
    %2006 = vector.extract_strided_slice %2004 {offsets = [0, 96], sizes = [1, 96], strides = [1, 1]} : vector<1x192xf32> to vector<1x96xf32>
    %2007 = vector.extract_strided_slice %2005 {offsets = [0, 0], sizes = [1, 32], strides = [1, 1]} : vector<1x96xf32> to vector<1x32xf32>
    %2008 = vector.extract_strided_slice %2006 {offsets = [0, 0], sizes = [1, 32], strides = [1, 1]} : vector<1x96xf32> to vector<1x32xf32>
    %2009 = arith.addf %2007, %2008 : vector<1x32xf32>
    %2010 = arith.negf %2009 : vector<1x32xf32>
    %2011 = math.exp %2010 : vector<1x32xf32>
    %cst_528 = arith.constant 1.000000e+00 : f32
    %2012 = vector.broadcast %cst_528 : f32 to vector<1x32xf32>
    %2013 = arith.addf %2012, %2011 : vector<1x32xf32>
    %2014 = arith.divf %2012, %2013 : vector<1x32xf32>
    %2015 = vector.extract_strided_slice %2005 {offsets = [0, 32], sizes = [1, 32], strides = [1, 1]} : vector<1x96xf32> to vector<1x32xf32>
    %2016 = vector.extract_strided_slice %2006 {offsets = [0, 32], sizes = [1, 32], strides = [1, 1]} : vector<1x96xf32> to vector<1x32xf32>
    %2017 = arith.addf %2015, %2016 : vector<1x32xf32>
    %2018 = arith.negf %2017 : vector<1x32xf32>
    %2019 = math.exp %2018 : vector<1x32xf32>
    %cst_529 = arith.constant 1.000000e+00 : f32
    %2020 = vector.broadcast %cst_529 : f32 to vector<1x32xf32>
    %2021 = arith.addf %2020, %2019 : vector<1x32xf32>
    %2022 = arith.divf %2020, %2021 : vector<1x32xf32>
    %2023 = vector.extract_strided_slice %2005 {offsets = [0, 64], sizes = [1, 32], strides = [1, 1]} : vector<1x96xf32> to vector<1x32xf32>
    %2024 = vector.extract_strided_slice %2006 {offsets = [0, 64], sizes = [1, 32], strides = [1, 1]} : vector<1x96xf32> to vector<1x32xf32>
    %2025 = arith.mulf %2014, %2024 : vector<1x32xf32>
    %2026 = arith.addf %2023, %2025 : vector<1x32xf32>
    %2027 = math.tanh %2026 : vector<1x32xf32>
    %cst_530 = arith.constant 1.000000e+00 : f32
    %2028 = vector.broadcast %cst_530 : f32 to vector<1x32xf32>
    %2029 = arith.subf %2028, %2022 : vector<1x32xf32>
    %2030 = arith.mulf %2029, %2027 : vector<1x32xf32>
    %2031 = arith.mulf %2022, %1913 : vector<1x32xf32>
    %2032 = arith.addf %2030, %2031 : vector<1x32xf32>
    %2033 = tpu.concatenate %2032, %1947 in 1 : vector<1x32xf32>, vector<1x32xf32> -> vector<1x64xf32>
    %c0_531 = arith.constant 0 : index
    %c0_532 = arith.constant 0 : index
    %c0_533 = arith.constant 0 : index
    %2034 = vector.load %arg7[%c0_531, %c0_532, %c0_533] : memref<1x64x192xf32, #tpu.memory_space<vmem>>, vector<1x64x192xf32>
    %2035 = vector.shape_cast %2034 : vector<1x64x192xf32> to vector<64x192xf32>
    %cst_534 = arith.constant dense<0.000000e+00> : vector<1x192xf32>
    %2036 = tpu.matmul %2033, %2035, %cst_534 {dimension_numbers = #tpu.dot_dimension_numbers<[1], [0], [0], [1], [0, 0, 1, 1], [], []>} : vector<1x64xf32>, vector<64x192xf32>, vector<1x192xf32> -> vector<1x192xf32>
    %c1_535 = arith.constant 1 : index
    %c0_536 = arith.constant 0 : index
    %2037 = vector.load %arg8[%c1_535, %c0_536] : memref<2x192xf32, #tpu.memory_space<vmem>>, vector<1x192xf32>
    %2038 = arith.addf %2036, %2037 : vector<1x192xf32>
    %2039 = vector.extract_strided_slice %2038 {offsets = [0, 0], sizes = [1, 96], strides = [1, 1]} : vector<1x192xf32> to vector<1x96xf32>
    %2040 = vector.extract_strided_slice %2038 {offsets = [0, 96], sizes = [1, 96], strides = [1, 1]} : vector<1x192xf32> to vector<1x96xf32>
    %2041 = vector.extract_strided_slice %2039 {offsets = [0, 0], sizes = [1, 32], strides = [1, 1]} : vector<1x96xf32> to vector<1x32xf32>
    %2042 = vector.extract_strided_slice %2040 {offsets = [0, 0], sizes = [1, 32], strides = [1, 1]} : vector<1x96xf32> to vector<1x32xf32>
    %2043 = arith.addf %2041, %2042 : vector<1x32xf32>
    %2044 = arith.negf %2043 : vector<1x32xf32>
    %2045 = math.exp %2044 : vector<1x32xf32>
    %cst_537 = arith.constant 1.000000e+00 : f32
    %2046 = vector.broadcast %cst_537 : f32 to vector<1x32xf32>
    %2047 = arith.addf %2046, %2045 : vector<1x32xf32>
    %2048 = arith.divf %2046, %2047 : vector<1x32xf32>
    %2049 = vector.extract_strided_slice %2039 {offsets = [0, 32], sizes = [1, 32], strides = [1, 1]} : vector<1x96xf32> to vector<1x32xf32>
    %2050 = vector.extract_strided_slice %2040 {offsets = [0, 32], sizes = [1, 32], strides = [1, 1]} : vector<1x96xf32> to vector<1x32xf32>
    %2051 = arith.addf %2049, %2050 : vector<1x32xf32>
    %2052 = arith.negf %2051 : vector<1x32xf32>
    %2053 = math.exp %2052 : vector<1x32xf32>
    %cst_538 = arith.constant 1.000000e+00 : f32
    %2054 = vector.broadcast %cst_538 : f32 to vector<1x32xf32>
    %2055 = arith.addf %2054, %2053 : vector<1x32xf32>
    %2056 = arith.divf %2054, %2055 : vector<1x32xf32>
    %2057 = vector.extract_strided_slice %2039 {offsets = [0, 64], sizes = [1, 32], strides = [1, 1]} : vector<1x96xf32> to vector<1x32xf32>
    %2058 = vector.extract_strided_slice %2040 {offsets = [0, 64], sizes = [1, 32], strides = [1, 1]} : vector<1x96xf32> to vector<1x32xf32>
    %2059 = arith.mulf %2048, %2058 : vector<1x32xf32>
    %2060 = arith.addf %2057, %2059 : vector<1x32xf32>
    %2061 = math.tanh %2060 : vector<1x32xf32>
    %cst_539 = arith.constant 1.000000e+00 : f32
    %2062 = vector.broadcast %cst_539 : f32 to vector<1x32xf32>
    %2063 = arith.subf %2062, %2056 : vector<1x32xf32>
    %2064 = arith.mulf %2063, %2061 : vector<1x32xf32>
    %2065 = arith.mulf %2056, %1947 : vector<1x32xf32>
    %2066 = arith.addf %2064, %2065 : vector<1x32xf32>
    %cst_540 = arith.constant dense<0.000000e+00> : vector<1x8xf32>
    %2067 = tpu.matmul %2066, %1036, %cst_540 {dimension_numbers = #tpu.dot_dimension_numbers<[1], [0], [0], [1], [0, 0, 1, 1], [], []>} : vector<1x32xf32>, vector<32x8xf32>, vector<1x8xf32> -> vector<1x8xf32>
    %cst_541 = arith.constant dense<0xFF800000> : vector<1xf32>
    %2068 = vector.multi_reduction <maximumf>, %2067, %cst_541 [1] : vector<1x8xf32> to vector<1xf32>
    %2069 = vector.shape_cast %2068 : vector<1xf32> to vector<1x1xf32>
    %2070 = vector.broadcast %2069 : vector<1x1xf32> to vector<1x8xf32>
    %2071 = arith.subf %2067, %2070 : vector<1x8xf32>
    %2072 = math.exp %2071 : vector<1x8xf32>
    %cst_542 = arith.constant dense<0.000000e+00> : vector<1xf32>
    %2073 = vector.multi_reduction <add>, %2072, %cst_542 [1] : vector<1x8xf32> to vector<1xf32>
    %2074 = vector.shape_cast %2073 : vector<1xf32> to vector<1x1xf32>
    %2075 = tpu.reciprocal %2074 {approx = true} : vector<1x1xf32> -> vector<1x1xf32>
    %2076 = vector.broadcast %2075 : vector<1x1xf32> to vector<1x8xf32>
    %2077 = arith.mulf %2072, %2076 : vector<1x8xf32>
    %c0_543 = arith.constant 0 : index
    %c0_544 = arith.constant 0 : index
    %2078 = vector.load %arg9[%c0_543, %c0_544] : memref<32x32xf32, #tpu.memory_space<vmem>>, vector<32x32xf32>
    %cst_545 = arith.constant dense<0.000000e+00> : vector<1x32xf32>
    %2079 = tpu.matmul %2066, %2078, %cst_545 {dimension_numbers = #tpu.dot_dimension_numbers<[1], [0], [0], [1], [0, 0, 1, 1], [], []>} : vector<1x32xf32>, vector<32x32xf32>, vector<1x32xf32> -> vector<1x32xf32>
    %cst_546 = arith.constant dense<0.000000e+00> : vector<1x32xf32>
    %2080 = tpu.matmul %2077, %1038, %cst_546 {dimension_numbers = #tpu.dot_dimension_numbers<[1], [0], [0], [1], [0, 0, 1, 1], [], []>} : vector<1x8xf32>, vector<8x32xf32>, vector<1x32xf32> -> vector<1x32xf32>
    %2081 = arith.addf %2079, %2080 : vector<1x32xf32>
    %c0_547 = arith.constant 0 : index
    %c0_548 = arith.constant 0 : index
    %2082 = vector.load %arg11[%c0_547, %c0_548] : memref<1x32xf32, #tpu.memory_space<vmem>>, vector<1x32xf32>
    %2083 = arith.addf %2081, %2082 : vector<1x32xf32>
    %2084 = math.tanh %2083 : vector<1x32xf32>
    %c0_549 = arith.constant 0 : index
    %c0_550 = arith.constant 0 : index
    %2085 = vector.load %arg12[%c0_549, %c0_550] : memref<32x48xf32, #tpu.memory_space<vmem>>, vector<32x48xf32>
    %cst_551 = arith.constant dense<0.000000e+00> : vector<1x48xf32>
    %2086 = tpu.matmul %2084, %2085, %cst_551 {dimension_numbers = #tpu.dot_dimension_numbers<[1], [0], [0], [1], [0, 0, 1, 1], [], []>} : vector<1x32xf32>, vector<32x48xf32>, vector<1x48xf32> -> vector<1x48xf32>
    %c0_552 = arith.constant 0 : index
    %c0_553 = arith.constant 0 : index
    %2087 = vector.load %arg13[%c0_552, %c0_553] : memref<1x48xf32, #tpu.memory_space<vmem>>, vector<1x48xf32>
    %2088 = arith.addf %2086, %2087 : vector<1x48xf32>
    %cst_554 = arith.constant dense<0xFF800000> : vector<1xf32>
    %2089 = vector.multi_reduction <maximumf>, %2088, %cst_554 [1] : vector<1x48xf32> to vector<1xf32>
    %2090 = vector.shape_cast %2089 : vector<1xf32> to vector<1x1xf32>
    %2091 = vector.broadcast %2090 : vector<1x1xf32> to vector<1x48xf32>
    %2092 = arith.subf %2088, %2091 : vector<1x48xf32>
    %2093 = math.exp %2092 : vector<1x48xf32>
    %cst_555 = arith.constant dense<0.000000e+00> : vector<1xf32>
    %2094 = vector.multi_reduction <add>, %2093, %cst_555 [1] : vector<1x48xf32> to vector<1xf32>
    %2095 = vector.shape_cast %2094 : vector<1xf32> to vector<1x1xf32>
    %cst_556 = arith.constant 1.000000e+00 : f32
    %2096 = vector.broadcast %cst_556 : f32 to vector<1x1xf32>
    %2097 = arith.divf %2096, %2095 : vector<1x1xf32>
    %2098 = vector.broadcast %2090 : vector<1x1xf32> to vector<1x48xf32>
    %2099 = arith.cmpf oge, %2088, %2098 : vector<1x48xf32>
    %cst_557 = arith.constant 4.800000e+01 : f32
    %2100 = vector.broadcast %cst_557 : f32 to vector<1x48xf32>
    %2101 = arith.select %2099, %1040, %2100 : vector<1x48xi1>, vector<1x48xf32>
    %cst_558 = arith.constant dense<0x7F800000> : vector<1xf32>
    %2102 = vector.multi_reduction <minimumf>, %2101, %cst_558 [1] : vector<1x48xf32> to vector<1xf32>
    %2103 = vector.shape_cast %2102 : vector<1xf32> to vector<1x1xf32>
    %c8_i32 = arith.constant 8 : i32
    %2104 = vector.broadcast %c8_i32 : i32 to vector<1x128xi32>
    %2105 = arith.cmpi eq, %1041, %2104 : vector<1x128xi32>
    %2106 = arith.fptosi %2103 : vector<1x1xf32> to vector<1x1xi32>
    %2107 = vector.shape_cast %2106 : vector<1x1xi32> to vector<1x1xi32>
    %2108 = vector.broadcast %2107 : vector<1x1xi32> to vector<1x128xi32>
    %2109 = arith.select %2105, %2108, %1990 : vector<1x128xi1>, vector<1x128xi32>
    %c8_i32_559 = arith.constant 8 : i32
    %2110 = vector.broadcast %c8_i32_559 : i32 to vector<1x128xi32>
    %2111 = arith.cmpi eq, %1041, %2110 : vector<1x128xi32>
    %2112 = vector.shape_cast %2097 : vector<1x1xf32> to vector<1x1xf32>
    %2113 = vector.broadcast %2112 : vector<1x1xf32> to vector<1x128xf32>
    %2114 = arith.select %2111, %2113, %1995 : vector<1x128xi1>, vector<1x128xf32>
    %2115 = vector.broadcast %2103 : vector<1x1xf32> to vector<1x48xf32>
    %2116 = arith.cmpf oeq, %1040, %2115 : vector<1x48xf32>
    %2117 = arith.extui %2116 : vector<1x48xi1> to vector<1x48xi32>
    %2118 = arith.sitofp %2117 : vector<1x48xi32> to vector<1x48xf32>
    %2119 = tpu.concatenate %2118, %2032 in 1 : vector<1x48xf32>, vector<1x32xf32> -> vector<1x80xf32>
    %c0_560 = arith.constant 0 : index
    %c0_561 = arith.constant 0 : index
    %2120 = vector.load %arg6[%c0_560, %c0_561] : memref<80x192xf32, #tpu.memory_space<vmem>>, vector<80x192xf32>
    %cst_562 = arith.constant dense<0.000000e+00> : vector<1x192xf32>
    %2121 = tpu.matmul %2119, %2120, %cst_562 {dimension_numbers = #tpu.dot_dimension_numbers<[1], [0], [0], [1], [0, 0, 1, 1], [], []>} : vector<1x80xf32>, vector<80x192xf32>, vector<1x192xf32> -> vector<1x192xf32>
    %c0_563 = arith.constant 0 : index
    %c0_564 = arith.constant 0 : index
    %2122 = vector.load %arg8[%c0_563, %c0_564] : memref<2x192xf32, #tpu.memory_space<vmem>>, vector<1x192xf32>
    %2123 = arith.addf %2121, %2122 : vector<1x192xf32>
    %2124 = vector.extract_strided_slice %2123 {offsets = [0, 0], sizes = [1, 96], strides = [1, 1]} : vector<1x192xf32> to vector<1x96xf32>
    %2125 = vector.extract_strided_slice %2123 {offsets = [0, 96], sizes = [1, 96], strides = [1, 1]} : vector<1x192xf32> to vector<1x96xf32>
    %2126 = vector.extract_strided_slice %2124 {offsets = [0, 0], sizes = [1, 32], strides = [1, 1]} : vector<1x96xf32> to vector<1x32xf32>
    %2127 = vector.extract_strided_slice %2125 {offsets = [0, 0], sizes = [1, 32], strides = [1, 1]} : vector<1x96xf32> to vector<1x32xf32>
    %2128 = arith.addf %2126, %2127 : vector<1x32xf32>
    %2129 = arith.negf %2128 : vector<1x32xf32>
    %2130 = math.exp %2129 : vector<1x32xf32>
    %cst_565 = arith.constant 1.000000e+00 : f32
    %2131 = vector.broadcast %cst_565 : f32 to vector<1x32xf32>
    %2132 = arith.addf %2131, %2130 : vector<1x32xf32>
    %2133 = arith.divf %2131, %2132 : vector<1x32xf32>
    %2134 = vector.extract_strided_slice %2124 {offsets = [0, 32], sizes = [1, 32], strides = [1, 1]} : vector<1x96xf32> to vector<1x32xf32>
    %2135 = vector.extract_strided_slice %2125 {offsets = [0, 32], sizes = [1, 32], strides = [1, 1]} : vector<1x96xf32> to vector<1x32xf32>
    %2136 = arith.addf %2134, %2135 : vector<1x32xf32>
    %2137 = arith.negf %2136 : vector<1x32xf32>
    %2138 = math.exp %2137 : vector<1x32xf32>
    %cst_566 = arith.constant 1.000000e+00 : f32
    %2139 = vector.broadcast %cst_566 : f32 to vector<1x32xf32>
    %2140 = arith.addf %2139, %2138 : vector<1x32xf32>
    %2141 = arith.divf %2139, %2140 : vector<1x32xf32>
    %2142 = vector.extract_strided_slice %2124 {offsets = [0, 64], sizes = [1, 32], strides = [1, 1]} : vector<1x96xf32> to vector<1x32xf32>
    %2143 = vector.extract_strided_slice %2125 {offsets = [0, 64], sizes = [1, 32], strides = [1, 1]} : vector<1x96xf32> to vector<1x32xf32>
    %2144 = arith.mulf %2133, %2143 : vector<1x32xf32>
    %2145 = arith.addf %2142, %2144 : vector<1x32xf32>
    %2146 = math.tanh %2145 : vector<1x32xf32>
    %cst_567 = arith.constant 1.000000e+00 : f32
    %2147 = vector.broadcast %cst_567 : f32 to vector<1x32xf32>
    %2148 = arith.subf %2147, %2141 : vector<1x32xf32>
    %2149 = arith.mulf %2148, %2146 : vector<1x32xf32>
    %2150 = arith.mulf %2141, %2032 : vector<1x32xf32>
    %2151 = arith.addf %2149, %2150 : vector<1x32xf32>
    %2152 = tpu.concatenate %2151, %2066 in 1 : vector<1x32xf32>, vector<1x32xf32> -> vector<1x64xf32>
    %c0_568 = arith.constant 0 : index
    %c0_569 = arith.constant 0 : index
    %c0_570 = arith.constant 0 : index
    %2153 = vector.load %arg7[%c0_568, %c0_569, %c0_570] : memref<1x64x192xf32, #tpu.memory_space<vmem>>, vector<1x64x192xf32>
    %2154 = vector.shape_cast %2153 : vector<1x64x192xf32> to vector<64x192xf32>
    %cst_571 = arith.constant dense<0.000000e+00> : vector<1x192xf32>
    %2155 = tpu.matmul %2152, %2154, %cst_571 {dimension_numbers = #tpu.dot_dimension_numbers<[1], [0], [0], [1], [0, 0, 1, 1], [], []>} : vector<1x64xf32>, vector<64x192xf32>, vector<1x192xf32> -> vector<1x192xf32>
    %c1_572 = arith.constant 1 : index
    %c0_573 = arith.constant 0 : index
    %2156 = vector.load %arg8[%c1_572, %c0_573] : memref<2x192xf32, #tpu.memory_space<vmem>>, vector<1x192xf32>
    %2157 = arith.addf %2155, %2156 : vector<1x192xf32>
    %2158 = vector.extract_strided_slice %2157 {offsets = [0, 0], sizes = [1, 96], strides = [1, 1]} : vector<1x192xf32> to vector<1x96xf32>
    %2159 = vector.extract_strided_slice %2157 {offsets = [0, 96], sizes = [1, 96], strides = [1, 1]} : vector<1x192xf32> to vector<1x96xf32>
    %2160 = vector.extract_strided_slice %2158 {offsets = [0, 0], sizes = [1, 32], strides = [1, 1]} : vector<1x96xf32> to vector<1x32xf32>
    %2161 = vector.extract_strided_slice %2159 {offsets = [0, 0], sizes = [1, 32], strides = [1, 1]} : vector<1x96xf32> to vector<1x32xf32>
    %2162 = arith.addf %2160, %2161 : vector<1x32xf32>
    %2163 = arith.negf %2162 : vector<1x32xf32>
    %2164 = math.exp %2163 : vector<1x32xf32>
    %cst_574 = arith.constant 1.000000e+00 : f32
    %2165 = vector.broadcast %cst_574 : f32 to vector<1x32xf32>
    %2166 = arith.addf %2165, %2164 : vector<1x32xf32>
    %2167 = arith.divf %2165, %2166 : vector<1x32xf32>
    %2168 = vector.extract_strided_slice %2158 {offsets = [0, 32], sizes = [1, 32], strides = [1, 1]} : vector<1x96xf32> to vector<1x32xf32>
    %2169 = vector.extract_strided_slice %2159 {offsets = [0, 32], sizes = [1, 32], strides = [1, 1]} : vector<1x96xf32> to vector<1x32xf32>
    %2170 = arith.addf %2168, %2169 : vector<1x32xf32>
    %2171 = arith.negf %2170 : vector<1x32xf32>
    %2172 = math.exp %2171 : vector<1x32xf32>
    %cst_575 = arith.constant 1.000000e+00 : f32
    %2173 = vector.broadcast %cst_575 : f32 to vector<1x32xf32>
    %2174 = arith.addf %2173, %2172 : vector<1x32xf32>
    %2175 = arith.divf %2173, %2174 : vector<1x32xf32>
    %2176 = vector.extract_strided_slice %2158 {offsets = [0, 64], sizes = [1, 32], strides = [1, 1]} : vector<1x96xf32> to vector<1x32xf32>
    %2177 = vector.extract_strided_slice %2159 {offsets = [0, 64], sizes = [1, 32], strides = [1, 1]} : vector<1x96xf32> to vector<1x32xf32>
    %2178 = arith.mulf %2167, %2177 : vector<1x32xf32>
    %2179 = arith.addf %2176, %2178 : vector<1x32xf32>
    %2180 = math.tanh %2179 : vector<1x32xf32>
    %cst_576 = arith.constant 1.000000e+00 : f32
    %2181 = vector.broadcast %cst_576 : f32 to vector<1x32xf32>
    %2182 = arith.subf %2181, %2175 : vector<1x32xf32>
    %2183 = arith.mulf %2182, %2180 : vector<1x32xf32>
    %2184 = arith.mulf %2175, %2066 : vector<1x32xf32>
    %2185 = arith.addf %2183, %2184 : vector<1x32xf32>
    %cst_577 = arith.constant dense<0.000000e+00> : vector<1x8xf32>
    %2186 = tpu.matmul %2185, %1036, %cst_577 {dimension_numbers = #tpu.dot_dimension_numbers<[1], [0], [0], [1], [0, 0, 1, 1], [], []>} : vector<1x32xf32>, vector<32x8xf32>, vector<1x8xf32> -> vector<1x8xf32>
    %cst_578 = arith.constant dense<0xFF800000> : vector<1xf32>
    %2187 = vector.multi_reduction <maximumf>, %2186, %cst_578 [1] : vector<1x8xf32> to vector<1xf32>
    %2188 = vector.shape_cast %2187 : vector<1xf32> to vector<1x1xf32>
    %2189 = vector.broadcast %2188 : vector<1x1xf32> to vector<1x8xf32>
    %2190 = arith.subf %2186, %2189 : vector<1x8xf32>
    %2191 = math.exp %2190 : vector<1x8xf32>
    %cst_579 = arith.constant dense<0.000000e+00> : vector<1xf32>
    %2192 = vector.multi_reduction <add>, %2191, %cst_579 [1] : vector<1x8xf32> to vector<1xf32>
    %2193 = vector.shape_cast %2192 : vector<1xf32> to vector<1x1xf32>
    %2194 = tpu.reciprocal %2193 {approx = true} : vector<1x1xf32> -> vector<1x1xf32>
    %2195 = vector.broadcast %2194 : vector<1x1xf32> to vector<1x8xf32>
    %2196 = arith.mulf %2191, %2195 : vector<1x8xf32>
    %c0_580 = arith.constant 0 : index
    %c0_581 = arith.constant 0 : index
    %2197 = vector.load %arg9[%c0_580, %c0_581] : memref<32x32xf32, #tpu.memory_space<vmem>>, vector<32x32xf32>
    %cst_582 = arith.constant dense<0.000000e+00> : vector<1x32xf32>
    %2198 = tpu.matmul %2185, %2197, %cst_582 {dimension_numbers = #tpu.dot_dimension_numbers<[1], [0], [0], [1], [0, 0, 1, 1], [], []>} : vector<1x32xf32>, vector<32x32xf32>, vector<1x32xf32> -> vector<1x32xf32>
    %cst_583 = arith.constant dense<0.000000e+00> : vector<1x32xf32>
    %2199 = tpu.matmul %2196, %1038, %cst_583 {dimension_numbers = #tpu.dot_dimension_numbers<[1], [0], [0], [1], [0, 0, 1, 1], [], []>} : vector<1x8xf32>, vector<8x32xf32>, vector<1x32xf32> -> vector<1x32xf32>
    %2200 = arith.addf %2198, %2199 : vector<1x32xf32>
    %c0_584 = arith.constant 0 : index
    %c0_585 = arith.constant 0 : index
    %2201 = vector.load %arg11[%c0_584, %c0_585] : memref<1x32xf32, #tpu.memory_space<vmem>>, vector<1x32xf32>
    %2202 = arith.addf %2200, %2201 : vector<1x32xf32>
    %2203 = math.tanh %2202 : vector<1x32xf32>
    %c0_586 = arith.constant 0 : index
    %c0_587 = arith.constant 0 : index
    %2204 = vector.load %arg12[%c0_586, %c0_587] : memref<32x48xf32, #tpu.memory_space<vmem>>, vector<32x48xf32>
    %cst_588 = arith.constant dense<0.000000e+00> : vector<1x48xf32>
    %2205 = tpu.matmul %2203, %2204, %cst_588 {dimension_numbers = #tpu.dot_dimension_numbers<[1], [0], [0], [1], [0, 0, 1, 1], [], []>} : vector<1x32xf32>, vector<32x48xf32>, vector<1x48xf32> -> vector<1x48xf32>
    %c0_589 = arith.constant 0 : index
    %c0_590 = arith.constant 0 : index
    %2206 = vector.load %arg13[%c0_589, %c0_590] : memref<1x48xf32, #tpu.memory_space<vmem>>, vector<1x48xf32>
    %2207 = arith.addf %2205, %2206 : vector<1x48xf32>
    %cst_591 = arith.constant dense<0xFF800000> : vector<1xf32>
    %2208 = vector.multi_reduction <maximumf>, %2207, %cst_591 [1] : vector<1x48xf32> to vector<1xf32>
    %2209 = vector.shape_cast %2208 : vector<1xf32> to vector<1x1xf32>
    %2210 = vector.broadcast %2209 : vector<1x1xf32> to vector<1x48xf32>
    %2211 = arith.subf %2207, %2210 : vector<1x48xf32>
    %2212 = math.exp %2211 : vector<1x48xf32>
    %cst_592 = arith.constant dense<0.000000e+00> : vector<1xf32>
    %2213 = vector.multi_reduction <add>, %2212, %cst_592 [1] : vector<1x48xf32> to vector<1xf32>
    %2214 = vector.shape_cast %2213 : vector<1xf32> to vector<1x1xf32>
    %cst_593 = arith.constant 1.000000e+00 : f32
    %2215 = vector.broadcast %cst_593 : f32 to vector<1x1xf32>
    %2216 = arith.divf %2215, %2214 : vector<1x1xf32>
    %2217 = vector.broadcast %2209 : vector<1x1xf32> to vector<1x48xf32>
    %2218 = arith.cmpf oge, %2207, %2217 : vector<1x48xf32>
    %cst_594 = arith.constant 4.800000e+01 : f32
    %2219 = vector.broadcast %cst_594 : f32 to vector<1x48xf32>
    %2220 = arith.select %2218, %1040, %2219 : vector<1x48xi1>, vector<1x48xf32>
    %cst_595 = arith.constant dense<0x7F800000> : vector<1xf32>
    %2221 = vector.multi_reduction <minimumf>, %2220, %cst_595 [1] : vector<1x48xf32> to vector<1xf32>
    %2222 = vector.shape_cast %2221 : vector<1xf32> to vector<1x1xf32>
    %c9_i32 = arith.constant 9 : i32
    %2223 = vector.broadcast %c9_i32 : i32 to vector<1x128xi32>
    %2224 = arith.cmpi eq, %1041, %2223 : vector<1x128xi32>
    %2225 = arith.fptosi %2222 : vector<1x1xf32> to vector<1x1xi32>
    %2226 = vector.shape_cast %2225 : vector<1x1xi32> to vector<1x1xi32>
    %2227 = vector.broadcast %2226 : vector<1x1xi32> to vector<1x128xi32>
    %2228 = arith.select %2224, %2227, %2109 : vector<1x128xi1>, vector<1x128xi32>
    %c9_i32_596 = arith.constant 9 : i32
    %2229 = vector.broadcast %c9_i32_596 : i32 to vector<1x128xi32>
    %2230 = arith.cmpi eq, %1041, %2229 : vector<1x128xi32>
    %2231 = vector.shape_cast %2216 : vector<1x1xf32> to vector<1x1xf32>
    %2232 = vector.broadcast %2231 : vector<1x1xf32> to vector<1x128xf32>
    %2233 = arith.select %2230, %2232, %2114 : vector<1x128xi1>, vector<1x128xf32>
    %c0_597 = arith.constant 0 : index
    %c0_598 = arith.constant 0 : index
    %2234 = vector.load %arg14[%c0_597, %c0_598] : memref<1x128xi32, #tpu.memory_space<vmem>>, vector<1x128xi32>
    tpu.vector_store %arg14[%c0_597, %c0_598], %2228 {strides = array<i32>} : memref<1x128xi32, #tpu.memory_space<vmem>>, vector<1x128xi32>,
    %c0_599 = arith.constant 0 : index
    %c0_600 = arith.constant 0 : index
    %2235 = vector.load %arg15[%c0_599, %c0_600] : memref<1x128xf32, #tpu.memory_space<vmem>>, vector<1x128xf32>
    tpu.vector_store %arg15[%c0_599, %c0_600], %2233 {strides = array<i32>} : memref<1x128xf32, #tpu.memory_space<vmem>>, vector<1x128xf32>,
    return
  }
}

</mosaic_0001>

<llo_original>
// kernel: greedy_search_decoder_forward.1
$region0: #{greedy_search_decoder_forward.1}
  #allocation0 [shape = 'u32[]', space=smem, size = 0x4, offset = 0x4, fixed_abs, tag = 'smem constant byte address 0x4 - core index']
  #allocation1 [shape = 'u32[72,128]{1,0:T(1,128)}', space=vmem, size = 0x9000, scoped, tag = 'internal scratch']
  %s0 = inlined_call_operand.vmem [shape: s32[8,1], index: 0, kind: input, shape index: {}]
  %s1 = inlined_call_operand.vmem [shape: f32[48,32], index: 1, kind: input, shape index: {}]
  %s2 = inlined_call_operand.vmem [shape: f32[4,64,96], index: 2, kind: input, shape index: {}]
  %s3 = inlined_call_operand.vmem [shape: f32[2,64,192], index: 3, kind: input, shape index: {}]
  %s4 = inlined_call_operand.vmem [shape: f32[4,96], index: 4, kind: input, shape index: {}]
  %s5 = inlined_call_operand.vmem [shape: f32[2,192], index: 5, kind: input, shape index: {}]
  %s6 = inlined_call_operand.vmem [shape: f32[80,192], index: 6, kind: input, shape index: {}]
  %s7 = inlined_call_operand.vmem [shape: f32[1,64,192], index: 7, kind: input, shape index: {}]
  %s8 = inlined_call_operand.vmem [shape: f32[2,192], index: 8, kind: input, shape index: {}]
  %s9 = inlined_call_operand.vmem [shape: f32[32,32], index: 9, kind: input, shape index: {}]
  %s10 = inlined_call_operand.vmem [shape: f32[32,32], index: 10, kind: input, shape index: {}]
  %s11 = inlined_call_operand.vmem [shape: f32[1,32], index: 11, kind: input, shape index: {}]
  %s12 = inlined_call_operand.vmem [shape: f32[32,48], index: 12, kind: input, shape index: {}]
  %s13 = inlined_call_operand.vmem [shape: f32[1,48], index: 13, kind: input, shape index: {}]
  %s14 = inlined_call_operand.vmem [shape: s32[1,128], index: 14, kind: output, shape index: {0}]
  %s15 = inlined_call_operand.vmem [shape: f32[1,128], index: 15, kind: output, shape index: {1}]
  %16 = xla_tuple %s14, %s15
  %s17 = sld [smem:[#allocation0]]
  $region74: #{greedy_search_decoder_forward.1} parent=0
    _
  %s19 = ssub.s32 1, %s17
  %s20 = scalar_select 0, %s19, %s17
  // Predicated region
  $region2: #{greedy_search_decoder_forward.1} parent=0 // pred_check
    _
  $region3: #{greedy_search_decoder_forward.1} parent=0 // pred_check_branch
    %22 = sbr.rel (0) target = $region5
  $region4: #{greedy_search_decoder_forward.1} parent=0 // pred_region
    _
  $region5: #{greedy_search_decoder_forward.1} parent=0 // pred_fallthru
    _
  // Predicated region
  $region6: #{greedy_search_decoder_forward.1} parent=0 // pred_check
    _
  $region7: #{greedy_search_decoder_forward.1} parent=0 // pred_check_branch
    %24 = sbr.rel (0) target = $region9
  $region8: #{greedy_search_decoder_forward.1} parent=0 // pred_region
    _
  $region9: #{greedy_search_decoder_forward.1} parent=0 // pred_fallthru
    _
  // Predicated region
  $region10: #{greedy_search_decoder_forward.1} parent=0 // pred_check
    _
  $region11: #{greedy_search_decoder_forward.1} parent=0 // pred_check_branch
    %26 = sbr.rel (0) target = $region13
  $region12: #{greedy_search_decoder_forward.1} parent=0 // pred_region
    _
  $region13: #{greedy_search_decoder_forward.1} parent=0 // pred_fallthru
    _
  // Predicated region
  $region14: #{greedy_search_decoder_forward.1} parent=0 // pred_check
    _
  $region15: #{greedy_search_decoder_forward.1} parent=0 // pred_check_branch
    %28 = sbr.rel (0) target = $region17
  $region16: #{greedy_search_decoder_forward.1} parent=0 // pred_region
    _
  $region17: #{greedy_search_decoder_forward.1} parent=0 // pred_fallthru
    _
  // Predicated region
  $region18: #{greedy_search_decoder_forward.1} parent=0 // pred_check
    _
  $region19: #{greedy_search_decoder_forward.1} parent=0 // pred_check_branch
    %30 = sbr.rel (0) target = $region21
  $region20: #{greedy_search_decoder_forward.1} parent=0 // pred_region
    _
  $region21: #{greedy_search_decoder_forward.1} parent=0 // pred_fallthru
    _
  // Predicated region
  $region22: #{greedy_search_decoder_forward.1} parent=0 // pred_check
    _
  $region23: #{greedy_search_decoder_forward.1} parent=0 // pred_check_branch
    %32 = sbr.rel (0) target = $region25
  $region24: #{greedy_search_decoder_forward.1} parent=0 // pred_region
    _
  $region25: #{greedy_search_decoder_forward.1} parent=0 // pred_fallthru
    _
  // Predicated region
  $region26: #{greedy_search_decoder_forward.1} parent=0 // pred_check
    _
  $region27: #{greedy_search_decoder_forward.1} parent=0 // pred_check_branch
    %34 = sbr.rel (0) target = $region29
  $region28: #{greedy_search_decoder_forward.1} parent=0 // pred_region
    _
  $region29: #{greedy_search_decoder_forward.1} parent=0 // pred_fallthru
    _
  // Predicated region
  $region30: #{greedy_search_decoder_forward.1} parent=0 // pred_check
    _
  $region31: #{greedy_search_decoder_forward.1} parent=0 // pred_check_branch
    %36 = sbr.rel (0) target = $region33
  $region32: #{greedy_search_decoder_forward.1} parent=0 // pred_region
    _
  $region33: #{greedy_search_decoder_forward.1} parent=0 // pred_fallthru
    _
  // Predicated region
  $region34: #{greedy_search_decoder_forward.1} parent=0 // pred_check
    _
  $region35: #{greedy_search_decoder_forward.1} parent=0 // pred_check_branch
    %38 = sbr.rel (0) target = $region37
  $region36: #{greedy_search_decoder_forward.1} parent=0 // pred_region
    _
  $region37: #{greedy_search_decoder_forward.1} parent=0 // pred_fallthru
    _
  // Predicated region
  $region38: #{greedy_search_decoder_forward.1} parent=0 // pred_check
    _
  $region39: #{greedy_search_decoder_forward.1} parent=0 // pred_check_branch
    %40 = sbr.rel (0) target = $region41
  $region40: #{greedy_search_decoder_forward.1} parent=0 // pred_region
    _
  $region41: #{greedy_search_decoder_forward.1} parent=0 // pred_fallthru
    _
  // Predicated region
  $region42: #{greedy_search_decoder_forward.1} parent=0 // pred_check
    _
  $region43: #{greedy_search_decoder_forward.1} parent=0 // pred_check_branch
    %42 = sbr.rel (0) target = $region45
  $region44: #{greedy_search_decoder_forward.1} parent=0 // pred_region
    _
  $region45: #{greedy_search_decoder_forward.1} parent=0 // pred_fallthru
    _
  // Predicated region
  $region46: #{greedy_search_decoder_forward.1} parent=0 // pred_check
    _
  $region47: #{greedy_search_decoder_forward.1} parent=0 // pred_check_branch
    %44 = sbr.rel (0) target = $region49
  $region48: #{greedy_search_decoder_forward.1} parent=0 // pred_region
    _
  $region49: #{greedy_search_decoder_forward.1} parent=0 // pred_fallthru
    _
  // Predicated region
  $region50: #{greedy_search_decoder_forward.1} parent=0 // pred_check
    _
  $region51: #{greedy_search_decoder_forward.1} parent=0 // pred_check_branch
    %46 = sbr.rel (0) target = $region53
  $region52: #{greedy_search_decoder_forward.1} parent=0 // pred_region
    _
  $region53: #{greedy_search_decoder_forward.1} parent=0 // pred_fallthru
    _
  // Predicated region
  $region54: #{greedy_search_decoder_forward.1} parent=0 // pred_check
    _
  $region55: #{greedy_search_decoder_forward.1} parent=0 // pred_check_branch
    %48 = sbr.rel (0) target = $region57
  $region56: #{greedy_search_decoder_forward.1} parent=0 // pred_region
    _
  $region57: #{greedy_search_decoder_forward.1} parent=0 // pred_fallthru
    _
  %v49 = vlaneseq
  %v50 = vand.u32 %v49, 127
  %v51 = vld [vmem:[%s0] sm:$0xff]
  %52 = vset.pattern.permute.xlu0 0
  %53 = vperm.xlu0 %52, %v51
  %v54 = vpop.permute.xlu0 %53
  %vm55 = vcmp.eq.s32.totalorder %v50, %v54
  %v56 = vsel %vm55, 1, 0
  %v57 = vcvt.s32.f32 %v56
  %v58 = vld [vmem:[%s1] sm:$0xff]
  %v59 = vld [vmem:[%s1 + $0x8] sm:$0xff]
  %v60 = vld [vmem:[%s1 + $0x10] sm:$0xff]
  %v61 = vld [vmem:[%s1 + $0x18] sm:$0xff]
  %v62 = vld [vmem:[%s1 + $0x20] sm:$0xff]
  %v63 = vld [vmem:[%s1 + $0x28] sm:$0xff]
  %vm64 = vcmask 392192
  %v66 = vsel %vm64, %v57, 0
  %68 = vmatpush.msra.mxu0 0.0
  %69 = vmatpush.msra.mxu0 0.0
  %70 = vmatpush.msra.mxu0 0.0
  %71 = vmatpush.msra.mxu0 0.0
  %72 = vmatpush.msra.mxu0 0.0
  %73 = vmatpush.msra.mxu0 0.0
  %74 = vmatpush.msra.mxu0 0.0
  %75 = vmatpush.msra.mxu0 0.0
  %76 = vmatpush.msra.mxu0 0.0
  %77 = vmatpush.msra.mxu0 0.0
  %78 = vmatpush.msra.mxu0 %v63
  %79 = vmatpush.msra.mxu0 %v62
  %80 = vmatpush.msra.mxu0 %v61
  %81 = vmatpush.msra.mxu0 %v60
  %82 = vmatpush.msra.mxu0 %v59
  %83 = vmatpush.msra.mxu0 %v58
  %84 = vmatmul.f32.gmra.mxu0 %v66
  %v85 = vpop.f32.mrf.mxu0
  %v86 = vadd.f32 0.0, %v85
  %87 = vdwg.mxu0
  %vm88 = vcmask 261120
  %v89 = vsel %vm88, %v86, 0.0
  %v90 = vld [vmem:[%s2] sm:$0xff]
  %v91 = vld [vmem:[%s2 + $0x8] sm:$0xff]
  %v92 = vld [vmem:[%s2 + $0x10] sm:$0xff]
  %v93 = vld [vmem:[%s2 + $0x18] sm:$0xff]
  %v94 = vld [vmem:[%s2 + $0x20] sm:$0xff]
  %v95 = vld [vmem:[%s2 + $0x28] sm:$0xff]
  %v96 = vld [vmem:[%s2 + $0x30] sm:$0xff]
  %v97 = vld [vmem:[%s2 + $0x38] sm:$0xff]
  %v98 = vld [vmem:[%s4] sm:$0x1]
  %v99 = vperm.slane %v98, 0
  %vm100 = vcmask 523264
  %v102 = vsel %vm100, %v89, 0
  %104 = vmatpush.msra.mxu0 0.0
  %105 = vmatpush.msra.mxu0 0.0
  %106 = vmatpush.msra.mxu0 0.0
  %107 = vmatpush.msra.mxu0 0.0
  %108 = vmatpush.msra.mxu0 0.0
  %109 = vmatpush.msra.mxu0 0.0
  %110 = vmatpush.msra.mxu0 0.0
  %111 = vmatpush.msra.mxu0 0.0
  %112 = vmatpush.msra.mxu0 %v97
  %113 = vmatpush.msra.mxu0 %v96
  %114 = vmatpush.msra.mxu0 %v95
  %115 = vmatpush.msra.mxu0 %v94
  %116 = vmatpush.msra.mxu0 %v93
  %117 = vmatpush.msra.mxu0 %v92
  %118 = vmatpush.msra.mxu0 %v91
  %119 = vmatpush.msra.mxu0 %v90
  %120 = vmatmul.f32.gmra.mxu0 %v102
  %v121 = vpop.f32.mrf.mxu0
  %v122 = vadd.f32 %v99, %v121
  %123 = vdwg.mxu0
  %s124 = scalar_lea.vmem %s2, 64
  %v125 = vld [vmem:[%s124] sm:$0xff]
  %v126 = vld [vmem:[%s124 + $0x8] sm:$0xff]
  %v127 = vld [vmem:[%s124 + $0x10] sm:$0xff]
  %v128 = vld [vmem:[%s124 + $0x18] sm:$0xff]
  %v129 = vld [vmem:[%s124 + $0x20] sm:$0xff]
  %v130 = vld [vmem:[%s124 + $0x28] sm:$0xff]
  %v131 = vld [vmem:[%s124 + $0x30] sm:$0xff]
  %v132 = vld [vmem:[%s124 + $0x38] sm:$0xff]
  %v133 = vld [vmem:[%s4 + $0x1] sm:$0x1]
  %v134 = vperm.slane %v133, 0
  %135 = vmatpush.msra.mxu0 0.0
  %136 = vmatpush.msra.mxu0 0.0
  %137 = vmatpush.msra.mxu0 0.0
  %138 = vmatpush.msra.mxu0 0.0
  %139 = vmatpush.msra.mxu0 0.0
  %140 = vmatpush.msra.mxu0 0.0
  %141 = vmatpush.msra.mxu0 0.0
  %142 = vmatpush.msra.mxu0 0.0
  %143 = vmatpush.msra.mxu0 %v132
  %144 = vmatpush.msra.mxu0 %v131
  %145 = vmatpush.msra.mxu0 %v130
  %146 = vmatpush.msra.mxu0 %v129
  %147 = vmatpush.msra.mxu0 %v128
  %148 = vmatpush.msra.mxu0 %v127
  %149 = vmatpush.msra.mxu0 %v126
  %150 = vmatpush.msra.mxu0 %v125
  %151 = vmatmul.f32.gmra.mxu0 %v102
  %v152 = vpop.f32.mrf.mxu0
  %v153 = vadd.f32 %v134, %v152
  %154 = vdwg.mxu0
  %v155 = vld [vmem:[%s3] sm:$0xff]
  %v156 = vld [vmem:[%s3 + $0x8] sm:$0xff]
  %v157 = vld [vmem:[%s3 + $0x10] sm:$0xff]
  %v158 = vld [vmem:[%s3 + $0x18] sm:$0xff]
  %v159 = vld [vmem:[%s3 + $0x20] sm:$0xff]
  %v160 = vld [vmem:[%s3 + $0x28] sm:$0xff]
  %v161 = vld [vmem:[%s3 + $0x30] sm:$0xff]
  %v162 = vld [vmem:[%s3 + $0x38] sm:$0xff]
  %v163 = vld [vmem:[%s3 + $0x40] sm:$0xff]
  %v164 = vld [vmem:[%s3 + $0x48] sm:$0xff]
  %v165 = vld [vmem:[%s3 + $0x50] sm:$0xff]
  %v166 = vld [vmem:[%s3 + $0x58] sm:$0xff]
  %v167 = vld [vmem:[%s3 + $0x60] sm:$0xff]
  %v168 = vld [vmem:[%s3 + $0x68] sm:$0xff]
  %v169 = vld [vmem:[%s3 + $0x70] sm:$0xff]
  %v170 = vld [vmem:[%s3 + $0x78] sm:$0xff]
  %v171 = vld [vmem:[%s5] ss:$2 sm:$0x3]
  %v173 = vperm.slane %v171, 0
  %v174 = vperm.slane %v171, 1
  %v178 = vsel %vm100, 0.0, 0
  %180 = vmatpush.msra.mxu0 0.0
  %181 = vmatpush.msra.mxu0 0.0
  %182 = vmatpush.msra.mxu0 0.0
  %183 = vmatpush.msra.mxu0 0.0
  %184 = vmatpush.msra.mxu0 0.0
  %185 = vmatpush.msra.mxu0 0.0
  %186 = vmatpush.msra.mxu0 0.0
  %187 = vmatpush.msra.mxu0 0.0
  %188 = vmatpush.msra.mxu0 %v169
  %189 = vmatpush.msra.mxu0 %v167
  %190 = vmatpush.msra.mxu0 %v165
  %191 = vmatpush.msra.mxu0 %v163
  %192 = vmatpush.msra.mxu0 %v161
  %193 = vmatpush.msra.mxu0 %v159
  %194 = vmatpush.msra.mxu0 %v157
  %195 = vmatpush.msra.mxu0 %v155
  %196 = vmatmul.f32.gmra.mxu0 %v178
  %v197 = vpop.f32.mrf.mxu0
  %v198 = vadd.f32 %v173, %v197
  %199 = vdwg.mxu0
  %200 = vmatpush.msra.mxu0 0.0
  %201 = vmatpush.msra.mxu0 0.0
  %202 = vmatpush.msra.mxu0 0.0
  %203 = vmatpush.msra.mxu0 0.0
  %204 = vmatpush.msra.mxu0 0.0
  %205 = vmatpush.msra.mxu0 0.0
  %206 = vmatpush.msra.mxu0 0.0
  %207 = vmatpush.msra.mxu0 0.0
  %208 = vmatpush.msra.mxu0 %v170
  %209 = vmatpush.msra.mxu0 %v168
  %210 = vmatpush.msra.mxu0 %v166
  %211 = vmatpush.msra.mxu0 %v164
  %212 = vmatpush.msra.mxu0 %v162
  %213 = vmatpush.msra.mxu0 %v160
  %214 = vmatpush.msra.mxu0 %v158
  %215 = vmatpush.msra.mxu0 %v156
  %216 = vmatmul.f32.gmra.mxu0 %v178
  %v217 = vpop.f32.mrf.mxu0
  %v218 = vadd.f32 %v174, %v217
  %219 = vdwg.mxu0
  %v220 = vadd.f32 %v122, %v198
  %v221 = vxor.u32 %v220, 2147483648
  %v222 = vmul.f32 %v221, 1.442695
  %v223 = vpow.pop %v222
  %v224 = vadd.f32 %v223, 1.0
  %v225 = vrcp.pop %v224
  %v226 = vmul.f32 %v224, %v225
  %v227 = vsub.f32 1.0, %v226
  %v228 = vmul.f32 %v225, %v227
  %v229 = vadd.f32 %v225, %v228
  %vm230 = vweird.f32 %v224
  %vm231 = vweird.f32 %v225
  %vm232 = vmor %vm230, %vm231
  %v233 = vsel %vm232, %v225, %v229
  %v234 = vand.u32 2147483647, %v224
  %vm235 = vcmp.eq.f32.partialorder %v234, 8.507059e+37
  %v236 = vand.u32 %v224, 2147483648
  %v237 = vor.u32 1.1754944e-38, %v236
  %v238 = vsel %vm235, %v237, %v233
  %v239 = vmul.f32 1.0, %v238
  %241 = vrot.lane.b32.xlu0 %v198, 64
  %v242 = vpop.permute.xlu0 %241
  %v244 = vmul.f32 %v239, %v242
  %246 = vrot.lane.b32.xlu0 %v244, 64
  %v247 = vpop.permute.xlu0 %246
  %v249 = vadd.f32 %v122, %v247
  %v250 = vtanh.pop %v249
  %v251 = vsub.f32 1.0, %v239
  %253 = vrot.lane.b32.xlu0 %v250, 96
  %v254 = vpop.permute.xlu0 %253
  %v256 = vmul.f32 %v251, %v254
  %v257 = vmul.f32 %v239, 0.0
  %v258 = vadd.f32 %v256, %v257
  %v259 = vrot.slane %v198, 1
  %260 = vrot.lane.b32.xlu0 %v259, 32
  %v261 = vpop.permute.xlu0 %260
  %v263 = vadd.f32 %v153, %v261
  %v264 = vxor.u32 %v263, 2147483648
  %v265 = vmul.f32 %v264, 1.442695
  %v266 = vpow.pop %v265
  %v267 = vadd.f32 %v266, 1.0
  %v268 = vrcp.pop %v267
  %v269 = vmul.f32 %v267, %v268
  %v270 = vsub.f32 1.0, %v269
  %v271 = vmul.f32 %v268, %v270
  %v272 = vadd.f32 %v268, %v271
  %vm273 = vweird.f32 %v267
  %vm274 = vweird.f32 %v268
  %vm275 = vmor %vm273, %vm274
  %v276 = vsel %vm275, %v268, %v272
  %v277 = vand.u32 2147483647, %v267
  %vm278 = vcmp.eq.f32.partialorder %v277, 8.507059e+37
  %v279 = vand.u32 %v267, 2147483648
  %v280 = vor.u32 1.1754944e-38, %v279
  %v281 = vsel %vm278, %v280, %v276
  %v282 = vmul.f32 1.0, %v281
  %v284 = vrot.slane %v218, 1
  %285 = vrot.lane.b32.xlu0 %v284, 32
  %v286 = vpop.permute.xlu0 %285
  %v288 = vadd.f32 %v153, %v286
  %v289 = vxor.u32 %v288, 2147483648
  %v290 = vmul.f32 %v289, 1.442695
  %v291 = vpow.pop %v290
  %v292 = vadd.f32 %v291, 1.0
  %v293 = vrcp.pop %v292
  %v294 = vmul.f32 %v292, %v293
  %v295 = vsub.f32 1.0, %v294
  %v296 = vmul.f32 %v293, %v295
  %v297 = vadd.f32 %v293, %v296
  %vm298 = vweird.f32 %v292
  %vm299 = vweird.f32 %v293
  %vm300 = vmor %vm298, %vm299
  %v301 = vsel %vm300, %v293, %v297
  %v302 = vand.u32 2147483647, %v292
  %vm303 = vcmp.eq.f32.partialorder %v302, 8.507059e+37
  %v304 = vand.u32 %v292, 2147483648
  %v305 = vor.u32 1.1754944e-38, %v304
  %v306 = vsel %vm303, %v305, %v301
  %v307 = vmul.f32 1.0, %v306
  %308 = vrot.lane.b32.xlu0 %v284, 96
  %v309 = vpop.permute.xlu0 %308
  %v311 = vmul.f32 %v282, %v309
  %313 = vrot.lane.b32.xlu0 %v311, 64
  %v314 = vpop.permute.xlu0 %313
  %v316 = vadd.f32 %v153, %v314
  %v317 = vtanh.pop %v316
  %v318 = vsub.f32 1.0, %v307
  %320 = vrot.lane.b32.xlu0 %v317, 96
  %v321 = vpop.permute.xlu0 %320
  %v323 = vmul.f32 %v318, %v321
  %v324 = vmul.f32 %v307, 0.0
  %v325 = vadd.f32 %v323, %v324
  %327 = vrot.lane.b32.xlu0 %v258, 96
  %v328 = vpop.permute.xlu0 %327
  %v331 = vrot.slane %v325, 7
  %v333 = vsel %vm88, %v328, %v331
  %v335 = vsel %vm100, %v333, 0
  %337 = vmatpush.msra.mxu0 0.0
  %338 = vmatpush.msra.mxu0 0.0
  %339 = vmatpush.msra.mxu0 0.0
  %340 = vmatpush.msra.mxu0 0.0
  %341 = vmatpush.msra.mxu0 0.0
  %342 = vmatpush.msra.mxu0 0.0
  %343 = vmatpush.msra.mxu0 0.0
  %344 = vmatpush.msra.mxu0 0.0
  %345 = vmatpush.msra.mxu0 %v169
  %346 = vmatpush.msra.mxu0 %v167
  %347 = vmatpush.msra.mxu0 %v165
  %348 = vmatpush.msra.mxu0 %v163
  %349 = vmatpush.msra.mxu0 %v161
  %350 = vmatpush.msra.mxu0 %v159
  %351 = vmatpush.msra.mxu0 %v157
  %352 = vmatpush.msra.mxu0 %v155
  %353 = vmatmul.f32.gmra.mxu0 %v335
  %v354 = vpop.f32.mrf.mxu0
  %v355 = vadd.f32 %v173, %v354
  %356 = vdwg.mxu0
  %357 = vmatpush.msra.mxu0 0.0
  %358 = vmatpush.msra.mxu0 0.0
  %359 = vmatpush.msra.mxu0 0.0
  %360 = vmatpush.msra.mxu0 0.0
  %361 = vmatpush.msra.mxu0 0.0
  %362 = vmatpush.msra.mxu0 0.0
  %363 = vmatpush.msra.mxu0 0.0
  %364 = vmatpush.msra.mxu0 0.0
  %365 = vmatpush.msra.mxu0 %v170
  %366 = vmatpush.msra.mxu0 %v168
  %367 = vmatpush.msra.mxu0 %v166
  %368 = vmatpush.msra.mxu0 %v164
  %369 = vmatpush.msra.mxu0 %v162
  %370 = vmatpush.msra.mxu0 %v160
  %371 = vmatpush.msra.mxu0 %v158
  %372 = vmatpush.msra.mxu0 %v156
  %373 = vmatmul.f32.gmra.mxu0 %v335
  %v374 = vpop.f32.mrf.mxu0
  %v375 = vadd.f32 %v174, %v374
  %376 = vdwg.mxu0
  %v378 = vrot.slane %v355, 7
  %v380 = vadd.f32 %v122, %v378
  %v381 = vxor.u32 %v380, 2147483648
  %v382 = vmul.f32 %v381, 1.442695
  %v383 = vpow.pop %v382
  %v384 = vadd.f32 %v383, 1.0
  %v385 = vrcp.pop %v384
  %v386 = vmul.f32 %v384, %v385
  %v387 = vsub.f32 1.0, %v386
  %v388 = vmul.f32 %v385, %v387
  %v389 = vadd.f32 %v385, %v388
  %vm390 = vweird.f32 %v384
  %vm391 = vweird.f32 %v385
  %vm392 = vmor %vm390, %vm391
  %v393 = vsel %vm392, %v385, %v389
  %v394 = vand.u32 2147483647, %v384
  %vm395 = vcmp.eq.f32.partialorder %v394, 8.507059e+37
  %v396 = vand.u32 %v384, 2147483648
  %v397 = vor.u32 1.1754944e-38, %v396
  %v398 = vsel %vm395, %v397, %v393
  %v399 = vmul.f32 1.0, %v398
  %400 = vrot.lane.b32.xlu0 %v378, 64
  %v401 = vpop.permute.xlu0 %400
  %v403 = vmul.f32 %v399, %v401
  %405 = vrot.lane.b32.xlu0 %v403, 64
  %v406 = vpop.permute.xlu0 %405
  %v408 = vadd.f32 %v122, %v406
  %v409 = vtanh.pop %v408
  %v410 = vsub.f32 1.0, %v399
  %412 = vrot.lane.b32.xlu0 %v409, 96
  %v413 = vpop.permute.xlu0 %412
  %v415 = vmul.f32 %v410, %v413
  %v416 = vrot.slane %v258, 7
  %v418 = vmul.f32 %v399, %v416
  %v419 = vadd.f32 %v415, %v418
  %v420 = vrot.slane %v355, 2
  %421 = vrot.lane.b32.xlu0 %v420, 32
  %v422 = vpop.permute.xlu0 %421
  %v424 = vadd.f32 %v153, %v422
  %v425 = vxor.u32 %v424, 2147483648
  %v426 = vmul.f32 %v425, 1.442695
  %v427 = vpow.pop %v426
  %v428 = vadd.f32 %v427, 1.0
  %v429 = vrcp.pop %v428
  %v430 = vmul.f32 %v428, %v429
  %v431 = vsub.f32 1.0, %v430
  %v432 = vmul.f32 %v429, %v431
  %v433 = vadd.f32 %v429, %v432
  %vm434 = vweird.f32 %v428
  %vm435 = vweird.f32 %v429
  %vm436 = vmor %vm434, %vm435
  %v437 = vsel %vm436, %v429, %v433
  %v438 = vand.u32 2147483647, %v428
  %vm439 = vcmp.eq.f32.partialorder %v438, 8.507059e+37
  %v440 = vand.u32 %v428, 2147483648
  %v441 = vor.u32 1.1754944e-38, %v440
  %v442 = vsel %vm439, %v441, %v437
  %v443 = vmul.f32 1.0, %v442
  %v445 = vrot.slane %v375, 2
  %446 = vrot.lane.b32.xlu0 %v445, 32
  %v447 = vpop.permute.xlu0 %446
  %v449 = vadd.f32 %v153, %v447
  %v450 = vxor.u32 %v449, 2147483648
  %v451 = vmul.f32 %v450, 1.442695
  %v452 = vpow.pop %v451
  %v453 = vadd.f32 %v452, 1.0
  %v454 = vrcp.pop %v453
  %v455 = vmul.f32 %v453, %v454
  %v456 = vsub.f32 1.0, %v455
  %v457 = vmul.f32 %v454, %v456
  %v458 = vadd.f32 %v454, %v457
  %vm459 = vweird.f32 %v453
  %vm460 = vweird.f32 %v454
  %vm461 = vmor %vm459, %vm460
  %v462 = vsel %vm461, %v454, %v458
  %v463 = vand.u32 2147483647, %v453
  %vm464 = vcmp.eq.f32.partialorder %v463, 8.507059e+37
  %v465 = vand.u32 %v453, 2147483648
  %v466 = vor.u32 1.1754944e-38, %v465
  %v467 = vsel %vm464, %v466, %v462
  %v468 = vmul.f32 1.0, %v467
  %469 = vrot.lane.b32.xlu0 %v445, 96
  %v470 = vpop.permute.xlu0 %469
  %v472 = vmul.f32 %v443, %v470
  %474 = vrot.lane.b32.xlu0 %v472, 64
  %v475 = vpop.permute.xlu0 %474
  %v477 = vadd.f32 %v153, %v475
  %v478 = vtanh.pop %v477
  %v479 = vsub.f32 1.0, %v468
  %481 = vrot.lane.b32.xlu0 %v478, 96
  %v482 = vpop.permute.xlu0 %481
  %v484 = vmul.f32 %v479, %v482
  %v485 = vrot.slane %v325, 1
  %v487 = vmul.f32 %v468, %v485
  %v488 = vadd.f32 %v484, %v487
  %490 = vrot.lane.b32.xlu0 %v419, 96
  %v491 = vpop.permute.xlu0 %490
  %v494 = vrot.slane %v488, 5
  %v496 = vsel %vm88, %v491, %v494
  %v498 = vrot.slane %v496, 1
  %v499 = vsel %vm100, %v498, 0
  %501 = vmatpush.msra.mxu0 0.0
  %502 = vmatpush.msra.mxu0 0.0
  %503 = vmatpush.msra.mxu0 0.0
  %504 = vmatpush.msra.mxu0 0.0
  %505 = vmatpush.msra.mxu0 0.0
  %506 = vmatpush.msra.mxu0 0.0
  %507 = vmatpush.msra.mxu0 0.0
  %508 = vmatpush.msra.mxu0 0.0
  %509 = vmatpush.msra.mxu0 %v169
  %510 = vmatpush.msra.mxu0 %v167
  %511 = vmatpush.msra.mxu0 %v165
  %512 = vmatpush.msra.mxu0 %v163
  %513 = vmatpush.msra.mxu0 %v161
  %514 = vmatpush.msra.mxu0 %v159
  %515 = vmatpush.msra.mxu0 %v157
  %516 = vmatpush.msra.mxu0 %v155
  %517 = vmatmul.f32.gmra.mxu0 %v499
  %v518 = vpop.f32.mrf.mxu0
  %v519 = vadd.f32 %v173, %v518
  %520 = vdwg.mxu0
  %521 = vmatpush.msra.mxu0 0.0
  %522 = vmatpush.msra.mxu0 0.0
  %523 = vmatpush.msra.mxu0 0.0
  %524 = vmatpush.msra.mxu0 0.0
  %525 = vmatpush.msra.mxu0 0.0
  %526 = vmatpush.msra.mxu0 0.0
  %527 = vmatpush.msra.mxu0 0.0
  %528 = vmatpush.msra.mxu0 0.0
  %529 = vmatpush.msra.mxu0 %v170
  %530 = vmatpush.msra.mxu0 %v168
  %531 = vmatpush.msra.mxu0 %v166
  %532 = vmatpush.msra.mxu0 %v164
  %533 = vmatpush.msra.mxu0 %v162
  %534 = vmatpush.msra.mxu0 %v160
  %535 = vmatpush.msra.mxu0 %v158
  %536 = vmatpush.msra.mxu0 %v156
  %537 = vmatmul.f32.gmra.mxu0 %v499
  %v538 = vpop.f32.mrf.mxu0
  %v539 = vadd.f32 %v174, %v538
  %540 = vdwg.mxu0
  %v542 = vrot.slane %v519, 6
  %v544 = vadd.f32 %v122, %v542
  %v545 = vxor.u32 %v544, 2147483648
  %v546 = vmul.f32 %v545, 1.442695
  %v547 = vpow.pop %v546
  %v548 = vadd.f32 %v547, 1.0
  %v549 = vrcp.pop %v548
  %v550 = vmul.f32 %v548, %v549
  %v551 = vsub.f32 1.0, %v550
  %v552 = vmul.f32 %v549, %v551
  %v553 = vadd.f32 %v549, %v552
  %vm554 = vweird.f32 %v548
  %vm555 = vweird.f32 %v549
  %vm556 = vmor %vm554, %vm555
  %v557 = vsel %vm556, %v549, %v553
  %v558 = vand.u32 2147483647, %v548
  %vm559 = vcmp.eq.f32.partialorder %v558, 8.507059e+37
  %v560 = vand.u32 %v548, 2147483648
  %v561 = vor.u32 1.1754944e-38, %v560
  %v562 = vsel %vm559, %v561, %v557
  %v563 = vmul.f32 1.0, %v562
  %564 = vrot.lane.b32.xlu0 %v542, 64
  %v565 = vpop.permute.xlu0 %564
  %v567 = vmul.f32 %v563, %v565
  %569 = vrot.lane.b32.xlu0 %v567, 64
  %v570 = vpop.permute.xlu0 %569
  %v572 = vadd.f32 %v122, %v570
  %v573 = vtanh.pop %v572
  %v574 = vsub.f32 1.0, %v563
  %576 = vrot.lane.b32.xlu0 %v573, 96
  %v577 = vpop.permute.xlu0 %576
  %v579 = vmul.f32 %v574, %v577
  %v580 = vrot.slane %v419, 7
  %v582 = vmul.f32 %v563, %v580
  %v583 = vadd.f32 %v579, %v582
  %v584 = vrot.slane %v519, 3
  %585 = vrot.lane.b32.xlu0 %v584, 32
  %v586 = vpop.permute.xlu0 %585
  %v588 = vadd.f32 %v153, %v586
  %v589 = vxor.u32 %v588, 2147483648
  %v590 = vmul.f32 %v589, 1.442695
  %v591 = vpow.pop %v590
  %v592 = vadd.f32 %v591, 1.0
  %v593 = vrcp.pop %v592
  %v594 = vmul.f32 %v592, %v593
  %v595 = vsub.f32 1.0, %v594
  %v596 = vmul.f32 %v593, %v595
  %v597 = vadd.f32 %v593, %v596
  %vm598 = vweird.f32 %v592
  %vm599 = vweird.f32 %v593
  %vm600 = vmor %vm598, %vm599
  %v601 = vsel %vm600, %v593, %v597
  %v602 = vand.u32 2147483647, %v592
  %vm603 = vcmp.eq.f32.partialorder %v602, 8.507059e+37
  %v604 = vand.u32 %v592, 2147483648
  %v605 = vor.u32 1.1754944e-38, %v604
  %v606 = vsel %vm603, %v605, %v601
  %v607 = vmul.f32 1.0, %v606
  %v609 = vrot.slane %v539, 3
  %610 = vrot.lane.b32.xlu0 %v609, 32
  %v611 = vpop.permute.xlu0 %610
  %v613 = vadd.f32 %v153, %v611
  %v614 = vxor.u32 %v613, 2147483648
  %v615 = vmul.f32 %v614, 1.442695
  %v616 = vpow.pop %v615
  %v617 = vadd.f32 %v616, 1.0
  %v618 = vrcp.pop %v617
  %v619 = vmul.f32 %v617, %v618
  %v620 = vsub.f32 1.0, %v619
  %v621 = vmul.f32 %v618, %v620
  %v622 = vadd.f32 %v618, %v621
  %vm623 = vweird.f32 %v617
  %vm624 = vweird.f32 %v618
  %vm625 = vmor %vm623, %vm624
  %v626 = vsel %vm625, %v618, %v622
  %v627 = vand.u32 2147483647, %v617
  %vm628 = vcmp.eq.f32.partialorder %v627, 8.507059e+37
  %v629 = vand.u32 %v617, 2147483648
  %v630 = vor.u32 1.1754944e-38, %v629
  %v631 = vsel %vm628, %v630, %v626
  %v632 = vmul.f32 1.0, %v631
  %633 = vrot.lane.b32.xlu0 %v609, 96
  %v634 = vpop.permute.xlu0 %633
  %v636 = vmul.f32 %v607, %v634
  %638 = vrot.lane.b32.xlu0 %v636, 64
  %v639 = vpop.permute.xlu0 %638
  %v641 = vadd.f32 %v153, %v639
  %v642 = vtanh.pop %v641
  %v643 = vsub.f32 1.0, %v632
  %645 = vrot.lane.b32.xlu0 %v642, 96
  %v646 = vpop.permute.xlu0 %645
  %v648 = vmul.f32 %v643, %v646
  %v649 = vrot.slane %v488, 1
  %v651 = vmul.f32 %v632, %v649
  %v652 = vadd.f32 %v648, %v651
  %654 = vrot.lane.b32.xlu0 %v583, 96
  %v655 = vpop.permute.xlu0 %654
  %v658 = vrot.slane %v652, 3
  %v660 = vsel %vm88, %v655, %v658
  %v662 = vrot.slane %v660, 2
  %v663 = vsel %vm100, %v662, 0
  %665 = vmatpush.msra.mxu0 0.0
  %666 = vmatpush.msra.mxu0 0.0
  %667 = vmatpush.msra.mxu0 0.0
  %668 = vmatpush.msra.mxu0 0.0
  %669 = vmatpush.msra.mxu0 0.0
  %670 = vmatpush.msra.mxu0 0.0
  %671 = vmatpush.msra.mxu0 0.0
  %672 = vmatpush.msra.mxu0 0.0
  %673 = vmatpush.msra.mxu0 %v169
  %674 = vmatpush.msra.mxu0 %v167
  %675 = vmatpush.msra.mxu0 %v165
  %676 = vmatpush.msra.mxu0 %v163
  %677 = vmatpush.msra.mxu0 %v161
  %678 = vmatpush.msra.mxu0 %v159
  %679 = vmatpush.msra.mxu0 %v157
  %680 = vmatpush.msra.mxu0 %v155
  %681 = vmatmul.f32.gmra.mxu0 %v663
  %v682 = vpop.f32.mrf.mxu0
  %v683 = vadd.f32 %v173, %v682
  %684 = vdwg.mxu0
  %685 = vmatpush.msra.mxu0 0.0
  %686 = vmatpush.msra.mxu0 0.0
  %687 = vmatpush.msra.mxu0 0.0
  %688 = vmatpush.msra.mxu0 0.0
  %689 = vmatpush.msra.mxu0 0.0
  %690 = vmatpush.msra.mxu0 0.0
  %691 = vmatpush.msra.mxu0 0.0
  %692 = vmatpush.msra.mxu0 0.0
  %693 = vmatpush.msra.mxu0 %v170
  %694 = vmatpush.msra.mxu0 %v168
  %695 = vmatpush.msra.mxu0 %v166
  %696 = vmatpush.msra.mxu0 %v164
  %697 = vmatpush.msra.mxu0 %v162
  %698 = vmatpush.msra.mxu0 %v160
  %699 = vmatpush.msra.mxu0 %v158
  %700 = vmatpush.msra.mxu0 %v156
  %701 = vmatmul.f32.gmra.mxu0 %v663
  %v702 = vpop.f32.mrf.mxu0
  %v703 = vadd.f32 %v174, %v702
  %704 = vdwg.mxu0
  %v706 = vrot.slane %v683, 5
  %v708 = vadd.f32 %v122, %v706
  %v709 = vxor.u32 %v708, 2147483648
  %v710 = vmul.f32 %v709, 1.442695
  %v711 = vpow.pop %v710
  %v712 = vadd.f32 %v711, 1.0
  %v713 = vrcp.pop %v712
  %v714 = vmul.f32 %v712, %v713
  %v715 = vsub.f32 1.0, %v714
  %v716 = vmul.f32 %v713, %v715
  %v717 = vadd.f32 %v713, %v716
  %vm718 = vweird.f32 %v712
  %vm719 = vweird.f32 %v713
  %vm720 = vmor %vm718, %vm719
  %v721 = vsel %vm720, %v713, %v717
  %v722 = vand.u32 2147483647, %v712
  %vm723 = vcmp.eq.f32.partialorder %v722, 8.507059e+37
  %v724 = vand.u32 %v712, 2147483648
  %v725 = vor.u32 1.1754944e-38, %v724
  %v726 = vsel %vm723, %v725, %v721
  %v727 = vmul.f32 1.0, %v726
  %728 = vrot.lane.b32.xlu0 %v706, 64
  %v729 = vpop.permute.xlu0 %728
  %v731 = vmul.f32 %v727, %v729
  %733 = vrot.lane.b32.xlu0 %v731, 64
  %v734 = vpop.permute.xlu0 %733
  %v736 = vadd.f32 %v122, %v734
  %v737 = vtanh.pop %v736
  %v738 = vsub.f32 1.0, %v727
  %740 = vrot.lane.b32.xlu0 %v737, 96
  %v741 = vpop.permute.xlu0 %740
  %v743 = vmul.f32 %v738, %v741
  %v744 = vrot.slane %v583, 7
  %v746 = vmul.f32 %v727, %v744
  %v747 = vadd.f32 %v743, %v746
  %v748 = vrot.slane %v683, 4
  %749 = vrot.lane.b32.xlu0 %v748, 32
  %v750 = vpop.permute.xlu0 %749
  %v752 = vadd.f32 %v153, %v750
  %v753 = vxor.u32 %v752, 2147483648
  %v754 = vmul.f32 %v753, 1.442695
  %v755 = vpow.pop %v754
  %v756 = vadd.f32 %v755, 1.0
  %v757 = vrcp.pop %v756
  %v758 = vmul.f32 %v756, %v757
  %v759 = vsub.f32 1.0, %v758
  %v760 = vmul.f32 %v757, %v759
  %v761 = vadd.f32 %v757, %v760
  %vm762 = vweird.f32 %v756
  %vm763 = vweird.f32 %v757
  %vm764 = vmor %vm762, %vm763
  %v765 = vsel %vm764, %v757, %v761
  %v766 = vand.u32 2147483647, %v756
  %vm767 = vcmp.eq.f32.partialorder %v766, 8.507059e+37
  %v768 = vand.u32 %v756, 2147483648
  %v769 = vor.u32 1.1754944e-38, %v768
  %v770 = vsel %vm767, %v769, %v765
  %v771 = vmul.f32 1.0, %v770
  %v773 = vrot.slane %v703, 4
  %774 = vrot.lane.b32.xlu0 %v773, 32
  %v775 = vpop.permute.xlu0 %774
  %v777 = vadd.f32 %v153, %v775
  %v778 = vxor.u32 %v777, 2147483648
  %v779 = vmul.f32 %v778, 1.442695
  %v780 = vpow.pop %v779
  %v781 = vadd.f32 %v780, 1.0
  %v782 = vrcp.pop %v781
  %v783 = vmul.f32 %v781, %v782
  %v784 = vsub.f32 1.0, %v783
  %v785 = vmul.f32 %v782, %v784
  %v786 = vadd.f32 %v782, %v785
  %vm787 = vweird.f32 %v781
  %vm788 = vweird.f32 %v782
  %vm789 = vmor %vm787, %vm788
  %v790 = vsel %vm789, %v782, %v786
  %v791 = vand.u32 2147483647, %v781
  %vm792 = vcmp.eq.f32.partialorder %v791, 8.507059e+37
  %v793 = vand.u32 %v781, 2147483648
  %v794 = vor.u32 1.1754944e-38, %v793
  %v795 = vsel %vm792, %v794, %v790
  %v796 = vmul.f32 1.0, %v795
  %797 = vrot.lane.b32.xlu0 %v773, 96
  %v798 = vpop.permute.xlu0 %797
  %v800 = vmul.f32 %v771, %v798
  %802 = vrot.lane.b32.xlu0 %v800, 64
  %v803 = vpop.permute.xlu0 %802
  %v805 = vadd.f32 %v153, %v803
  %v806 = vtanh.pop %v805
  %v807 = vsub.f32 1.0, %v796
  %809 = vrot.lane.b32.xlu0 %v806, 96
  %v810 = vpop.permute.xlu0 %809
  %v812 = vmul.f32 %v807, %v810
  %v813 = vrot.slane %v652, 1
  %v815 = vmul.f32 %v796, %v813
  %v816 = vadd.f32 %v812, %v815
  %818 = vrot.lane.b32.xlu0 %v747, 96
  %v819 = vpop.permute.xlu0 %818
  %v822 = vrot.slane %v816, 1
  %v824 = vsel %vm88, %v819, %v822
  %v826 = vrot.slane %v824, 3
  %v827 = vsel %vm100, %v826, 0
  %829 = vmatpush.msra.mxu0 0.0
  %830 = vmatpush.msra.mxu0 0.0
  %831 = vmatpush.msra.mxu0 0.0
  %832 = vmatpush.msra.mxu0 0.0
  %833 = vmatpush.msra.mxu0 0.0
  %834 = vmatpush.msra.mxu0 0.0
  %835 = vmatpush.msra.mxu0 0.0
  %836 = vmatpush.msra.mxu0 0.0
  %837 = vmatpush.msra.mxu0 %v169
  %838 = vmatpush.msra.mxu0 %v167
  %839 = vmatpush.msra.mxu0 %v165
  %840 = vmatpush.msra.mxu0 %v163
  %841 = vmatpush.msra.mxu0 %v161
  %842 = vmatpush.msra.mxu0 %v159
  %843 = vmatpush.msra.mxu0 %v157
  %844 = vmatpush.msra.mxu0 %v155
  %845 = vmatmul.f32.gmra.mxu0 %v827
  %v846 = vpop.f32.mrf.mxu0
  %v847 = vadd.f32 %v173, %v846
  %848 = vdwg.mxu0
  %849 = vmatpush.msra.mxu0 0.0
  %850 = vmatpush.msra.mxu0 0.0
  %851 = vmatpush.msra.mxu0 0.0
  %852 = vmatpush.msra.mxu0 0.0
  %853 = vmatpush.msra.mxu0 0.0
  %854 = vmatpush.msra.mxu0 0.0
  %855 = vmatpush.msra.mxu0 0.0
  %856 = vmatpush.msra.mxu0 0.0
  %857 = vmatpush.msra.mxu0 %v170
  %858 = vmatpush.msra.mxu0 %v168
  %859 = vmatpush.msra.mxu0 %v166
  %860 = vmatpush.msra.mxu0 %v164
  %861 = vmatpush.msra.mxu0 %v162
  %862 = vmatpush.msra.mxu0 %v160
  %863 = vmatpush.msra.mxu0 %v158
  %864 = vmatpush.msra.mxu0 %v156
  %865 = vmatmul.f32.gmra.mxu0 %v827
  %v866 = vpop.f32.mrf.mxu0
  %v867 = vadd.f32 %v174, %v866
  %868 = vdwg.mxu0
  %v870 = vrot.slane %v847, 4
  %v872 = vadd.f32 %v122, %v870
  %v873 = vxor.u32 %v872, 2147483648
  %v874 = vmul.f32 %v873, 1.442695
  %v875 = vpow.pop %v874
  %v876 = vadd.f32 %v875, 1.0
  %v877 = vrcp.pop %v876
  %v878 = vmul.f32 %v876, %v877
  %v879 = vsub.f32 1.0, %v878
  %v880 = vmul.f32 %v877, %v879
  %v881 = vadd.f32 %v877, %v880
  %vm882 = vweird.f32 %v876
  %vm883 = vweird.f32 %v877
  %vm884 = vmor %vm882, %vm883
  %v885 = vsel %vm884, %v877, %v881
  %v886 = vand.u32 2147483647, %v876
  %vm887 = vcmp.eq.f32.partialorder %v886, 8.507059e+37
  %v888 = vand.u32 %v876, 2147483648
  %v889 = vor.u32 1.1754944e-38, %v888
  %v890 = vsel %vm887, %v889, %v885
  %v891 = vmul.f32 1.0, %v890
  %892 = vrot.lane.b32.xlu0 %v870, 64
  %v893 = vpop.permute.xlu0 %892
  %v895 = vmul.f32 %v891, %v893
  %897 = vrot.lane.b32.xlu0 %v895, 64
  %v898 = vpop.permute.xlu0 %897
  %v900 = vadd.f32 %v122, %v898
  %v901 = vtanh.pop %v900
  %v902 = vsub.f32 1.0, %v891
  %904 = vrot.lane.b32.xlu0 %v901, 96
  %v905 = vpop.permute.xlu0 %904
  %v907 = vmul.f32 %v902, %v905
  %v908 = vrot.slane %v747, 7
  %v910 = vmul.f32 %v891, %v908
  %v911 = vadd.f32 %v907, %v910
  %v912 = vrot.slane %v847, 5
  %913 = vrot.lane.b32.xlu0 %v912, 32
  %v914 = vpop.permute.xlu0 %913
  %v916 = vadd.f32 %v153, %v914
  %v917 = vxor.u32 %v916, 2147483648
  %v918 = vmul.f32 %v917, 1.442695
  %v919 = vpow.pop %v918
  %v920 = vadd.f32 %v919, 1.0
  %v921 = vrcp.pop %v920
  %v922 = vmul.f32 %v920, %v921
  %v923 = vsub.f32 1.0, %v922
  %v924 = vmul.f32 %v921, %v923
  %v925 = vadd.f32 %v921, %v924
  %vm926 = vweird.f32 %v920
  %vm927 = vweird.f32 %v921
  %vm928 = vmor %vm926, %vm927
  %v929 = vsel %vm928, %v921, %v925
  %v930 = vand.u32 2147483647, %v920
  %vm931 = vcmp.eq.f32.partialorder %v930, 8.507059e+37
  %v932 = vand.u32 %v920, 2147483648
  %v933 = vor.u32 1.1754944e-38, %v932
  %v934 = vsel %vm931, %v933, %v929
  %v935 = vmul.f32 1.0, %v934
  %v937 = vrot.slane %v867, 5
  %938 = vrot.lane.b32.xlu0 %v937, 32
  %v939 = vpop.permute.xlu0 %938
  %v941 = vadd.f32 %v153, %v939
  %v942 = vxor.u32 %v941, 2147483648
  %v943 = vmul.f32 %v942, 1.442695
  %v944 = vpow.pop %v943
  %v945 = vadd.f32 %v944, 1.0
  %v946 = vrcp.pop %v945
  %v947 = vmul.f32 %v945, %v946
  %v948 = vsub.f32 1.0, %v947
  %v949 = vmul.f32 %v946, %v948
  %v950 = vadd.f32 %v946, %v949
  %vm951 = vweird.f32 %v945
  %vm952 = vweird.f32 %v946
  %vm953 = vmor %vm951, %vm952
  %v954 = vsel %vm953, %v946, %v950
  %v955 = vand.u32 2147483647, %v945
  %vm956 = vcmp.eq.f32.partialorder %v955, 8.507059e+37
  %v957 = vand.u32 %v945, 2147483648
  %v958 = vor.u32 1.1754944e-38, %v957
  %v959 = vsel %vm956, %v958, %v954
  %v960 = vmul.f32 1.0, %v959
  %961 = vrot.lane.b32.xlu0 %v937, 96
  %v962 = vpop.permute.xlu0 %961
  %v964 = vmul.f32 %v935, %v962
  %966 = vrot.lane.b32.xlu0 %v964, 64
  %v967 = vpop.permute.xlu0 %966
  %v969 = vadd.f32 %v153, %v967
  %v970 = vtanh.pop %v969
  %v971 = vsub.f32 1.0, %v960
  %973 = vrot.lane.b32.xlu0 %v970, 96
  %v974 = vpop.permute.xlu0 %973
  %v976 = vmul.f32 %v971, %v974
  %v977 = vmul.f32 %v960, %v822
  %v978 = vadd.f32 %v976, %v977
  %980 = vrot.lane.b32.xlu0 %v911, 96
  %v981 = vpop.permute.xlu0 %980
  %v984 = vrot.slane %v978, 7
  %v986 = vsel %vm88, %v981, %v984
  %v988 = vrot.slane %v986, 4
  %v989 = vsel %vm100, %v988, 0
  %991 = vmatpush.msra.mxu0 0.0
  %992 = vmatpush.msra.mxu0 0.0
  %993 = vmatpush.msra.mxu0 0.0
  %994 = vmatpush.msra.mxu0 0.0
  %995 = vmatpush.msra.mxu0 0.0
  %996 = vmatpush.msra.mxu0 0.0
  %997 = vmatpush.msra.mxu0 0.0
  %998 = vmatpush.msra.mxu0 0.0
  %999 = vmatpush.msra.mxu0 %v169
  %1000 = vmatpush.msra.mxu0 %v167
  %1001 = vmatpush.msra.mxu0 %v165
  %1002 = vmatpush.msra.mxu0 %v163
  %1003 = vmatpush.msra.mxu0 %v161
  %1004 = vmatpush.msra.mxu0 %v159
  %1005 = vmatpush.msra.mxu0 %v157
  %1006 = vmatpush.msra.mxu0 %v155
  %1007 = vmatmul.f32.gmra.mxu0 %v989
  %v1008 = vpop.f32.mrf.mxu0
  %v1009 = vadd.f32 %v173, %v1008
  %1010 = vdwg.mxu0
  %1011 = vmatpush.msra.mxu0 0.0
  %1012 = vmatpush.msra.mxu0 0.0
  %1013 = vmatpush.msra.mxu0 0.0
  %1014 = vmatpush.msra.mxu0 0.0
  %1015 = vmatpush.msra.mxu0 0.0
  %1016 = vmatpush.msra.mxu0 0.0
  %1017 = vmatpush.msra.mxu0 0.0
  %1018 = vmatpush.msra.mxu0 0.0
  %1019 = vmatpush.msra.mxu0 %v170
  %1020 = vmatpush.msra.mxu0 %v168
  %1021 = vmatpush.msra.mxu0 %v166
  %1022 = vmatpush.msra.mxu0 %v164
  %1023 = vmatpush.msra.mxu0 %v162
  %1024 = vmatpush.msra.mxu0 %v160
  %1025 = vmatpush.msra.mxu0 %v158
  %1026 = vmatpush.msra.mxu0 %v156
  %1027 = vmatmul.f32.gmra.mxu0 %v989
  %v1028 = vpop.f32.mrf.mxu0
  %v1029 = vadd.f32 %v174, %v1028
  %1030 = vdwg.mxu0
  %v1032 = vrot.slane %v1009, 3
  %v1034 = vadd.f32 %v122, %v1032
  %v1035 = vxor.u32 %v1034, 2147483648
  %v1036 = vmul.f32 %v1035, 1.442695
  %v1037 = vpow.pop %v1036
  %v1038 = vadd.f32 %v1037, 1.0
  %v1039 = vrcp.pop %v1038
  %v1040 = vmul.f32 %v1038, %v1039
  %v1041 = vsub.f32 1.0, %v1040
  %v1042 = vmul.f32 %v1039, %v1041
  %v1043 = vadd.f32 %v1039, %v1042
  %vm1044 = vweird.f32 %v1038
  %vm1045 = vweird.f32 %v1039
  %vm1046 = vmor %vm1044, %vm1045
  %v1047 = vsel %vm1046, %v1039, %v1043
  %v1048 = vand.u32 2147483647, %v1038
  %vm1049 = vcmp.eq.f32.partialorder %v1048, 8.507059e+37
  %v1050 = vand.u32 %v1038, 2147483648
  %v1051 = vor.u32 1.1754944e-38, %v1050
  %v1052 = vsel %vm1049, %v1051, %v1047
  %v1053 = vmul.f32 1.0, %v1052
  %1054 = vrot.lane.b32.xlu0 %v1032, 64
  %v1055 = vpop.permute.xlu0 %1054
  %v1057 = vmul.f32 %v1053, %v1055
  %1059 = vrot.lane.b32.xlu0 %v1057, 64
  %v1060 = vpop.permute.xlu0 %1059
  %v1062 = vadd.f32 %v122, %v1060
  %v1063 = vtanh.pop %v1062
  %v1064 = vsub.f32 1.0, %v1053
  %1066 = vrot.lane.b32.xlu0 %v1063, 96
  %v1067 = vpop.permute.xlu0 %1066
  %v1069 = vmul.f32 %v1064, %v1067
  %v1070 = vrot.slane %v911, 7
  %v1072 = vmul.f32 %v1053, %v1070
  %v1073 = vadd.f32 %v1069, %v1072
  %v1074 = vrot.slane %v1009, 6
  %1075 = vrot.lane.b32.xlu0 %v1074, 32
  %v1076 = vpop.permute.xlu0 %1075
  %v1078 = vadd.f32 %v153, %v1076
  %v1079 = vxor.u32 %v1078, 2147483648
  %v1080 = vmul.f32 %v1079, 1.442695
  %v1081 = vpow.pop %v1080
  %v1082 = vadd.f32 %v1081, 1.0
  %v1083 = vrcp.pop %v1082
  %v1084 = vmul.f32 %v1082, %v1083
  %v1085 = vsub.f32 1.0, %v1084
  %v1086 = vmul.f32 %v1083, %v1085
  %v1087 = vadd.f32 %v1083, %v1086
  %vm1088 = vweird.f32 %v1082
  %vm1089 = vweird.f32 %v1083
  %vm1090 = vmor %vm1088, %vm1089
  %v1091 = vsel %vm1090, %v1083, %v1087
  %v1092 = vand.u32 2147483647, %v1082
  %vm1093 = vcmp.eq.f32.partialorder %v1092, 8.507059e+37
  %v1094 = vand.u32 %v1082, 2147483648
  %v1095 = vor.u32 1.1754944e-38, %v1094
  %v1096 = vsel %vm1093, %v1095, %v1091
  %v1097 = vmul.f32 1.0, %v1096
  %v1099 = vrot.slane %v1029, 6
  %1100 = vrot.lane.b32.xlu0 %v1099, 32
  %v1101 = vpop.permute.xlu0 %1100
  %v1103 = vadd.f32 %v153, %v1101
  %v1104 = vxor.u32 %v1103, 2147483648
  %v1105 = vmul.f32 %v1104, 1.442695
  %v1106 = vpow.pop %v1105
  %v1107 = vadd.f32 %v1106, 1.0
  %v1108 = vrcp.pop %v1107
  %v1109 = vmul.f32 %v1107, %v1108
  %v1110 = vsub.f32 1.0, %v1109
  %v1111 = vmul.f32 %v1108, %v1110
  %v1112 = vadd.f32 %v1108, %v1111
  %vm1113 = vweird.f32 %v1107
  %vm1114 = vweird.f32 %v1108
  %vm1115 = vmor %vm1113, %vm1114
  %v1116 = vsel %vm1115, %v1108, %v1112
  %v1117 = vand.u32 2147483647, %v1107
  %vm1118 = vcmp.eq.f32.partialorder %v1117, 8.507059e+37
  %v1119 = vand.u32 %v1107, 2147483648
  %v1120 = vor.u32 1.1754944e-38, %v1119
  %v1121 = vsel %vm1118, %v1120, %v1116
  %v1122 = vmul.f32 1.0, %v1121
  %1123 = vrot.lane.b32.xlu0 %v1099, 96
  %v1124 = vpop.permute.xlu0 %1123
  %v1126 = vmul.f32 %v1097, %v1124
  %1128 = vrot.lane.b32.xlu0 %v1126, 64
  %v1129 = vpop.permute.xlu0 %1128
  %v1131 = vadd.f32 %v153, %v1129
  %v1132 = vtanh.pop %v1131
  %v1133 = vsub.f32 1.0, %v1122
  %1135 = vrot.lane.b32.xlu0 %v1132, 96
  %v1136 = vpop.permute.xlu0 %1135
  %v1138 = vmul.f32 %v1133, %v1136
  %v1139 = vrot.slane %v978, 1
  %v1141 = vmul.f32 %v1122, %v1139
  %v1142 = vadd.f32 %v1138, %v1141
  %1144 = vrot.lane.b32.xlu0 %v1073, 96
  %v1145 = vpop.permute.xlu0 %1144
  %v1148 = vrot.slane %v1142, 5
  %v1150 = vsel %vm88, %v1145, %v1148
  %v1152 = vrot.slane %v1150, 5
  %v1153 = vsel %vm100, %v1152, 0
  %1155 = vmatpush.msra.mxu0 0.0
  %1156 = vmatpush.msra.mxu0 0.0
  %1157 = vmatpush.msra.mxu0 0.0
  %1158 = vmatpush.msra.mxu0 0.0
  %1159 = vmatpush.msra.mxu0 0.0
  %1160 = vmatpush.msra.mxu0 0.0
  %1161 = vmatpush.msra.mxu0 0.0
  %1162 = vmatpush.msra.mxu0 0.0
  %1163 = vmatpush.msra.mxu0 %v169
  %1164 = vmatpush.msra.mxu0 %v167
  %1165 = vmatpush.msra.mxu0 %v165
  %1166 = vmatpush.msra.mxu0 %v163
  %1167 = vmatpush.msra.mxu0 %v161
  %1168 = vmatpush.msra.mxu0 %v159
  %1169 = vmatpush.msra.mxu0 %v157
  %1170 = vmatpush.msra.mxu0 %v155
  %1171 = vmatmul.f32.gmra.mxu0 %v1153
  %v1172 = vpop.f32.mrf.mxu0
  %v1173 = vadd.f32 %v173, %v1172
  %1174 = vdwg.mxu0
  %1175 = vmatpush.msra.mxu0 0.0
  %1176 = vmatpush.msra.mxu0 0.0
  %1177 = vmatpush.msra.mxu0 0.0
  %1178 = vmatpush.msra.mxu0 0.0
  %1179 = vmatpush.msra.mxu0 0.0
  %1180 = vmatpush.msra.mxu0 0.0
  %1181 = vmatpush.msra.mxu0 0.0
  %1182 = vmatpush.msra.mxu0 0.0
  %1183 = vmatpush.msra.mxu0 %v170
  %1184 = vmatpush.msra.mxu0 %v168
  %1185 = vmatpush.msra.mxu0 %v166
  %1186 = vmatpush.msra.mxu0 %v164
  %1187 = vmatpush.msra.mxu0 %v162
  %1188 = vmatpush.msra.mxu0 %v160
  %1189 = vmatpush.msra.mxu0 %v158
  %1190 = vmatpush.msra.mxu0 %v156
  %1191 = vmatmul.f32.gmra.mxu0 %v1153
  %v1192 = vpop.f32.mrf.mxu0
  %v1193 = vadd.f32 %v174, %v1192
  %1194 = vdwg.mxu0
  %v1196 = vrot.slane %v1173, 2
  %v1198 = vadd.f32 %v122, %v1196
  %v1199 = vxor.u32 %v1198, 2147483648
  %v1200 = vmul.f32 %v1199, 1.442695
  %v1201 = vpow.pop %v1200
  %v1202 = vadd.f32 %v1201, 1.0
  %v1203 = vrcp.pop %v1202
  %v1204 = vmul.f32 %v1202, %v1203
  %v1205 = vsub.f32 1.0, %v1204
  %v1206 = vmul.f32 %v1203, %v1205
  %v1207 = vadd.f32 %v1203, %v1206
  %vm1208 = vweird.f32 %v1202
  %vm1209 = vweird.f32 %v1203
  %vm1210 = vmor %vm1208, %vm1209
  %v1211 = vsel %vm1210, %v1203, %v1207
  %v1212 = vand.u32 2147483647, %v1202
  %vm1213 = vcmp.eq.f32.partialorder %v1212, 8.507059e+37
  %v1214 = vand.u32 %v1202, 2147483648
  %v1215 = vor.u32 1.1754944e-38, %v1214
  %v1216 = vsel %vm1213, %v1215, %v1211
  %v1217 = vmul.f32 1.0, %v1216
  %1218 = vrot.lane.b32.xlu0 %v1196, 64
  %v1219 = vpop.permute.xlu0 %1218
  %v1221 = vmul.f32 %v1217, %v1219
  %1223 = vrot.lane.b32.xlu0 %v1221, 64
  %v1224 = vpop.permute.xlu0 %1223
  %v1226 = vadd.f32 %v122, %v1224
  %v1227 = vtanh.pop %v1226
  %v1228 = vsub.f32 1.0, %v1217
  %1230 = vrot.lane.b32.xlu0 %v1227, 96
  %v1231 = vpop.permute.xlu0 %1230
  %v1233 = vmul.f32 %v1228, %v1231
  %v1234 = vrot.slane %v1073, 7
  %v1236 = vmul.f32 %v1217, %v1234
  %v1237 = vadd.f32 %v1233, %v1236
  %v1238 = vrot.slane %v1173, 7
  %1239 = vrot.lane.b32.xlu0 %v1238, 32
  %v1240 = vpop.permute.xlu0 %1239
  %v1242 = vadd.f32 %v153, %v1240
  %v1243 = vxor.u32 %v1242, 2147483648
  %v1244 = vmul.f32 %v1243, 1.442695
  %v1245 = vpow.pop %v1244
  %v1246 = vadd.f32 %v1245, 1.0
  %v1247 = vrcp.pop %v1246
  %v1248 = vmul.f32 %v1246, %v1247
  %v1249 = vsub.f32 1.0, %v1248
  %v1250 = vmul.f32 %v1247, %v1249
  %v1251 = vadd.f32 %v1247, %v1250
  %vm1252 = vweird.f32 %v1246
  %vm1253 = vweird.f32 %v1247
  %vm1254 = vmor %vm1252, %vm1253
  %v1255 = vsel %vm1254, %v1247, %v1251
  %v1256 = vand.u32 2147483647, %v1246
  %vm1257 = vcmp.eq.f32.partialorder %v1256, 8.507059e+37
  %v1258 = vand.u32 %v1246, 2147483648
  %v1259 = vor.u32 1.1754944e-38, %v1258
  %v1260 = vsel %vm1257, %v1259, %v1255
  %v1261 = vmul.f32 1.0, %v1260
  %v1263 = vrot.slane %v1193, 7
  %1264 = vrot.lane.b32.xlu0 %v1263, 32
  %v1265 = vpop.permute.xlu0 %1264
  %v1267 = vadd.f32 %v153, %v1265
  %v1268 = vxor.u32 %v1267, 2147483648
  %v1269 = vmul.f32 %v1268, 1.442695
  %v1270 = vpow.pop %v1269
  %v1271 = vadd.f32 %v1270, 1.0
  %v1272 = vrcp.pop %v1271
  %v1273 = vmul.f32 %v1271, %v1272
  %v1274 = vsub.f32 1.0, %v1273
  %v1275 = vmul.f32 %v1272, %v1274
  %v1276 = vadd.f32 %v1272, %v1275
  %vm1277 = vweird.f32 %v1271
  %vm1278 = vweird.f32 %v1272
  %vm1279 = vmor %vm1277, %vm1278
  %v1280 = vsel %vm1279, %v1272, %v1276
  %v1281 = vand.u32 2147483647, %v1271
  %vm1282 = vcmp.eq.f32.partialorder %v1281, 8.507059e+37
  %v1283 = vand.u32 %v1271, 2147483648
  %v1284 = vor.u32 1.1754944e-38, %v1283
  %v1285 = vsel %vm1282, %v1284, %v1280
  %v1286 = vmul.f32 1.0, %v1285
  %1287 = vrot.lane.b32.xlu0 %v1263, 96
  %v1288 = vpop.permute.xlu0 %1287
  %v1290 = vmul.f32 %v1261, %v1288
  %1292 = vrot.lane.b32.xlu0 %v1290, 64
  %v1293 = vpop.permute.xlu0 %1292
  %v1295 = vadd.f32 %v153, %v1293
  %v1296 = vtanh.pop %v1295
  %v1297 = vsub.f32 1.0, %v1286
  %1299 = vrot.lane.b32.xlu0 %v1296, 96
  %v1300 = vpop.permute.xlu0 %1299
  %v1302 = vmul.f32 %v1297, %v1300
  %v1303 = vrot.slane %v1142, 1
  %v1305 = vmul.f32 %v1286, %v1303
  %v1306 = vadd.f32 %v1302, %v1305
  %1308 = vrot.lane.b32.xlu0 %v1237, 96
  %v1309 = vpop.permute.xlu0 %1308
  %v1312 = vrot.slane %v1306, 3
  %v1314 = vsel %vm88, %v1309, %v1312
  %v1316 = vrot.slane %v1314, 6
  %v1317 = vsel %vm100, %v1316, 0
  %1319 = vmatpush.msra.mxu0 0.0
  %1320 = vmatpush.msra.mxu0 0.0
  %1321 = vmatpush.msra.mxu0 0.0
  %1322 = vmatpush.msra.mxu0 0.0
  %1323 = vmatpush.msra.mxu0 0.0
  %1324 = vmatpush.msra.mxu0 0.0
  %1325 = vmatpush.msra.mxu0 0.0
  %1326 = vmatpush.msra.mxu0 0.0
  %1327 = vmatpush.msra.mxu0 %v169
  %1328 = vmatpush.msra.mxu0 %v167
  %1329 = vmatpush.msra.mxu0 %v165
  %1330 = vmatpush.msra.mxu0 %v163
  %1331 = vmatpush.msra.mxu0 %v161
  %1332 = vmatpush.msra.mxu0 %v159
  %1333 = vmatpush.msra.mxu0 %v157
  %1334 = vmatpush.msra.mxu0 %v155
  %1335 = vmatmul.f32.gmra.mxu0 %v1317
  %v1336 = vpop.f32.mrf.mxu0
  %v1337 = vadd.f32 %v173, %v1336
  %1338 = vdwg.mxu0
  %1339 = vmatpush.msra.mxu0 0.0
  %1340 = vmatpush.msra.mxu0 0.0
  %1341 = vmatpush.msra.mxu0 0.0
  %1342 = vmatpush.msra.mxu0 0.0
  %1343 = vmatpush.msra.mxu0 0.0
  %1344 = vmatpush.msra.mxu0 0.0
  %1345 = vmatpush.msra.mxu0 0.0
  %1346 = vmatpush.msra.mxu0 0.0
  %1347 = vmatpush.msra.mxu0 %v170
  %1348 = vmatpush.msra.mxu0 %v168
  %1349 = vmatpush.msra.mxu0 %v166
  %1350 = vmatpush.msra.mxu0 %v164
  %1351 = vmatpush.msra.mxu0 %v162
  %1352 = vmatpush.msra.mxu0 %v160
  %1353 = vmatpush.msra.mxu0 %v158
  %1354 = vmatpush.msra.mxu0 %v156
  %1355 = vmatmul.f32.gmra.mxu0 %v1317
  %v1356 = vpop.f32.mrf.mxu0
  %v1357 = vadd.f32 %v174, %v1356
  %1358 = vdwg.mxu0
  %v1360 = vrot.slane %v1337, 1
  %v1362 = vadd.f32 %v122, %v1360
  %v1363 = vxor.u32 %v1362, 2147483648
  %v1364 = vmul.f32 %v1363, 1.442695
  %v1365 = vpow.pop %v1364
  %v1366 = vadd.f32 %v1365, 1.0
  %v1367 = vrcp.pop %v1366
  %v1368 = vmul.f32 %v1366, %v1367
  %v1369 = vsub.f32 1.0, %v1368
  %v1370 = vmul.f32 %v1367, %v1369
  %v1371 = vadd.f32 %v1367, %v1370
  %vm1372 = vweird.f32 %v1366
  %vm1373 = vweird.f32 %v1367
  %vm1374 = vmor %vm1372, %vm1373
  %v1375 = vsel %vm1374, %v1367, %v1371
  %v1376 = vand.u32 2147483647, %v1366
  %vm1377 = vcmp.eq.f32.partialorder %v1376, 8.507059e+37
  %v1378 = vand.u32 %v1366, 2147483648
  %v1379 = vor.u32 1.1754944e-38, %v1378
  %v1380 = vsel %vm1377, %v1379, %v1375
  %v1381 = vmul.f32 1.0, %v1380
  %1382 = vrot.lane.b32.xlu0 %v1360, 64
  %v1383 = vpop.permute.xlu0 %1382
  %v1385 = vmul.f32 %v1381, %v1383
  %1387 = vrot.lane.b32.xlu0 %v1385, 64
  %v1388 = vpop.permute.xlu0 %1387
  %v1390 = vadd.f32 %v122, %v1388
  %v1391 = vtanh.pop %v1390
  %v1392 = vsub.f32 1.0, %v1381
  %1394 = vrot.lane.b32.xlu0 %v1391, 96
  %v1395 = vpop.permute.xlu0 %1394
  %v1397 = vmul.f32 %v1392, %v1395
  %v1398 = vrot.slane %v1237, 7
  %v1400 = vmul.f32 %v1381, %v1398
  %v1401 = vadd.f32 %v1397, %v1400
  %1402 = vrot.lane.b32.xlu0 %v1337, 32
  %v1403 = vpop.permute.xlu0 %1402
  %v1405 = vadd.f32 %v153, %v1403
  %v1406 = vxor.u32 %v1405, 2147483648
  %v1407 = vmul.f32 %v1406, 1.442695
  %v1408 = vpow.pop %v1407
  %v1409 = vadd.f32 %v1408, 1.0
  %v1410 = vrcp.pop %v1409
  %v1411 = vmul.f32 %v1409, %v1410
  %v1412 = vsub.f32 1.0, %v1411
  %v1413 = vmul.f32 %v1410, %v1412
  %v1414 = vadd.f32 %v1410, %v1413
  %vm1415 = vweird.f32 %v1409
  %vm1416 = vweird.f32 %v1410
  %vm1417 = vmor %vm1415, %vm1416
  %v1418 = vsel %vm1417, %v1410, %v1414
  %v1419 = vand.u32 2147483647, %v1409
  %vm1420 = vcmp.eq.f32.partialorder %v1419, 8.507059e+37
  %v1421 = vand.u32 %v1409, 2147483648
  %v1422 = vor.u32 1.1754944e-38, %v1421
  %v1423 = vsel %vm1420, %v1422, %v1418
  %v1424 = vmul.f32 1.0, %v1423
  %1426 = vrot.lane.b32.xlu0 %v1357, 32
  %v1427 = vpop.permute.xlu0 %1426
  %v1429 = vadd.f32 %v153, %v1427
  %v1430 = vxor.u32 %v1429, 2147483648
  %v1431 = vmul.f32 %v1430, 1.442695
  %v1432 = vpow.pop %v1431
  %v1433 = vadd.f32 %v1432, 1.0
  %v1434 = vrcp.pop %v1433
  %v1435 = vmul.f32 %v1433, %v1434
  %v1436 = vsub.f32 1.0, %v1435
  %v1437 = vmul.f32 %v1434, %v1436
  %v1438 = vadd.f32 %v1434, %v1437
  %vm1439 = vweird.f32 %v1433
  %vm1440 = vweird.f32 %v1434
  %vm1441 = vmor %vm1439, %vm1440
  %v1442 = vsel %vm1441, %v1434, %v1438
  %v1443 = vand.u32 2147483647, %v1433
  %vm1444 = vcmp.eq.f32.partialorder %v1443, 8.507059e+37
  %v1445 = vand.u32 %v1433, 2147483648
  %v1446 = vor.u32 1.1754944e-38, %v1445
  %v1447 = vsel %vm1444, %v1446, %v1442
  %v1448 = vmul.f32 1.0, %v1447
  %1449 = vrot.lane.b32.xlu0 %v1357, 96
  %v1450 = vpop.permute.xlu0 %1449
  %v1452 = vmul.f32 %v1424, %v1450
  %1454 = vrot.lane.b32.xlu0 %v1452, 64
  %v1455 = vpop.permute.xlu0 %1454
  %v1457 = vadd.f32 %v153, %v1455
  %v1458 = vtanh.pop %v1457
  %v1459 = vsub.f32 1.0, %v1448
  %1461 = vrot.lane.b32.xlu0 %v1458, 96
  %v1462 = vpop.permute.xlu0 %1461
  %v1464 = vmul.f32 %v1459, %v1462
  %v1465 = vrot.slane %v1306, 1
  %v1467 = vmul.f32 %v1448, %v1465
  %v1468 = vadd.f32 %v1464, %v1467
  %vm1469 = vcmask 1040384
  %v1470 = vsel %vm1469, %v258, %v419
  %vm1471 = vcmask 1041408
  %v1472 = vsel %vm1471, %v1470, %v583
  %vm1473 = vcmask 1042432
  %v1474 = vsel %vm1473, %v1472, %v747
  %vm1475 = vcmask 1043456
  %v1476 = vsel %vm1475, %v1474, %v911
  %vm1477 = vcmask 1044480
  %v1478 = vsel %vm1477, %v1476, %v1073
  %vm1479 = vcmask 1045504
  %v1480 = vsel %vm1479, %v1478, %v1237
  %vm1481 = vcmask 1046528
  %v1482 = vsel %vm1481, %v1480, %v1401
  %v1483 = vsel %vm1469, %v1468, %v1306
  %v1484 = vsel %vm1471, %v1483, %v1142
  %v1485 = vsel %vm1473, %v1484, %v978
  %v1486 = vsel %vm1475, %v1485, %v816
  %v1487 = vsel %vm1477, %v1486, %v652
  %v1488 = vsel %vm1479, %v1487, %v488
  %v1489 = vsel %vm1481, %v1488, %v325
  %1491 = vrot.lane.b32.xlu0 %v1482, 96
  %v1492 = vpop.permute.xlu0 %1491
  %v1494 = vsel %vm88, %v1492, %v1489
  %s1495 = scalar_lea.vmem %s2, 128
  %v1496 = vld [vmem:[%s1495] sm:$0xff]
  %v1497 = vld [vmem:[%s1495 + $0x8] sm:$0xff]
  %v1498 = vld [vmem:[%s1495 + $0x10] sm:$0xff]
  %v1499 = vld [vmem:[%s1495 + $0x18] sm:$0xff]
  %v1500 = vld [vmem:[%s1495 + $0x20] sm:$0xff]
  %v1501 = vld [vmem:[%s1495 + $0x28] sm:$0xff]
  %v1502 = vld [vmem:[%s1495 + $0x30] sm:$0xff]
  %v1503 = vld [vmem:[%s1495 + $0x38] sm:$0xff]
  %v1504 = vld [vmem:[%s4 + $0x2] sm:$0x1]
  %v1505 = vperm.slane %v1504, 0
  %v1507 = vsel %vm100, %v1494, 0
  %1509 = vmatpush.msra.mxu0 0.0
  %1510 = vmatpush.msra.mxu0 0.0
  %1511 = vmatpush.msra.mxu0 0.0
  %1512 = vmatpush.msra.mxu0 0.0
  %1513 = vmatpush.msra.mxu0 0.0
  %1514 = vmatpush.msra.mxu0 0.0
  %1515 = vmatpush.msra.mxu0 0.0
  %1516 = vmatpush.msra.mxu0 0.0
  %1517 = vmatpush.msra.mxu0 %v1503
  %1518 = vmatpush.msra.mxu0 %v1502
  %1519 = vmatpush.msra.mxu0 %v1501
  %1520 = vmatpush.msra.mxu0 %v1500
  %1521 = vmatpush.msra.mxu0 %v1499
  %1522 = vmatpush.msra.mxu0 %v1498
  %1523 = vmatpush.msra.mxu0 %v1497
  %1524 = vmatpush.msra.mxu0 %v1496
  %1525 = vmatmul.f32.gmra.mxu0 %v1507
  %v1526 = vpop.f32.mrf.mxu0
  %v1527 = vadd.f32 %v1505, %v1526
  %1528 = vdwg.mxu0
  %s1529 = scalar_lea.vmem %s2, 192
  %v1530 = vld [vmem:[%s1529] sm:$0xff]
  %v1531 = vld [vmem:[%s1529 + $0x8] sm:$0xff]
  %v1532 = vld [vmem:[%s1529 + $0x10] sm:$0xff]
  %v1533 = vld [vmem:[%s1529 + $0x18] sm:$0xff]
  %v1534 = vld [vmem:[%s1529 + $0x20] sm:$0xff]
  %v1535 = vld [vmem:[%s1529 + $0x28] sm:$0xff]
  %v1536 = vld [vmem:[%s1529 + $0x30] sm:$0xff]
  %v1537 = vld [vmem:[%s1529 + $0x38] sm:$0xff]
  %v1538 = vld [vmem:[%s4 + $0x3] sm:$0x1]
  %v1539 = vperm.slane %v1538, 0
  %1540 = vmatpush.msra.mxu0 0.0
  %1541 = vmatpush.msra.mxu0 0.0
  %1542 = vmatpush.msra.mxu0 0.0
  %1543 = vmatpush.msra.mxu0 0.0
  %1544 = vmatpush.msra.mxu0 0.0
  %1545 = vmatpush.msra.mxu0 0.0
  %1546 = vmatpush.msra.mxu0 0.0
  %1547 = vmatpush.msra.mxu0 0.0
  %1548 = vmatpush.msra.mxu0 %v1537
  %1549 = vmatpush.msra.mxu0 %v1536
  %1550 = vmatpush.msra.mxu0 %v1535
  %1551 = vmatpush.msra.mxu0 %v1534
  %1552 = vmatpush.msra.mxu0 %v1533
  %1553 = vmatpush.msra.mxu0 %v1532
  %1554 = vmatpush.msra.mxu0 %v1531
  %1555 = vmatpush.msra.mxu0 %v1530
  %1556 = vmatmul.f32.gmra.mxu0 %v1507
  %v1557 = vpop.f32.mrf.mxu0
  %v1558 = vadd.f32 %v1539, %v1557
  %1559 = vdwg.mxu0
  %s1560 = scalar_lea.vmem %s3, 128
  %v1561 = vld [vmem:[%s1560] sm:$0xff]
  %v1562 = vld [vmem:[%s1560 + $0x8] sm:$0xff]
  %v1563 = vld [vmem:[%s1560 + $0x10] sm:$0xff]
  %v1564 = vld [vmem:[%s1560 + $0x18] sm:$0xff]
  %v1565 = vld [vmem:[%s1560 + $0x20] sm:$0xff]
  %v1566 = vld [vmem:[%s1560 + $0x28] sm:$0xff]
  %v1567 = vld [vmem:[%s1560 + $0x30] sm:$0xff]
  %v1568 = vld [vmem:[%s1560 + $0x38] sm:$0xff]
  %v1569 = vld [vmem:[%s1560 + $0x40] sm:$0xff]
  %v1570 = vld [vmem:[%s1560 + $0x48] sm:$0xff]
  %v1571 = vld [vmem:[%s1560 + $0x50] sm:$0xff]
  %v1572 = vld [vmem:[%s1560 + $0x58] sm:$0xff]
  %v1573 = vld [vmem:[%s1560 + $0x60] sm:$0xff]
  %v1574 = vld [vmem:[%s1560 + $0x68] sm:$0xff]
  %v1575 = vld [vmem:[%s1560 + $0x70] sm:$0xff]
  %v1576 = vld [vmem:[%s1560 + $0x78] sm:$0xff]
  %s1577 = scalar_lea.vmem %s5, 1
  %v1578 = vld [vmem:[%s1577] ss:$2 sm:$0x3]
  %v1580 = vperm.slane %v1578, 0
  %v1581 = vperm.slane %v1578, 1
  %1584 = vmatpush.msra.mxu0 0.0
  %1585 = vmatpush.msra.mxu0 0.0
  %1586 = vmatpush.msra.mxu0 0.0
  %1587 = vmatpush.msra.mxu0 0.0
  %1588 = vmatpush.msra.mxu0 0.0
  %1589 = vmatpush.msra.mxu0 0.0
  %1590 = vmatpush.msra.mxu0 0.0
  %1591 = vmatpush.msra.mxu0 0.0
  %1592 = vmatpush.msra.mxu0 %v1575
  %1593 = vmatpush.msra.mxu0 %v1573
  %1594 = vmatpush.msra.mxu0 %v1571
  %1595 = vmatpush.msra.mxu0 %v1569
  %1596 = vmatpush.msra.mxu0 %v1567
  %1597 = vmatpush.msra.mxu0 %v1565
  %1598 = vmatpush.msra.mxu0 %v1563
  %1599 = vmatpush.msra.mxu0 %v1561
  %1600 = vmatmul.f32.gmra.mxu0 %v178
  %v1601 = vpop.f32.mrf.mxu0
  %v1602 = vadd.f32 %v1580, %v1601
  %1603 = vdwg.mxu0
  %1604 = vmatpush.msra.mxu0 0.0
  %1605 = vmatpush.msra.mxu0 0.0
  %1606 = vmatpush.msra.mxu0 0.0
  %1607 = vmatpush.msra.mxu0 0.0
  %1608 = vmatpush.msra.mxu0 0.0
  %1609 = vmatpush.msra.mxu0 0.0
  %1610 = vmatpush.msra.mxu0 0.0
  %1611 = vmatpush.msra.mxu0 0.0
  %1612 = vmatpush.msra.mxu0 %v1576
  %1613 = vmatpush.msra.mxu0 %v1574
  %1614 = vmatpush.msra.mxu0 %v1572
  %1615 = vmatpush.msra.mxu0 %v1570
  %1616 = vmatpush.msra.mxu0 %v1568
  %1617 = vmatpush.msra.mxu0 %v1566
  %1618 = vmatpush.msra.mxu0 %v1564
  %1619 = vmatpush.msra.mxu0 %v1562
  %1620 = vmatmul.f32.gmra.mxu0 %v178
  %v1621 = vpop.f32.mrf.mxu0
  %v1622 = vadd.f32 %v1581, %v1621
  %1623 = vdwg.mxu0
  %v1624 = vadd.f32 %v1527, %v1602
  %v1625 = vxor.u32 %v1624, 2147483648
  %v1626 = vmul.f32 %v1625, 1.442695
  %v1627 = vpow.pop %v1626
  %v1628 = vadd.f32 %v1627, 1.0
  %v1629 = vrcp.pop %v1628
  %v1630 = vmul.f32 %v1628, %v1629
  %v1631 = vsub.f32 1.0, %v1630
  %v1632 = vmul.f32 %v1629, %v1631
  %v1633 = vadd.f32 %v1629, %v1632
  %vm1634 = vweird.f32 %v1628
  %vm1635 = vweird.f32 %v1629
  %vm1636 = vmor %vm1634, %vm1635
  %v1637 = vsel %vm1636, %v1629, %v1633
  %v1638 = vand.u32 2147483647, %v1628
  %vm1639 = vcmp.eq.f32.partialorder %v1638, 8.507059e+37
  %v1640 = vand.u32 %v1628, 2147483648
  %v1641 = vor.u32 1.1754944e-38, %v1640
  %v1642 = vsel %vm1639, %v1641, %v1637
  %v1643 = vmul.f32 1.0, %v1642
  %1645 = vrot.lane.b32.xlu0 %v1602, 64
  %v1646 = vpop.permute.xlu0 %1645
  %v1648 = vmul.f32 %v1643, %v1646
  %1650 = vrot.lane.b32.xlu0 %v1648, 64
  %v1651 = vpop.permute.xlu0 %1650
  %v1653 = vadd.f32 %v1527, %v1651
  %v1654 = vtanh.pop %v1653
  %v1655 = vsub.f32 1.0, %v1643
  %1657 = vrot.lane.b32.xlu0 %v1654, 96
  %v1658 = vpop.permute.xlu0 %1657
  %v1660 = vmul.f32 %v1655, %v1658
  %v1661 = vmul.f32 %v1643, 0.0
  %v1662 = vadd.f32 %v1660, %v1661
  %v1663 = vrot.slane %v1602, 1
  %1664 = vrot.lane.b32.xlu0 %v1663, 32
  %v1665 = vpop.permute.xlu0 %1664
  %v1667 = vadd.f32 %v1558, %v1665
  %v1668 = vxor.u32 %v1667, 2147483648
  %v1669 = vmul.f32 %v1668, 1.442695
  %v1670 = vpow.pop %v1669
  %v1671 = vadd.f32 %v1670, 1.0
  %v1672 = vrcp.pop %v1671
  %v1673 = vmul.f32 %v1671, %v1672
  %v1674 = vsub.f32 1.0, %v1673
  %v1675 = vmul.f32 %v1672, %v1674
  %v1676 = vadd.f32 %v1672, %v1675
  %vm1677 = vweird.f32 %v1671
  %vm1678 = vweird.f32 %v1672
  %vm1679 = vmor %vm1677, %vm1678
  %v1680 = vsel %vm1679, %v1672, %v1676
  %v1681 = vand.u32 2147483647, %v1671
  %vm1682 = vcmp.eq.f32.partialorder %v1681, 8.507059e+37
  %v1683 = vand.u32 %v1671, 2147483648
  %v1684 = vor.u32 1.1754944e-38, %v1683
  %v1685 = vsel %vm1682, %v1684, %v1680
  %v1686 = vmul.f32 1.0, %v1685
  %v1688 = vrot.slane %v1622, 1
  %1689 = vrot.lane.b32.xlu0 %v1688, 32
  %v1690 = vpop.permute.xlu0 %1689
  %v1692 = vadd.f32 %v1558, %v1690
  %v1693 = vxor.u32 %v1692, 2147483648
  %v1694 = vmul.f32 %v1693, 1.442695
  %v1695 = vpow.pop %v1694
  %v1696 = vadd.f32 %v1695, 1.0
  %v1697 = vrcp.pop %v1696
  %v1698 = vmul.f32 %v1696, %v1697
  %v1699 = vsub.f32 1.0, %v1698
  %v1700 = vmul.f32 %v1697, %v1699
  %v1701 = vadd.f32 %v1697, %v1700
  %vm1702 = vweird.f32 %v1696
  %vm1703 = vweird.f32 %v1697
  %vm1704 = vmor %vm1702, %vm1703
  %v1705 = vsel %vm1704, %v1697, %v1701
  %v1706 = vand.u32 2147483647, %v1696
  %vm1707 = vcmp.eq.f32.partialorder %v1706, 8.507059e+37
  %v1708 = vand.u32 %v1696, 2147483648
  %v1709 = vor.u32 1.1754944e-38, %v1708
  %v1710 = vsel %vm1707, %v1709, %v1705
  %v1711 = vmul.f32 1.0, %v1710
  %1712 = vrot.lane.b32.xlu0 %v1688, 96
  %v1713 = vpop.permute.xlu0 %1712
  %v1715 = vmul.f32 %v1686, %v1713
  %1717 = vrot.lane.b32.xlu0 %v1715, 64
  %v1718 = vpop.permute.xlu0 %1717
  %v1720 = vadd.f32 %v1558, %v1718
  %v1721 = vtanh.pop %v1720
  %v1722 = vsub.f32 1.0, %v1711
  %1724 = vrot.lane.b32.xlu0 %v1721, 96
  %v1725 = vpop.permute.xlu0 %1724
  %v1727 = vmul.f32 %v1722, %v1725
  %v1728 = vmul.f32 %v1711, 0.0
  %v1729 = vadd.f32 %v1727, %v1728
  %1731 = vrot.lane.b32.xlu0 %v1662, 96
  %v1732 = vpop.permute.xlu0 %1731
  %v1735 = vrot.slane %v1729, 7
  %v1737 = vsel %vm88, %v1732, %v1735
  %v1739 = vsel %vm100, %v1737, 0
  %1741 = vmatpush.msra.mxu0 0.0
  %1742 = vmatpush.msra.mxu0 0.0
  %1743 = vmatpush.msra.mxu0 0.0
  %1744 = vmatpush.msra.mxu0 0.0
  %1745 = vmatpush.msra.mxu0 0.0
  %1746 = vmatpush.msra.mxu0 0.0
  %1747 = vmatpush.msra.mxu0 0.0
  %1748 = vmatpush.msra.mxu0 0.0
  %1749 = vmatpush.msra.mxu0 %v1575
  %1750 = vmatpush.msra.mxu0 %v1573
  %1751 = vmatpush.msra.mxu0 %v1571
  %1752 = vmatpush.msra.mxu0 %v1569
  %1753 = vmatpush.msra.mxu0 %v1567
  %1754 = vmatpush.msra.mxu0 %v1565
  %1755 = vmatpush.msra.mxu0 %v1563
  %1756 = vmatpush.msra.mxu0 %v1561
  %1757 = vmatmul.f32.gmra.mxu0 %v1739
  %v1758 = vpop.f32.mrf.mxu0
  %v1759 = vadd.f32 %v1580, %v1758
  %1760 = vdwg.mxu0
  %1761 = vmatpush.msra.mxu0 0.0
  %1762 = vmatpush.msra.mxu0 0.0
  %1763 = vmatpush.msra.mxu0 0.0
  %1764 = vmatpush.msra.mxu0 0.0
  %1765 = vmatpush.msra.mxu0 0.0
  %1766 = vmatpush.msra.mxu0 0.0
  %1767 = vmatpush.msra.mxu0 0.0
  %1768 = vmatpush.msra.mxu0 0.0
  %1769 = vmatpush.msra.mxu0 %v1576
  %1770 = vmatpush.msra.mxu0 %v1574
  %1771 = vmatpush.msra.mxu0 %v1572
  %1772 = vmatpush.msra.mxu0 %v1570
  %1773 = vmatpush.msra.mxu0 %v1568
  %1774 = vmatpush.msra.mxu0 %v1566
  %1775 = vmatpush.msra.mxu0 %v1564
  %1776 = vmatpush.msra.mxu0 %v1562
  %1777 = vmatmul.f32.gmra.mxu0 %v1739
  %v1778 = vpop.f32.mrf.mxu0
  %v1779 = vadd.f32 %v1581, %v1778
  %1780 = vdwg.mxu0
  %v1782 = vrot.slane %v1759, 7
  %v1784 = vadd.f32 %v1527, %v1782
  %v1785 = vxor.u32 %v1784, 2147483648
  %v1786 = vmul.f32 %v1785, 1.442695
  %v1787 = vpow.pop %v1786
  %v1788 = vadd.f32 %v1787, 1.0
  %v1789 = vrcp.pop %v1788
  %v1790 = vmul.f32 %v1788, %v1789
  %v1791 = vsub.f32 1.0, %v1790
  %v1792 = vmul.f32 %v1789, %v1791
  %v1793 = vadd.f32 %v1789, %v1792
  %vm1794 = vweird.f32 %v1788
  %vm1795 = vweird.f32 %v1789
  %vm1796 = vmor %vm1794, %vm1795
  %v1797 = vsel %vm1796, %v1789, %v1793
  %v1798 = vand.u32 2147483647, %v1788
  %vm1799 = vcmp.eq.f32.partialorder %v1798, 8.507059e+37
  %v1800 = vand.u32 %v1788, 2147483648
  %v1801 = vor.u32 1.1754944e-38, %v1800
  %v1802 = vsel %vm1799, %v1801, %v1797
  %v1803 = vmul.f32 1.0, %v1802
  %1804 = vrot.lane.b32.xlu0 %v1782, 64
  %v1805 = vpop.permute.xlu0 %1804
  %v1807 = vmul.f32 %v1803, %v1805
  %1809 = vrot.lane.b32.xlu0 %v1807, 64
  %v1810 = vpop.permute.xlu0 %1809
  %v1812 = vadd.f32 %v1527, %v1810
  %v1813 = vtanh.pop %v1812
  %v1814 = vsub.f32 1.0, %v1803
  %1816 = vrot.lane.b32.xlu0 %v1813, 96
  %v1817 = vpop.permute.xlu0 %1816
  %v1819 = vmul.f32 %v1814, %v1817
  %v1820 = vrot.slane %v1662, 7
  %v1822 = vmul.f32 %v1803, %v1820
  %v1823 = vadd.f32 %v1819, %v1822
  %v1824 = vrot.slane %v1759, 2
  %1825 = vrot.lane.b32.xlu0 %v1824, 32
  %v1826 = vpop.permute.xlu0 %1825
  %v1828 = vadd.f32 %v1558, %v1826
  %v1829 = vxor.u32 %v1828, 2147483648
  %v1830 = vmul.f32 %v1829, 1.442695
  %v1831 = vpow.pop %v1830
  %v1832 = vadd.f32 %v1831, 1.0
  %v1833 = vrcp.pop %v1832
  %v1834 = vmul.f32 %v1832, %v1833
  %v1835 = vsub.f32 1.0, %v1834
  %v1836 = vmul.f32 %v1833, %v1835
  %v1837 = vadd.f32 %v1833, %v1836
  %vm1838 = vweird.f32 %v1832
  %vm1839 = vweird.f32 %v1833
  %vm1840 = vmor %vm1838, %vm1839
  %v1841 = vsel %vm1840, %v1833, %v1837
  %v1842 = vand.u32 2147483647, %v1832
  %vm1843 = vcmp.eq.f32.partialorder %v1842, 8.507059e+37
  %v1844 = vand.u32 %v1832, 2147483648
  %v1845 = vor.u32 1.1754944e-38, %v1844
  %v1846 = vsel %vm1843, %v1845, %v1841
  %v1847 = vmul.f32 1.0, %v1846
  %v1849 = vrot.slane %v1779, 2
  %1850 = vrot.lane.b32.xlu0 %v1849, 32
  %v1851 = vpop.permute.xlu0 %1850
  %v1853 = vadd.f32 %v1558, %v1851
  %v1854 = vxor.u32 %v1853, 2147483648
  %v1855 = vmul.f32 %v1854, 1.442695
  %v1856 = vpow.pop %v1855
  %v1857 = vadd.f32 %v1856, 1.0
  %v1858 = vrcp.pop %v1857
  %v1859 = vmul.f32 %v1857, %v1858
  %v1860 = vsub.f32 1.0, %v1859
  %v1861 = vmul.f32 %v1858, %v1860
  %v1862 = vadd.f32 %v1858, %v1861
  %vm1863 = vweird.f32 %v1857
  %vm1864 = vweird.f32 %v1858
  %vm1865 = vmor %vm1863, %vm1864
  %v1866 = vsel %vm1865, %v1858, %v1862
  %v1867 = vand.u32 2147483647, %v1857
  %vm1868 = vcmp.eq.f32.partialorder %v1867, 8.507059e+37
  %v1869 = vand.u32 %v1857, 2147483648
  %v1870 = vor.u32 1.1754944e-38, %v1869
  %v1871 = vsel %vm1868, %v1870, %v1866
  %v1872 = vmul.f32 1.0, %v1871
  %1873 = vrot.lane.b32.xlu0 %v1849, 96
  %v1874 = vpop.permute.xlu0 %1873
  %v1876 = vmul.f32 %v1847, %v1874
  %1878 = vrot.lane.b32.xlu0 %v1876, 64
  %v1879 = vpop.permute.xlu0 %1878
  %v1881 = vadd.f32 %v1558, %v1879
  %v1882 = vtanh.pop %v1881
  %v1883 = vsub.f32 1.0, %v1872
  %1885 = vrot.lane.b32.xlu0 %v1882, 96
  %v1886 = vpop.permute.xlu0 %1885
  %v1888 = vmul.f32 %v1883, %v1886
  %v1889 = vrot.slane %v1729, 1
  %v1891 = vmul.f32 %v1872, %v1889
  %v1892 = vadd.f32 %v1888, %v1891
  %1894 = vrot.lane.b32.xlu0 %v1823, 96
  %v1895 = vpop.permute.xlu0 %1894
  %v1898 = vrot.slane %v1892, 5
  %v1900 = vsel %vm88, %v1895, %v1898
  %v1902 = vrot.slane %v1900, 1
  %v1903 = vsel %vm100, %v1902, 0
  %1905 = vmatpush.msra.mxu0 0.0
  %1906 = vmatpush.msra.mxu0 0.0
  %1907 = vmatpush.msra.mxu0 0.0
  %1908 = vmatpush.msra.mxu0 0.0
  %1909 = vmatpush.msra.mxu0 0.0
  %1910 = vmatpush.msra.mxu0 0.0
  %1911 = vmatpush.msra.mxu0 0.0
  %1912 = vmatpush.msra.mxu0 0.0
  %1913 = vmatpush.msra.mxu0 %v1575
  %1914 = vmatpush.msra.mxu0 %v1573
  %1915 = vmatpush.msra.mxu0 %v1571
  %1916 = vmatpush.msra.mxu0 %v1569
  %1917 = vmatpush.msra.mxu0 %v1567
  %1918 = vmatpush.msra.mxu0 %v1565
  %1919 = vmatpush.msra.mxu0 %v1563
  %1920 = vmatpush.msra.mxu0 %v1561
  %1921 = vmatmul.f32.gmra.mxu0 %v1903
  %v1922 = vpop.f32.mrf.mxu0
  %v1923 = vadd.f32 %v1580, %v1922
  %1924 = vdwg.mxu0
  %1925 = vmatpush.msra.mxu0 0.0
  %1926 = vmatpush.msra.mxu0 0.0
  %1927 = vmatpush.msra.mxu0 0.0
  %1928 = vmatpush.msra.mxu0 0.0
  %1929 = vmatpush.msra.mxu0 0.0
  %1930 = vmatpush.msra.mxu0 0.0
  %1931 = vmatpush.msra.mxu0 0.0
  %1932 = vmatpush.msra.mxu0 0.0
  %1933 = vmatpush.msra.mxu0 %v1576
  %1934 = vmatpush.msra.mxu0 %v1574
  %1935 = vmatpush.msra.mxu0 %v1572
  %1936 = vmatpush.msra.mxu0 %v1570
  %1937 = vmatpush.msra.mxu0 %v1568
  %1938 = vmatpush.msra.mxu0 %v1566
  %1939 = vmatpush.msra.mxu0 %v1564
  %1940 = vmatpush.msra.mxu0 %v1562
  %1941 = vmatmul.f32.gmra.mxu0 %v1903
  %v1942 = vpop.f32.mrf.mxu0
  %v1943 = vadd.f32 %v1581, %v1942
  %1944 = vdwg.mxu0
  %v1946 = vrot.slane %v1923, 6
  %v1948 = vadd.f32 %v1527, %v1946
  %v1949 = vxor.u32 %v1948, 2147483648
  %v1950 = vmul.f32 %v1949, 1.442695
  %v1951 = vpow.pop %v1950
  %v1952 = vadd.f32 %v1951, 1.0
  %v1953 = vrcp.pop %v1952
  %v1954 = vmul.f32 %v1952, %v1953
  %v1955 = vsub.f32 1.0, %v1954
  %v1956 = vmul.f32 %v1953, %v1955
  %v1957 = vadd.f32 %v1953, %v1956
  %vm1958 = vweird.f32 %v1952
  %vm1959 = vweird.f32 %v1953
  %vm1960 = vmor %vm1958, %vm1959
  %v1961 = vsel %vm1960, %v1953, %v1957
  %v1962 = vand.u32 2147483647, %v1952
  %vm1963 = vcmp.eq.f32.partialorder %v1962, 8.507059e+37
  %v1964 = vand.u32 %v1952, 2147483648
  %v1965 = vor.u32 1.1754944e-38, %v1964
  %v1966 = vsel %vm1963, %v1965, %v1961
  %v1967 = vmul.f32 1.0, %v1966
  %1968 = vrot.lane.b32.xlu0 %v1946, 64
  %v1969 = vpop.permute.xlu0 %1968
  %v1971 = vmul.f32 %v1967, %v1969
  %1973 = vrot.lane.b32.xlu0 %v1971, 64
  %v1974 = vpop.permute.xlu0 %1973
  %v1976 = vadd.f32 %v1527, %v1974
  %v1977 = vtanh.pop %v1976
  %v1978 = vsub.f32 1.0, %v1967
  %1980 = vrot.lane.b32.xlu0 %v1977, 96
  %v1981 = vpop.permute.xlu0 %1980
  %v1983 = vmul.f32 %v1978, %v1981
  %v1984 = vrot.slane %v1823, 7
  %v1986 = vmul.f32 %v1967, %v1984
  %v1987 = vadd.f32 %v1983, %v1986
  %v1988 = vrot.slane %v1923, 3
  %1989 = vrot.lane.b32.xlu0 %v1988, 32
  %v1990 = vpop.permute.xlu0 %1989
  %v1992 = vadd.f32 %v1558, %v1990
  %v1993 = vxor.u32 %v1992, 2147483648
  %v1994 = vmul.f32 %v1993, 1.442695
  %v1995 = vpow.pop %v1994
  %v1996 = vadd.f32 %v1995, 1.0
  %v1997 = vrcp.pop %v1996
  %v1998 = vmul.f32 %v1996, %v1997
  %v1999 = vsub.f32 1.0, %v1998
  %v2000 = vmul.f32 %v1997, %v1999
  %v2001 = vadd.f32 %v1997, %v2000
  %vm2002 = vweird.f32 %v1996
  %vm2003 = vweird.f32 %v1997
  %vm2004 = vmor %vm2002, %vm2003
  %v2005 = vsel %vm2004, %v1997, %v2001
  %v2006 = vand.u32 2147483647, %v1996
  %vm2007 = vcmp.eq.f32.partialorder %v2006, 8.507059e+37
  %v2008 = vand.u32 %v1996, 2147483648
  %v2009 = vor.u32 1.1754944e-38, %v2008
  %v2010 = vsel %vm2007, %v2009, %v2005
  %v2011 = vmul.f32 1.0, %v2010
  %v2013 = vrot.slane %v1943, 3
  %2014 = vrot.lane.b32.xlu0 %v2013, 32
  %v2015 = vpop.permute.xlu0 %2014
  %v2017 = vadd.f32 %v1558, %v2015
  %v2018 = vxor.u32 %v2017, 2147483648
  %v2019 = vmul.f32 %v2018, 1.442695
  %v2020 = vpow.pop %v2019
  %v2021 = vadd.f32 %v2020, 1.0
  %v2022 = vrcp.pop %v2021
  %v2023 = vmul.f32 %v2021, %v2022
  %v2024 = vsub.f32 1.0, %v2023
  %v2025 = vmul.f32 %v2022, %v2024
  %v2026 = vadd.f32 %v2022, %v2025
  %vm2027 = vweird.f32 %v2021
  %vm2028 = vweird.f32 %v2022
  %vm2029 = vmor %vm2027, %vm2028
  %v2030 = vsel %vm2029, %v2022, %v2026
  %v2031 = vand.u32 2147483647, %v2021
  %vm2032 = vcmp.eq.f32.partialorder %v2031, 8.507059e+37
  %v2033 = vand.u32 %v2021, 2147483648
  %v2034 = vor.u32 1.1754944e-38, %v2033
  %v2035 = vsel %vm2032, %v2034, %v2030
  %v2036 = vmul.f32 1.0, %v2035
  %2037 = vrot.lane.b32.xlu0 %v2013, 96
  %v2038 = vpop.permute.xlu0 %2037
  %v2040 = vmul.f32 %v2011, %v2038
  %2042 = vrot.lane.b32.xlu0 %v2040, 64
  %v2043 = vpop.permute.xlu0 %2042
  %v2045 = vadd.f32 %v1558, %v2043
  %v2046 = vtanh.pop %v2045
  %v2047 = vsub.f32 1.0, %v2036
  %2049 = vrot.lane.b32.xlu0 %v2046, 96
  %v2050 = vpop.permute.xlu0 %2049
  %v2052 = vmul.f32 %v2047, %v2050
  %v2053 = vrot.slane %v1892, 1
  %v2055 = vmul.f32 %v2036, %v2053
  %v2056 = vadd.f32 %v2052, %v2055
  %2058 = vrot.lane.b32.xlu0 %v1987, 96
  %v2059 = vpop.permute.xlu0 %2058
  %v2062 = vrot.slane %v2056, 3
  %v2064 = vsel %vm88, %v2059, %v2062
  %v2066 = vrot.slane %v2064, 2
  %v2067 = vsel %vm100, %v2066, 0
  %2069 = vmatpush.msra.mxu0 0.0
  %2070 = vmatpush.msra.mxu0 0.0
  %2071 = vmatpush.msra.mxu0 0.0
  %2072 = vmatpush.msra.mxu0 0.0
  %2073 = vmatpush.msra.mxu0 0.0
  %2074 = vmatpush.msra.mxu0 0.0
  %2075 = vmatpush.msra.mxu0 0.0
  %2076 = vmatpush.msra.mxu0 0.0
  %2077 = vmatpush.msra.mxu0 %v1575
  %2078 = vmatpush.msra.mxu0 %v1573
  %2079 = vmatpush.msra.mxu0 %v1571
  %2080 = vmatpush.msra.mxu0 %v1569
  %2081 = vmatpush.msra.mxu0 %v1567
  %2082 = vmatpush.msra.mxu0 %v1565
  %2083 = vmatpush.msra.mxu0 %v1563
  %2084 = vmatpush.msra.mxu0 %v1561
  %2085 = vmatmul.f32.gmra.mxu0 %v2067
  %v2086 = vpop.f32.mrf.mxu0
  %v2087 = vadd.f32 %v1580, %v2086
  %2088 = vdwg.mxu0
  %2089 = vmatpush.msra.mxu0 0.0
  %2090 = vmatpush.msra.mxu0 0.0
  %2091 = vmatpush.msra.mxu0 0.0
  %2092 = vmatpush.msra.mxu0 0.0
  %2093 = vmatpush.msra.mxu0 0.0
  %2094 = vmatpush.msra.mxu0 0.0
  %2095 = vmatpush.msra.mxu0 0.0
  %2096 = vmatpush.msra.mxu0 0.0
  %2097 = vmatpush.msra.mxu0 %v1576
  %2098 = vmatpush.msra.mxu0 %v1574
  %2099 = vmatpush.msra.mxu0 %v1572
  %2100 = vmatpush.msra.mxu0 %v1570
  %2101 = vmatpush.msra.mxu0 %v1568
  %2102 = vmatpush.msra.mxu0 %v1566
  %2103 = vmatpush.msra.mxu0 %v1564
  %2104 = vmatpush.msra.mxu0 %v1562
  %2105 = vmatmul.f32.gmra.mxu0 %v2067
  %v2106 = vpop.f32.mrf.mxu0
  %v2107 = vadd.f32 %v1581, %v2106
  %2108 = vdwg.mxu0
  %v2110 = vrot.slane %v2087, 5
  %v2112 = vadd.f32 %v1527, %v2110
  %v2113 = vxor.u32 %v2112, 2147483648
  %v2114 = vmul.f32 %v2113, 1.442695
  %v2115 = vpow.pop %v2114
  %v2116 = vadd.f32 %v2115, 1.0
  %v2117 = vrcp.pop %v2116
  %v2118 = vmul.f32 %v2116, %v2117
  %v2119 = vsub.f32 1.0, %v2118
  %v2120 = vmul.f32 %v2117, %v2119
  %v2121 = vadd.f32 %v2117, %v2120
  %vm2122 = vweird.f32 %v2116
  %vm2123 = vweird.f32 %v2117
  %vm2124 = vmor %vm2122, %vm2123
  %v2125 = vsel %vm2124, %v2117, %v2121
  %v2126 = vand.u32 2147483647, %v2116
  %vm2127 = vcmp.eq.f32.partialorder %v2126, 8.507059e+37
  %v2128 = vand.u32 %v2116, 2147483648
  %v2129 = vor.u32 1.1754944e-38, %v2128
  %v2130 = vsel %vm2127, %v2129, %v2125
  %v2131 = vmul.f32 1.0, %v2130
  %2132 = vrot.lane.b32.xlu0 %v2110, 64
  %v2133 = vpop.permute.xlu0 %2132
  %v2135 = vmul.f32 %v2131, %v2133
  %2137 = vrot.lane.b32.xlu0 %v2135, 64
  %v2138 = vpop.permute.xlu0 %2137
  %v2140 = vadd.f32 %v1527, %v2138
  %v2141 = vtanh.pop %v2140
  %v2142 = vsub.f32 1.0, %v2131
  %2144 = vrot.lane.b32.xlu0 %v2141, 96
  %v2145 = vpop.permute.xlu0 %2144
  %v2147 = vmul.f32 %v2142, %v2145
  %v2148 = vrot.slane %v1987, 7
  %v2150 = vmul.f32 %v2131, %v2148
  %v2151 = vadd.f32 %v2147, %v2150
  %v2152 = vrot.slane %v2087, 4
  %2153 = vrot.lane.b32.xlu0 %v2152, 32
  %v2154 = vpop.permute.xlu0 %2153
  %v2156 = vadd.f32 %v1558, %v2154
  %v2157 = vxor.u32 %v2156, 2147483648
  %v2158 = vmul.f32 %v2157, 1.442695
  %v2159 = vpow.pop %v2158
  %v2160 = vadd.f32 %v2159, 1.0
  %v2161 = vrcp.pop %v2160
  %v2162 = vmul.f32 %v2160, %v2161
  %v2163 = vsub.f32 1.0, %v2162
  %v2164 = vmul.f32 %v2161, %v2163
  %v2165 = vadd.f32 %v2161, %v2164
  %vm2166 = vweird.f32 %v2160
  %vm2167 = vweird.f32 %v2161
  %vm2168 = vmor %vm2166, %vm2167
  %v2169 = vsel %vm2168, %v2161, %v2165
  %v2170 = vand.u32 2147483647, %v2160
  %vm2171 = vcmp.eq.f32.partialorder %v2170, 8.507059e+37
  %v2172 = vand.u32 %v2160, 2147483648
  %v2173 = vor.u32 1.1754944e-38, %v2172
  %v2174 = vsel %vm2171, %v2173, %v2169
  %v2175 = vmul.f32 1.0, %v2174
  %v2177 = vrot.slane %v2107, 4
  %2178 = vrot.lane.b32.xlu0 %v2177, 32
  %v2179 = vpop.permute.xlu0 %2178
  %v2181 = vadd.f32 %v1558, %v2179
  %v2182 = vxor.u32 %v2181, 2147483648
  %v2183 = vmul.f32 %v2182, 1.442695
  %v2184 = vpow.pop %v2183
  %v2185 = vadd.f32 %v2184, 1.0
  %v2186 = vrcp.pop %v2185
  %v2187 = vmul.f32 %v2185, %v2186
  %v2188 = vsub.f32 1.0, %v2187
  %v2189 = vmul.f32 %v2186, %v2188
  %v2190 = vadd.f32 %v2186, %v2189
  %vm2191 = vweird.f32 %v2185
  %vm2192 = vweird.f32 %v2186
  %vm2193 = vmor %vm2191, %vm2192
  %v2194 = vsel %vm2193, %v2186, %v2190
  %v2195 = vand.u32 2147483647, %v2185
  %vm2196 = vcmp.eq.f32.partialorder %v2195, 8.507059e+37
  %v2197 = vand.u32 %v2185, 2147483648
  %v2198 = vor.u32 1.1754944e-38, %v2197
  %v2199 = vsel %vm2196, %v2198, %v2194
  %v2200 = vmul.f32 1.0, %v2199
  %2201 = vrot.lane.b32.xlu0 %v2177, 96
  %v2202 = vpop.permute.xlu0 %2201
  %v2204 = vmul.f32 %v2175, %v2202
  %2206 = vrot.lane.b32.xlu0 %v2204, 64
  %v2207 = vpop.permute.xlu0 %2206
  %v2209 = vadd.f32 %v1558, %v2207
  %v2210 = vtanh.pop %v2209
  %v2211 = vsub.f32 1.0, %v2200
  %2213 = vrot.lane.b32.xlu0 %v2210, 96
  %v2214 = vpop.permute.xlu0 %2213
  %v2216 = vmul.f32 %v2211, %v2214
  %v2217 = vrot.slane %v2056, 1
  %v2219 = vmul.f32 %v2200, %v2217
  %v2220 = vadd.f32 %v2216, %v2219
  %2222 = vrot.lane.b32.xlu0 %v2151, 96
  %v2223 = vpop.permute.xlu0 %2222
  %v2226 = vrot.slane %v2220, 1
  %v2228 = vsel %vm88, %v2223, %v2226
  %v2230 = vrot.slane %v2228, 3
  %v2231 = vsel %vm100, %v2230, 0
  %2233 = vmatpush.msra.mxu0 0.0
  %2234 = vmatpush.msra.mxu0 0.0
  %2235 = vmatpush.msra.mxu0 0.0
  %2236 = vmatpush.msra.mxu0 0.0
  %2237 = vmatpush.msra.mxu0 0.0
  %2238 = vmatpush.msra.mxu0 0.0
  %2239 = vmatpush.msra.mxu0 0.0
  %2240 = vmatpush.msra.mxu0 0.0
  %2241 = vmatpush.msra.mxu0 %v1575
  %2242 = vmatpush.msra.mxu0 %v1573
  %2243 = vmatpush.msra.mxu0 %v1571
  %2244 = vmatpush.msra.mxu0 %v1569
  %2245 = vmatpush.msra.mxu0 %v1567
  %2246 = vmatpush.msra.mxu0 %v1565
  %2247 = vmatpush.msra.mxu0 %v1563
  %2248 = vmatpush.msra.mxu0 %v1561
  %2249 = vmatmul.f32.gmra.mxu0 %v2231
  %v2250 = vpop.f32.mrf.mxu0
  %v2251 = vadd.f32 %v1580, %v2250
  %2252 = vdwg.mxu0
  %2253 = vmatpush.msra.mxu0 0.0
  %2254 = vmatpush.msra.mxu0 0.0
  %2255 = vmatpush.msra.mxu0 0.0
  %2256 = vmatpush.msra.mxu0 0.0
  %2257 = vmatpush.msra.mxu0 0.0
  %2258 = vmatpush.msra.mxu0 0.0
  %2259 = vmatpush.msra.mxu0 0.0
  %2260 = vmatpush.msra.mxu0 0.0
  %2261 = vmatpush.msra.mxu0 %v1576
  %2262 = vmatpush.msra.mxu0 %v1574
  %2263 = vmatpush.msra.mxu0 %v1572
  %2264 = vmatpush.msra.mxu0 %v1570
  %2265 = vmatpush.msra.mxu0 %v1568
  %2266 = vmatpush.msra.mxu0 %v1566
  %2267 = vmatpush.msra.mxu0 %v1564
  %2268 = vmatpush.msra.mxu0 %v1562
  %2269 = vmatmul.f32.gmra.mxu0 %v2231
  %v2270 = vpop.f32.mrf.mxu0
  %v2271 = vadd.f32 %v1581, %v2270
  %2272 = vdwg.mxu0
  %v2274 = vrot.slane %v2251, 4
  %v2276 = vadd.f32 %v1527, %v2274
  %v2277 = vxor.u32 %v2276, 2147483648
  %v2278 = vmul.f32 %v2277, 1.442695
  %v2279 = vpow.pop %v2278
  %v2280 = vadd.f32 %v2279, 1.0
  %v2281 = vrcp.pop %v2280
  %v2282 = vmul.f32 %v2280, %v2281
  %v2283 = vsub.f32 1.0, %v2282
  %v2284 = vmul.f32 %v2281, %v2283
  %v2285 = vadd.f32 %v2281, %v2284
  %vm2286 = vweird.f32 %v2280
  %vm2287 = vweird.f32 %v2281
  %vm2288 = vmor %vm2286, %vm2287
  %v2289 = vsel %vm2288, %v2281, %v2285
  %v2290 = vand.u32 2147483647, %v2280
  %vm2291 = vcmp.eq.f32.partialorder %v2290, 8.507059e+37
  %v2292 = vand.u32 %v2280, 2147483648
  %v2293 = vor.u32 1.1754944e-38, %v2292
  %v2294 = vsel %vm2291, %v2293, %v2289
  %v2295 = vmul.f32 1.0, %v2294
  %2296 = vrot.lane.b32.xlu0 %v2274, 64
  %v2297 = vpop.permute.xlu0 %2296
  %v2299 = vmul.f32 %v2295, %v2297
  %2301 = vrot.lane.b32.xlu0 %v2299, 64
  %v2302 = vpop.permute.xlu0 %2301
  %v2304 = vadd.f32 %v1527, %v2302
  %v2305 = vtanh.pop %v2304
  %v2306 = vsub.f32 1.0, %v2295
  %2308 = vrot.lane.b32.xlu0 %v2305, 96
  %v2309 = vpop.permute.xlu0 %2308
  %v2311 = vmul.f32 %v2306, %v2309
  %v2312 = vrot.slane %v2151, 7
  %v2314 = vmul.f32 %v2295, %v2312
  %v2315 = vadd.f32 %v2311, %v2314
  %v2316 = vrot.slane %v2251, 5
  %2317 = vrot.lane.b32.xlu0 %v2316, 32
  %v2318 = vpop.permute.xlu0 %2317
  %v2320 = vadd.f32 %v1558, %v2318
  %v2321 = vxor.u32 %v2320, 2147483648
  %v2322 = vmul.f32 %v2321, 1.442695
  %v2323 = vpow.pop %v2322
  %v2324 = vadd.f32 %v2323, 1.0
  %v2325 = vrcp.pop %v2324
  %v2326 = vmul.f32 %v2324, %v2325
  %v2327 = vsub.f32 1.0, %v2326
  %v2328 = vmul.f32 %v2325, %v2327
  %v2329 = vadd.f32 %v2325, %v2328
  %vm2330 = vweird.f32 %v2324
  %vm2331 = vweird.f32 %v2325
  %vm2332 = vmor %vm2330, %vm2331
  %v2333 = vsel %vm2332, %v2325, %v2329
  %v2334 = vand.u32 2147483647, %v2324
  %vm2335 = vcmp.eq.f32.partialorder %v2334, 8.507059e+37
  %v2336 = vand.u32 %v2324, 2147483648
  %v2337 = vor.u32 1.1754944e-38, %v2336
  %v2338 = vsel %vm2335, %v2337, %v2333
  %v2339 = vmul.f32 1.0, %v2338
  %v2341 = vrot.slane %v2271, 5
  %2342 = vrot.lane.b32.xlu0 %v2341, 32
  %v2343 = vpop.permute.xlu0 %2342
  %v2345 = vadd.f32 %v1558, %v2343
  %v2346 = vxor.u32 %v2345, 2147483648
  %v2347 = vmul.f32 %v2346, 1.442695
  %v2348 = vpow.pop %v2347
  %v2349 = vadd.f32 %v2348, 1.0
  %v2350 = vrcp.pop %v2349
  %v2351 = vmul.f32 %v2349, %v2350
  %v2352 = vsub.f32 1.0, %v2351
  %v2353 = vmul.f32 %v2350, %v2352
  %v2354 = vadd.f32 %v2350, %v2353
  %vm2355 = vweird.f32 %v2349
  %vm2356 = vweird.f32 %v2350
  %vm2357 = vmor %vm2355, %vm2356
  %v2358 = vsel %vm2357, %v2350, %v2354
  %v2359 = vand.u32 2147483647, %v2349
  %vm2360 = vcmp.eq.f32.partialorder %v2359, 8.507059e+37
  %v2361 = vand.u32 %v2349, 2147483648
  %v2362 = vor.u32 1.1754944e-38, %v2361
  %v2363 = vsel %vm2360, %v2362, %v2358
  %v2364 = vmul.f32 1.0, %v2363
  %2365 = vrot.lane.b32.xlu0 %v2341, 96
  %v2366 = vpop.permute.xlu0 %2365
  %v2368 = vmul.f32 %v2339, %v2366
  %2370 = vrot.lane.b32.xlu0 %v2368, 64
  %v2371 = vpop.permute.xlu0 %2370
  %v2373 = vadd.f32 %v1558, %v2371
  %v2374 = vtanh.pop %v2373
  %v2375 = vsub.f32 1.0, %v2364
  %2377 = vrot.lane.b32.xlu0 %v2374, 96
  %v2378 = vpop.permute.xlu0 %2377
  %v2380 = vmul.f32 %v2375, %v2378
  %v2381 = vmul.f32 %v2364, %v2226
  %v2382 = vadd.f32 %v2380, %v2381
  %2384 = vrot.lane.b32.xlu0 %v2315, 96
  %v2385 = vpop.permute.xlu0 %2384
  %v2388 = vrot.slane %v2382, 7
  %v2390 = vsel %vm88, %v2385, %v2388
  %v2392 = vrot.slane %v2390, 4
  %v2393 = vsel %vm100, %v2392, 0
  %2395 = vmatpush.msra.mxu0 0.0
  %2396 = vmatpush.msra.mxu0 0.0
  %2397 = vmatpush.msra.mxu0 0.0
  %2398 = vmatpush.msra.mxu0 0.0
  %2399 = vmatpush.msra.mxu0 0.0
  %2400 = vmatpush.msra.mxu0 0.0
  %2401 = vmatpush.msra.mxu0 0.0
  %2402 = vmatpush.msra.mxu0 0.0
  %2403 = vmatpush.msra.mxu0 %v1575
  %2404 = vmatpush.msra.mxu0 %v1573
  %2405 = vmatpush.msra.mxu0 %v1571
  %2406 = vmatpush.msra.mxu0 %v1569
  %2407 = vmatpush.msra.mxu0 %v1567
  %2408 = vmatpush.msra.mxu0 %v1565
  %2409 = vmatpush.msra.mxu0 %v1563
  %2410 = vmatpush.msra.mxu0 %v1561
  %2411 = vmatmul.f32.gmra.mxu0 %v2393
  %v2412 = vpop.f32.mrf.mxu0
  %v2413 = vadd.f32 %v1580, %v2412
  %2414 = vdwg.mxu0
  %2415 = vmatpush.msra.mxu0 0.0
  %2416 = vmatpush.msra.mxu0 0.0
  %2417 = vmatpush.msra.mxu0 0.0
  %2418 = vmatpush.msra.mxu0 0.0
  %2419 = vmatpush.msra.mxu0 0.0
  %2420 = vmatpush.msra.mxu0 0.0
  %2421 = vmatpush.msra.mxu0 0.0
  %2422 = vmatpush.msra.mxu0 0.0
  %2423 = vmatpush.msra.mxu0 %v1576
  %2424 = vmatpush.msra.mxu0 %v1574
  %2425 = vmatpush.msra.mxu0 %v1572
  %2426 = vmatpush.msra.mxu0 %v1570
  %2427 = vmatpush.msra.mxu0 %v1568
  %2428 = vmatpush.msra.mxu0 %v1566
  %2429 = vmatpush.msra.mxu0 %v1564
  %2430 = vmatpush.msra.mxu0 %v1562
  %2431 = vmatmul.f32.gmra.mxu0 %v2393
  %v2432 = vpop.f32.mrf.mxu0
  %v2433 = vadd.f32 %v1581, %v2432
  %2434 = vdwg.mxu0
  %v2436 = vrot.slane %v2413, 3
  %v2438 = vadd.f32 %v1527, %v2436
  %v2439 = vxor.u32 %v2438, 2147483648
  %v2440 = vmul.f32 %v2439, 1.442695
  %v2441 = vpow.pop %v2440
  %v2442 = vadd.f32 %v2441, 1.0
  %v2443 = vrcp.pop %v2442
  %v2444 = vmul.f32 %v2442, %v2443
  %v2445 = vsub.f32 1.0, %v2444
  %v2446 = vmul.f32 %v2443, %v2445
  %v2447 = vadd.f32 %v2443, %v2446
  %vm2448 = vweird.f32 %v2442
  %vm2449 = vweird.f32 %v2443
  %vm2450 = vmor %vm2448, %vm2449
  %v2451 = vsel %vm2450, %v2443, %v2447
  %v2452 = vand.u32 2147483647, %v2442
  %vm2453 = vcmp.eq.f32.partialorder %v2452, 8.507059e+37
  %v2454 = vand.u32 %v2442, 2147483648
  %v2455 = vor.u32 1.1754944e-38, %v2454
  %v2456 = vsel %vm2453, %v2455, %v2451
  %v2457 = vmul.f32 1.0, %v2456
  %2458 = vrot.lane.b32.xlu0 %v2436, 64
  %v2459 = vpop.permute.xlu0 %2458
  %v2461 = vmul.f32 %v2457, %v2459
  %2463 = vrot.lane.b32.xlu0 %v2461, 64
  %v2464 = vpop.permute.xlu0 %2463
  %v2466 = vadd.f32 %v1527, %v2464
  %v2467 = vtanh.pop %v2466
  %v2468 = vsub.f32 1.0, %v2457
  %2470 = vrot.lane.b32.xlu0 %v2467, 96
  %v2471 = vpop.permute.xlu0 %2470
  %v2473 = vmul.f32 %v2468, %v2471
  %v2474 = vrot.slane %v2315, 7
  %v2476 = vmul.f32 %v2457, %v2474
  %v2477 = vadd.f32 %v2473, %v2476
  %v2478 = vrot.slane %v2413, 6
  %2479 = vrot.lane.b32.xlu0 %v2478, 32
  %v2480 = vpop.permute.xlu0 %2479
  %v2482 = vadd.f32 %v1558, %v2480
  %v2483 = vxor.u32 %v2482, 2147483648
  %v2484 = vmul.f32 %v2483, 1.442695
  %v2485 = vpow.pop %v2484
  %v2486 = vadd.f32 %v2485, 1.0
  %v2487 = vrcp.pop %v2486
  %v2488 = vmul.f32 %v2486, %v2487
  %v2489 = vsub.f32 1.0, %v2488
  %v2490 = vmul.f32 %v2487, %v2489
  %v2491 = vadd.f32 %v2487, %v2490
  %vm2492 = vweird.f32 %v2486
  %vm2493 = vweird.f32 %v2487
  %vm2494 = vmor %vm2492, %vm2493
  %v2495 = vsel %vm2494, %v2487, %v2491
  %v2496 = vand.u32 2147483647, %v2486
  %vm2497 = vcmp.eq.f32.partialorder %v2496, 8.507059e+37
  %v2498 = vand.u32 %v2486, 2147483648
  %v2499 = vor.u32 1.1754944e-38, %v2498
  %v2500 = vsel %vm2497, %v2499, %v2495
  %v2501 = vmul.f32 1.0, %v2500
  %v2503 = vrot.slane %v2433, 6
  %2504 = vrot.lane.b32.xlu0 %v2503, 32
  %v2505 = vpop.permute.xlu0 %2504
  %v2507 = vadd.f32 %v1558, %v2505
  %v2508 = vxor.u32 %v2507, 2147483648
  %v2509 = vmul.f32 %v2508, 1.442695
  %v2510 = vpow.pop %v2509
  %v2511 = vadd.f32 %v2510, 1.0
  %v2512 = vrcp.pop %v2511
  %v2513 = vmul.f32 %v2511, %v2512
  %v2514 = vsub.f32 1.0, %v2513
  %v2515 = vmul.f32 %v2512, %v2514
  %v2516 = vadd.f32 %v2512, %v2515
  %vm2517 = vweird.f32 %v2511
  %vm2518 = vweird.f32 %v2512
  %vm2519 = vmor %vm2517, %vm2518
  %v2520 = vsel %vm2519, %v2512, %v2516
  %v2521 = vand.u32 2147483647, %v2511
  %vm2522 = vcmp.eq.f32.partialorder %v2521, 8.507059e+37
  %v2523 = vand.u32 %v2511, 2147483648
  %v2524 = vor.u32 1.1754944e-38, %v2523
  %v2525 = vsel %vm2522, %v2524, %v2520
  %v2526 = vmul.f32 1.0, %v2525
  %2527 = vrot.lane.b32.xlu0 %v2503, 96
  %v2528 = vpop.permute.xlu0 %2527
  %v2530 = vmul.f32 %v2501, %v2528
  %2532 = vrot.lane.b32.xlu0 %v2530, 64
  %v2533 = vpop.permute.xlu0 %2532
  %v2535 = vadd.f32 %v1558, %v2533
  %v2536 = vtanh.pop %v2535
  %v2537 = vsub.f32 1.0, %v2526
  %2539 = vrot.lane.b32.xlu0 %v2536, 96
  %v2540 = vpop.permute.xlu0 %2539
  %v2542 = vmul.f32 %v2537, %v2540
  %v2543 = vrot.slane %v2382, 1
  %v2545 = vmul.f32 %v2526, %v2543
  %v2546 = vadd.f32 %v2542, %v2545
  %2548 = vrot.lane.b32.xlu0 %v2477, 96
  %v2549 = vpop.permute.xlu0 %2548
  %v2552 = vrot.slane %v2546, 5
  %v2554 = vsel %vm88, %v2549, %v2552
  %v2556 = vrot.slane %v2554, 5
  %v2557 = vsel %vm100, %v2556, 0
  %2559 = vmatpush.msra.mxu0 0.0
  %2560 = vmatpush.msra.mxu0 0.0
  %2561 = vmatpush.msra.mxu0 0.0
  %2562 = vmatpush.msra.mxu0 0.0
  %2563 = vmatpush.msra.mxu0 0.0
  %2564 = vmatpush.msra.mxu0 0.0
  %2565 = vmatpush.msra.mxu0 0.0
  %2566 = vmatpush.msra.mxu0 0.0
  %2567 = vmatpush.msra.mxu0 %v1575
  %2568 = vmatpush.msra.mxu0 %v1573
  %2569 = vmatpush.msra.mxu0 %v1571
  %2570 = vmatpush.msra.mxu0 %v1569
  %2571 = vmatpush.msra.mxu0 %v1567
  %2572 = vmatpush.msra.mxu0 %v1565
  %2573 = vmatpush.msra.mxu0 %v1563
  %2574 = vmatpush.msra.mxu0 %v1561
  %2575 = vmatmul.f32.gmra.mxu0 %v2557
  %v2576 = vpop.f32.mrf.mxu0
  %v2577 = vadd.f32 %v1580, %v2576
  %2578 = vdwg.mxu0
  %2579 = vmatpush.msra.mxu0 0.0
  %2580 = vmatpush.msra.mxu0 0.0
  %2581 = vmatpush.msra.mxu0 0.0
  %2582 = vmatpush.msra.mxu0 0.0
  %2583 = vmatpush.msra.mxu0 0.0
  %2584 = vmatpush.msra.mxu0 0.0
  %2585 = vmatpush.msra.mxu0 0.0
  %2586 = vmatpush.msra.mxu0 0.0
  %2587 = vmatpush.msra.mxu0 %v1576
  %2588 = vmatpush.msra.mxu0 %v1574
  %2589 = vmatpush.msra.mxu0 %v1572
  %2590 = vmatpush.msra.mxu0 %v1570
  %2591 = vmatpush.msra.mxu0 %v1568
  %2592 = vmatpush.msra.mxu0 %v1566
  %2593 = vmatpush.msra.mxu0 %v1564
  %2594 = vmatpush.msra.mxu0 %v1562
  %2595 = vmatmul.f32.gmra.mxu0 %v2557
  %v2596 = vpop.f32.mrf.mxu0
  %v2597 = vadd.f32 %v1581, %v2596
  %2598 = vdwg.mxu0
  %v2600 = vrot.slane %v2577, 2
  %v2602 = vadd.f32 %v1527, %v2600
  %v2603 = vxor.u32 %v2602, 2147483648
  %v2604 = vmul.f32 %v2603, 1.442695
  %v2605 = vpow.pop %v2604
  %v2606 = vadd.f32 %v2605, 1.0
  %v2607 = vrcp.pop %v2606
  %v2608 = vmul.f32 %v2606, %v2607
  %v2609 = vsub.f32 1.0, %v2608
  %v2610 = vmul.f32 %v2607, %v2609
  %v2611 = vadd.f32 %v2607, %v2610
  %vm2612 = vweird.f32 %v2606
  %vm2613 = vweird.f32 %v2607
  %vm2614 = vmor %vm2612, %vm2613
  %v2615 = vsel %vm2614, %v2607, %v2611
  %v2616 = vand.u32 2147483647, %v2606
  %vm2617 = vcmp.eq.f32.partialorder %v2616, 8.507059e+37
  %v2618 = vand.u32 %v2606, 2147483648
  %v2619 = vor.u32 1.1754944e-38, %v2618
  %v2620 = vsel %vm2617, %v2619, %v2615
  %v2621 = vmul.f32 1.0, %v2620
  %2622 = vrot.lane.b32.xlu0 %v2600, 64
  %v2623 = vpop.permute.xlu0 %2622
  %v2625 = vmul.f32 %v2621, %v2623
  %2627 = vrot.lane.b32.xlu0 %v2625, 64
  %v2628 = vpop.permute.xlu0 %2627
  %v2630 = vadd.f32 %v1527, %v2628
  %v2631 = vtanh.pop %v2630
  %v2632 = vsub.f32 1.0, %v2621
  %2634 = vrot.lane.b32.xlu0 %v2631, 96
  %v2635 = vpop.permute.xlu0 %2634
  %v2637 = vmul.f32 %v2632, %v2635
  %v2638 = vrot.slane %v2477, 7
  %v2640 = vmul.f32 %v2621, %v2638
  %v2641 = vadd.f32 %v2637, %v2640
  %v2642 = vrot.slane %v2577, 7
  %2643 = vrot.lane.b32.xlu0 %v2642, 32
  %v2644 = vpop.permute.xlu0 %2643
  %v2646 = vadd.f32 %v1558, %v2644
  %v2647 = vxor.u32 %v2646, 2147483648
  %v2648 = vmul.f32 %v2647, 1.442695
  %v2649 = vpow.pop %v2648
  %v2650 = vadd.f32 %v2649, 1.0
  %v2651 = vrcp.pop %v2650
  %v2652 = vmul.f32 %v2650, %v2651
  %v2653 = vsub.f32 1.0, %v2652
  %v2654 = vmul.f32 %v2651, %v2653
  %v2655 = vadd.f32 %v2651, %v2654
  %vm2656 = vweird.f32 %v2650
  %vm2657 = vweird.f32 %v2651
  %vm2658 = vmor %vm2656, %vm2657
  %v2659 = vsel %vm2658, %v2651, %v2655
  %v2660 = vand.u32 2147483647, %v2650
  %vm2661 = vcmp.eq.f32.partialorder %v2660, 8.507059e+37
  %v2662 = vand.u32 %v2650, 2147483648
  %v2663 = vor.u32 1.1754944e-38, %v2662
  %v2664 = vsel %vm2661, %v2663, %v2659
  %v2665 = vmul.f32 1.0, %v2664
  %v2667 = vrot.slane %v2597, 7
  %2668 = vrot.lane.b32.xlu0 %v2667, 32
  %v2669 = vpop.permute.xlu0 %2668
  %v2671 = vadd.f32 %v1558, %v2669
  %v2672 = vxor.u32 %v2671, 2147483648
  %v2673 = vmul.f32 %v2672, 1.442695
  %v2674 = vpow.pop %v2673
  %v2675 = vadd.f32 %v2674, 1.0
  %v2676 = vrcp.pop %v2675
  %v2677 = vmul.f32 %v2675, %v2676
  %v2678 = vsub.f32 1.0, %v2677
  %v2679 = vmul.f32 %v2676, %v2678
  %v2680 = vadd.f32 %v2676, %v2679
  %vm2681 = vweird.f32 %v2675
  %vm2682 = vweird.f32 %v2676
  %vm2683 = vmor %vm2681, %vm2682
  %v2684 = vsel %vm2683, %v2676, %v2680
  %v2685 = vand.u32 2147483647, %v2675
  %vm2686 = vcmp.eq.f32.partialorder %v2685, 8.507059e+37
  %v2687 = vand.u32 %v2675, 2147483648
  %v2688 = vor.u32 1.1754944e-38, %v2687
  %v2689 = vsel %vm2686, %v2688, %v2684
  %v2690 = vmul.f32 1.0, %v2689
  %2691 = vrot.lane.b32.xlu0 %v2667, 96
  %v2692 = vpop.permute.xlu0 %2691
  %v2694 = vmul.f32 %v2665, %v2692
  %2696 = vrot.lane.b32.xlu0 %v2694, 64
  %v2697 = vpop.permute.xlu0 %2696
  %v2699 = vadd.f32 %v1558, %v2697
  %v2700 = vtanh.pop %v2699
  %v2701 = vsub.f32 1.0, %v2690
  %2703 = vrot.lane.b32.xlu0 %v2700, 96
  %v2704 = vpop.permute.xlu0 %2703
  %v2706 = vmul.f32 %v2701, %v2704
  %v2707 = vrot.slane %v2546, 1
  %v2709 = vmul.f32 %v2690, %v2707
  %v2710 = vadd.f32 %v2706, %v2709
  %2712 = vrot.lane.b32.xlu0 %v2641, 96
  %v2713 = vpop.permute.xlu0 %2712
  %v2716 = vrot.slane %v2710, 3
  %v2718 = vsel %vm88, %v2713, %v2716
  %v2720 = vrot.slane %v2718, 6
  %v2721 = vsel %vm100, %v2720, 0
  %2723 = vmatpush.msra.mxu0 0.0
  %2724 = vmatpush.msra.mxu0 0.0
  %2725 = vmatpush.msra.mxu0 0.0
  %2726 = vmatpush.msra.mxu0 0.0
  %2727 = vmatpush.msra.mxu0 0.0
  %2728 = vmatpush.msra.mxu0 0.0
  %2729 = vmatpush.msra.mxu0 0.0
  %2730 = vmatpush.msra.mxu0 0.0
  %2731 = vmatpush.msra.mxu0 %v1575
  %2732 = vmatpush.msra.mxu0 %v1573
  %2733 = vmatpush.msra.mxu0 %v1571
  %2734 = vmatpush.msra.mxu0 %v1569
  %2735 = vmatpush.msra.mxu0 %v1567
  %2736 = vmatpush.msra.mxu0 %v1565
  %2737 = vmatpush.msra.mxu0 %v1563
  %2738 = vmatpush.msra.mxu0 %v1561
  %2739 = vmatmul.f32.gmra.mxu0 %v2721
  %v2740 = vpop.f32.mrf.mxu0
  %v2741 = vadd.f32 %v1580, %v2740
  %2742 = vdwg.mxu0
  %2743 = vmatpush.msra.mxu0 0.0
  %2744 = vmatpush.msra.mxu0 0.0
  %2745 = vmatpush.msra.mxu0 0.0
  %2746 = vmatpush.msra.mxu0 0.0
  %2747 = vmatpush.msra.mxu0 0.0
  %2748 = vmatpush.msra.mxu0 0.0
  %2749 = vmatpush.msra.mxu0 0.0
  %2750 = vmatpush.msra.mxu0 0.0
  %2751 = vmatpush.msra.mxu0 %v1576
  %2752 = vmatpush.msra.mxu0 %v1574
  %2753 = vmatpush.msra.mxu0 %v1572
  %2754 = vmatpush.msra.mxu0 %v1570
  %2755 = vmatpush.msra.mxu0 %v1568
  %2756 = vmatpush.msra.mxu0 %v1566
  %2757 = vmatpush.msra.mxu0 %v1564
  %2758 = vmatpush.msra.mxu0 %v1562
  %2759 = vmatmul.f32.gmra.mxu0 %v2721
  %v2760 = vpop.f32.mrf.mxu0
  %v2761 = vadd.f32 %v1581, %v2760
  %2762 = vdwg.mxu0
  %v2764 = vrot.slane %v2741, 1
  %v2766 = vadd.f32 %v1527, %v2764
  %v2767 = vxor.u32 %v2766, 2147483648
  %v2768 = vmul.f32 %v2767, 1.442695
  %v2769 = vpow.pop %v2768
  %v2770 = vadd.f32 %v2769, 1.0
  %v2771 = vrcp.pop %v2770
  %v2772 = vmul.f32 %v2770, %v2771
  %v2773 = vsub.f32 1.0, %v2772
  %v2774 = vmul.f32 %v2771, %v2773
  %v2775 = vadd.f32 %v2771, %v2774
  %vm2776 = vweird.f32 %v2770
  %vm2777 = vweird.f32 %v2771
  %vm2778 = vmor %vm2776, %vm2777
  %v2779 = vsel %vm2778, %v2771, %v2775
  %v2780 = vand.u32 2147483647, %v2770
  %vm2781 = vcmp.eq.f32.partialorder %v2780, 8.507059e+37
  %v2782 = vand.u32 %v2770, 2147483648
  %v2783 = vor.u32 1.1754944e-38, %v2782
  %v2784 = vsel %vm2781, %v2783, %v2779
  %v2785 = vmul.f32 1.0, %v2784
  %2786 = vrot.lane.b32.xlu0 %v2764, 64
  %v2787 = vpop.permute.xlu0 %2786
  %v2789 = vmul.f32 %v2785, %v2787
  %2791 = vrot.lane.b32.xlu0 %v2789, 64
  %v2792 = vpop.permute.xlu0 %2791
  %v2794 = vadd.f32 %v1527, %v2792
  %v2795 = vtanh.pop %v2794
  %v2796 = vsub.f32 1.0, %v2785
  %2798 = vrot.lane.b32.xlu0 %v2795, 96
  %v2799 = vpop.permute.xlu0 %2798
  %v2801 = vmul.f32 %v2796, %v2799
  %v2802 = vrot.slane %v2641, 7
  %v2804 = vmul.f32 %v2785, %v2802
  %v2805 = vadd.f32 %v2801, %v2804
  %2806 = vrot.lane.b32.xlu0 %v2741, 32
  %v2807 = vpop.permute.xlu0 %2806
  %v2809 = vadd.f32 %v1558, %v2807
  %v2810 = vxor.u32 %v2809, 2147483648
  %v2811 = vmul.f32 %v2810, 1.442695
  %v2812 = vpow.pop %v2811
  %v2813 = vadd.f32 %v2812, 1.0
  %v2814 = vrcp.pop %v2813
  %v2815 = vmul.f32 %v2813, %v2814
  %v2816 = vsub.f32 1.0, %v2815
  %v2817 = vmul.f32 %v2814, %v2816
  %v2818 = vadd.f32 %v2814, %v2817
  %vm2819 = vweird.f32 %v2813
  %vm2820 = vweird.f32 %v2814
  %vm2821 = vmor %vm2819, %vm2820
  %v2822 = vsel %vm2821, %v2814, %v2818
  %v2823 = vand.u32 2147483647, %v2813
  %vm2824 = vcmp.eq.f32.partialorder %v2823, 8.507059e+37
  %v2825 = vand.u32 %v2813, 2147483648
  %v2826 = vor.u32 1.1754944e-38, %v2825
  %v2827 = vsel %vm2824, %v2826, %v2822
  %v2828 = vmul.f32 1.0, %v2827
  %2830 = vrot.lane.b32.xlu0 %v2761, 32
  %v2831 = vpop.permute.xlu0 %2830
  %v2833 = vadd.f32 %v1558, %v2831
  %v2834 = vxor.u32 %v2833, 2147483648
  %v2835 = vmul.f32 %v2834, 1.442695
  %v2836 = vpow.pop %v2835
  %v2837 = vadd.f32 %v2836, 1.0
  %v2838 = vrcp.pop %v2837
  %v2839 = vmul.f32 %v2837, %v2838
  %v2840 = vsub.f32 1.0, %v2839
  %v2841 = vmul.f32 %v2838, %v2840
  %v2842 = vadd.f32 %v2838, %v2841
  %vm2843 = vweird.f32 %v2837
  %vm2844 = vweird.f32 %v2838
  %vm2845 = vmor %vm2843, %vm2844
  %v2846 = vsel %vm2845, %v2838, %v2842
  %v2847 = vand.u32 2147483647, %v2837
  %vm2848 = vcmp.eq.f32.partialorder %v2847, 8.507059e+37
  %v2849 = vand.u32 %v2837, 2147483648
  %v2850 = vor.u32 1.1754944e-38, %v2849
  %v2851 = vsel %vm2848, %v2850, %v2846
  %v2852 = vmul.f32 1.0, %v2851
  %2853 = vrot.lane.b32.xlu0 %v2761, 96
  %v2854 = vpop.permute.xlu0 %2853
  %v2856 = vmul.f32 %v2828, %v2854
  %2858 = vrot.lane.b32.xlu0 %v2856, 64
  %v2859 = vpop.permute.xlu0 %2858
  %v2861 = vadd.f32 %v1558, %v2859
  %v2862 = vtanh.pop %v2861
  %v2863 = vsub.f32 1.0, %v2852
  %2865 = vrot.lane.b32.xlu0 %v2862, 96
  %v2866 = vpop.permute.xlu0 %2865
  %v2868 = vmul.f32 %v2863, %v2866
  %v2869 = vrot.slane %v2710, 1
  %v2871 = vmul.f32 %v2852, %v2869
  %v2872 = vadd.f32 %v2868, %v2871
  %v2873 = vsel %vm1469, %v1662, %v1823
  %v2874 = vsel %vm1471, %v2873, %v1987
  %v2875 = vsel %vm1473, %v2874, %v2151
  %v2876 = vsel %vm1475, %v2875, %v2315
  %v2877 = vsel %vm1477, %v2876, %v2477
  %v2878 = vsel %vm1479, %v2877, %v2641
  %v2879 = vsel %vm1481, %v2878, %v2805
  %v2880 = vsel %vm1469, %v2872, %v2710
  %v2881 = vsel %vm1471, %v2880, %v2546
  %v2882 = vsel %vm1473, %v2881, %v2382
  %v2883 = vsel %vm1475, %v2882, %v2220
  %v2884 = vsel %vm1477, %v2883, %v2056
  %v2885 = vsel %vm1479, %v2884, %v1892
  %v2886 = vsel %vm1481, %v2885, %v1729
  %v2887 = vadd.f32 %v2879, %v2886
  %v2888 = vld [vmem:[%s10] sm:$0xff]
  %v2889 = vld [vmem:[%s10 + $0x8] sm:$0xff]
  %v2890 = vld [vmem:[%s10 + $0x10] sm:$0xff]
  %v2891 = vld [vmem:[%s10 + $0x18] sm:$0xff]
  %2893 = vrot.lane.b32.xlu0 %v2887, 96
  %v2894 = vpop.permute.xlu0 %2893
  %v2895 = vsel %vm88, %v2894, 0
  %2897 = vmatpush.msra.mxu0 0.0
  %2898 = vmatpush.msra.mxu0 0.0
  %2899 = vmatpush.msra.mxu0 0.0
  %2900 = vmatpush.msra.mxu0 0.0
  %2901 = vmatpush.msra.mxu0 0.0
  %2902 = vmatpush.msra.mxu0 0.0
  %2903 = vmatpush.msra.mxu0 0.0
  %2904 = vmatpush.msra.mxu0 0.0
  %2905 = vmatpush.msra.mxu0 0.0
  %2906 = vmatpush.msra.mxu0 0.0
  %2907 = vmatpush.msra.mxu0 0.0
  %2908 = vmatpush.msra.mxu0 0.0
  %2909 = vmatpush.msra.mxu0 %v2891
  %2910 = vmatpush.msra.mxu0 %v2890
  %2911 = vmatpush.msra.mxu0 %v2889
  %2912 = vmatpush.msra.mxu0 %v2888
  %2913 = vmatmul.f32.gmra.mxu0 %v2895
  %v2914 = vpop.f32.mrf.mxu0
  %v2915 = vadd.f32 0.0, %v2914
  %2916 = vdwg.mxu0
  %v2917 = vcvt.s32.f32 %v50
  %vm2918 = vcmp.eq.f32.partialorder %v2917, 1.0
  %v2919 = vsel %vm2918, 1, 0
  %v2920 = vcvt.s32.f32 %v2919
  %v2922 = vrot.slane %v1401, 7
  %2923 = vrot.lane.b32.xlu0 %v2922, 16
  %v2924 = vpop.permute.xlu0 %2923
  %v2926 = vsel %vm64, %v2920, %v2924
  %v2927 = vld [vmem:[%s6] sm:$0xff]
  %v2928 = vld [vmem:[%s6 + $0x8] sm:$0xff]
  %v2929 = vld [vmem:[%s6 + $0x10] sm:$0xff]
  %v2930 = vld [vmem:[%s6 + $0x18] sm:$0xff]
  %v2931 = vld [vmem:[%s6 + $0x20] sm:$0xff]
  %v2932 = vld [vmem:[%s6 + $0x28] sm:$0xff]
  %v2933 = vld [vmem:[%s6 + $0x30] sm:$0xff]
  %v2934 = vld [vmem:[%s6 + $0x38] sm:$0xff]
  %v2935 = vld [vmem:[%s6 + $0x40] sm:$0xff]
  %v2936 = vld [vmem:[%s6 + $0x48] sm:$0xff]
  %v2937 = vld [vmem:[%s6 + $0x50] sm:$0xff]
  %v2938 = vld [vmem:[%s6 + $0x58] sm:$0xff]
  %v2939 = vld [vmem:[%s6 + $0x60] sm:$0xff]
  %v2940 = vld [vmem:[%s6 + $0x68] sm:$0xff]
  %v2941 = vld [vmem:[%s6 + $0x70] sm:$0xff]
  %v2942 = vld [vmem:[%s6 + $0x78] sm:$0xff]
  %v2943 = vld [vmem:[%s6 + $0x80] sm:$0xff]
  %v2944 = vld [vmem:[%s6 + $0x88] sm:$0xff]
  %v2945 = vld [vmem:[%s6 + $0x90] sm:$0xff]
  %v2946 = vld [vmem:[%s6 + $0x98] sm:$0xff]
  %v2947 = vld [vmem:[%s8] ss:$2 sm:$0x3]
  %v2949 = vperm.slane %v2947, 0
  %v2950 = vperm.slane %v2947, 1
  %vm2953 = vcmask 654336
  %v2955 = vsel %vm2953, %v2926, 0
  %2957 = vmatpush.msra.mxu0 0.0
  %2958 = vmatpush.msra.mxu0 0.0
  %2959 = vmatpush.msra.mxu0 0.0
  %2960 = vmatpush.msra.mxu0 0.0
  %2961 = vmatpush.msra.mxu0 0.0
  %2962 = vmatpush.msra.mxu0 0.0
  %2963 = vmatpush.msra.mxu0 %v2945
  %2964 = vmatpush.msra.mxu0 %v2943
  %2965 = vmatpush.msra.mxu0 %v2941
  %2966 = vmatpush.msra.mxu0 %v2939
  %2967 = vmatpush.msra.mxu0 %v2937
  %2968 = vmatpush.msra.mxu0 %v2935
  %2969 = vmatpush.msra.mxu0 %v2933
  %2970 = vmatpush.msra.mxu0 %v2931
  %2971 = vmatpush.msra.mxu0 %v2929
  %2972 = vmatpush.msra.mxu0 %v2927
  %2973 = vmatmul.f32.gmra.mxu0 %v2955
  %v2974 = vpop.f32.mrf.mxu0
  %v2975 = vadd.f32 %v2949, %v2974
  %2976 = vdwg.mxu0
  %2977 = vmatpush.msra.mxu0 0.0
  %2978 = vmatpush.msra.mxu0 0.0
  %2979 = vmatpush.msra.mxu0 0.0
  %2980 = vmatpush.msra.mxu0 0.0
  %2981 = vmatpush.msra.mxu0 0.0
  %2982 = vmatpush.msra.mxu0 0.0
  %2983 = vmatpush.msra.mxu0 %v2946
  %2984 = vmatpush.msra.mxu0 %v2944
  %2985 = vmatpush.msra.mxu0 %v2942
  %2986 = vmatpush.msra.mxu0 %v2940
  %2987 = vmatpush.msra.mxu0 %v2938
  %2988 = vmatpush.msra.mxu0 %v2936
  %2989 = vmatpush.msra.mxu0 %v2934
  %2990 = vmatpush.msra.mxu0 %v2932
  %2991 = vmatpush.msra.mxu0 %v2930
  %2992 = vmatpush.msra.mxu0 %v2928
  %2993 = vmatmul.f32.gmra.mxu0 %v2955
  %v2994 = vpop.f32.mrf.mxu0
  %v2995 = vadd.f32 %v2950, %v2994
  %2996 = vdwg.mxu0
  %2998 = vrot.lane.b32.xlu0 %v2975, 32
  %v2999 = vpop.permute.xlu0 %2998
  %v3001 = vadd.f32 %v2975, %v2999
  %v3002 = vxor.u32 %v3001, 2147483648
  %v3003 = vmul.f32 %v3002, 1.442695
  %v3004 = vpow.pop %v3003
  %v3005 = vadd.f32 %v3004, 1.0
  %v3006 = vrcp.pop %v3005
  %v3007 = vmul.f32 %v3005, %v3006
  %v3008 = vsub.f32 1.0, %v3007
  %v3009 = vmul.f32 %v3006, %v3008
  %v3010 = vadd.f32 %v3006, %v3009
  %vm3011 = vweird.f32 %v3005
  %vm3012 = vweird.f32 %v3006
  %vm3013 = vmor %vm3011, %vm3012
  %v3014 = vsel %vm3013, %v3006, %v3010
  %v3015 = vand.u32 2147483647, %v3005
  %vm3016 = vcmp.eq.f32.partialorder %v3015, 8.507059e+37
  %v3017 = vand.u32 %v3005, 2147483648
  %v3018 = vor.u32 1.1754944e-38, %v3017
  %v3019 = vsel %vm3016, %v3018, %v3014
  %v3020 = vmul.f32 1.0, %v3019
  %3022 = vrot.lane.b32.xlu0 %v2995, 32
  %v3023 = vpop.permute.xlu0 %3022
  %v3025 = vadd.f32 %v2975, %v3023
  %v3026 = vxor.u32 %v3025, 2147483648
  %v3027 = vmul.f32 %v3026, 1.442695
  %v3028 = vpow.pop %v3027
  %v3029 = vadd.f32 %v3028, 1.0
  %v3030 = vrcp.pop %v3029
  %v3031 = vmul.f32 %v3029, %v3030
  %v3032 = vsub.f32 1.0, %v3031
  %v3033 = vmul.f32 %v3030, %v3032
  %v3034 = vadd.f32 %v3030, %v3033
  %vm3035 = vweird.f32 %v3029
  %vm3036 = vweird.f32 %v3030
  %vm3037 = vmor %vm3035, %vm3036
  %v3038 = vsel %vm3037, %v3030, %v3034
  %v3039 = vand.u32 2147483647, %v3029
  %vm3040 = vcmp.eq.f32.partialorder %v3039, 8.507059e+37
  %v3041 = vand.u32 %v3029, 2147483648
  %v3042 = vor.u32 1.1754944e-38, %v3041
  %v3043 = vsel %vm3040, %v3042, %v3038
  %v3044 = vmul.f32 1.0, %v3043
  %3045 = vrot.lane.b32.xlu0 %v2995, 96
  %v3046 = vpop.permute.xlu0 %3045
  %v3048 = vmul.f32 %v3020, %v3046
  %3050 = vrot.lane.b32.xlu0 %v3048, 64
  %v3051 = vpop.permute.xlu0 %3050
  %v3053 = vadd.f32 %v2975, %v3051
  %v3054 = vtanh.pop %v3053
  %v3055 = vsub.f32 1.0, %v3044
  %3057 = vrot.lane.b32.xlu0 %v3054, 96
  %v3058 = vpop.permute.xlu0 %3057
  %v3060 = vmul.f32 %v3055, %v3058
  %v3062 = vmul.f32 %v3044, %v2922
  %v3063 = vadd.f32 %v3060, %v3062
  %3065 = vrot.lane.b32.xlu0 %v3063, 96
  %v3066 = vpop.permute.xlu0 %3065
  %v3068 = vsel %vm88, %v3066, %v1468
  %v3069 = vld [vmem:[%s7] sm:$0xff]
  %v3070 = vld [vmem:[%s7 + $0x8] sm:$0xff]
  %v3071 = vld [vmem:[%s7 + $0x10] sm:$0xff]
  %v3072 = vld [vmem:[%s7 + $0x18] sm:$0xff]
  %v3073 = vld [vmem:[%s7 + $0x20] sm:$0xff]
  %v3074 = vld [vmem:[%s7 + $0x28] sm:$0xff]
  %v3075 = vld [vmem:[%s7 + $0x30] sm:$0xff]
  %v3076 = vld [vmem:[%s7 + $0x38] sm:$0xff]
  %v3077 = vld [vmem:[%s7 + $0x40] sm:$0xff]
  %v3078 = vld [vmem:[%s7 + $0x48] sm:$0xff]
  %v3079 = vld [vmem:[%s7 + $0x50] sm:$0xff]
  %v3080 = vld [vmem:[%s7 + $0x58] sm:$0xff]
  %v3081 = vld [vmem:[%s7 + $0x60] sm:$0xff]
  %v3082 = vld [vmem:[%s7 + $0x68] sm:$0xff]
  %v3083 = vld [vmem:[%s7 + $0x70] sm:$0xff]
  %v3084 = vld [vmem:[%s7 + $0x78] sm:$0xff]
  %s3085 = scalar_lea.vmem %s8, 1
  %v3086 = vld [vmem:[%s3085] ss:$2 sm:$0x3]
  %v3088 = vperm.slane %v3086, 0
  %v3089 = vperm.slane %v3086, 1
  %v3093 = vsel %vm100, %v3068, 0
  %3095 = vmatpush.msra.mxu0 0.0
  %3096 = vmatpush.msra.mxu0 0.0
  %3097 = vmatpush.msra.mxu0 0.0
  %3098 = vmatpush.msra.mxu0 0.0
  %3099 = vmatpush.msra.mxu0 0.0
  %3100 = vmatpush.msra.mxu0 0.0
  %3101 = vmatpush.msra.mxu0 0.0
  %3102 = vmatpush.msra.mxu0 0.0
  %3103 = vmatpush.msra.mxu0 %v3083
  %3104 = vmatpush.msra.mxu0 %v3081
  %3105 = vmatpush.msra.mxu0 %v3079
  %3106 = vmatpush.msra.mxu0 %v3077
  %3107 = vmatpush.msra.mxu0 %v3075
  %3108 = vmatpush.msra.mxu0 %v3073
  %3109 = vmatpush.msra.mxu0 %v3071
  %3110 = vmatpush.msra.mxu0 %v3069
  %3111 = vmatmul.f32.gmra.mxu0 %v3093
  %v3112 = vpop.f32.mrf.mxu0
  %v3113 = vadd.f32 %v3088, %v3112
  %3114 = vdwg.mxu0
  %3115 = vmatpush.msra.mxu0 0.0
  %3116 = vmatpush.msra.mxu0 0.0
  %3117 = vmatpush.msra.mxu0 0.0
  %3118 = vmatpush.msra.mxu0 0.0
  %3119 = vmatpush.msra.mxu0 0.0
  %3120 = vmatpush.msra.mxu0 0.0
  %3121 = vmatpush.msra.mxu0 0.0
  %3122 = vmatpush.msra.mxu0 0.0
  %3123 = vmatpush.msra.mxu0 %v3084
  %3124 = vmatpush.msra.mxu0 %v3082
  %3125 = vmatpush.msra.mxu0 %v3080
  %3126 = vmatpush.msra.mxu0 %v3078
  %3127 = vmatpush.msra.mxu0 %v3076
  %3128 = vmatpush.msra.mxu0 %v3074
  %3129 = vmatpush.msra.mxu0 %v3072
  %3130 = vmatpush.msra.mxu0 %v3070
  %3131 = vmatmul.f32.gmra.mxu0 %v3093
  %v3132 = vpop.f32.mrf.mxu0
  %v3133 = vadd.f32 %v3089, %v3132
  %3134 = vdwg.mxu0
  %3136 = vrot.lane.b32.xlu0 %v3113, 32
  %v3137 = vpop.permute.xlu0 %3136
  %v3139 = vadd.f32 %v3113, %v3137
  %v3140 = vxor.u32 %v3139, 2147483648
  %v3141 = vmul.f32 %v3140, 1.442695
  %v3142 = vpow.pop %v3141
  %v3143 = vadd.f32 %v3142, 1.0
  %v3144 = vrcp.pop %v3143
  %v3145 = vmul.f32 %v3143, %v3144
  %v3146 = vsub.f32 1.0, %v3145
  %v3147 = vmul.f32 %v3144, %v3146
  %v3148 = vadd.f32 %v3144, %v3147
  %vm3149 = vweird.f32 %v3143
  %vm3150 = vweird.f32 %v3144
  %vm3151 = vmor %vm3149, %vm3150
  %v3152 = vsel %vm3151, %v3144, %v3148
  %v3153 = vand.u32 2147483647, %v3143
  %vm3154 = vcmp.eq.f32.partialorder %v3153, 8.507059e+37
  %v3155 = vand.u32 %v3143, 2147483648
  %v3156 = vor.u32 1.1754944e-38, %v3155
  %v3157 = vsel %vm3154, %v3156, %v3152
  %v3158 = vmul.f32 1.0, %v3157
  %3160 = vrot.lane.b32.xlu0 %v3133, 32
  %v3161 = vpop.permute.xlu0 %3160
  %v3163 = vadd.f32 %v3113, %v3161
  %v3164 = vxor.u32 %v3163, 2147483648
  %v3165 = vmul.f32 %v3164, 1.442695
  %v3166 = vpow.pop %v3165
  %v3167 = vadd.f32 %v3166, 1.0
  %v3168 = vrcp.pop %v3167
  %v3169 = vmul.f32 %v3167, %v3168
  %v3170 = vsub.f32 1.0, %v3169
  %v3171 = vmul.f32 %v3168, %v3170
  %v3172 = vadd.f32 %v3168, %v3171
  %vm3173 = vweird.f32 %v3167
  %vm3174 = vweird.f32 %v3168
  %vm3175 = vmor %vm3173, %vm3174
  %v3176 = vsel %vm3175, %v3168, %v3172
  %v3177 = vand.u32 2147483647, %v3167
  %vm3178 = vcmp.eq.f32.partialorder %v3177, 8.507059e+37
  %v3179 = vand.u32 %v3167, 2147483648
  %v3180 = vor.u32 1.1754944e-38, %v3179
  %v3181 = vsel %vm3178, %v3180, %v3176
  %v3182 = vmul.f32 1.0, %v3181
  %3183 = vrot.lane.b32.xlu0 %v3133, 96
  %v3184 = vpop.permute.xlu0 %3183
  %v3186 = vmul.f32 %v3158, %v3184
  %3188 = vrot.lane.b32.xlu0 %v3186, 64
  %v3189 = vpop.permute.xlu0 %3188
  %v3191 = vadd.f32 %v3113, %v3189
  %v3192 = vtanh.pop %v3191
  %v3193 = vsub.f32 1.0, %v3182
  %3195 = vrot.lane.b32.xlu0 %v3192, 96
  %v3196 = vpop.permute.xlu0 %3195
  %v3198 = vmul.f32 %v3193, %v3196
  %v3199 = vmul.f32 %v3182, %v1468
  %v3200 = vadd.f32 %v3198, %v3199
  %3202 = vrot.lane.b32.xlu0 %v3200, 96
  %v3203 = vpop.permute.xlu0 %3202
  %v3204 = vsel %vm88, %v3203, 0
  %3206 = vmatpush.xpose.msra.mxu0 0.0
  %3207 = vmatpush.xpose.msra.mxu0 0.0
  %3208 = vmatpush.xpose.msra.mxu0 0.0
  %3209 = vmatpush.xpose.msra.mxu0 0.0
  %3210 = vmatpush.xpose.msra.mxu0 0.0
  %3211 = vmatpush.xpose.msra.mxu0 0.0
  %3212 = vmatpush.xpose.msra.mxu0 0.0
  %3213 = vmatpush.xpose.msra.mxu0 0.0
  %3214 = vmatpush.xpose.msra.mxu0 0.0
  %3215 = vmatpush.xpose.msra.mxu0 0.0
  %3216 = vmatpush.xpose.msra.mxu0 0.0
  %3217 = vmatpush.xpose.msra.mxu0 0.0
  %3218 = vmatpush.xpose.msra.mxu0 0.0
  %3219 = vmatpush.xpose.msra.mxu0 0.0
  %3220 = vmatpush.xpose.msra.mxu0 0.0
  %3221 = vmatpush.xpose.msra.mxu0 %v2895
  %3222 = vmatmul.f32.gmra.mxu0 %v3204
  %v3223 = vpop.f32.mrf.mxu0
  %v3224 = vadd.f32 0.0, %v3223
  %3225 = vdwg.mxu0
  %vm3226 = vcmask 57344
  %v3227 = vsel %vm3226, %v3224, -inf
  %3228 = vmax.xlane.f32.xlu0 %v3227
  %v3229 = vpop.xlane.xlu0 %3228
  %v3230 = vsub.f32 %v3224, %v3229
  %v3231 = vmul.f32 %v3230, 1.442695
  %v3232 = vpow.pop %v3231
  %v3233 = vsel %vm3226, %v3232, 0.0
  %3234 = vadd.xlane.f32.xlu0 %v3233
  %v3235 = vpop.xlane.xlu0 %3234
  %v3236 = vrcp.pop %v3235
  %v3237 = vmul.f32 %v3232, %v3236
  %v3238 = vld [vmem:[%s9] sm:$0xff]
  %v3239 = vld [vmem:[%s9 + $0x8] sm:$0xff]
  %v3240 = vld [vmem:[%s9 + $0x10] sm:$0xff]
  %v3241 = vld [vmem:[%s9 + $0x18] sm:$0xff]
  %vm3242 = vcmask 64512
  %v3244 = vsel %vm3242, %v3237, 0
  %3246 = vmatpush.msra.mxu0 0.0
  %3247 = vmatpush.msra.mxu0 0.0
  %3248 = vmatpush.msra.mxu0 0.0
  %3249 = vmatpush.msra.mxu0 0.0
  %3250 = vmatpush.msra.mxu0 0.0
  %3251 = vmatpush.msra.mxu0 0.0
  %3252 = vmatpush.msra.mxu0 0.0
  %3253 = vmatpush.msra.mxu0 0.0
  %3254 = vmatpush.msra.mxu0 0.0
  %3255 = vmatpush.msra.mxu0 0.0
  %3256 = vmatpush.msra.mxu0 0.0
  %3257 = vmatpush.msra.mxu0 0.0
  %3258 = vmatpush.msra.mxu0 0.0
  %3259 = vmatpush.msra.mxu0 0.0
  %3260 = vmatpush.msra.mxu0 0.0
  %3261 = vmatpush.msra.mxu0 %v2915
  %3262 = vmatmul.f32.gmra.mxu0 %v3244
  %v3263 = vpop.f32.mrf.mxu0
  %v3264 = vadd.f32 0.0, %v3263
  %3265 = vdwg.mxu0
  %3266 = vmatpush.msra.mxu0 0.0
  %3267 = vmatpush.msra.mxu0 0.0
  %3268 = vmatpush.msra.mxu0 0.0
  %3269 = vmatpush.msra.mxu0 0.0
  %3270 = vmatpush.msra.mxu0 0.0
  %3271 = vmatpush.msra.mxu0 0.0
  %3272 = vmatpush.msra.mxu0 0.0
  %3273 = vmatpush.msra.mxu0 0.0
  %3274 = vmatpush.msra.mxu0 0.0
  %3275 = vmatpush.msra.mxu0 0.0
  %3276 = vmatpush.msra.mxu0 0.0
  %3277 = vmatpush.msra.mxu0 0.0
  %3278 = vmatpush.msra.mxu0 %v3241
  %3279 = vmatpush.msra.mxu0 %v3240
  %3280 = vmatpush.msra.mxu0 %v3239
  %3281 = vmatpush.msra.mxu0 %v3238
  %3282 = vmatmul.f32.gmra.mxu0 %v3204
  %v3283 = vpop.f32.mrf.mxu0
  %v3284 = vadd.f32 %v3264, %v3283
  %3285 = vdwg.mxu0
  %v3286 = vld [vmem:[%s11] sm:$0x1]
  %v3287 = vadd.f32 %v3284, %v3286
  %v3288 = vtanh.pop %v3287
  %v3289 = vld [vmem:[%s12] sm:$0xff]
  %v3290 = vld [vmem:[%s12 + $0x8] sm:$0xff]
  %v3291 = vld [vmem:[%s12 + $0x10] sm:$0xff]
  %v3292 = vld [vmem:[%s12 + $0x18] sm:$0xff]
  %v3293 = vld [vmem:[%s13] sm:$0x1]
  %v3295 = vsel %vm88, %v3288, 0
  %3297 = vmatpush.msra.mxu0 0.0
  %3298 = vmatpush.msra.mxu0 0.0
  %3299 = vmatpush.msra.mxu0 0.0
  %3300 = vmatpush.msra.mxu0 0.0
  %3301 = vmatpush.msra.mxu0 0.0
  %3302 = vmatpush.msra.mxu0 0.0
  %3303 = vmatpush.msra.mxu0 0.0
  %3304 = vmatpush.msra.mxu0 0.0
  %3305 = vmatpush.msra.mxu0 0.0
  %3306 = vmatpush.msra.mxu0 0.0
  %3307 = vmatpush.msra.mxu0 0.0
  %3308 = vmatpush.msra.mxu0 0.0
  %3309 = vmatpush.msra.mxu0 %v3292
  %3310 = vmatpush.msra.mxu0 %v3291
  %3311 = vmatpush.msra.mxu0 %v3290
  %3312 = vmatpush.msra.mxu0 %v3289
  %3313 = vmatmul.f32.gmra.mxu0 %v3295
  %v3314 = vpop.f32.mrf.mxu0
  %v3315 = vadd.f32 %v3293, %v3314
  %3316 = vdwg.mxu0
  %vm3317 = vcmask 385024
  %v3318 = vsel %vm3317, %v3315, -inf
  %3319 = vmax.xlane.f32.xlu0 %v3318
  %v3320 = vpop.xlane.xlu0 %3319
  %v3321 = vsub.f32 %v3315, %v3320
  %v3322 = vmul.f32 %v3321, 1.442695
  %v3323 = vpow.pop %v3322
  %v3324 = vsel %vm3317, %v3323, 0.0
  %3325 = vadd.xlane.f32.xlu0 %v3324
  %v3326 = vpop.xlane.xlu0 %3325
  %v3327 = vrcp.pop %v3326
  %v3328 = vmul.f32 %v3326, %v3327
  %v3329 = vsub.f32 1.0, %v3328
  %v3330 = vmul.f32 %v3327, %v3329
  %v3331 = vadd.f32 %v3327, %v3330
  %vm3332 = vweird.f32 %v3326
  %vm3333 = vweird.f32 %v3327
  %vm3334 = vmor %vm3332, %vm3333
  %v3335 = vsel %vm3334, %v3327, %v3331
  %v3336 = vand.u32 2147483647, %v3326
  %vm3337 = vcmp.eq.f32.partialorder %v3336, 8.507059e+37
  %v3338 = vand.u32 %v3326, 2147483648
  %v3339 = vor.u32 1.1754944e-38, %v3338
  %v3340 = vsel %vm3337, %v3339, %v3335
  %v3341 = vmul.f32 1.0, %v3340
  %vm3342 = vcmp.ge.f32.partialorder %v3315, %v3320
  %v3343 = vsel %vm3342, %v2917, 48.0
  %v3344 = vsel %vm3317, %v3343, inf
  %3345 = vmin.xlane.f32.xlu0 %v3344
  %v3346 = vpop.xlane.xlu0 %3345
  %vm3347 = vcmp.eq.s32.totalorder %v50, 0
  %v3348 = vcvt.f32.s32.to.zero.pseudo %v3346
  %v3349 = vsel %vm3347, %v3348, 0
  %v3350 = vsel %vm3347, %v3341, 0.0
  %vm3351 = vcmp.eq.f32.partialorder %v2917, %v3346
  %v3352 = vsel %vm3351, 1, 0
  %v3353 = vcvt.s32.f32 %v3352
  %3354 = vrot.lane.b32.xlu0 %v3063, 16
  %v3355 = vpop.permute.xlu0 %3354
  %v3357 = vsel %vm64, %v3353, %v3355
  %v3359 = vsel %vm2953, %v3357, 0
  %3361 = vmatpush.msra.mxu0 0.0
  %3362 = vmatpush.msra.mxu0 0.0
  %3363 = vmatpush.msra.mxu0 0.0
  %3364 = vmatpush.msra.mxu0 0.0
  %3365 = vmatpush.msra.mxu0 0.0
  %3366 = vmatpush.msra.mxu0 0.0
  %3367 = vmatpush.msra.mxu0 %v2945
  %3368 = vmatpush.msra.mxu0 %v2943
  %3369 = vmatpush.msra.mxu0 %v2941
  %3370 = vmatpush.msra.mxu0 %v2939
  %3371 = vmatpush.msra.mxu0 %v2937
  %3372 = vmatpush.msra.mxu0 %v2935
  %3373 = vmatpush.msra.mxu0 %v2933
  %3374 = vmatpush.msra.mxu0 %v2931
  %3375 = vmatpush.msra.mxu0 %v2929
  %3376 = vmatpush.msra.mxu0 %v2927
  %3377 = vmatmul.f32.gmra.mxu0 %v3359
  %v3378 = vpop.f32.mrf.mxu0
  %v3379 = vadd.f32 %v2949, %v3378
  %3380 = vdwg.mxu0
  %3381 = vmatpush.msra.mxu0 0.0
  %3382 = vmatpush.msra.mxu0 0.0
  %3383 = vmatpush.msra.mxu0 0.0
  %3384 = vmatpush.msra.mxu0 0.0
  %3385 = vmatpush.msra.mxu0 0.0
  %3386 = vmatpush.msra.mxu0 0.0
  %3387 = vmatpush.msra.mxu0 %v2946
  %3388 = vmatpush.msra.mxu0 %v2944
  %3389 = vmatpush.msra.mxu0 %v2942
  %3390 = vmatpush.msra.mxu0 %v2940
  %3391 = vmatpush.msra.mxu0 %v2938
  %3392 = vmatpush.msra.mxu0 %v2936
  %3393 = vmatpush.msra.mxu0 %v2934
  %3394 = vmatpush.msra.mxu0 %v2932
  %3395 = vmatpush.msra.mxu0 %v2930
  %3396 = vmatpush.msra.mxu0 %v2928
  %3397 = vmatmul.f32.gmra.mxu0 %v3359
  %v3398 = vpop.f32.mrf.mxu0
  %v3399 = vadd.f32 %v2950, %v3398
  %3400 = vdwg.mxu0
  %3402 = vrot.lane.b32.xlu0 %v3379, 32
  %v3403 = vpop.permute.xlu0 %3402
  %v3405 = vadd.f32 %v3379, %v3403
  %v3406 = vxor.u32 %v3405, 2147483648
  %v3407 = vmul.f32 %v3406, 1.442695
  %v3408 = vpow.pop %v3407
  %v3409 = vadd.f32 %v3408, 1.0
  %v3410 = vrcp.pop %v3409
  %v3411 = vmul.f32 %v3409, %v3410
  %v3412 = vsub.f32 1.0, %v3411
  %v3413 = vmul.f32 %v3410, %v3412
  %v3414 = vadd.f32 %v3410, %v3413
  %vm3415 = vweird.f32 %v3409
  %vm3416 = vweird.f32 %v3410
  %vm3417 = vmor %vm3415, %vm3416
  %v3418 = vsel %vm3417, %v3410, %v3414
  %v3419 = vand.u32 2147483647, %v3409
  %vm3420 = vcmp.eq.f32.partialorder %v3419, 8.507059e+37
  %v3421 = vand.u32 %v3409, 2147483648
  %v3422 = vor.u32 1.1754944e-38, %v3421
  %v3423 = vsel %vm3420, %v3422, %v3418
  %v3424 = vmul.f32 1.0, %v3423
  %3426 = vrot.lane.b32.xlu0 %v3399, 32
  %v3427 = vpop.permute.xlu0 %3426
  %v3429 = vadd.f32 %v3379, %v3427
  %v3430 = vxor.u32 %v3429, 2147483648
  %v3431 = vmul.f32 %v3430, 1.442695
  %v3432 = vpow.pop %v3431
  %v3433 = vadd.f32 %v3432, 1.0
  %v3434 = vrcp.pop %v3433
  %v3435 = vmul.f32 %v3433, %v3434
  %v3436 = vsub.f32 1.0, %v3435
  %v3437 = vmul.f32 %v3434, %v3436
  %v3438 = vadd.f32 %v3434, %v3437
  %vm3439 = vweird.f32 %v3433
  %vm3440 = vweird.f32 %v3434
  %vm3441 = vmor %vm3439, %vm3440
  %v3442 = vsel %vm3441, %v3434, %v3438
  %v3443 = vand.u32 2147483647, %v3433
  %vm3444 = vcmp.eq.f32.partialorder %v3443, 8.507059e+37
  %v3445 = vand.u32 %v3433, 2147483648
  %v3446 = vor.u32 1.1754944e-38, %v3445
  %v3447 = vsel %vm3444, %v3446, %v3442
  %v3448 = vmul.f32 1.0, %v3447
  %3449 = vrot.lane.b32.xlu0 %v3399, 96
  %v3450 = vpop.permute.xlu0 %3449
  %v3452 = vmul.f32 %v3424, %v3450
  %3454 = vrot.lane.b32.xlu0 %v3452, 64
  %v3455 = vpop.permute.xlu0 %3454
  %v3457 = vadd.f32 %v3379, %v3455
  %v3458 = vtanh.pop %v3457
  %v3459 = vsub.f32 1.0, %v3448
  %3461 = vrot.lane.b32.xlu0 %v3458, 96
  %v3462 = vpop.permute.xlu0 %3461
  %v3464 = vmul.f32 %v3459, %v3462
  %v3465 = vmul.f32 %v3448, %v3063
  %v3466 = vadd.f32 %v3464, %v3465
  %3468 = vrot.lane.b32.xlu0 %v3466, 96
  %v3469 = vpop.permute.xlu0 %3468
  %v3471 = vsel %vm88, %v3469, %v3200
  %v3473 = vsel %vm100, %v3471, 0
  %3475 = vmatpush.msra.mxu0 0.0
  %3476 = vmatpush.msra.mxu0 0.0
  %3477 = vmatpush.msra.mxu0 0.0
  %3478 = vmatpush.msra.mxu0 0.0
  %3479 = vmatpush.msra.mxu0 0.0
  %3480 = vmatpush.msra.mxu0 0.0
  %3481 = vmatpush.msra.mxu0 0.0
  %3482 = vmatpush.msra.mxu0 0.0
  %3483 = vmatpush.msra.mxu0 %v3083
  %3484 = vmatpush.msra.mxu0 %v3081
  %3485 = vmatpush.msra.mxu0 %v3079
  %3486 = vmatpush.msra.mxu0 %v3077
  %3487 = vmatpush.msra.mxu0 %v3075
  %3488 = vmatpush.msra.mxu0 %v3073
  %3489 = vmatpush.msra.mxu0 %v3071
  %3490 = vmatpush.msra.mxu0 %v3069
  %3491 = vmatmul.f32.gmra.mxu0 %v3473
  %v3492 = vpop.f32.mrf.mxu0
  %v3493 = vadd.f32 %v3088, %v3492
  %3494 = vdwg.mxu0
  %3495 = vmatpush.msra.mxu0 0.0
  %3496 = vmatpush.msra.mxu0 0.0
  %3497 = vmatpush.msra.mxu0 0.0
  %3498 = vmatpush.msra.mxu0 0.0
  %3499 = vmatpush.msra.mxu0 0.0
  %3500 = vmatpush.msra.mxu0 0.0
  %3501 = vmatpush.msra.mxu0 0.0
  %3502 = vmatpush.msra.mxu0 0.0
  %3503 = vmatpush.msra.mxu0 %v3084
  %3504 = vmatpush.msra.mxu0 %v3082
  %3505 = vmatpush.msra.mxu0 %v3080
  %3506 = vmatpush.msra.mxu0 %v3078
  %3507 = vmatpush.msra.mxu0 %v3076
  %3508 = vmatpush.msra.mxu0 %v3074
  %3509 = vmatpush.msra.mxu0 %v3072
  %3510 = vmatpush.msra.mxu0 %v3070
  %3511 = vmatmul.f32.gmra.mxu0 %v3473
  %v3512 = vpop.f32.mrf.mxu0
  %v3513 = vadd.f32 %v3089, %v3512
  %3514 = vdwg.mxu0
  %3516 = vrot.lane.b32.xlu0 %v3493, 32
  %v3517 = vpop.permute.xlu0 %3516
  %v3519 = vadd.f32 %v3493, %v3517
  %v3520 = vxor.u32 %v3519, 2147483648
  %v3521 = vmul.f32 %v3520, 1.442695
  %v3522 = vpow.pop %v3521
  %v3523 = vadd.f32 %v3522, 1.0
  %v3524 = vrcp.pop %v3523
  %v3525 = vmul.f32 %v3523, %v3524
  %v3526 = vsub.f32 1.0, %v3525
  %v3527 = vmul.f32 %v3524, %v3526
  %v3528 = vadd.f32 %v3524, %v3527
  %vm3529 = vweird.f32 %v3523
  %vm3530 = vweird.f32 %v3524
  %vm3531 = vmor %vm3529, %vm3530
  %v3532 = vsel %vm3531, %v3524, %v3528
  %v3533 = vand.u32 2147483647, %v3523
  %vm3534 = vcmp.eq.f32.partialorder %v3533, 8.507059e+37
  %v3535 = vand.u32 %v3523, 2147483648
  %v3536 = vor.u32 1.1754944e-38, %v3535
  %v3537 = vsel %vm3534, %v3536, %v3532
  %v3538 = vmul.f32 1.0, %v3537
  %3540 = vrot.lane.b32.xlu0 %v3513, 32
  %v3541 = vpop.permute.xlu0 %3540
  %v3543 = vadd.f32 %v3493, %v3541
  %v3544 = vxor.u32 %v3543, 2147483648
  %v3545 = vmul.f32 %v3544, 1.442695
  %v3546 = vpow.pop %v3545
  %v3547 = vadd.f32 %v3546, 1.0
  %v3548 = vrcp.pop %v3547
  %v3549 = vmul.f32 %v3547, %v3548
  %v3550 = vsub.f32 1.0, %v3549
  %v3551 = vmul.f32 %v3548, %v3550
  %v3552 = vadd.f32 %v3548, %v3551
  %vm3553 = vweird.f32 %v3547
  %vm3554 = vweird.f32 %v3548
  %vm3555 = vmor %vm3553, %vm3554
  %v3556 = vsel %vm3555, %v3548, %v3552
  %v3557 = vand.u32 2147483647, %v3547
  %vm3558 = vcmp.eq.f32.partialorder %v3557, 8.507059e+37
  %v3559 = vand.u32 %v3547, 2147483648
  %v3560 = vor.u32 1.1754944e-38, %v3559
  %v3561 = vsel %vm3558, %v3560, %v3556
  %v3562 = vmul.f32 1.0, %v3561
  %3563 = vrot.lane.b32.xlu0 %v3513, 96
  %v3564 = vpop.permute.xlu0 %3563
  %v3566 = vmul.f32 %v3538, %v3564
  %3568 = vrot.lane.b32.xlu0 %v3566, 64
  %v3569 = vpop.permute.xlu0 %3568
  %v3571 = vadd.f32 %v3493, %v3569
  %v3572 = vtanh.pop %v3571
  %v3573 = vsub.f32 1.0, %v3562
  %3575 = vrot.lane.b32.xlu0 %v3572, 96
  %v3576 = vpop.permute.xlu0 %3575
  %v3578 = vmul.f32 %v3573, %v3576
  %v3579 = vmul.f32 %v3562, %v3200
  %v3580 = vadd.f32 %v3578, %v3579
  %3582 = vrot.lane.b32.xlu0 %v3580, 96
  %v3583 = vpop.permute.xlu0 %3582
  %v3584 = vsel %vm88, %v3583, 0
  %3586 = vmatpush.xpose.msra.mxu0 0.0
  %3587 = vmatpush.xpose.msra.mxu0 0.0
  %3588 = vmatpush.xpose.msra.mxu0 0.0
  %3589 = vmatpush.xpose.msra.mxu0 0.0
  %3590 = vmatpush.xpose.msra.mxu0 0.0
  %3591 = vmatpush.xpose.msra.mxu0 0.0
  %3592 = vmatpush.xpose.msra.mxu0 0.0
  %3593 = vmatpush.xpose.msra.mxu0 0.0
  %3594 = vmatpush.xpose.msra.mxu0 0.0
  %3595 = vmatpush.xpose.msra.mxu0 0.0
  %3596 = vmatpush.xpose.msra.mxu0 0.0
  %3597 = vmatpush.xpose.msra.mxu0 0.0
  %3598 = vmatpush.xpose.msra.mxu0 0.0
  %3599 = vmatpush.xpose.msra.mxu0 0.0
  %3600 = vmatpush.xpose.msra.mxu0 0.0
  %3601 = vmatpush.xpose.msra.mxu0 %v2895
  %3602 = vmatmul.f32.gmra.mxu0 %v3584
  %v3603 = vpop.f32.mrf.mxu0
  %v3604 = vadd.f32 0.0, %v3603
  %3605 = vdwg.mxu0
  %v3606 = vsel %vm3226, %v3604, -inf
  %3607 = vmax.xlane.f32.xlu0 %v3606
  %v3608 = vpop.xlane.xlu0 %3607
  %v3609 = vsub.f32 %v3604, %v3608
  %v3610 = vmul.f32 %v3609, 1.442695
  %v3611 = vpow.pop %v3610
  %v3612 = vsel %vm3226, %v3611, 0.0
  %3613 = vadd.xlane.f32.xlu0 %v3612
  %v3614 = vpop.xlane.xlu0 %3613
  %v3615 = vrcp.pop %v3614
  %v3616 = vmul.f32 %v3611, %v3615
  %v3618 = vsel %vm3242, %v3616, 0
  %3620 = vmatpush.msra.mxu0 0.0
  %3621 = vmatpush.msra.mxu0 0.0
  %3622 = vmatpush.msra.mxu0 0.0
  %3623 = vmatpush.msra.mxu0 0.0
  %3624 = vmatpush.msra.mxu0 0.0
  %3625 = vmatpush.msra.mxu0 0.0
  %3626 = vmatpush.msra.mxu0 0.0
  %3627 = vmatpush.msra.mxu0 0.0
  %3628 = vmatpush.msra.mxu0 0.0
  %3629 = vmatpush.msra.mxu0 0.0
  %3630 = vmatpush.msra.mxu0 0.0
  %3631 = vmatpush.msra.mxu0 0.0
  %3632 = vmatpush.msra.mxu0 0.0
  %3633 = vmatpush.msra.mxu0 0.0
  %3634 = vmatpush.msra.mxu0 0.0
  %3635 = vmatpush.msra.mxu0 %v2915
  %3636 = vmatmul.f32.gmra.mxu0 %v3618
  %v3637 = vpop.f32.mrf.mxu0
  %v3638 = vadd.f32 0.0, %v3637
  %3639 = vdwg.mxu0
  %3640 = vmatpush.msra.mxu0 0.0
  %3641 = vmatpush.msra.mxu0 0.0
  %3642 = vmatpush.msra.mxu0 0.0
  %3643 = vmatpush.msra.mxu0 0.0
  %3644 = vmatpush.msra.mxu0 0.0
  %3645 = vmatpush.msra.mxu0 0.0
  %3646 = vmatpush.msra.mxu0 0.0
  %3647 = vmatpush.msra.mxu0 0.0
  %3648 = vmatpush.msra.mxu0 0.0
  %3649 = vmatpush.msra.mxu0 0.0
  %3650 = vmatpush.msra.mxu0 0.0
  %3651 = vmatpush.msra.mxu0 0.0
  %3652 = vmatpush.msra.mxu0 %v3241
  %3653 = vmatpush.msra.mxu0 %v3240
  %3654 = vmatpush.msra.mxu0 %v3239
  %3655 = vmatpush.msra.mxu0 %v3238
  %3656 = vmatmul.f32.gmra.mxu0 %v3584
  %v3657 = vpop.f32.mrf.mxu0
  %v3658 = vadd.f32 %v3638, %v3657
  %3659 = vdwg.mxu0
  %v3660 = vadd.f32 %v3658, %v3286
  %v3661 = vtanh.pop %v3660
  %v3663 = vsel %vm88, %v3661, 0
  %3665 = vmatpush.msra.mxu0 0.0
  %3666 = vmatpush.msra.mxu0 0.0
  %3667 = vmatpush.msra.mxu0 0.0
  %3668 = vmatpush.msra.mxu0 0.0
  %3669 = vmatpush.msra.mxu0 0.0
  %3670 = vmatpush.msra.mxu0 0.0
  %3671 = vmatpush.msra.mxu0 0.0
  %3672 = vmatpush.msra.mxu0 0.0
  %3673 = vmatpush.msra.mxu0 0.0
  %3674 = vmatpush.msra.mxu0 0.0
  %3675 = vmatpush.msra.mxu0 0.0
  %3676 = vmatpush.msra.mxu0 0.0
  %3677 = vmatpush.msra.mxu0 %v3292
  %3678 = vmatpush.msra.mxu0 %v3291
  %3679 = vmatpush.msra.mxu0 %v3290
  %3680 = vmatpush.msra.mxu0 %v3289
  %3681 = vmatmul.f32.gmra.mxu0 %v3663
  %v3682 = vpop.f32.mrf.mxu0
  %v3683 = vadd.f32 %v3293, %v3682
  %3684 = vdwg.mxu0
  %v3685 = vsel %vm3317, %v3683, -inf
  %3686 = vmax.xlane.f32.xlu0 %v3685
  %v3687 = vpop.xlane.xlu0 %3686
  %v3688 = vsub.f32 %v3683, %v3687
  %v3689 = vmul.f32 %v3688, 1.442695
  %v3690 = vpow.pop %v3689
  %v3691 = vsel %vm3317, %v3690, 0.0
  %3692 = vadd.xlane.f32.xlu0 %v3691
  %v3693 = vpop.xlane.xlu0 %3692
  %v3694 = vrcp.pop %v3693
  %v3695 = vmul.f32 %v3693, %v3694
  %v3696 = vsub.f32 1.0, %v3695
  %v3697 = vmul.f32 %v3694, %v3696
  %v3698 = vadd.f32 %v3694, %v3697
  %vm3699 = vweird.f32 %v3693
  %vm3700 = vweird.f32 %v3694
  %vm3701 = vmor %vm3699, %vm3700
  %v3702 = vsel %vm3701, %v3694, %v3698
  %v3703 = vand.u32 2147483647, %v3693
  %vm3704 = vcmp.eq.f32.partialorder %v3703, 8.507059e+37
  %v3705 = vand.u32 %v3693, 2147483648
  %v3706 = vor.u32 1.1754944e-38, %v3705
  %v3707 = vsel %vm3704, %v3706, %v3702
  %v3708 = vmul.f32 1.0, %v3707
  %vm3709 = vcmp.ge.f32.partialorder %v3683, %v3687
  %v3710 = vsel %vm3709, %v2917, 48.0
  %v3711 = vsel %vm3317, %v3710, inf
  %3712 = vmin.xlane.f32.xlu0 %v3711
  %v3713 = vpop.xlane.xlu0 %3712
  %vm3714 = vcmp.eq.s32.totalorder %v50, 1
  %v3715 = vcvt.f32.s32.to.zero.pseudo %v3713
  %v3716 = vsel %vm3714, %v3715, %v3349
  %v3717 = vsel %vm3714, %v3708, %v3350
  %vm3718 = vcmp.eq.f32.partialorder %v2917, %v3713
  %v3719 = vsel %vm3718, 1, 0
  %v3720 = vcvt.s32.f32 %v3719
  %3721 = vrot.lane.b32.xlu0 %v3466, 16
  %v3722 = vpop.permute.xlu0 %3721
  %v3724 = vsel %vm64, %v3720, %v3722
  %v3726 = vsel %vm2953, %v3724, 0
  %3728 = vmatpush.msra.mxu0 0.0
  %3729 = vmatpush.msra.mxu0 0.0
  %3730 = vmatpush.msra.mxu0 0.0
  %3731 = vmatpush.msra.mxu0 0.0
  %3732 = vmatpush.msra.mxu0 0.0
  %3733 = vmatpush.msra.mxu0 0.0
  %3734 = vmatpush.msra.mxu0 %v2945
  %3735 = vmatpush.msra.mxu0 %v2943
  %3736 = vmatpush.msra.mxu0 %v2941
  %3737 = vmatpush.msra.mxu0 %v2939
  %3738 = vmatpush.msra.mxu0 %v2937
  %3739 = vmatpush.msra.mxu0 %v2935
  %3740 = vmatpush.msra.mxu0 %v2933
  %3741 = vmatpush.msra.mxu0 %v2931
  %3742 = vmatpush.msra.mxu0 %v2929
  %3743 = vmatpush.msra.mxu0 %v2927
  %3744 = vmatmul.f32.gmra.mxu0 %v3726
  %v3745 = vpop.f32.mrf.mxu0
  %v3746 = vadd.f32 %v2949, %v3745
  %3747 = vdwg.mxu0
  %3748 = vmatpush.msra.mxu0 0.0
  %3749 = vmatpush.msra.mxu0 0.0
  %3750 = vmatpush.msra.mxu0 0.0
  %3751 = vmatpush.msra.mxu0 0.0
  %3752 = vmatpush.msra.mxu0 0.0
  %3753 = vmatpush.msra.mxu0 0.0
  %3754 = vmatpush.msra.mxu0 %v2946
  %3755 = vmatpush.msra.mxu0 %v2944
  %3756 = vmatpush.msra.mxu0 %v2942
  %3757 = vmatpush.msra.mxu0 %v2940
  %3758 = vmatpush.msra.mxu0 %v2938
  %3759 = vmatpush.msra.mxu0 %v2936
  %3760 = vmatpush.msra.mxu0 %v2934
  %3761 = vmatpush.msra.mxu0 %v2932
  %3762 = vmatpush.msra.mxu0 %v2930
  %3763 = vmatpush.msra.mxu0 %v2928
  %3764 = vmatmul.f32.gmra.mxu0 %v3726
  %v3765 = vpop.f32.mrf.mxu0
  %v3766 = vadd.f32 %v2950, %v3765
  %3767 = vdwg.mxu0
  %3769 = vrot.lane.b32.xlu0 %v3746, 32
  %v3770 = vpop.permute.xlu0 %3769
  %v3772 = vadd.f32 %v3746, %v3770
  %v3773 = vxor.u32 %v3772, 2147483648
  %v3774 = vmul.f32 %v3773, 1.442695
  %v3775 = vpow.pop %v3774
  %v3776 = vadd.f32 %v3775, 1.0
  %v3777 = vrcp.pop %v3776
  %v3778 = vmul.f32 %v3776, %v3777
  %v3779 = vsub.f32 1.0, %v3778
  %v3780 = vmul.f32 %v3777, %v3779
  %v3781 = vadd.f32 %v3777, %v3780
  %vm3782 = vweird.f32 %v3776
  %vm3783 = vweird.f32 %v3777
  %vm3784 = vmor %vm3782, %vm3783
  %v3785 = vsel %vm3784, %v3777, %v3781
  %v3786 = vand.u32 2147483647, %v3776
  %vm3787 = vcmp.eq.f32.partialorder %v3786, 8.507059e+37
  %v3788 = vand.u32 %v3776, 2147483648
  %v3789 = vor.u32 1.1754944e-38, %v3788
  %v3790 = vsel %vm3787, %v3789, %v3785
  %v3791 = vmul.f32 1.0, %v3790
  %3793 = vrot.lane.b32.xlu0 %v3766, 32
  %v3794 = vpop.permute.xlu0 %3793
  %v3796 = vadd.f32 %v3746, %v3794
  %v3797 = vxor.u32 %v3796, 2147483648
  %v3798 = vmul.f32 %v3797, 1.442695
  %v3799 = vpow.pop %v3798
  %v3800 = vadd.f32 %v3799, 1.0
  %v3801 = vrcp.pop %v3800
  %v3802 = vmul.f32 %v3800, %v3801
  %v3803 = vsub.f32 1.0, %v3802
  %v3804 = vmul.f32 %v3801, %v3803
  %v3805 = vadd.f32 %v3801, %v3804
  %vm3806 = vweird.f32 %v3800
  %vm3807 = vweird.f32 %v3801
  %vm3808 = vmor %vm3806, %vm3807
  %v3809 = vsel %vm3808, %v3801, %v3805
  %v3810 = vand.u32 2147483647, %v3800
  %vm3811 = vcmp.eq.f32.partialorder %v3810, 8.507059e+37
  %v3812 = vand.u32 %v3800, 2147483648
  %v3813 = vor.u32 1.1754944e-38, %v3812
  %v3814 = vsel %vm3811, %v3813, %v3809
  %v3815 = vmul.f32 1.0, %v3814
  %3816 = vrot.lane.b32.xlu0 %v3766, 96
  %v3817 = vpop.permute.xlu0 %3816
  %v3819 = vmul.f32 %v3791, %v3817
  %3821 = vrot.lane.b32.xlu0 %v3819, 64
  %v3822 = vpop.permute.xlu0 %3821
  %v3824 = vadd.f32 %v3746, %v3822
  %v3825 = vtanh.pop %v3824
  %v3826 = vsub.f32 1.0, %v3815
  %3828 = vrot.lane.b32.xlu0 %v3825, 96
  %v3829 = vpop.permute.xlu0 %3828
  %v3831 = vmul.f32 %v3826, %v3829
  %v3832 = vmul.f32 %v3815, %v3466
  %v3833 = vadd.f32 %v3831, %v3832
  %3835 = vrot.lane.b32.xlu0 %v3833, 96
  %v3836 = vpop.permute.xlu0 %3835
  %v3838 = vsel %vm88, %v3836, %v3580
  %v3840 = vsel %vm100, %v3838, 0
  %3842 = vmatpush.msra.mxu0 0.0
  %3843 = vmatpush.msra.mxu0 0.0
  %3844 = vmatpush.msra.mxu0 0.0
  %3845 = vmatpush.msra.mxu0 0.0
  %3846 = vmatpush.msra.mxu0 0.0
  %3847 = vmatpush.msra.mxu0 0.0
  %3848 = vmatpush.msra.mxu0 0.0
  %3849 = vmatpush.msra.mxu0 0.0
  %3850 = vmatpush.msra.mxu0 %v3083
  %3851 = vmatpush.msra.mxu0 %v3081
  %3852 = vmatpush.msra.mxu0 %v3079
  %3853 = vmatpush.msra.mxu0 %v3077
  %3854 = vmatpush.msra.mxu0 %v3075
  %3855 = vmatpush.msra.mxu0 %v3073
  %3856 = vmatpush.msra.mxu0 %v3071
  %3857 = vmatpush.msra.mxu0 %v3069
  %3858 = vmatmul.f32.gmra.mxu0 %v3840
  %v3859 = vpop.f32.mrf.mxu0
  %v3860 = vadd.f32 %v3088, %v3859
  %3861 = vdwg.mxu0
  %3862 = vmatpush.msra.mxu0 0.0
  %3863 = vmatpush.msra.mxu0 0.0
  %3864 = vmatpush.msra.mxu0 0.0
  %3865 = vmatpush.msra.mxu0 0.0
  %3866 = vmatpush.msra.mxu0 0.0
  %3867 = vmatpush.msra.mxu0 0.0
  %3868 = vmatpush.msra.mxu0 0.0
  %3869 = vmatpush.msra.mxu0 0.0
  %3870 = vmatpush.msra.mxu0 %v3084
  %3871 = vmatpush.msra.mxu0 %v3082
  %3872 = vmatpush.msra.mxu0 %v3080
  %3873 = vmatpush.msra.mxu0 %v3078
  %3874 = vmatpush.msra.mxu0 %v3076
  %3875 = vmatpush.msra.mxu0 %v3074
  %3876 = vmatpush.msra.mxu0 %v3072
  %3877 = vmatpush.msra.mxu0 %v3070
  %3878 = vmatmul.f32.gmra.mxu0 %v3840
  %v3879 = vpop.f32.mrf.mxu0
  %v3880 = vadd.f32 %v3089, %v3879
  %3881 = vdwg.mxu0
  %3883 = vrot.lane.b32.xlu0 %v3860, 32
  %v3884 = vpop.permute.xlu0 %3883
  %v3886 = vadd.f32 %v3860, %v3884
  %v3887 = vxor.u32 %v3886, 2147483648
  %v3888 = vmul.f32 %v3887, 1.442695
  %v3889 = vpow.pop %v3888
  %v3890 = vadd.f32 %v3889, 1.0
  %v3891 = vrcp.pop %v3890
  %v3892 = vmul.f32 %v3890, %v3891
  %v3893 = vsub.f32 1.0, %v3892
  %v3894 = vmul.f32 %v3891, %v3893
  %v3895 = vadd.f32 %v3891, %v3894
  %vm3896 = vweird.f32 %v3890
  %vm3897 = vweird.f32 %v3891
  %vm3898 = vmor %vm3896, %vm3897
  %v3899 = vsel %vm3898, %v3891, %v3895
  %v3900 = vand.u32 2147483647, %v3890
  %vm3901 = vcmp.eq.f32.partialorder %v3900, 8.507059e+37
  %v3902 = vand.u32 %v3890, 2147483648
  %v3903 = vor.u32 1.1754944e-38, %v3902
  %v3904 = vsel %vm3901, %v3903, %v3899
  %v3905 = vmul.f32 1.0, %v3904
  %3907 = vrot.lane.b32.xlu0 %v3880, 32
  %v3908 = vpop.permute.xlu0 %3907
  %v3910 = vadd.f32 %v3860, %v3908
  %v3911 = vxor.u32 %v3910, 2147483648
  %v3912 = vmul.f32 %v3911, 1.442695
  %v3913 = vpow.pop %v3912
  %v3914 = vadd.f32 %v3913, 1.0
  %v3915 = vrcp.pop %v3914
  %v3916 = vmul.f32 %v3914, %v3915
  %v3917 = vsub.f32 1.0, %v3916
  %v3918 = vmul.f32 %v3915, %v3917
  %v3919 = vadd.f32 %v3915, %v3918
  %vm3920 = vweird.f32 %v3914
  %vm3921 = vweird.f32 %v3915
  %vm3922 = vmor %vm3920, %vm3921
  %v3923 = vsel %vm3922, %v3915, %v3919
  %v3924 = vand.u32 2147483647, %v3914
  %vm3925 = vcmp.eq.f32.partialorder %v3924, 8.507059e+37
  %v3926 = vand.u32 %v3914, 2147483648
  %v3927 = vor.u32 1.1754944e-38, %v3926
  %v3928 = vsel %vm3925, %v3927, %v3923
  %v3929 = vmul.f32 1.0, %v3928
  %3930 = vrot.lane.b32.xlu0 %v3880, 96
  %v3931 = vpop.permute.xlu0 %3930
  %v3933 = vmul.f32 %v3905, %v3931
  %3935 = vrot.lane.b32.xlu0 %v3933, 64
  %v3936 = vpop.permute.xlu0 %3935
  %v3938 = vadd.f32 %v3860, %v3936
  %v3939 = vtanh.pop %v3938
  %v3940 = vsub.f32 1.0, %v3929
  %3942 = vrot.lane.b32.xlu0 %v3939, 96
  %v3943 = vpop.permute.xlu0 %3942
  %v3945 = vmul.f32 %v3940, %v3943
  %v3946 = vmul.f32 %v3929, %v3580
  %v3947 = vadd.f32 %v3945, %v3946
  %3949 = vrot.lane.b32.xlu0 %v3947, 96
  %v3950 = vpop.permute.xlu0 %3949
  %v3951 = vsel %vm88, %v3950, 0
  %3953 = vmatpush.xpose.msra.mxu0 0.0
  %3954 = vmatpush.xpose.msra.mxu0 0.0
  %3955 = vmatpush.xpose.msra.mxu0 0.0
  %3956 = vmatpush.xpose.msra.mxu0 0.0
  %3957 = vmatpush.xpose.msra.mxu0 0.0
  %3958 = vmatpush.xpose.msra.mxu0 0.0
  %3959 = vmatpush.xpose.msra.mxu0 0.0
  %3960 = vmatpush.xpose.msra.mxu0 0.0
  %3961 = vmatpush.xpose.msra.mxu0 0.0
  %3962 = vmatpush.xpose.msra.mxu0 0.0
  %3963 = vmatpush.xpose.msra.mxu0 0.0
  %3964 = vmatpush.xpose.msra.mxu0 0.0
  %3965 = vmatpush.xpose.msra.mxu0 0.0
  %3966 = vmatpush.xpose.msra.mxu0 0.0
  %3967 = vmatpush.xpose.msra.mxu0 0.0
  %3968 = vmatpush.xpose.msra.mxu0 %v2895
  %3969 = vmatmul.f32.gmra.mxu0 %v3951
  %v3970 = vpop.f32.mrf.mxu0
  %v3971 = vadd.f32 0.0, %v3970
  %3972 = vdwg.mxu0
  %v3973 = vsel %vm3226, %v3971, -inf
  %3974 = vmax.xlane.f32.xlu0 %v3973
  %v3975 = vpop.xlane.xlu0 %3974
  %v3976 = vsub.f32 %v3971, %v3975
  %v3977 = vmul.f32 %v3976, 1.442695
  %v3978 = vpow.pop %v3977
  %v3979 = vsel %vm3226, %v3978, 0.0
  %3980 = vadd.xlane.f32.xlu0 %v3979
  %v3981 = vpop.xlane.xlu0 %3980
  %v3982 = vrcp.pop %v3981
  %v3983 = vmul.f32 %v3978, %v3982
  %v3985 = vsel %vm3242, %v3983, 0
  %3987 = vmatpush.msra.mxu0 0.0
  %3988 = vmatpush.msra.mxu0 0.0
  %3989 = vmatpush.msra.mxu0 0.0
  %3990 = vmatpush.msra.mxu0 0.0
  %3991 = vmatpush.msra.mxu0 0.0
  %3992 = vmatpush.msra.mxu0 0.0
  %3993 = vmatpush.msra.mxu0 0.0
  %3994 = vmatpush.msra.mxu0 0.0
  %3995 = vmatpush.msra.mxu0 0.0
  %3996 = vmatpush.msra.mxu0 0.0
  %3997 = vmatpush.msra.mxu0 0.0
  %3998 = vmatpush.msra.mxu0 0.0
  %3999 = vmatpush.msra.mxu0 0.0
  %4000 = vmatpush.msra.mxu0 0.0
  %4001 = vmatpush.msra.mxu0 0.0
  %4002 = vmatpush.msra.mxu0 %v2915
  %4003 = vmatmul.f32.gmra.mxu0 %v3985
  %v4004 = vpop.f32.mrf.mxu0
  %v4005 = vadd.f32 0.0, %v4004
  %4006 = vdwg.mxu0
  %4007 = vmatpush.msra.mxu0 0.0
  %4008 = vmatpush.msra.mxu0 0.0
  %4009 = vmatpush.msra.mxu0 0.0
  %4010 = vmatpush.msra.mxu0 0.0
  %4011 = vmatpush.msra.mxu0 0.0
  %4012 = vmatpush.msra.mxu0 0.0
  %4013 = vmatpush.msra.mxu0 0.0
  %4014 = vmatpush.msra.mxu0 0.0
  %4015 = vmatpush.msra.mxu0 0.0
  %4016 = vmatpush.msra.mxu0 0.0
  %4017 = vmatpush.msra.mxu0 0.0
  %4018 = vmatpush.msra.mxu0 0.0
  %4019 = vmatpush.msra.mxu0 %v3241
  %4020 = vmatpush.msra.mxu0 %v3240
  %4021 = vmatpush.msra.mxu0 %v3239
  %4022 = vmatpush.msra.mxu0 %v3238
  %4023 = vmatmul.f32.gmra.mxu0 %v3951
  %v4024 = vpop.f32.mrf.mxu0
  %v4025 = vadd.f32 %v4005, %v4024
  %4026 = vdwg.mxu0
  %v4027 = vadd.f32 %v4025, %v3286
  %v4028 = vtanh.pop %v4027
  %v4030 = vsel %vm88, %v4028, 0
  %4032 = vmatpush.msra.mxu0 0.0
  %4033 = vmatpush.msra.mxu0 0.0
  %4034 = vmatpush.msra.mxu0 0.0
  %4035 = vmatpush.msra.mxu0 0.0
  %4036 = vmatpush.msra.mxu0 0.0
  %4037 = vmatpush.msra.mxu0 0.0
  %4038 = vmatpush.msra.mxu0 0.0
  %4039 = vmatpush.msra.mxu0 0.0
  %4040 = vmatpush.msra.mxu0 0.0
  %4041 = vmatpush.msra.mxu0 0.0
  %4042 = vmatpush.msra.mxu0 0.0
  %4043 = vmatpush.msra.mxu0 0.0
  %4044 = vmatpush.msra.mxu0 %v3292
  %4045 = vmatpush.msra.mxu0 %v3291
  %4046 = vmatpush.msra.mxu0 %v3290
  %4047 = vmatpush.msra.mxu0 %v3289
  %4048 = vmatmul.f32.gmra.mxu0 %v4030
  %v4049 = vpop.f32.mrf.mxu0
  %v4050 = vadd.f32 %v3293, %v4049
  %4051 = vdwg.mxu0
  %v4052 = vsel %vm3317, %v4050, -inf
  %4053 = vmax.xlane.f32.xlu0 %v4052
  %v4054 = vpop.xlane.xlu0 %4053
  %v4055 = vsub.f32 %v4050, %v4054
  %v4056 = vmul.f32 %v4055, 1.442695
  %v4057 = vpow.pop %v4056
  %v4058 = vsel %vm3317, %v4057, 0.0
  %4059 = vadd.xlane.f32.xlu0 %v4058
  %v4060 = vpop.xlane.xlu0 %4059
  %v4061 = vrcp.pop %v4060
  %v4062 = vmul.f32 %v4060, %v4061
  %v4063 = vsub.f32 1.0, %v4062
  %v4064 = vmul.f32 %v4061, %v4063
  %v4065 = vadd.f32 %v4061, %v4064
  %vm4066 = vweird.f32 %v4060
  %vm4067 = vweird.f32 %v4061
  %vm4068 = vmor %vm4066, %vm4067
  %v4069 = vsel %vm4068, %v4061, %v4065
  %v4070 = vand.u32 2147483647, %v4060
  %vm4071 = vcmp.eq.f32.partialorder %v4070, 8.507059e+37
  %v4072 = vand.u32 %v4060, 2147483648
  %v4073 = vor.u32 1.1754944e-38, %v4072
  %v4074 = vsel %vm4071, %v4073, %v4069
  %v4075 = vmul.f32 1.0, %v4074
  %vm4076 = vcmp.ge.f32.partialorder %v4050, %v4054
  %v4077 = vsel %vm4076, %v2917, 48.0
  %v4078 = vsel %vm3317, %v4077, inf
  %4079 = vmin.xlane.f32.xlu0 %v4078
  %v4080 = vpop.xlane.xlu0 %4079
  %vm4081 = vcmp.eq.s32.totalorder %v50, 2
  %v4082 = vcvt.f32.s32.to.zero.pseudo %v4080
  %v4083 = vsel %vm4081, %v4082, %v3716
  %v4084 = vsel %vm4081, %v4075, %v3717
  %vm4085 = vcmp.eq.f32.partialorder %v2917, %v4080
  %v4086 = vsel %vm4085, 1, 0
  %v4087 = vcvt.s32.f32 %v4086
  %4088 = vrot.lane.b32.xlu0 %v3833, 16
  %v4089 = vpop.permute.xlu0 %4088
  %v4091 = vsel %vm64, %v4087, %v4089
  %v4093 = vsel %vm2953, %v4091, 0
  %4095 = vmatpush.msra.mxu0 0.0
  %4096 = vmatpush.msra.mxu0 0.0
  %4097 = vmatpush.msra.mxu0 0.0
  %4098 = vmatpush.msra.mxu0 0.0
  %4099 = vmatpush.msra.mxu0 0.0
  %4100 = vmatpush.msra.mxu0 0.0
  %4101 = vmatpush.msra.mxu0 %v2945
  %4102 = vmatpush.msra.mxu0 %v2943
  %4103 = vmatpush.msra.mxu0 %v2941
  %4104 = vmatpush.msra.mxu0 %v2939
  %4105 = vmatpush.msra.mxu0 %v2937
  %4106 = vmatpush.msra.mxu0 %v2935
  %4107 = vmatpush.msra.mxu0 %v2933
  %4108 = vmatpush.msra.mxu0 %v2931
  %4109 = vmatpush.msra.mxu0 %v2929
  %4110 = vmatpush.msra.mxu0 %v2927
  %4111 = vmatmul.f32.gmra.mxu0 %v4093
  %v4112 = vpop.f32.mrf.mxu0
  %v4113 = vadd.f32 %v2949, %v4112
  %4114 = vdwg.mxu0
  %4115 = vmatpush.msra.mxu0 0.0
  %4116 = vmatpush.msra.mxu0 0.0
  %4117 = vmatpush.msra.mxu0 0.0
  %4118 = vmatpush.msra.mxu0 0.0
  %4119 = vmatpush.msra.mxu0 0.0
  %4120 = vmatpush.msra.mxu0 0.0
  %4121 = vmatpush.msra.mxu0 %v2946
  %4122 = vmatpush.msra.mxu0 %v2944
  %4123 = vmatpush.msra.mxu0 %v2942
  %4124 = vmatpush.msra.mxu0 %v2940
  %4125 = vmatpush.msra.mxu0 %v2938
  %4126 = vmatpush.msra.mxu0 %v2936
  %4127 = vmatpush.msra.mxu0 %v2934
  %4128 = vmatpush.msra.mxu0 %v2932
  %4129 = vmatpush.msra.mxu0 %v2930
  %4130 = vmatpush.msra.mxu0 %v2928
  %4131 = vmatmul.f32.gmra.mxu0 %v4093
  %v4132 = vpop.f32.mrf.mxu0
  %v4133 = vadd.f32 %v2950, %v4132
  %4134 = vdwg.mxu0
  %4136 = vrot.lane.b32.xlu0 %v4113, 32
  %v4137 = vpop.permute.xlu0 %4136
  %v4139 = vadd.f32 %v4113, %v4137
  %v4140 = vxor.u32 %v4139, 2147483648
  %v4141 = vmul.f32 %v4140, 1.442695
  %v4142 = vpow.pop %v4141
  %v4143 = vadd.f32 %v4142, 1.0
  %v4144 = vrcp.pop %v4143
  %v4145 = vmul.f32 %v4143, %v4144
  %v4146 = vsub.f32 1.0, %v4145
  %v4147 = vmul.f32 %v4144, %v4146
  %v4148 = vadd.f32 %v4144, %v4147
  %vm4149 = vweird.f32 %v4143
  %vm4150 = vweird.f32 %v4144
  %vm4151 = vmor %vm4149, %vm4150
  %v4152 = vsel %vm4151, %v4144, %v4148
  %v4153 = vand.u32 2147483647, %v4143
  %vm4154 = vcmp.eq.f32.partialorder %v4153, 8.507059e+37
  %v4155 = vand.u32 %v4143, 2147483648
  %v4156 = vor.u32 1.1754944e-38, %v4155
  %v4157 = vsel %vm4154, %v4156, %v4152
  %v4158 = vmul.f32 1.0, %v4157
  %4160 = vrot.lane.b32.xlu0 %v4133, 32
  %v4161 = vpop.permute.xlu0 %4160
  %v4163 = vadd.f32 %v4113, %v4161
  %v4164 = vxor.u32 %v4163, 2147483648
  %v4165 = vmul.f32 %v4164, 1.442695
  %v4166 = vpow.pop %v4165
  %v4167 = vadd.f32 %v4166, 1.0
  %v4168 = vrcp.pop %v4167
  %v4169 = vmul.f32 %v4167, %v4168
  %v4170 = vsub.f32 1.0, %v4169
  %v4171 = vmul.f32 %v4168, %v4170
  %v4172 = vadd.f32 %v4168, %v4171
  %vm4173 = vweird.f32 %v4167
  %vm4174 = vweird.f32 %v4168
  %vm4175 = vmor %vm4173, %vm4174
  %v4176 = vsel %vm4175, %v4168, %v4172
  %v4177 = vand.u32 2147483647, %v4167
  %vm4178 = vcmp.eq.f32.partialorder %v4177, 8.507059e+37
  %v4179 = vand.u32 %v4167, 2147483648
  %v4180 = vor.u32 1.1754944e-38, %v4179
  %v4181 = vsel %vm4178, %v4180, %v4176
  %v4182 = vmul.f32 1.0, %v4181
  %4183 = vrot.lane.b32.xlu0 %v4133, 96
  %v4184 = vpop.permute.xlu0 %4183
  %v4186 = vmul.f32 %v4158, %v4184
  %4188 = vrot.lane.b32.xlu0 %v4186, 64
  %v4189 = vpop.permute.xlu0 %4188
  %v4191 = vadd.f32 %v4113, %v4189
  %v4192 = vtanh.pop %v4191
  %v4193 = vsub.f32 1.0, %v4182
  %4195 = vrot.lane.b32.xlu0 %v4192, 96
  %v4196 = vpop.permute.xlu0 %4195
  %v4198 = vmul.f32 %v4193, %v4196
  %v4199 = vmul.f32 %v4182, %v3833
  %v4200 = vadd.f32 %v4198, %v4199
  %4202 = vrot.lane.b32.xlu0 %v4200, 96
  %v4203 = vpop.permute.xlu0 %4202
  %v4205 = vsel %vm88, %v4203, %v3947
  %v4207 = vsel %vm100, %v4205, 0
  %4209 = vmatpush.msra.mxu0 0.0
  %4210 = vmatpush.msra.mxu0 0.0
  %4211 = vmatpush.msra.mxu0 0.0
  %4212 = vmatpush.msra.mxu0 0.0
  %4213 = vmatpush.msra.mxu0 0.0
  %4214 = vmatpush.msra.mxu0 0.0
  %4215 = vmatpush.msra.mxu0 0.0
  %4216 = vmatpush.msra.mxu0 0.0
  %4217 = vmatpush.msra.mxu0 %v3083
  %4218 = vmatpush.msra.mxu0 %v3081
  %4219 = vmatpush.msra.mxu0 %v3079
  %4220 = vmatpush.msra.mxu0 %v3077
  %4221 = vmatpush.msra.mxu0 %v3075
  %4222 = vmatpush.msra.mxu0 %v3073
  %4223 = vmatpush.msra.mxu0 %v3071
  %4224 = vmatpush.msra.mxu0 %v3069
  %4225 = vmatmul.f32.gmra.mxu0 %v4207
  %v4226 = vpop.f32.mrf.mxu0
  %v4227 = vadd.f32 %v3088, %v4226
  %4228 = vdwg.mxu0
  %4229 = vmatpush.msra.mxu0 0.0
  %4230 = vmatpush.msra.mxu0 0.0
  %4231 = vmatpush.msra.mxu0 0.0
  %4232 = vmatpush.msra.mxu0 0.0
  %4233 = vmatpush.msra.mxu0 0.0
  %4234 = vmatpush.msra.mxu0 0.0
  %4235 = vmatpush.msra.mxu0 0.0
  %4236 = vmatpush.msra.mxu0 0.0
  %4237 = vmatpush.msra.mxu0 %v3084
  %4238 = vmatpush.msra.mxu0 %v3082
  %4239 = vmatpush.msra.mxu0 %v3080
  %4240 = vmatpush.msra.mxu0 %v3078
  %4241 = vmatpush.msra.mxu0 %v3076
  %4242 = vmatpush.msra.mxu0 %v3074
  %4243 = vmatpush.msra.mxu0 %v3072
  %4244 = vmatpush.msra.mxu0 %v3070
  %4245 = vmatmul.f32.gmra.mxu0 %v4207
  %v4246 = vpop.f32.mrf.mxu0
  %v4247 = vadd.f32 %v3089, %v4246
  %4248 = vdwg.mxu0
  %4250 = vrot.lane.b32.xlu0 %v4227, 32
  %v4251 = vpop.permute.xlu0 %4250
  %v4253 = vadd.f32 %v4227, %v4251
  %v4254 = vxor.u32 %v4253, 2147483648
  %v4255 = vmul.f32 %v4254, 1.442695
  %v4256 = vpow.pop %v4255
  %v4257 = vadd.f32 %v4256, 1.0
  %v4258 = vrcp.pop %v4257
  %v4259 = vmul.f32 %v4257, %v4258
  %v4260 = vsub.f32 1.0, %v4259
  %v4261 = vmul.f32 %v4258, %v4260
  %v4262 = vadd.f32 %v4258, %v4261
  %vm4263 = vweird.f32 %v4257
  %vm4264 = vweird.f32 %v4258
  %vm4265 = vmor %vm4263, %vm4264
  %v4266 = vsel %vm4265, %v4258, %v4262
  %v4267 = vand.u32 2147483647, %v4257
  %vm4268 = vcmp.eq.f32.partialorder %v4267, 8.507059e+37
  %v4269 = vand.u32 %v4257, 2147483648
  %v4270 = vor.u32 1.1754944e-38, %v4269
  %v4271 = vsel %vm4268, %v4270, %v4266
  %v4272 = vmul.f32 1.0, %v4271
  %4274 = vrot.lane.b32.xlu0 %v4247, 32
  %v4275 = vpop.permute.xlu0 %4274
  %v4277 = vadd.f32 %v4227, %v4275
  %v4278 = vxor.u32 %v4277, 2147483648
  %v4279 = vmul.f32 %v4278, 1.442695
  %v4280 = vpow.pop %v4279
  %v4281 = vadd.f32 %v4280, 1.0
  %v4282 = vrcp.pop %v4281
  %v4283 = vmul.f32 %v4281, %v4282
  %v4284 = vsub.f32 1.0, %v4283
  %v4285 = vmul.f32 %v4282, %v4284
  %v4286 = vadd.f32 %v4282, %v4285
  %vm4287 = vweird.f32 %v4281
  %vm4288 = vweird.f32 %v4282
  %vm4289 = vmor %vm4287, %vm4288
  %v4290 = vsel %vm4289, %v4282, %v4286
  %v4291 = vand.u32 2147483647, %v4281
  %vm4292 = vcmp.eq.f32.partialorder %v4291, 8.507059e+37
  %v4293 = vand.u32 %v4281, 2147483648
  %v4294 = vor.u32 1.1754944e-38, %v4293
  %v4295 = vsel %vm4292, %v4294, %v4290
  %v4296 = vmul.f32 1.0, %v4295
  %4297 = vrot.lane.b32.xlu0 %v4247, 96
  %v4298 = vpop.permute.xlu0 %4297
  %v4300 = vmul.f32 %v4272, %v4298
  %4302 = vrot.lane.b32.xlu0 %v4300, 64
  %v4303 = vpop.permute.xlu0 %4302
  %v4305 = vadd.f32 %v4227, %v4303
  %v4306 = vtanh.pop %v4305
  %v4307 = vsub.f32 1.0, %v4296
  %4309 = vrot.lane.b32.xlu0 %v4306, 96
  %v4310 = vpop.permute.xlu0 %4309
  %v4312 = vmul.f32 %v4307, %v4310
  %v4313 = vmul.f32 %v4296, %v3947
  %v4314 = vadd.f32 %v4312, %v4313
  %4316 = vrot.lane.b32.xlu0 %v4314, 96
  %v4317 = vpop.permute.xlu0 %4316
  %v4318 = vsel %vm88, %v4317, 0
  %4320 = vmatpush.xpose.msra.mxu0 0.0
  %4321 = vmatpush.xpose.msra.mxu0 0.0
  %4322 = vmatpush.xpose.msra.mxu0 0.0
  %4323 = vmatpush.xpose.msra.mxu0 0.0
  %4324 = vmatpush.xpose.msra.mxu0 0.0
  %4325 = vmatpush.xpose.msra.mxu0 0.0
  %4326 = vmatpush.xpose.msra.mxu0 0.0
  %4327 = vmatpush.xpose.msra.mxu0 0.0
  %4328 = vmatpush.xpose.msra.mxu0 0.0
  %4329 = vmatpush.xpose.msra.mxu0 0.0
  %4330 = vmatpush.xpose.msra.mxu0 0.0
  %4331 = vmatpush.xpose.msra.mxu0 0.0
  %4332 = vmatpush.xpose.msra.mxu0 0.0
  %4333 = vmatpush.xpose.msra.mxu0 0.0
  %4334 = vmatpush.xpose.msra.mxu0 0.0
  %4335 = vmatpush.xpose.msra.mxu0 %v2895
  %4336 = vmatmul.f32.gmra.mxu0 %v4318
  %v4337 = vpop.f32.mrf.mxu0
  %v4338 = vadd.f32 0.0, %v4337
  %4339 = vdwg.mxu0
  %v4340 = vsel %vm3226, %v4338, -inf
  %4341 = vmax.xlane.f32.xlu0 %v4340
  %v4342 = vpop.xlane.xlu0 %4341
  %v4343 = vsub.f32 %v4338, %v4342
  %v4344 = vmul.f32 %v4343, 1.442695
  %v4345 = vpow.pop %v4344
  %v4346 = vsel %vm3226, %v4345, 0.0
  %4347 = vadd.xlane.f32.xlu0 %v4346
  %v4348 = vpop.xlane.xlu0 %4347
  %v4349 = vrcp.pop %v4348
  %v4350 = vmul.f32 %v4345, %v4349
  %v4352 = vsel %vm3242, %v4350, 0
  %4354 = vmatpush.msra.mxu0 0.0
  %4355 = vmatpush.msra.mxu0 0.0
  %4356 = vmatpush.msra.mxu0 0.0
  %4357 = vmatpush.msra.mxu0 0.0
  %4358 = vmatpush.msra.mxu0 0.0
  %4359 = vmatpush.msra.mxu0 0.0
  %4360 = vmatpush.msra.mxu0 0.0
  %4361 = vmatpush.msra.mxu0 0.0
  %4362 = vmatpush.msra.mxu0 0.0
  %4363 = vmatpush.msra.mxu0 0.0
  %4364 = vmatpush.msra.mxu0 0.0
  %4365 = vmatpush.msra.mxu0 0.0
  %4366 = vmatpush.msra.mxu0 0.0
  %4367 = vmatpush.msra.mxu0 0.0
  %4368 = vmatpush.msra.mxu0 0.0
  %4369 = vmatpush.msra.mxu0 %v2915
  %4370 = vmatmul.f32.gmra.mxu0 %v4352
  %v4371 = vpop.f32.mrf.mxu0
  %v4372 = vadd.f32 0.0, %v4371
  %4373 = vdwg.mxu0
  %4374 = vmatpush.msra.mxu0 0.0
  %4375 = vmatpush.msra.mxu0 0.0
  %4376 = vmatpush.msra.mxu0 0.0
  %4377 = vmatpush.msra.mxu0 0.0
  %4378 = vmatpush.msra.mxu0 0.0
  %4379 = vmatpush.msra.mxu0 0.0
  %4380 = vmatpush.msra.mxu0 0.0
  %4381 = vmatpush.msra.mxu0 0.0
  %4382 = vmatpush.msra.mxu0 0.0
  %4383 = vmatpush.msra.mxu0 0.0
  %4384 = vmatpush.msra.mxu0 0.0
  %4385 = vmatpush.msra.mxu0 0.0
  %4386 = vmatpush.msra.mxu0 %v3241
  %4387 = vmatpush.msra.mxu0 %v3240
  %4388 = vmatpush.msra.mxu0 %v3239
  %4389 = vmatpush.msra.mxu0 %v3238
  %4390 = vmatmul.f32.gmra.mxu0 %v4318
  %v4391 = vpop.f32.mrf.mxu0
  %v4392 = vadd.f32 %v4372, %v4391
  %4393 = vdwg.mxu0
  %v4394 = vadd.f32 %v4392, %v3286
  %v4395 = vtanh.pop %v4394
  %v4397 = vsel %vm88, %v4395, 0
  %4399 = vmatpush.msra.mxu0 0.0
  %4400 = vmatpush.msra.mxu0 0.0
  %4401 = vmatpush.msra.mxu0 0.0
  %4402 = vmatpush.msra.mxu0 0.0
  %4403 = vmatpush.msra.mxu0 0.0
  %4404 = vmatpush.msra.mxu0 0.0
  %4405 = vmatpush.msra.mxu0 0.0
  %4406 = vmatpush.msra.mxu0 0.0
  %4407 = vmatpush.msra.mxu0 0.0
  %4408 = vmatpush.msra.mxu0 0.0
  %4409 = vmatpush.msra.mxu0 0.0
  %4410 = vmatpush.msra.mxu0 0.0
  %4411 = vmatpush.msra.mxu0 %v3292
  %4412 = vmatpush.msra.mxu0 %v3291
  %4413 = vmatpush.msra.mxu0 %v3290
  %4414 = vmatpush.msra.mxu0 %v3289
  %4415 = vmatmul.f32.gmra.mxu0 %v4397
  %v4416 = vpop.f32.mrf.mxu0
  %v4417 = vadd.f32 %v3293, %v4416
  %4418 = vdwg.mxu0
  %v4419 = vsel %vm3317, %v4417, -inf
  %4420 = vmax.xlane.f32.xlu0 %v4419
  %v4421 = vpop.xlane.xlu0 %4420
  %v4422 = vsub.f32 %v4417, %v4421
  %v4423 = vmul.f32 %v4422, 1.442695
  %v4424 = vpow.pop %v4423
  %v4425 = vsel %vm3317, %v4424, 0.0
  %4426 = vadd.xlane.f32.xlu0 %v4425
  %v4427 = vpop.xlane.xlu0 %4426
  %v4428 = vrcp.pop %v4427
  %v4429 = vmul.f32 %v4427, %v4428
  %v4430 = vsub.f32 1.0, %v4429
  %v4431 = vmul.f32 %v4428, %v4430
  %v4432 = vadd.f32 %v4428, %v4431
  %vm4433 = vweird.f32 %v4427
  %vm4434 = vweird.f32 %v4428
  %vm4435 = vmor %vm4433, %vm4434
  %v4436 = vsel %vm4435, %v4428, %v4432
  %v4437 = vand.u32 2147483647, %v4427
  %vm4438 = vcmp.eq.f32.partialorder %v4437, 8.507059e+37
  %v4439 = vand.u32 %v4427, 2147483648
  %v4440 = vor.u32 1.1754944e-38, %v4439
  %v4441 = vsel %vm4438, %v4440, %v4436
  %v4442 = vmul.f32 1.0, %v4441
  %vm4443 = vcmp.ge.f32.partialorder %v4417, %v4421
  %v4444 = vsel %vm4443, %v2917, 48.0
  %v4445 = vsel %vm3317, %v4444, inf
  %4446 = vmin.xlane.f32.xlu0 %v4445
  %v4447 = vpop.xlane.xlu0 %4446
  %vm4448 = vcmp.eq.s32.totalorder %v50, 3
  %v4449 = vcvt.f32.s32.to.zero.pseudo %v4447
  %v4450 = vsel %vm4448, %v4449, %v4083
  %v4451 = vsel %vm4448, %v4442, %v4084
  %vm4452 = vcmp.eq.f32.partialorder %v2917, %v4447
  %v4453 = vsel %vm4452, 1, 0
  %v4454 = vcvt.s32.f32 %v4453
  %4455 = vrot.lane.b32.xlu0 %v4200, 16
  %v4456 = vpop.permute.xlu0 %4455
  %v4458 = vsel %vm64, %v4454, %v4456
  %v4460 = vsel %vm2953, %v4458, 0
  %4462 = vmatpush.msra.mxu0 0.0
  %4463 = vmatpush.msra.mxu0 0.0
  %4464 = vmatpush.msra.mxu0 0.0
  %4465 = vmatpush.msra.mxu0 0.0
  %4466 = vmatpush.msra.mxu0 0.0
  %4467 = vmatpush.msra.mxu0 0.0
  %4468 = vmatpush.msra.mxu0 %v2945
  %4469 = vmatpush.msra.mxu0 %v2943
  %4470 = vmatpush.msra.mxu0 %v2941
  %4471 = vmatpush.msra.mxu0 %v2939
  %4472 = vmatpush.msra.mxu0 %v2937
  %4473 = vmatpush.msra.mxu0 %v2935
  %4474 = vmatpush.msra.mxu0 %v2933
  %4475 = vmatpush.msra.mxu0 %v2931
  %4476 = vmatpush.msra.mxu0 %v2929
  %4477 = vmatpush.msra.mxu0 %v2927
  %4478 = vmatmul.f32.gmra.mxu0 %v4460
  %v4479 = vpop.f32.mrf.mxu0
  %v4480 = vadd.f32 %v2949, %v4479
  %4481 = vdwg.mxu0
  %4482 = vmatpush.msra.mxu0 0.0
  %4483 = vmatpush.msra.mxu0 0.0
  %4484 = vmatpush.msra.mxu0 0.0
  %4485 = vmatpush.msra.mxu0 0.0
  %4486 = vmatpush.msra.mxu0 0.0
  %4487 = vmatpush.msra.mxu0 0.0
  %4488 = vmatpush.msra.mxu0 %v2946
  %4489 = vmatpush.msra.mxu0 %v2944
  %4490 = vmatpush.msra.mxu0 %v2942
  %4491 = vmatpush.msra.mxu0 %v2940
  %4492 = vmatpush.msra.mxu0 %v2938
  %4493 = vmatpush.msra.mxu0 %v2936
  %4494 = vmatpush.msra.mxu0 %v2934
  %4495 = vmatpush.msra.mxu0 %v2932
  %4496 = vmatpush.msra.mxu0 %v2930
  %4497 = vmatpush.msra.mxu0 %v2928
  %4498 = vmatmul.f32.gmra.mxu0 %v4460
  %v4499 = vpop.f32.mrf.mxu0
  %v4500 = vadd.f32 %v2950, %v4499
  %4501 = vdwg.mxu0
  %4503 = vrot.lane.b32.xlu0 %v4480, 32
  %v4504 = vpop.permute.xlu0 %4503
  %v4506 = vadd.f32 %v4480, %v4504
  %v4507 = vxor.u32 %v4506, 2147483648
  %v4508 = vmul.f32 %v4507, 1.442695
  %v4509 = vpow.pop %v4508
  %v4510 = vadd.f32 %v4509, 1.0
  %v4511 = vrcp.pop %v4510
  %v4512 = vmul.f32 %v4510, %v4511
  %v4513 = vsub.f32 1.0, %v4512
  %v4514 = vmul.f32 %v4511, %v4513
  %v4515 = vadd.f32 %v4511, %v4514
  %vm4516 = vweird.f32 %v4510
  %vm4517 = vweird.f32 %v4511
  %vm4518 = vmor %vm4516, %vm4517
  %v4519 = vsel %vm4518, %v4511, %v4515
  %v4520 = vand.u32 2147483647, %v4510
  %vm4521 = vcmp.eq.f32.partialorder %v4520, 8.507059e+37
  %v4522 = vand.u32 %v4510, 2147483648
  %v4523 = vor.u32 1.1754944e-38, %v4522
  %v4524 = vsel %vm4521, %v4523, %v4519
  %v4525 = vmul.f32 1.0, %v4524
  %4527 = vrot.lane.b32.xlu0 %v4500, 32
  %v4528 = vpop.permute.xlu0 %4527
  %v4530 = vadd.f32 %v4480, %v4528
  %v4531 = vxor.u32 %v4530, 2147483648
  %v4532 = vmul.f32 %v4531, 1.442695
  %v4533 = vpow.pop %v4532
  %v4534 = vadd.f32 %v4533, 1.0
  %v4535 = vrcp.pop %v4534
  %v4536 = vmul.f32 %v4534, %v4535
  %v4537 = vsub.f32 1.0, %v4536
  %v4538 = vmul.f32 %v4535, %v4537
  %v4539 = vadd.f32 %v4535, %v4538
  %vm4540 = vweird.f32 %v4534
  %vm4541 = vweird.f32 %v4535
  %vm4542 = vmor %vm4540, %vm4541
  %v4543 = vsel %vm4542, %v4535, %v4539
  %v4544 = vand.u32 2147483647, %v4534
  %vm4545 = vcmp.eq.f32.partialorder %v4544, 8.507059e+37
  %v4546 = vand.u32 %v4534, 2147483648
  %v4547 = vor.u32 1.1754944e-38, %v4546
  %v4548 = vsel %vm4545, %v4547, %v4543
  %v4549 = vmul.f32 1.0, %v4548
  %4550 = vrot.lane.b32.xlu0 %v4500, 96
  %v4551 = vpop.permute.xlu0 %4550
  %v4553 = vmul.f32 %v4525, %v4551
  %4555 = vrot.lane.b32.xlu0 %v4553, 64
  %v4556 = vpop.permute.xlu0 %4555
  %v4558 = vadd.f32 %v4480, %v4556
  %v4559 = vtanh.pop %v4558
  %v4560 = vsub.f32 1.0, %v4549
  %4562 = vrot.lane.b32.xlu0 %v4559, 96
  %v4563 = vpop.permute.xlu0 %4562
  %v4565 = vmul.f32 %v4560, %v4563
  %v4566 = vmul.f32 %v4549, %v4200
  %v4567 = vadd.f32 %v4565, %v4566
  %4569 = vrot.lane.b32.xlu0 %v4567, 96
  %v4570 = vpop.permute.xlu0 %4569
  %v4572 = vsel %vm88, %v4570, %v4314
  %v4574 = vsel %vm100, %v4572, 0
  %4576 = vmatpush.msra.mxu0 0.0
  %4577 = vmatpush.msra.mxu0 0.0
  %4578 = vmatpush.msra.mxu0 0.0
  %4579 = vmatpush.msra.mxu0 0.0
  %4580 = vmatpush.msra.mxu0 0.0
  %4581 = vmatpush.msra.mxu0 0.0
  %4582 = vmatpush.msra.mxu0 0.0
  %4583 = vmatpush.msra.mxu0 0.0
  %4584 = vmatpush.msra.mxu0 %v3083
  %4585 = vmatpush.msra.mxu0 %v3081
  %4586 = vmatpush.msra.mxu0 %v3079
  %4587 = vmatpush.msra.mxu0 %v3077
  %4588 = vmatpush.msra.mxu0 %v3075
  %4589 = vmatpush.msra.mxu0 %v3073
  %4590 = vmatpush.msra.mxu0 %v3071
  %4591 = vmatpush.msra.mxu0 %v3069
  %4592 = vmatmul.f32.gmra.mxu0 %v4574
  %v4593 = vpop.f32.mrf.mxu0
  %v4594 = vadd.f32 %v3088, %v4593
  %4595 = vdwg.mxu0
  %4596 = vmatpush.msra.mxu0 0.0
  %4597 = vmatpush.msra.mxu0 0.0
  %4598 = vmatpush.msra.mxu0 0.0
  %4599 = vmatpush.msra.mxu0 0.0
  %4600 = vmatpush.msra.mxu0 0.0
  %4601 = vmatpush.msra.mxu0 0.0
  %4602 = vmatpush.msra.mxu0 0.0
  %4603 = vmatpush.msra.mxu0 0.0
  %4604 = vmatpush.msra.mxu0 %v3084
  %4605 = vmatpush.msra.mxu0 %v3082
  %4606 = vmatpush.msra.mxu0 %v3080
  %4607 = vmatpush.msra.mxu0 %v3078
  %4608 = vmatpush.msra.mxu0 %v3076
  %4609 = vmatpush.msra.mxu0 %v3074
  %4610 = vmatpush.msra.mxu0 %v3072
  %4611 = vmatpush.msra.mxu0 %v3070
  %4612 = vmatmul.f32.gmra.mxu0 %v4574
  %v4613 = vpop.f32.mrf.mxu0
  %v4614 = vadd.f32 %v3089, %v4613
  %4615 = vdwg.mxu0
  %4617 = vrot.lane.b32.xlu0 %v4594, 32
  %v4618 = vpop.permute.xlu0 %4617
  %v4620 = vadd.f32 %v4594, %v4618
  %v4621 = vxor.u32 %v4620, 2147483648
  %v4622 = vmul.f32 %v4621, 1.442695
  %v4623 = vpow.pop %v4622
  %v4624 = vadd.f32 %v4623, 1.0
  %v4625 = vrcp.pop %v4624
  %v4626 = vmul.f32 %v4624, %v4625
  %v4627 = vsub.f32 1.0, %v4626
  %v4628 = vmul.f32 %v4625, %v4627
  %v4629 = vadd.f32 %v4625, %v4628
  %vm4630 = vweird.f32 %v4624
  %vm4631 = vweird.f32 %v4625
  %vm4632 = vmor %vm4630, %vm4631
  %v4633 = vsel %vm4632, %v4625, %v4629
  %v4634 = vand.u32 2147483647, %v4624
  %vm4635 = vcmp.eq.f32.partialorder %v4634, 8.507059e+37
  %v4636 = vand.u32 %v4624, 2147483648
  %v4637 = vor.u32 1.1754944e-38, %v4636
  %v4638 = vsel %vm4635, %v4637, %v4633
  %v4639 = vmul.f32 1.0, %v4638
  %4641 = vrot.lane.b32.xlu0 %v4614, 32
  %v4642 = vpop.permute.xlu0 %4641
  %v4644 = vadd.f32 %v4594, %v4642
  %v4645 = vxor.u32 %v4644, 2147483648
  %v4646 = vmul.f32 %v4645, 1.442695
  %v4647 = vpow.pop %v4646
  %v4648 = vadd.f32 %v4647, 1.0
  %v4649 = vrcp.pop %v4648
  %v4650 = vmul.f32 %v4648, %v4649
  %v4651 = vsub.f32 1.0, %v4650
  %v4652 = vmul.f32 %v4649, %v4651
  %v4653 = vadd.f32 %v4649, %v4652
  %vm4654 = vweird.f32 %v4648
  %vm4655 = vweird.f32 %v4649
  %vm4656 = vmor %vm4654, %vm4655
  %v4657 = vsel %vm4656, %v4649, %v4653
  %v4658 = vand.u32 2147483647, %v4648
  %vm4659 = vcmp.eq.f32.partialorder %v4658, 8.507059e+37
  %v4660 = vand.u32 %v4648, 2147483648
  %v4661 = vor.u32 1.1754944e-38, %v4660
  %v4662 = vsel %vm4659, %v4661, %v4657
  %v4663 = vmul.f32 1.0, %v4662
  %4664 = vrot.lane.b32.xlu0 %v4614, 96
  %v4665 = vpop.permute.xlu0 %4664
  %v4667 = vmul.f32 %v4639, %v4665
  %4669 = vrot.lane.b32.xlu0 %v4667, 64
  %v4670 = vpop.permute.xlu0 %4669
  %v4672 = vadd.f32 %v4594, %v4670
  %v4673 = vtanh.pop %v4672
  %v4674 = vsub.f32 1.0, %v4663
  %4676 = vrot.lane.b32.xlu0 %v4673, 96
  %v4677 = vpop.permute.xlu0 %4676
  %v4679 = vmul.f32 %v4674, %v4677
  %v4680 = vmul.f32 %v4663, %v4314
  %v4681 = vadd.f32 %v4679, %v4680
  %4683 = vrot.lane.b32.xlu0 %v4681, 96
  %v4684 = vpop.permute.xlu0 %4683
  %v4685 = vsel %vm88, %v4684, 0
  %4687 = vmatpush.xpose.msra.mxu0 0.0
  %4688 = vmatpush.xpose.msra.mxu0 0.0
  %4689 = vmatpush.xpose.msra.mxu0 0.0
  %4690 = vmatpush.xpose.msra.mxu0 0.0
  %4691 = vmatpush.xpose.msra.mxu0 0.0
  %4692 = vmatpush.xpose.msra.mxu0 0.0
  %4693 = vmatpush.xpose.msra.mxu0 0.0
  %4694 = vmatpush.xpose.msra.mxu0 0.0
  %4695 = vmatpush.xpose.msra.mxu0 0.0
  %4696 = vmatpush.xpose.msra.mxu0 0.0
  %4697 = vmatpush.xpose.msra.mxu0 0.0
  %4698 = vmatpush.xpose.msra.mxu0 0.0
  %4699 = vmatpush.xpose.msra.mxu0 0.0
  %4700 = vmatpush.xpose.msra.mxu0 0.0
  %4701 = vmatpush.xpose.msra.mxu0 0.0
  %4702 = vmatpush.xpose.msra.mxu0 %v2895
  %4703 = vmatmul.f32.gmra.mxu0 %v4685
  %v4704 = vpop.f32.mrf.mxu0
  %v4705 = vadd.f32 0.0, %v4704
  %4706 = vdwg.mxu0
  %v4707 = vsel %vm3226, %v4705, -inf
  %4708 = vmax.xlane.f32.xlu0 %v4707
  %v4709 = vpop.xlane.xlu0 %4708
  %v4710 = vsub.f32 %v4705, %v4709
  %v4711 = vmul.f32 %v4710, 1.442695
  %v4712 = vpow.pop %v4711
  %v4713 = vsel %vm3226, %v4712, 0.0
  %4714 = vadd.xlane.f32.xlu0 %v4713
  %v4715 = vpop.xlane.xlu0 %4714
  %v4716 = vrcp.pop %v4715
  %v4717 = vmul.f32 %v4712, %v4716
  %v4719 = vsel %vm3242, %v4717, 0
  %4721 = vmatpush.msra.mxu0 0.0
  %4722 = vmatpush.msra.mxu0 0.0
  %4723 = vmatpush.msra.mxu0 0.0
  %4724 = vmatpush.msra.mxu0 0.0
  %4725 = vmatpush.msra.mxu0 0.0
  %4726 = vmatpush.msra.mxu0 0.0
  %4727 = vmatpush.msra.mxu0 0.0
  %4728 = vmatpush.msra.mxu0 0.0
  %4729 = vmatpush.msra.mxu0 0.0
  %4730 = vmatpush.msra.mxu0 0.0
  %4731 = vmatpush.msra.mxu0 0.0
  %4732 = vmatpush.msra.mxu0 0.0
  %4733 = vmatpush.msra.mxu0 0.0
  %4734 = vmatpush.msra.mxu0 0.0
  %4735 = vmatpush.msra.mxu0 0.0
  %4736 = vmatpush.msra.mxu0 %v2915
  %4737 = vmatmul.f32.gmra.mxu0 %v4719
  %v4738 = vpop.f32.mrf.mxu0
  %v4739 = vadd.f32 0.0, %v4738
  %4740 = vdwg.mxu0
  %4741 = vmatpush.msra.mxu0 0.0
  %4742 = vmatpush.msra.mxu0 0.0
  %4743 = vmatpush.msra.mxu0 0.0
  %4744 = vmatpush.msra.mxu0 0.0
  %4745 = vmatpush.msra.mxu0 0.0
  %4746 = vmatpush.msra.mxu0 0.0
  %4747 = vmatpush.msra.mxu0 0.0
  %4748 = vmatpush.msra.mxu0 0.0
  %4749 = vmatpush.msra.mxu0 0.0
  %4750 = vmatpush.msra.mxu0 0.0
  %4751 = vmatpush.msra.mxu0 0.0
  %4752 = vmatpush.msra.mxu0 0.0
  %4753 = vmatpush.msra.mxu0 %v3241
  %4754 = vmatpush.msra.mxu0 %v3240
  %4755 = vmatpush.msra.mxu0 %v3239
  %4756 = vmatpush.msra.mxu0 %v3238
  %4757 = vmatmul.f32.gmra.mxu0 %v4685
  %v4758 = vpop.f32.mrf.mxu0
  %v4759 = vadd.f32 %v4739, %v4758
  %4760 = vdwg.mxu0
  %v4761 = vadd.f32 %v4759, %v3286
  %v4762 = vtanh.pop %v4761
  %v4764 = vsel %vm88, %v4762, 0
  %4766 = vmatpush.msra.mxu0 0.0
  %4767 = vmatpush.msra.mxu0 0.0
  %4768 = vmatpush.msra.mxu0 0.0
  %4769 = vmatpush.msra.mxu0 0.0
  %4770 = vmatpush.msra.mxu0 0.0
  %4771 = vmatpush.msra.mxu0 0.0
  %4772 = vmatpush.msra.mxu0 0.0
  %4773 = vmatpush.msra.mxu0 0.0
  %4774 = vmatpush.msra.mxu0 0.0
  %4775 = vmatpush.msra.mxu0 0.0
  %4776 = vmatpush.msra.mxu0 0.0
  %4777 = vmatpush.msra.mxu0 0.0
  %4778 = vmatpush.msra.mxu0 %v3292
  %4779 = vmatpush.msra.mxu0 %v3291
  %4780 = vmatpush.msra.mxu0 %v3290
  %4781 = vmatpush.msra.mxu0 %v3289
  %4782 = vmatmul.f32.gmra.mxu0 %v4764
  %v4783 = vpop.f32.mrf.mxu0
  %v4784 = vadd.f32 %v3293, %v4783
  %4785 = vdwg.mxu0
  %v4786 = vsel %vm3317, %v4784, -inf
  %4787 = vmax.xlane.f32.xlu0 %v4786
  %v4788 = vpop.xlane.xlu0 %4787
  %v4789 = vsub.f32 %v4784, %v4788
  %v4790 = vmul.f32 %v4789, 1.442695
  %v4791 = vpow.pop %v4790
  %v4792 = vsel %vm3317, %v4791, 0.0
  %4793 = vadd.xlane.f32.xlu0 %v4792
  %v4794 = vpop.xlane.xlu0 %4793
  %v4795 = vrcp.pop %v4794
  %v4796 = vmul.f32 %v4794, %v4795
  %v4797 = vsub.f32 1.0, %v4796
  %v4798 = vmul.f32 %v4795, %v4797
  %v4799 = vadd.f32 %v4795, %v4798
  %vm4800 = vweird.f32 %v4794
  %vm4801 = vweird.f32 %v4795
  %vm4802 = vmor %vm4800, %vm4801
  %v4803 = vsel %vm4802, %v4795, %v4799
  %v4804 = vand.u32 2147483647, %v4794
  %vm4805 = vcmp.eq.f32.partialorder %v4804, 8.507059e+37
  %v4806 = vand.u32 %v4794, 2147483648
  %v4807 = vor.u32 1.1754944e-38, %v4806
  %v4808 = vsel %vm4805, %v4807, %v4803
  %v4809 = vmul.f32 1.0, %v4808
  %vm4810 = vcmp.ge.f32.partialorder %v4784, %v4788
  %v4811 = vsel %vm4810, %v2917, 48.0
  %v4812 = vsel %vm3317, %v4811, inf
  %4813 = vmin.xlane.f32.xlu0 %v4812
  %v4814 = vpop.xlane.xlu0 %4813
  %vm4815 = vcmp.eq.s32.totalorder %v50, 4
  %v4816 = vcvt.f32.s32.to.zero.pseudo %v4814
  %v4817 = vsel %vm4815, %v4816, %v4450
  %v4818 = vsel %vm4815, %v4809, %v4451
  %vm4819 = vcmp.eq.f32.partialorder %v2917, %v4814
  %v4820 = vsel %vm4819, 1, 0
  %v4821 = vcvt.s32.f32 %v4820
  %4822 = vrot.lane.b32.xlu0 %v4567, 16
  %v4823 = vpop.permute.xlu0 %4822
  %v4825 = vsel %vm64, %v4821, %v4823
  %v4827 = vsel %vm2953, %v4825, 0
  %4829 = vmatpush.msra.mxu0 0.0
  %4830 = vmatpush.msra.mxu0 0.0
  %4831 = vmatpush.msra.mxu0 0.0
  %4832 = vmatpush.msra.mxu0 0.0
  %4833 = vmatpush.msra.mxu0 0.0
  %4834 = vmatpush.msra.mxu0 0.0
  %4835 = vmatpush.msra.mxu0 %v2945
  %4836 = vmatpush.msra.mxu0 %v2943
  %4837 = vmatpush.msra.mxu0 %v2941
  %4838 = vmatpush.msra.mxu0 %v2939
  %4839 = vmatpush.msra.mxu0 %v2937
  %4840 = vmatpush.msra.mxu0 %v2935
  %4841 = vmatpush.msra.mxu0 %v2933
  %4842 = vmatpush.msra.mxu0 %v2931
  %4843 = vmatpush.msra.mxu0 %v2929
  %4844 = vmatpush.msra.mxu0 %v2927
  %4845 = vmatmul.f32.gmra.mxu0 %v4827
  %v4846 = vpop.f32.mrf.mxu0
  %v4847 = vadd.f32 %v2949, %v4846
  %4848 = vdwg.mxu0
  %4849 = vmatpush.msra.mxu0 0.0
  %4850 = vmatpush.msra.mxu0 0.0
  %4851 = vmatpush.msra.mxu0 0.0
  %4852 = vmatpush.msra.mxu0 0.0
  %4853 = vmatpush.msra.mxu0 0.0
  %4854 = vmatpush.msra.mxu0 0.0
  %4855 = vmatpush.msra.mxu0 %v2946
  %4856 = vmatpush.msra.mxu0 %v2944
  %4857 = vmatpush.msra.mxu0 %v2942
  %4858 = vmatpush.msra.mxu0 %v2940
  %4859 = vmatpush.msra.mxu0 %v2938
  %4860 = vmatpush.msra.mxu0 %v2936
  %4861 = vmatpush.msra.mxu0 %v2934
  %4862 = vmatpush.msra.mxu0 %v2932
  %4863 = vmatpush.msra.mxu0 %v2930
  %4864 = vmatpush.msra.mxu0 %v2928
  %4865 = vmatmul.f32.gmra.mxu0 %v4827
  %v4866 = vpop.f32.mrf.mxu0
  %v4867 = vadd.f32 %v2950, %v4866
  %4868 = vdwg.mxu0
  %4870 = vrot.lane.b32.xlu0 %v4847, 32
  %v4871 = vpop.permute.xlu0 %4870
  %v4873 = vadd.f32 %v4847, %v4871
  %v4874 = vxor.u32 %v4873, 2147483648
  %v4875 = vmul.f32 %v4874, 1.442695
  %v4876 = vpow.pop %v4875
  %v4877 = vadd.f32 %v4876, 1.0
  %v4878 = vrcp.pop %v4877
  %v4879 = vmul.f32 %v4877, %v4878
  %v4880 = vsub.f32 1.0, %v4879
  %v4881 = vmul.f32 %v4878, %v4880
  %v4882 = vadd.f32 %v4878, %v4881
  %vm4883 = vweird.f32 %v4877
  %vm4884 = vweird.f32 %v4878
  %vm4885 = vmor %vm4883, %vm4884
  %v4886 = vsel %vm4885, %v4878, %v4882
  %v4887 = vand.u32 2147483647, %v4877
  %vm4888 = vcmp.eq.f32.partialorder %v4887, 8.507059e+37
  %v4889 = vand.u32 %v4877, 2147483648
  %v4890 = vor.u32 1.1754944e-38, %v4889
  %v4891 = vsel %vm4888, %v4890, %v4886
  %v4892 = vmul.f32 1.0, %v4891
  %4894 = vrot.lane.b32.xlu0 %v4867, 32
  %v4895 = vpop.permute.xlu0 %4894
  %v4897 = vadd.f32 %v4847, %v4895
  %v4898 = vxor.u32 %v4897, 2147483648
  %v4899 = vmul.f32 %v4898, 1.442695
  %v4900 = vpow.pop %v4899
  %v4901 = vadd.f32 %v4900, 1.0
  %v4902 = vrcp.pop %v4901
  %v4903 = vmul.f32 %v4901, %v4902
  %v4904 = vsub.f32 1.0, %v4903
  %v4905 = vmul.f32 %v4902, %v4904
  %v4906 = vadd.f32 %v4902, %v4905
  %vm4907 = vweird.f32 %v4901
  %vm4908 = vweird.f32 %v4902
  %vm4909 = vmor %vm4907, %vm4908
  %v4910 = vsel %vm4909, %v4902, %v4906
  %v4911 = vand.u32 2147483647, %v4901
  %vm4912 = vcmp.eq.f32.partialorder %v4911, 8.507059e+37
  %v4913 = vand.u32 %v4901, 2147483648
  %v4914 = vor.u32 1.1754944e-38, %v4913
  %v4915 = vsel %vm4912, %v4914, %v4910
  %v4916 = vmul.f32 1.0, %v4915
  %4917 = vrot.lane.b32.xlu0 %v4867, 96
  %v4918 = vpop.permute.xlu0 %4917
  %v4920 = vmul.f32 %v4892, %v4918
  %4922 = vrot.lane.b32.xlu0 %v4920, 64
  %v4923 = vpop.permute.xlu0 %4922
  %v4925 = vadd.f32 %v4847, %v4923
  %v4926 = vtanh.pop %v4925
  %v4927 = vsub.f32 1.0, %v4916
  %4929 = vrot.lane.b32.xlu0 %v4926, 96
  %v4930 = vpop.permute.xlu0 %4929
  %v4932 = vmul.f32 %v4927, %v4930
  %v4933 = vmul.f32 %v4916, %v4567
  %v4934 = vadd.f32 %v4932, %v4933
  %4936 = vrot.lane.b32.xlu0 %v4934, 96
  %v4937 = vpop.permute.xlu0 %4936
  %v4939 = vsel %vm88, %v4937, %v4681
  %v4941 = vsel %vm100, %v4939, 0
  %4943 = vmatpush.msra.mxu0 0.0
  %4944 = vmatpush.msra.mxu0 0.0
  %4945 = vmatpush.msra.mxu0 0.0
  %4946 = vmatpush.msra.mxu0 0.0
  %4947 = vmatpush.msra.mxu0 0.0
  %4948 = vmatpush.msra.mxu0 0.0
  %4949 = vmatpush.msra.mxu0 0.0
  %4950 = vmatpush.msra.mxu0 0.0
  %4951 = vmatpush.msra.mxu0 %v3083
  %4952 = vmatpush.msra.mxu0 %v3081
  %4953 = vmatpush.msra.mxu0 %v3079
  %4954 = vmatpush.msra.mxu0 %v3077
  %4955 = vmatpush.msra.mxu0 %v3075
  %4956 = vmatpush.msra.mxu0 %v3073
  %4957 = vmatpush.msra.mxu0 %v3071
  %4958 = vmatpush.msra.mxu0 %v3069
  %4959 = vmatmul.f32.gmra.mxu0 %v4941
  %v4960 = vpop.f32.mrf.mxu0
  %v4961 = vadd.f32 %v3088, %v4960
  %4962 = vdwg.mxu0
  %4963 = vmatpush.msra.mxu0 0.0
  %4964 = vmatpush.msra.mxu0 0.0
  %4965 = vmatpush.msra.mxu0 0.0
  %4966 = vmatpush.msra.mxu0 0.0
  %4967 = vmatpush.msra.mxu0 0.0
  %4968 = vmatpush.msra.mxu0 0.0
  %4969 = vmatpush.msra.mxu0 0.0
  %4970 = vmatpush.msra.mxu0 0.0
  %4971 = vmatpush.msra.mxu0 %v3084
  %4972 = vmatpush.msra.mxu0 %v3082
  %4973 = vmatpush.msra.mxu0 %v3080
  %4974 = vmatpush.msra.mxu0 %v3078
  %4975 = vmatpush.msra.mxu0 %v3076
  %4976 = vmatpush.msra.mxu0 %v3074
  %4977 = vmatpush.msra.mxu0 %v3072
  %4978 = vmatpush.msra.mxu0 %v3070
  %4979 = vmatmul.f32.gmra.mxu0 %v4941
  %v4980 = vpop.f32.mrf.mxu0
  %v4981 = vadd.f32 %v3089, %v4980
  %4982 = vdwg.mxu0
  %4984 = vrot.lane.b32.xlu0 %v4961, 32
  %v4985 = vpop.permute.xlu0 %4984
  %v4987 = vadd.f32 %v4961, %v4985
  %v4988 = vxor.u32 %v4987, 2147483648
  %v4989 = vmul.f32 %v4988, 1.442695
  %v4990 = vpow.pop %v4989
  %v4991 = vadd.f32 %v4990, 1.0
  %v4992 = vrcp.pop %v4991
  %v4993 = vmul.f32 %v4991, %v4992
  %v4994 = vsub.f32 1.0, %v4993
  %v4995 = vmul.f32 %v4992, %v4994
  %v4996 = vadd.f32 %v4992, %v4995
  %vm4997 = vweird.f32 %v4991
  %vm4998 = vweird.f32 %v4992
  %vm4999 = vmor %vm4997, %vm4998
  %v5000 = vsel %vm4999, %v4992, %v4996
  %v5001 = vand.u32 2147483647, %v4991
  %vm5002 = vcmp.eq.f32.partialorder %v5001, 8.507059e+37
  %v5003 = vand.u32 %v4991, 2147483648
  %v5004 = vor.u32 1.1754944e-38, %v5003
  %v5005 = vsel %vm5002, %v5004, %v5000
  %v5006 = vmul.f32 1.0, %v5005
  %5008 = vrot.lane.b32.xlu0 %v4981, 32
  %v5009 = vpop.permute.xlu0 %5008
  %v5011 = vadd.f32 %v4961, %v5009
  %v5012 = vxor.u32 %v5011, 2147483648
  %v5013 = vmul.f32 %v5012, 1.442695
  %v5014 = vpow.pop %v5013
  %v5015 = vadd.f32 %v5014, 1.0
  %v5016 = vrcp.pop %v5015
  %v5017 = vmul.f32 %v5015, %v5016
  %v5018 = vsub.f32 1.0, %v5017
  %v5019 = vmul.f32 %v5016, %v5018
  %v5020 = vadd.f32 %v5016, %v5019
  %vm5021 = vweird.f32 %v5015
  %vm5022 = vweird.f32 %v5016
  %vm5023 = vmor %vm5021, %vm5022
  %v5024 = vsel %vm5023, %v5016, %v5020
  %v5025 = vand.u32 2147483647, %v5015
  %vm5026 = vcmp.eq.f32.partialorder %v5025, 8.507059e+37
  %v5027 = vand.u32 %v5015, 2147483648
  %v5028 = vor.u32 1.1754944e-38, %v5027
  %v5029 = vsel %vm5026, %v5028, %v5024
  %v5030 = vmul.f32 1.0, %v5029
  %5031 = vrot.lane.b32.xlu0 %v4981, 96
  %v5032 = vpop.permute.xlu0 %5031
  %v5034 = vmul.f32 %v5006, %v5032
  %5036 = vrot.lane.b32.xlu0 %v5034, 64
  %v5037 = vpop.permute.xlu0 %5036
  %v5039 = vadd.f32 %v4961, %v5037
  %v5040 = vtanh.pop %v5039
  %v5041 = vsub.f32 1.0, %v5030
  %5043 = vrot.lane.b32.xlu0 %v5040, 96
  %v5044 = vpop.permute.xlu0 %5043
  %v5046 = vmul.f32 %v5041, %v5044
  %v5047 = vmul.f32 %v5030, %v4681
  %v5048 = vadd.f32 %v5046, %v5047
  %5050 = vrot.lane.b32.xlu0 %v5048, 96
  %v5051 = vpop.permute.xlu0 %5050
  %v5052 = vsel %vm88, %v5051, 0
  %5054 = vmatpush.xpose.msra.mxu0 0.0
  %5055 = vmatpush.xpose.msra.mxu0 0.0
  %5056 = vmatpush.xpose.msra.mxu0 0.0
  %5057 = vmatpush.xpose.msra.mxu0 0.0
  %5058 = vmatpush.xpose.msra.mxu0 0.0
  %5059 = vmatpush.xpose.msra.mxu0 0.0
  %5060 = vmatpush.xpose.msra.mxu0 0.0
  %5061 = vmatpush.xpose.msra.mxu0 0.0
  %5062 = vmatpush.xpose.msra.mxu0 0.0
  %5063 = vmatpush.xpose.msra.mxu0 0.0
  %5064 = vmatpush.xpose.msra.mxu0 0.0
  %5065 = vmatpush.xpose.msra.mxu0 0.0
  %5066 = vmatpush.xpose.msra.mxu0 0.0
  %5067 = vmatpush.xpose.msra.mxu0 0.0
  %5068 = vmatpush.xpose.msra.mxu0 0.0
  %5069 = vmatpush.xpose.msra.mxu0 %v2895
  %5070 = vmatmul.f32.gmra.mxu0 %v5052
  %v5071 = vpop.f32.mrf.mxu0
  %v5072 = vadd.f32 0.0, %v5071
  %5073 = vdwg.mxu0
  %v5074 = vsel %vm3226, %v5072, -inf
  %5075 = vmax.xlane.f32.xlu0 %v5074
  %v5076 = vpop.xlane.xlu0 %5075
  %v5077 = vsub.f32 %v5072, %v5076
  %v5078 = vmul.f32 %v5077, 1.442695
  %v5079 = vpow.pop %v5078
  %v5080 = vsel %vm3226, %v5079, 0.0
  %5081 = vadd.xlane.f32.xlu0 %v5080
  %v5082 = vpop.xlane.xlu0 %5081
  %v5083 = vrcp.pop %v5082
  %v5084 = vmul.f32 %v5079, %v5083
  %v5086 = vsel %vm3242, %v5084, 0
  %5088 = vmatpush.msra.mxu0 0.0
  %5089 = vmatpush.msra.mxu0 0.0
  %5090 = vmatpush.msra.mxu0 0.0
  %5091 = vmatpush.msra.mxu0 0.0
  %5092 = vmatpush.msra.mxu0 0.0
  %5093 = vmatpush.msra.mxu0 0.0
  %5094 = vmatpush.msra.mxu0 0.0
  %5095 = vmatpush.msra.mxu0 0.0
  %5096 = vmatpush.msra.mxu0 0.0
  %5097 = vmatpush.msra.mxu0 0.0
  %5098 = vmatpush.msra.mxu0 0.0
  %5099 = vmatpush.msra.mxu0 0.0
  %5100 = vmatpush.msra.mxu0 0.0
  %5101 = vmatpush.msra.mxu0 0.0
  %5102 = vmatpush.msra.mxu0 0.0
  %5103 = vmatpush.msra.mxu0 %v2915
  %5104 = vmatmul.f32.gmra.mxu0 %v5086
  %v5105 = vpop.f32.mrf.mxu0
  %v5106 = vadd.f32 0.0, %v5105
  %5107 = vdwg.mxu0
  %5108 = vmatpush.msra.mxu0 0.0
  %5109 = vmatpush.msra.mxu0 0.0
  %5110 = vmatpush.msra.mxu0 0.0
  %5111 = vmatpush.msra.mxu0 0.0
  %5112 = vmatpush.msra.mxu0 0.0
  %5113 = vmatpush.msra.mxu0 0.0
  %5114 = vmatpush.msra.mxu0 0.0
  %5115 = vmatpush.msra.mxu0 0.0
  %5116 = vmatpush.msra.mxu0 0.0
  %5117 = vmatpush.msra.mxu0 0.0
  %5118 = vmatpush.msra.mxu0 0.0
  %5119 = vmatpush.msra.mxu0 0.0
  %5120 = vmatpush.msra.mxu0 %v3241
  %5121 = vmatpush.msra.mxu0 %v3240
  %5122 = vmatpush.msra.mxu0 %v3239
  %5123 = vmatpush.msra.mxu0 %v3238
  %5124 = vmatmul.f32.gmra.mxu0 %v5052
  %v5125 = vpop.f32.mrf.mxu0
  %v5126 = vadd.f32 %v5106, %v5125
  %5127 = vdwg.mxu0
  %v5128 = vadd.f32 %v5126, %v3286
  %v5129 = vtanh.pop %v5128
  %v5131 = vsel %vm88, %v5129, 0
  %5133 = vmatpush.msra.mxu0 0.0
  %5134 = vmatpush.msra.mxu0 0.0
  %5135 = vmatpush.msra.mxu0 0.0
  %5136 = vmatpush.msra.mxu0 0.0
  %5137 = vmatpush.msra.mxu0 0.0
  %5138 = vmatpush.msra.mxu0 0.0
  %5139 = vmatpush.msra.mxu0 0.0
  %5140 = vmatpush.msra.mxu0 0.0
  %5141 = vmatpush.msra.mxu0 0.0
  %5142 = vmatpush.msra.mxu0 0.0
  %5143 = vmatpush.msra.mxu0 0.0
  %5144 = vmatpush.msra.mxu0 0.0
  %5145 = vmatpush.msra.mxu0 %v3292
  %5146 = vmatpush.msra.mxu0 %v3291
  %5147 = vmatpush.msra.mxu0 %v3290
  %5148 = vmatpush.msra.mxu0 %v3289
  %5149 = vmatmul.f32.gmra.mxu0 %v5131
  %v5150 = vpop.f32.mrf.mxu0
  %v5151 = vadd.f32 %v3293, %v5150
  %5152 = vdwg.mxu0
  %v5153 = vsel %vm3317, %v5151, -inf
  %5154 = vmax.xlane.f32.xlu0 %v5153
  %v5155 = vpop.xlane.xlu0 %5154
  %v5156 = vsub.f32 %v5151, %v5155
  %v5157 = vmul.f32 %v5156, 1.442695
  %v5158 = vpow.pop %v5157
  %v5159 = vsel %vm3317, %v5158, 0.0
  %5160 = vadd.xlane.f32.xlu0 %v5159
  %v5161 = vpop.xlane.xlu0 %5160
  %v5162 = vrcp.pop %v5161
  %v5163 = vmul.f32 %v5161, %v5162
  %v5164 = vsub.f32 1.0, %v5163
  %v5165 = vmul.f32 %v5162, %v5164
  %v5166 = vadd.f32 %v5162, %v5165
  %vm5167 = vweird.f32 %v5161
  %vm5168 = vweird.f32 %v5162
  %vm5169 = vmor %vm5167, %vm5168
  %v5170 = vsel %vm5169, %v5162, %v5166
  %v5171 = vand.u32 2147483647, %v5161
  %vm5172 = vcmp.eq.f32.partialorder %v5171, 8.507059e+37
  %v5173 = vand.u32 %v5161, 2147483648
  %v5174 = vor.u32 1.1754944e-38, %v5173
  %v5175 = vsel %vm5172, %v5174, %v5170
  %v5176 = vmul.f32 1.0, %v5175
  %vm5177 = vcmp.ge.f32.partialorder %v5151, %v5155
  %v5178 = vsel %vm5177, %v2917, 48.0
  %v5179 = vsel %vm3317, %v5178, inf
  %5180 = vmin.xlane.f32.xlu0 %v5179
  %v5181 = vpop.xlane.xlu0 %5180
  %vm5182 = vcmp.eq.s32.totalorder %v50, 5
  %v5183 = vcvt.f32.s32.to.zero.pseudo %v5181
  %v5184 = vsel %vm5182, %v5183, %v4817
  %v5185 = vsel %vm5182, %v5176, %v4818
  %vm5186 = vcmp.eq.f32.partialorder %v2917, %v5181
  %v5187 = vsel %vm5186, 1, 0
  %v5188 = vcvt.s32.f32 %v5187
  %5189 = vrot.lane.b32.xlu0 %v4934, 16
  %v5190 = vpop.permute.xlu0 %5189
  %v5192 = vsel %vm64, %v5188, %v5190
  %v5194 = vsel %vm2953, %v5192, 0
  %5196 = vmatpush.msra.mxu0 0.0
  %5197 = vmatpush.msra.mxu0 0.0
  %5198 = vmatpush.msra.mxu0 0.0
  %5199 = vmatpush.msra.mxu0 0.0
  %5200 = vmatpush.msra.mxu0 0.0
  %5201 = vmatpush.msra.mxu0 0.0
  %5202 = vmatpush.msra.mxu0 %v2945
  %5203 = vmatpush.msra.mxu0 %v2943
  %5204 = vmatpush.msra.mxu0 %v2941
  %5205 = vmatpush.msra.mxu0 %v2939
  %5206 = vmatpush.msra.mxu0 %v2937
  %5207 = vmatpush.msra.mxu0 %v2935
  %5208 = vmatpush.msra.mxu0 %v2933
  %5209 = vmatpush.msra.mxu0 %v2931
  %5210 = vmatpush.msra.mxu0 %v2929
  %5211 = vmatpush.msra.mxu0 %v2927
  %5212 = vmatmul.f32.gmra.mxu0 %v5194
  %v5213 = vpop.f32.mrf.mxu0
  %v5214 = vadd.f32 %v2949, %v5213
  %5215 = vdwg.mxu0
  %5216 = vmatpush.msra.mxu0 0.0
  %5217 = vmatpush.msra.mxu0 0.0
  %5218 = vmatpush.msra.mxu0 0.0
  %5219 = vmatpush.msra.mxu0 0.0
  %5220 = vmatpush.msra.mxu0 0.0
  %5221 = vmatpush.msra.mxu0 0.0
  %5222 = vmatpush.msra.mxu0 %v2946
  %5223 = vmatpush.msra.mxu0 %v2944
  %5224 = vmatpush.msra.mxu0 %v2942
  %5225 = vmatpush.msra.mxu0 %v2940
  %5226 = vmatpush.msra.mxu0 %v2938
  %5227 = vmatpush.msra.mxu0 %v2936
  %5228 = vmatpush.msra.mxu0 %v2934
  %5229 = vmatpush.msra.mxu0 %v2932
  %5230 = vmatpush.msra.mxu0 %v2930
  %5231 = vmatpush.msra.mxu0 %v2928
  %5232 = vmatmul.f32.gmra.mxu0 %v5194
  %v5233 = vpop.f32.mrf.mxu0
  %v5234 = vadd.f32 %v2950, %v5233
  %5235 = vdwg.mxu0
  %5237 = vrot.lane.b32.xlu0 %v5214, 32
  %v5238 = vpop.permute.xlu0 %5237
  %v5240 = vadd.f32 %v5214, %v5238
  %v5241 = vxor.u32 %v5240, 2147483648
  %v5242 = vmul.f32 %v5241, 1.442695
  %v5243 = vpow.pop %v5242
  %v5244 = vadd.f32 %v5243, 1.0
  %v5245 = vrcp.pop %v5244
  %v5246 = vmul.f32 %v5244, %v5245
  %v5247 = vsub.f32 1.0, %v5246
  %v5248 = vmul.f32 %v5245, %v5247
  %v5249 = vadd.f32 %v5245, %v5248
  %vm5250 = vweird.f32 %v5244
  %vm5251 = vweird.f32 %v5245
  %vm5252 = vmor %vm5250, %vm5251
  %v5253 = vsel %vm5252, %v5245, %v5249
  %v5254 = vand.u32 2147483647, %v5244
  %vm5255 = vcmp.eq.f32.partialorder %v5254, 8.507059e+37
  %v5256 = vand.u32 %v5244, 2147483648
  %v5257 = vor.u32 1.1754944e-38, %v5256
  %v5258 = vsel %vm5255, %v5257, %v5253
  %v5259 = vmul.f32 1.0, %v5258
  %5261 = vrot.lane.b32.xlu0 %v5234, 32
  %v5262 = vpop.permute.xlu0 %5261
  %v5264 = vadd.f32 %v5214, %v5262
  %v5265 = vxor.u32 %v5264, 2147483648
  %v5266 = vmul.f32 %v5265, 1.442695
  %v5267 = vpow.pop %v5266
  %v5268 = vadd.f32 %v5267, 1.0
  %v5269 = vrcp.pop %v5268
  %v5270 = vmul.f32 %v5268, %v5269
  %v5271 = vsub.f32 1.0, %v5270
  %v5272 = vmul.f32 %v5269, %v5271
  %v5273 = vadd.f32 %v5269, %v5272
  %vm5274 = vweird.f32 %v5268
  %vm5275 = vweird.f32 %v5269
  %vm5276 = vmor %vm5274, %vm5275
  %v5277 = vsel %vm5276, %v5269, %v5273
  %v5278 = vand.u32 2147483647, %v5268
  %vm5279 = vcmp.eq.f32.partialorder %v5278, 8.507059e+37
  %v5280 = vand.u32 %v5268, 2147483648
  %v5281 = vor.u32 1.1754944e-38, %v5280
  %v5282 = vsel %vm5279, %v5281, %v5277
  %v5283 = vmul.f32 1.0, %v5282
  %5284 = vrot.lane.b32.xlu0 %v5234, 96
  %v5285 = vpop.permute.xlu0 %5284
  %v5287 = vmul.f32 %v5259, %v5285
  %5289 = vrot.lane.b32.xlu0 %v5287, 64
  %v5290 = vpop.permute.xlu0 %5289
  %v5292 = vadd.f32 %v5214, %v5290
  %v5293 = vtanh.pop %v5292
  %v5294 = vsub.f32 1.0, %v5283
  %5296 = vrot.lane.b32.xlu0 %v5293, 96
  %v5297 = vpop.permute.xlu0 %5296
  %v5299 = vmul.f32 %v5294, %v5297
  %v5300 = vmul.f32 %v5283, %v4934
  %v5301 = vadd.f32 %v5299, %v5300
  %5303 = vrot.lane.b32.xlu0 %v5301, 96
  %v5304 = vpop.permute.xlu0 %5303
  %v5306 = vsel %vm88, %v5304, %v5048
  %v5308 = vsel %vm100, %v5306, 0
  %5310 = vmatpush.msra.mxu0 0.0
  %5311 = vmatpush.msra.mxu0 0.0
  %5312 = vmatpush.msra.mxu0 0.0
  %5313 = vmatpush.msra.mxu0 0.0
  %5314 = vmatpush.msra.mxu0 0.0
  %5315 = vmatpush.msra.mxu0 0.0
  %5316 = vmatpush.msra.mxu0 0.0
  %5317 = vmatpush.msra.mxu0 0.0
  %5318 = vmatpush.msra.mxu0 %v3083
  %5319 = vmatpush.msra.mxu0 %v3081
  %5320 = vmatpush.msra.mxu0 %v3079
  %5321 = vmatpush.msra.mxu0 %v3077
  %5322 = vmatpush.msra.mxu0 %v3075
  %5323 = vmatpush.msra.mxu0 %v3073
  %5324 = vmatpush.msra.mxu0 %v3071
  %5325 = vmatpush.msra.mxu0 %v3069
  %5326 = vmatmul.f32.gmra.mxu0 %v5308
  %v5327 = vpop.f32.mrf.mxu0
  %v5328 = vadd.f32 %v3088, %v5327
  %5329 = vdwg.mxu0
  %5330 = vmatpush.msra.mxu0 0.0
  %5331 = vmatpush.msra.mxu0 0.0
  %5332 = vmatpush.msra.mxu0 0.0
  %5333 = vmatpush.msra.mxu0 0.0
  %5334 = vmatpush.msra.mxu0 0.0
  %5335 = vmatpush.msra.mxu0 0.0
  %5336 = vmatpush.msra.mxu0 0.0
  %5337 = vmatpush.msra.mxu0 0.0
  %5338 = vmatpush.msra.mxu0 %v3084
  %5339 = vmatpush.msra.mxu0 %v3082
  %5340 = vmatpush.msra.mxu0 %v3080
  %5341 = vmatpush.msra.mxu0 %v3078
  %5342 = vmatpush.msra.mxu0 %v3076
  %5343 = vmatpush.msra.mxu0 %v3074
  %5344 = vmatpush.msra.mxu0 %v3072
  %5345 = vmatpush.msra.mxu0 %v3070
  %5346 = vmatmul.f32.gmra.mxu0 %v5308
  %v5347 = vpop.f32.mrf.mxu0
  %v5348 = vadd.f32 %v3089, %v5347
  %5349 = vdwg.mxu0
  %5351 = vrot.lane.b32.xlu0 %v5328, 32
  %v5352 = vpop.permute.xlu0 %5351
  %v5354 = vadd.f32 %v5328, %v5352
  %v5355 = vxor.u32 %v5354, 2147483648
  %v5356 = vmul.f32 %v5355, 1.442695
  %v5357 = vpow.pop %v5356
  %v5358 = vadd.f32 %v5357, 1.0
  %v5359 = vrcp.pop %v5358
  %v5360 = vmul.f32 %v5358, %v5359
  %v5361 = vsub.f32 1.0, %v5360
  %v5362 = vmul.f32 %v5359, %v5361
  %v5363 = vadd.f32 %v5359, %v5362
  %vm5364 = vweird.f32 %v5358
  %vm5365 = vweird.f32 %v5359
  %vm5366 = vmor %vm5364, %vm5365
  %v5367 = vsel %vm5366, %v5359, %v5363
  %v5368 = vand.u32 2147483647, %v5358
  %vm5369 = vcmp.eq.f32.partialorder %v5368, 8.507059e+37
  %v5370 = vand.u32 %v5358, 2147483648
  %v5371 = vor.u32 1.1754944e-38, %v5370
  %v5372 = vsel %vm5369, %v5371, %v5367
  %v5373 = vmul.f32 1.0, %v5372
  %5375 = vrot.lane.b32.xlu0 %v5348, 32
  %v5376 = vpop.permute.xlu0 %5375
  %v5378 = vadd.f32 %v5328, %v5376
  %v5379 = vxor.u32 %v5378, 2147483648
  %v5380 = vmul.f32 %v5379, 1.442695
  %v5381 = vpow.pop %v5380
  %v5382 = vadd.f32 %v5381, 1.0
  %v5383 = vrcp.pop %v5382
  %v5384 = vmul.f32 %v5382, %v5383
  %v5385 = vsub.f32 1.0, %v5384
  %v5386 = vmul.f32 %v5383, %v5385
  %v5387 = vadd.f32 %v5383, %v5386
  %vm5388 = vweird.f32 %v5382
  %vm5389 = vweird.f32 %v5383
  %vm5390 = vmor %vm5388, %vm5389
  %v5391 = vsel %vm5390, %v5383, %v5387
  %v5392 = vand.u32 2147483647, %v5382
  %vm5393 = vcmp.eq.f32.partialorder %v5392, 8.507059e+37
  %v5394 = vand.u32 %v5382, 2147483648
  %v5395 = vor.u32 1.1754944e-38, %v5394
  %v5396 = vsel %vm5393, %v5395, %v5391
  %v5397 = vmul.f32 1.0, %v5396
  %5398 = vrot.lane.b32.xlu0 %v5348, 96
  %v5399 = vpop.permute.xlu0 %5398
  %v5401 = vmul.f32 %v5373, %v5399
  %5403 = vrot.lane.b32.xlu0 %v5401, 64
  %v5404 = vpop.permute.xlu0 %5403
  %v5406 = vadd.f32 %v5328, %v5404
  %v5407 = vtanh.pop %v5406
  %v5408 = vsub.f32 1.0, %v5397
  %5410 = vrot.lane.b32.xlu0 %v5407, 96
  %v5411 = vpop.permute.xlu0 %5410
  %v5413 = vmul.f32 %v5408, %v5411
  %v5414 = vmul.f32 %v5397, %v5048
  %v5415 = vadd.f32 %v5413, %v5414
  %5417 = vrot.lane.b32.xlu0 %v5415, 96
  %v5418 = vpop.permute.xlu0 %5417
  %v5419 = vsel %vm88, %v5418, 0
  %5421 = vmatpush.xpose.msra.mxu0 0.0
  %5422 = vmatpush.xpose.msra.mxu0 0.0
  %5423 = vmatpush.xpose.msra.mxu0 0.0
  %5424 = vmatpush.xpose.msra.mxu0 0.0
  %5425 = vmatpush.xpose.msra.mxu0 0.0
  %5426 = vmatpush.xpose.msra.mxu0 0.0
  %5427 = vmatpush.xpose.msra.mxu0 0.0
  %5428 = vmatpush.xpose.msra.mxu0 0.0
  %5429 = vmatpush.xpose.msra.mxu0 0.0
  %5430 = vmatpush.xpose.msra.mxu0 0.0
  %5431 = vmatpush.xpose.msra.mxu0 0.0
  %5432 = vmatpush.xpose.msra.mxu0 0.0
  %5433 = vmatpush.xpose.msra.mxu0 0.0
  %5434 = vmatpush.xpose.msra.mxu0 0.0
  %5435 = vmatpush.xpose.msra.mxu0 0.0
  %5436 = vmatpush.xpose.msra.mxu0 %v2895
  %5437 = vmatmul.f32.gmra.mxu0 %v5419
  %v5438 = vpop.f32.mrf.mxu0
  %v5439 = vadd.f32 0.0, %v5438
  %5440 = vdwg.mxu0
  %v5441 = vsel %vm3226, %v5439, -inf
  %5442 = vmax.xlane.f32.xlu0 %v5441
  %v5443 = vpop.xlane.xlu0 %5442
  %v5444 = vsub.f32 %v5439, %v5443
  %v5445 = vmul.f32 %v5444, 1.442695
  %v5446 = vpow.pop %v5445
  %v5447 = vsel %vm3226, %v5446, 0.0
  %5448 = vadd.xlane.f32.xlu0 %v5447
  %v5449 = vpop.xlane.xlu0 %5448
  %v5450 = vrcp.pop %v5449
  %v5451 = vmul.f32 %v5446, %v5450
  %v5453 = vsel %vm3242, %v5451, 0
  %5455 = vmatpush.msra.mxu0 0.0
  %5456 = vmatpush.msra.mxu0 0.0
  %5457 = vmatpush.msra.mxu0 0.0
  %5458 = vmatpush.msra.mxu0 0.0
  %5459 = vmatpush.msra.mxu0 0.0
  %5460 = vmatpush.msra.mxu0 0.0
  %5461 = vmatpush.msra.mxu0 0.0
  %5462 = vmatpush.msra.mxu0 0.0
  %5463 = vmatpush.msra.mxu0 0.0
  %5464 = vmatpush.msra.mxu0 0.0
  %5465 = vmatpush.msra.mxu0 0.0
  %5466 = vmatpush.msra.mxu0 0.0
  %5467 = vmatpush.msra.mxu0 0.0
  %5468 = vmatpush.msra.mxu0 0.0
  %5469 = vmatpush.msra.mxu0 0.0
  %5470 = vmatpush.msra.mxu0 %v2915
  %5471 = vmatmul.f32.gmra.mxu0 %v5453
  %v5472 = vpop.f32.mrf.mxu0
  %v5473 = vadd.f32 0.0, %v5472
  %5474 = vdwg.mxu0
  %5475 = vmatpush.msra.mxu0 0.0
  %5476 = vmatpush.msra.mxu0 0.0
  %5477 = vmatpush.msra.mxu0 0.0
  %5478 = vmatpush.msra.mxu0 0.0
  %5479 = vmatpush.msra.mxu0 0.0
  %5480 = vmatpush.msra.mxu0 0.0
  %5481 = vmatpush.msra.mxu0 0.0
  %5482 = vmatpush.msra.mxu0 0.0
  %5483 = vmatpush.msra.mxu0 0.0
  %5484 = vmatpush.msra.mxu0 0.0
  %5485 = vmatpush.msra.mxu0 0.0
  %5486 = vmatpush.msra.mxu0 0.0
  %5487 = vmatpush.msra.mxu0 %v3241
  %5488 = vmatpush.msra.mxu0 %v3240
  %5489 = vmatpush.msra.mxu0 %v3239
  %5490 = vmatpush.msra.mxu0 %v3238
  %5491 = vmatmul.f32.gmra.mxu0 %v5419
  %v5492 = vpop.f32.mrf.mxu0
  %v5493 = vadd.f32 %v5473, %v5492
  %5494 = vdwg.mxu0
  %v5495 = vadd.f32 %v5493, %v3286
  %v5496 = vtanh.pop %v5495
  %v5498 = vsel %vm88, %v5496, 0
  %5500 = vmatpush.msra.mxu0 0.0
  %5501 = vmatpush.msra.mxu0 0.0
  %5502 = vmatpush.msra.mxu0 0.0
  %5503 = vmatpush.msra.mxu0 0.0
  %5504 = vmatpush.msra.mxu0 0.0
  %5505 = vmatpush.msra.mxu0 0.0
  %5506 = vmatpush.msra.mxu0 0.0
  %5507 = vmatpush.msra.mxu0 0.0
  %5508 = vmatpush.msra.mxu0 0.0
  %5509 = vmatpush.msra.mxu0 0.0
  %5510 = vmatpush.msra.mxu0 0.0
  %5511 = vmatpush.msra.mxu0 0.0
  %5512 = vmatpush.msra.mxu0 %v3292
  %5513 = vmatpush.msra.mxu0 %v3291
  %5514 = vmatpush.msra.mxu0 %v3290
  %5515 = vmatpush.msra.mxu0 %v3289
  %5516 = vmatmul.f32.gmra.mxu0 %v5498
  %v5517 = vpop.f32.mrf.mxu0
  %v5518 = vadd.f32 %v3293, %v5517
  %5519 = vdwg.mxu0
  %v5520 = vsel %vm3317, %v5518, -inf
  %5521 = vmax.xlane.f32.xlu0 %v5520
  %v5522 = vpop.xlane.xlu0 %5521
  %v5523 = vsub.f32 %v5518, %v5522
  %v5524 = vmul.f32 %v5523, 1.442695
  %v5525 = vpow.pop %v5524
  %v5526 = vsel %vm3317, %v5525, 0.0
  %5527 = vadd.xlane.f32.xlu0 %v5526
  %v5528 = vpop.xlane.xlu0 %5527
  %v5529 = vrcp.pop %v5528
  %v5530 = vmul.f32 %v5528, %v5529
  %v5531 = vsub.f32 1.0, %v5530
  %v5532 = vmul.f32 %v5529, %v5531
  %v5533 = vadd.f32 %v5529, %v5532
  %vm5534 = vweird.f32 %v5528
  %vm5535 = vweird.f32 %v5529
  %vm5536 = vmor %vm5534, %vm5535
  %v5537 = vsel %vm5536, %v5529, %v5533
  %v5538 = vand.u32 2147483647, %v5528
  %vm5539 = vcmp.eq.f32.partialorder %v5538, 8.507059e+37
  %v5540 = vand.u32 %v5528, 2147483648
  %v5541 = vor.u32 1.1754944e-38, %v5540
  %v5542 = vsel %vm5539, %v5541, %v5537
  %v5543 = vmul.f32 1.0, %v5542
  %vm5544 = vcmp.ge.f32.partialorder %v5518, %v5522
  %v5545 = vsel %vm5544, %v2917, 48.0
  %v5546 = vsel %vm3317, %v5545, inf
  %5547 = vmin.xlane.f32.xlu0 %v5546
  %v5548 = vpop.xlane.xlu0 %5547
  %vm5549 = vcmp.eq.s32.totalorder %v50, 6
  %v5550 = vcvt.f32.s32.to.zero.pseudo %v5548
  %v5551 = vsel %vm5549, %v5550, %v5184
  %v5552 = vsel %vm5549, %v5543, %v5185
  %vm5553 = vcmp.eq.f32.partialorder %v2917, %v5548
  %v5554 = vsel %vm5553, 1, 0
  %v5555 = vcvt.s32.f32 %v5554
  %5556 = vrot.lane.b32.xlu0 %v5301, 16
  %v5557 = vpop.permute.xlu0 %5556
  %v5559 = vsel %vm64, %v5555, %v5557
  %v5561 = vsel %vm2953, %v5559, 0
  %5563 = vmatpush.msra.mxu0 0.0
  %5564 = vmatpush.msra.mxu0 0.0
  %5565 = vmatpush.msra.mxu0 0.0
  %5566 = vmatpush.msra.mxu0 0.0
  %5567 = vmatpush.msra.mxu0 0.0
  %5568 = vmatpush.msra.mxu0 0.0
  %5569 = vmatpush.msra.mxu0 %v2945
  %5570 = vmatpush.msra.mxu0 %v2943
  %5571 = vmatpush.msra.mxu0 %v2941
  %5572 = vmatpush.msra.mxu0 %v2939
  %5573 = vmatpush.msra.mxu0 %v2937
  %5574 = vmatpush.msra.mxu0 %v2935
  %5575 = vmatpush.msra.mxu0 %v2933
  %5576 = vmatpush.msra.mxu0 %v2931
  %5577 = vmatpush.msra.mxu0 %v2929
  %5578 = vmatpush.msra.mxu0 %v2927
  %5579 = vmatmul.f32.gmra.mxu0 %v5561
  %v5580 = vpop.f32.mrf.mxu0
  %v5581 = vadd.f32 %v2949, %v5580
  %5582 = vdwg.mxu0
  %5583 = vmatpush.msra.mxu0 0.0
  %5584 = vmatpush.msra.mxu0 0.0
  %5585 = vmatpush.msra.mxu0 0.0
  %5586 = vmatpush.msra.mxu0 0.0
  %5587 = vmatpush.msra.mxu0 0.0
  %5588 = vmatpush.msra.mxu0 0.0
  %5589 = vmatpush.msra.mxu0 %v2946
  %5590 = vmatpush.msra.mxu0 %v2944
  %5591 = vmatpush.msra.mxu0 %v2942
  %5592 = vmatpush.msra.mxu0 %v2940
  %5593 = vmatpush.msra.mxu0 %v2938
  %5594 = vmatpush.msra.mxu0 %v2936
  %5595 = vmatpush.msra.mxu0 %v2934
  %5596 = vmatpush.msra.mxu0 %v2932
  %5597 = vmatpush.msra.mxu0 %v2930
  %5598 = vmatpush.msra.mxu0 %v2928
  %5599 = vmatmul.f32.gmra.mxu0 %v5561
  %v5600 = vpop.f32.mrf.mxu0
  %v5601 = vadd.f32 %v2950, %v5600
  %5602 = vdwg.mxu0
  %5604 = vrot.lane.b32.xlu0 %v5581, 32
  %v5605 = vpop.permute.xlu0 %5604
  %v5607 = vadd.f32 %v5581, %v5605
  %v5608 = vxor.u32 %v5607, 2147483648
  %v5609 = vmul.f32 %v5608, 1.442695
  %v5610 = vpow.pop %v5609
  %v5611 = vadd.f32 %v5610, 1.0
  %v5612 = vrcp.pop %v5611
  %v5613 = vmul.f32 %v5611, %v5612
  %v5614 = vsub.f32 1.0, %v5613
  %v5615 = vmul.f32 %v5612, %v5614
  %v5616 = vadd.f32 %v5612, %v5615
  %vm5617 = vweird.f32 %v5611
  %vm5618 = vweird.f32 %v5612
  %vm5619 = vmor %vm5617, %vm5618
  %v5620 = vsel %vm5619, %v5612, %v5616
  %v5621 = vand.u32 2147483647, %v5611
  %vm5622 = vcmp.eq.f32.partialorder %v5621, 8.507059e+37
  %v5623 = vand.u32 %v5611, 2147483648
  %v5624 = vor.u32 1.1754944e-38, %v5623
  %v5625 = vsel %vm5622, %v5624, %v5620
  %v5626 = vmul.f32 1.0, %v5625
  %5628 = vrot.lane.b32.xlu0 %v5601, 32
  %v5629 = vpop.permute.xlu0 %5628
  %v5631 = vadd.f32 %v5581, %v5629
  %v5632 = vxor.u32 %v5631, 2147483648
  %v5633 = vmul.f32 %v5632, 1.442695
  %v5634 = vpow.pop %v5633
  %v5635 = vadd.f32 %v5634, 1.0
  %v5636 = vrcp.pop %v5635
  %v5637 = vmul.f32 %v5635, %v5636
  %v5638 = vsub.f32 1.0, %v5637
  %v5639 = vmul.f32 %v5636, %v5638
  %v5640 = vadd.f32 %v5636, %v5639
  %vm5641 = vweird.f32 %v5635
  %vm5642 = vweird.f32 %v5636
  %vm5643 = vmor %vm5641, %vm5642
  %v5644 = vsel %vm5643, %v5636, %v5640
  %v5645 = vand.u32 2147483647, %v5635
  %vm5646 = vcmp.eq.f32.partialorder %v5645, 8.507059e+37
  %v5647 = vand.u32 %v5635, 2147483648
  %v5648 = vor.u32 1.1754944e-38, %v5647
  %v5649 = vsel %vm5646, %v5648, %v5644
  %v5650 = vmul.f32 1.0, %v5649
  %5651 = vrot.lane.b32.xlu0 %v5601, 96
  %v5652 = vpop.permute.xlu0 %5651
  %v5654 = vmul.f32 %v5626, %v5652
  %5656 = vrot.lane.b32.xlu0 %v5654, 64
  %v5657 = vpop.permute.xlu0 %5656
  %v5659 = vadd.f32 %v5581, %v5657
  %v5660 = vtanh.pop %v5659
  %v5661 = vsub.f32 1.0, %v5650
  %5663 = vrot.lane.b32.xlu0 %v5660, 96
  %v5664 = vpop.permute.xlu0 %5663
  %v5666 = vmul.f32 %v5661, %v5664
  %v5667 = vmul.f32 %v5650, %v5301
  %v5668 = vadd.f32 %v5666, %v5667
  %5670 = vrot.lane.b32.xlu0 %v5668, 96
  %v5671 = vpop.permute.xlu0 %5670
  %v5673 = vsel %vm88, %v5671, %v5415
  %v5675 = vsel %vm100, %v5673, 0
  %5677 = vmatpush.msra.mxu0 0.0
  %5678 = vmatpush.msra.mxu0 0.0
  %5679 = vmatpush.msra.mxu0 0.0
  %5680 = vmatpush.msra.mxu0 0.0
  %5681 = vmatpush.msra.mxu0 0.0
  %5682 = vmatpush.msra.mxu0 0.0
  %5683 = vmatpush.msra.mxu0 0.0
  %5684 = vmatpush.msra.mxu0 0.0
  %5685 = vmatpush.msra.mxu0 %v3083
  %5686 = vmatpush.msra.mxu0 %v3081
  %5687 = vmatpush.msra.mxu0 %v3079
  %5688 = vmatpush.msra.mxu0 %v3077
  %5689 = vmatpush.msra.mxu0 %v3075
  %5690 = vmatpush.msra.mxu0 %v3073
  %5691 = vmatpush.msra.mxu0 %v3071
  %5692 = vmatpush.msra.mxu0 %v3069
  %5693 = vmatmul.f32.gmra.mxu0 %v5675
  %v5694 = vpop.f32.mrf.mxu0
  %v5695 = vadd.f32 %v3088, %v5694
  %5696 = vdwg.mxu0
  %5697 = vmatpush.msra.mxu0 0.0
  %5698 = vmatpush.msra.mxu0 0.0
  %5699 = vmatpush.msra.mxu0 0.0
  %5700 = vmatpush.msra.mxu0 0.0
  %5701 = vmatpush.msra.mxu0 0.0
  %5702 = vmatpush.msra.mxu0 0.0
  %5703 = vmatpush.msra.mxu0 0.0
  %5704 = vmatpush.msra.mxu0 0.0
  %5705 = vmatpush.msra.mxu0 %v3084
  %5706 = vmatpush.msra.mxu0 %v3082
  %5707 = vmatpush.msra.mxu0 %v3080
  %5708 = vmatpush.msra.mxu0 %v3078
  %5709 = vmatpush.msra.mxu0 %v3076
  %5710 = vmatpush.msra.mxu0 %v3074
  %5711 = vmatpush.msra.mxu0 %v3072
  %5712 = vmatpush.msra.mxu0 %v3070
  %5713 = vmatmul.f32.gmra.mxu0 %v5675
  %v5714 = vpop.f32.mrf.mxu0
  %v5715 = vadd.f32 %v3089, %v5714
  %5716 = vdwg.mxu0
  %5718 = vrot.lane.b32.xlu0 %v5695, 32
  %v5719 = vpop.permute.xlu0 %5718
  %v5721 = vadd.f32 %v5695, %v5719
  %v5722 = vxor.u32 %v5721, 2147483648
  %v5723 = vmul.f32 %v5722, 1.442695
  %v5724 = vpow.pop %v5723
  %v5725 = vadd.f32 %v5724, 1.0
  %v5726 = vrcp.pop %v5725
  %v5727 = vmul.f32 %v5725, %v5726
  %v5728 = vsub.f32 1.0, %v5727
  %v5729 = vmul.f32 %v5726, %v5728
  %v5730 = vadd.f32 %v5726, %v5729
  %vm5731 = vweird.f32 %v5725
  %vm5732 = vweird.f32 %v5726
  %vm5733 = vmor %vm5731, %vm5732
  %v5734 = vsel %vm5733, %v5726, %v5730
  %v5735 = vand.u32 2147483647, %v5725
  %vm5736 = vcmp.eq.f32.partialorder %v5735, 8.507059e+37
  %v5737 = vand.u32 %v5725, 2147483648
  %v5738 = vor.u32 1.1754944e-38, %v5737
  %v5739 = vsel %vm5736, %v5738, %v5734
  %v5740 = vmul.f32 1.0, %v5739
  %5742 = vrot.lane.b32.xlu0 %v5715, 32
  %v5743 = vpop.permute.xlu0 %5742
  %v5745 = vadd.f32 %v5695, %v5743
  %v5746 = vxor.u32 %v5745, 2147483648
  %v5747 = vmul.f32 %v5746, 1.442695
  %v5748 = vpow.pop %v5747
  %v5749 = vadd.f32 %v5748, 1.0
  %v5750 = vrcp.pop %v5749
  %v5751 = vmul.f32 %v5749, %v5750
  %v5752 = vsub.f32 1.0, %v5751
  %v5753 = vmul.f32 %v5750, %v5752
  %v5754 = vadd.f32 %v5750, %v5753
  %vm5755 = vweird.f32 %v5749
  %vm5756 = vweird.f32 %v5750
  %vm5757 = vmor %vm5755, %vm5756
  %v5758 = vsel %vm5757, %v5750, %v5754
  %v5759 = vand.u32 2147483647, %v5749
  %vm5760 = vcmp.eq.f32.partialorder %v5759, 8.507059e+37
  %v5761 = vand.u32 %v5749, 2147483648
  %v5762 = vor.u32 1.1754944e-38, %v5761
  %v5763 = vsel %vm5760, %v5762, %v5758
  %v5764 = vmul.f32 1.0, %v5763
  %5765 = vrot.lane.b32.xlu0 %v5715, 96
  %v5766 = vpop.permute.xlu0 %5765
  %v5768 = vmul.f32 %v5740, %v5766
  %5770 = vrot.lane.b32.xlu0 %v5768, 64
  %v5771 = vpop.permute.xlu0 %5770
  %v5773 = vadd.f32 %v5695, %v5771
  %v5774 = vtanh.pop %v5773
  %v5775 = vsub.f32 1.0, %v5764
  %5777 = vrot.lane.b32.xlu0 %v5774, 96
  %v5778 = vpop.permute.xlu0 %5777
  %v5780 = vmul.f32 %v5775, %v5778
  %v5781 = vmul.f32 %v5764, %v5415
  %v5782 = vadd.f32 %v5780, %v5781
  %5784 = vrot.lane.b32.xlu0 %v5782, 96
  %v5785 = vpop.permute.xlu0 %5784
  %v5786 = vsel %vm88, %v5785, 0
  %5788 = vmatpush.xpose.msra.mxu0 0.0
  %5789 = vmatpush.xpose.msra.mxu0 0.0
  %5790 = vmatpush.xpose.msra.mxu0 0.0
  %5791 = vmatpush.xpose.msra.mxu0 0.0
  %5792 = vmatpush.xpose.msra.mxu0 0.0
  %5793 = vmatpush.xpose.msra.mxu0 0.0
  %5794 = vmatpush.xpose.msra.mxu0 0.0
  %5795 = vmatpush.xpose.msra.mxu0 0.0
  %5796 = vmatpush.xpose.msra.mxu0 0.0
  %5797 = vmatpush.xpose.msra.mxu0 0.0
  %5798 = vmatpush.xpose.msra.mxu0 0.0
  %5799 = vmatpush.xpose.msra.mxu0 0.0
  %5800 = vmatpush.xpose.msra.mxu0 0.0
  %5801 = vmatpush.xpose.msra.mxu0 0.0
  %5802 = vmatpush.xpose.msra.mxu0 0.0
  %5803 = vmatpush.xpose.msra.mxu0 %v2895
  %5804 = vmatmul.f32.gmra.mxu0 %v5786
  %v5805 = vpop.f32.mrf.mxu0
  %v5806 = vadd.f32 0.0, %v5805
  %5807 = vdwg.mxu0
  %v5808 = vsel %vm3226, %v5806, -inf
  %5809 = vmax.xlane.f32.xlu0 %v5808
  %v5810 = vpop.xlane.xlu0 %5809
  %v5811 = vsub.f32 %v5806, %v5810
  %v5812 = vmul.f32 %v5811, 1.442695
  %v5813 = vpow.pop %v5812
  %v5814 = vsel %vm3226, %v5813, 0.0
  %5815 = vadd.xlane.f32.xlu0 %v5814
  %v5816 = vpop.xlane.xlu0 %5815
  %v5817 = vrcp.pop %v5816
  %v5818 = vmul.f32 %v5813, %v5817
  %v5820 = vsel %vm3242, %v5818, 0
  %5822 = vmatpush.msra.mxu0 0.0
  %5823 = vmatpush.msra.mxu0 0.0
  %5824 = vmatpush.msra.mxu0 0.0
  %5825 = vmatpush.msra.mxu0 0.0
  %5826 = vmatpush.msra.mxu0 0.0
  %5827 = vmatpush.msra.mxu0 0.0
  %5828 = vmatpush.msra.mxu0 0.0
  %5829 = vmatpush.msra.mxu0 0.0
  %5830 = vmatpush.msra.mxu0 0.0
  %5831 = vmatpush.msra.mxu0 0.0
  %5832 = vmatpush.msra.mxu0 0.0
  %5833 = vmatpush.msra.mxu0 0.0
  %5834 = vmatpush.msra.mxu0 0.0
  %5835 = vmatpush.msra.mxu0 0.0
  %5836 = vmatpush.msra.mxu0 0.0
  %5837 = vmatpush.msra.mxu0 %v2915
  %5838 = vmatmul.f32.gmra.mxu0 %v5820
  %v5839 = vpop.f32.mrf.mxu0
  %v5840 = vadd.f32 0.0, %v5839
  %5841 = vdwg.mxu0
  %5842 = vmatpush.msra.mxu0 0.0
  %5843 = vmatpush.msra.mxu0 0.0
  %5844 = vmatpush.msra.mxu0 0.0
  %5845 = vmatpush.msra.mxu0 0.0
  %5846 = vmatpush.msra.mxu0 0.0
  %5847 = vmatpush.msra.mxu0 0.0
  %5848 = vmatpush.msra.mxu0 0.0
  %5849 = vmatpush.msra.mxu0 0.0
  %5850 = vmatpush.msra.mxu0 0.0
  %5851 = vmatpush.msra.mxu0 0.0
  %5852 = vmatpush.msra.mxu0 0.0
  %5853 = vmatpush.msra.mxu0 0.0
  %5854 = vmatpush.msra.mxu0 %v3241
  %5855 = vmatpush.msra.mxu0 %v3240
  %5856 = vmatpush.msra.mxu0 %v3239
  %5857 = vmatpush.msra.mxu0 %v3238
  %5858 = vmatmul.f32.gmra.mxu0 %v5786
  %v5859 = vpop.f32.mrf.mxu0
  %v5860 = vadd.f32 %v5840, %v5859
  %5861 = vdwg.mxu0
  %v5862 = vadd.f32 %v5860, %v3286
  %v5863 = vtanh.pop %v5862
  %v5865 = vsel %vm88, %v5863, 0
  %5867 = vmatpush.msra.mxu0 0.0
  %5868 = vmatpush.msra.mxu0 0.0
  %5869 = vmatpush.msra.mxu0 0.0
  %5870 = vmatpush.msra.mxu0 0.0
  %5871 = vmatpush.msra.mxu0 0.0
  %5872 = vmatpush.msra.mxu0 0.0
  %5873 = vmatpush.msra.mxu0 0.0
  %5874 = vmatpush.msra.mxu0 0.0
  %5875 = vmatpush.msra.mxu0 0.0
  %5876 = vmatpush.msra.mxu0 0.0
  %5877 = vmatpush.msra.mxu0 0.0
  %5878 = vmatpush.msra.mxu0 0.0
  %5879 = vmatpush.msra.mxu0 %v3292
  %5880 = vmatpush.msra.mxu0 %v3291
  %5881 = vmatpush.msra.mxu0 %v3290
  %5882 = vmatpush.msra.mxu0 %v3289
  %5883 = vmatmul.f32.gmra.mxu0 %v5865
  %v5884 = vpop.f32.mrf.mxu0
  %v5885 = vadd.f32 %v3293, %v5884
  %5886 = vdwg.mxu0
  %v5887 = vsel %vm3317, %v5885, -inf
  %5888 = vmax.xlane.f32.xlu0 %v5887
  %v5889 = vpop.xlane.xlu0 %5888
  %v5890 = vsub.f32 %v5885, %v5889
  %v5891 = vmul.f32 %v5890, 1.442695
  %v5892 = vpow.pop %v5891
  %v5893 = vsel %vm3317, %v5892, 0.0
  %5894 = vadd.xlane.f32.xlu0 %v5893
  %v5895 = vpop.xlane.xlu0 %5894
  %v5896 = vrcp.pop %v5895
  %v5897 = vmul.f32 %v5895, %v5896
  %v5898 = vsub.f32 1.0, %v5897
  %v5899 = vmul.f32 %v5896, %v5898
  %v5900 = vadd.f32 %v5896, %v5899
  %vm5901 = vweird.f32 %v5895
  %vm5902 = vweird.f32 %v5896
  %vm5903 = vmor %vm5901, %vm5902
  %v5904 = vsel %vm5903, %v5896, %v5900
  %v5905 = vand.u32 2147483647, %v5895
  %vm5906 = vcmp.eq.f32.partialorder %v5905, 8.507059e+37
  %v5907 = vand.u32 %v5895, 2147483648
  %v5908 = vor.u32 1.1754944e-38, %v5907
  %v5909 = vsel %vm5906, %v5908, %v5904
  %v5910 = vmul.f32 1.0, %v5909
  %vm5911 = vcmp.ge.f32.partialorder %v5885, %v5889
  %v5912 = vsel %vm5911, %v2917, 48.0
  %v5913 = vsel %vm3317, %v5912, inf
  %5914 = vmin.xlane.f32.xlu0 %v5913
  %v5915 = vpop.xlane.xlu0 %5914
  %vm5916 = vcmp.eq.s32.totalorder %v50, 7
  %v5917 = vcvt.f32.s32.to.zero.pseudo %v5915
  %v5918 = vsel %vm5916, %v5917, %v5551
  %v5919 = vsel %vm5916, %v5910, %v5552
  %vm5920 = vcmp.eq.f32.partialorder %v2917, %v5915
  %v5921 = vsel %vm5920, 1, 0
  %v5922 = vcvt.s32.f32 %v5921
  %5923 = vrot.lane.b32.xlu0 %v5668, 16
  %v5924 = vpop.permute.xlu0 %5923
  %v5926 = vsel %vm64, %v5922, %v5924
  %v5928 = vsel %vm2953, %v5926, 0
  %5930 = vmatpush.msra.mxu0 0.0
  %5931 = vmatpush.msra.mxu0 0.0
  %5932 = vmatpush.msra.mxu0 0.0
  %5933 = vmatpush.msra.mxu0 0.0
  %5934 = vmatpush.msra.mxu0 0.0
  %5935 = vmatpush.msra.mxu0 0.0
  %5936 = vmatpush.msra.mxu0 %v2945
  %5937 = vmatpush.msra.mxu0 %v2943
  %5938 = vmatpush.msra.mxu0 %v2941
  %5939 = vmatpush.msra.mxu0 %v2939
  %5940 = vmatpush.msra.mxu0 %v2937
  %5941 = vmatpush.msra.mxu0 %v2935
  %5942 = vmatpush.msra.mxu0 %v2933
  %5943 = vmatpush.msra.mxu0 %v2931
  %5944 = vmatpush.msra.mxu0 %v2929
  %5945 = vmatpush.msra.mxu0 %v2927
  %5946 = vmatmul.f32.gmra.mxu0 %v5928
  %v5947 = vpop.f32.mrf.mxu0
  %v5948 = vadd.f32 %v2949, %v5947
  %5949 = vdwg.mxu0
  %5950 = vmatpush.msra.mxu0 0.0
  %5951 = vmatpush.msra.mxu0 0.0
  %5952 = vmatpush.msra.mxu0 0.0
  %5953 = vmatpush.msra.mxu0 0.0
  %5954 = vmatpush.msra.mxu0 0.0
  %5955 = vmatpush.msra.mxu0 0.0
  %5956 = vmatpush.msra.mxu0 %v2946
  %5957 = vmatpush.msra.mxu0 %v2944
  %5958 = vmatpush.msra.mxu0 %v2942
  %5959 = vmatpush.msra.mxu0 %v2940
  %5960 = vmatpush.msra.mxu0 %v2938
  %5961 = vmatpush.msra.mxu0 %v2936
  %5962 = vmatpush.msra.mxu0 %v2934
  %5963 = vmatpush.msra.mxu0 %v2932
  %5964 = vmatpush.msra.mxu0 %v2930
  %5965 = vmatpush.msra.mxu0 %v2928
  %5966 = vmatmul.f32.gmra.mxu0 %v5928
  %v5967 = vpop.f32.mrf.mxu0
  %v5968 = vadd.f32 %v2950, %v5967
  %5969 = vdwg.mxu0
  %5971 = vrot.lane.b32.xlu0 %v5948, 32
  %v5972 = vpop.permute.xlu0 %5971
  %v5974 = vadd.f32 %v5948, %v5972
  %v5975 = vxor.u32 %v5974, 2147483648
  %v5976 = vmul.f32 %v5975, 1.442695
  %v5977 = vpow.pop %v5976
  %v5978 = vadd.f32 %v5977, 1.0
  %v5979 = vrcp.pop %v5978
  %v5980 = vmul.f32 %v5978, %v5979
  %v5981 = vsub.f32 1.0, %v5980
  %v5982 = vmul.f32 %v5979, %v5981
  %v5983 = vadd.f32 %v5979, %v5982
  %vm5984 = vweird.f32 %v5978
  %vm5985 = vweird.f32 %v5979
  %vm5986 = vmor %vm5984, %vm5985
  %v5987 = vsel %vm5986, %v5979, %v5983
  %v5988 = vand.u32 2147483647, %v5978
  %vm5989 = vcmp.eq.f32.partialorder %v5988, 8.507059e+37
  %v5990 = vand.u32 %v5978, 2147483648
  %v5991 = vor.u32 1.1754944e-38, %v5990
  %v5992 = vsel %vm5989, %v5991, %v5987
  %v5993 = vmul.f32 1.0, %v5992
  %5995 = vrot.lane.b32.xlu0 %v5968, 32
  %v5996 = vpop.permute.xlu0 %5995
  %v5998 = vadd.f32 %v5948, %v5996
  %v5999 = vxor.u32 %v5998, 2147483648
  %v6000 = vmul.f32 %v5999, 1.442695
  %v6001 = vpow.pop %v6000
  %v6002 = vadd.f32 %v6001, 1.0
  %v6003 = vrcp.pop %v6002
  %v6004 = vmul.f32 %v6002, %v6003
  %v6005 = vsub.f32 1.0, %v6004
  %v6006 = vmul.f32 %v6003, %v6005
  %v6007 = vadd.f32 %v6003, %v6006
  %vm6008 = vweird.f32 %v6002
  %vm6009 = vweird.f32 %v6003
  %vm6010 = vmor %vm6008, %vm6009
  %v6011 = vsel %vm6010, %v6003, %v6007
  %v6012 = vand.u32 2147483647, %v6002
  %vm6013 = vcmp.eq.f32.partialorder %v6012, 8.507059e+37
  %v6014 = vand.u32 %v6002, 2147483648
  %v6015 = vor.u32 1.1754944e-38, %v6014
  %v6016 = vsel %vm6013, %v6015, %v6011
  %v6017 = vmul.f32 1.0, %v6016
  %6018 = vrot.lane.b32.xlu0 %v5968, 96
  %v6019 = vpop.permute.xlu0 %6018
  %v6021 = vmul.f32 %v5993, %v6019
  %6023 = vrot.lane.b32.xlu0 %v6021, 64
  %v6024 = vpop.permute.xlu0 %6023
  %v6026 = vadd.f32 %v5948, %v6024
  %v6027 = vtanh.pop %v6026
  %v6028 = vsub.f32 1.0, %v6017
  %6030 = vrot.lane.b32.xlu0 %v6027, 96
  %v6031 = vpop.permute.xlu0 %6030
  %v6033 = vmul.f32 %v6028, %v6031
  %v6034 = vmul.f32 %v6017, %v5668
  %v6035 = vadd.f32 %v6033, %v6034
  %6037 = vrot.lane.b32.xlu0 %v6035, 96
  %v6038 = vpop.permute.xlu0 %6037
  %v6040 = vsel %vm88, %v6038, %v5782
  %v6042 = vsel %vm100, %v6040, 0
  %6044 = vmatpush.msra.mxu0 0.0
  %6045 = vmatpush.msra.mxu0 0.0
  %6046 = vmatpush.msra.mxu0 0.0
  %6047 = vmatpush.msra.mxu0 0.0
  %6048 = vmatpush.msra.mxu0 0.0
  %6049 = vmatpush.msra.mxu0 0.0
  %6050 = vmatpush.msra.mxu0 0.0
  %6051 = vmatpush.msra.mxu0 0.0
  %6052 = vmatpush.msra.mxu0 %v3083
  %6053 = vmatpush.msra.mxu0 %v3081
  %6054 = vmatpush.msra.mxu0 %v3079
  %6055 = vmatpush.msra.mxu0 %v3077
  %6056 = vmatpush.msra.mxu0 %v3075
  %6057 = vmatpush.msra.mxu0 %v3073
  %6058 = vmatpush.msra.mxu0 %v3071
  %6059 = vmatpush.msra.mxu0 %v3069
  %6060 = vmatmul.f32.gmra.mxu0 %v6042
  %v6061 = vpop.f32.mrf.mxu0
  %v6062 = vadd.f32 %v3088, %v6061
  %6063 = vdwg.mxu0
  %6064 = vmatpush.msra.mxu0 0.0
  %6065 = vmatpush.msra.mxu0 0.0
  %6066 = vmatpush.msra.mxu0 0.0
  %6067 = vmatpush.msra.mxu0 0.0
  %6068 = vmatpush.msra.mxu0 0.0
  %6069 = vmatpush.msra.mxu0 0.0
  %6070 = vmatpush.msra.mxu0 0.0
  %6071 = vmatpush.msra.mxu0 0.0
  %6072 = vmatpush.msra.mxu0 %v3084
  %6073 = vmatpush.msra.mxu0 %v3082
  %6074 = vmatpush.msra.mxu0 %v3080
  %6075 = vmatpush.msra.mxu0 %v3078
  %6076 = vmatpush.msra.mxu0 %v3076
  %6077 = vmatpush.msra.mxu0 %v3074
  %6078 = vmatpush.msra.mxu0 %v3072
  %6079 = vmatpush.msra.mxu0 %v3070
  %6080 = vmatmul.f32.gmra.mxu0 %v6042
  %v6081 = vpop.f32.mrf.mxu0
  %v6082 = vadd.f32 %v3089, %v6081
  %6083 = vdwg.mxu0
  %6085 = vrot.lane.b32.xlu0 %v6062, 32
  %v6086 = vpop.permute.xlu0 %6085
  %v6088 = vadd.f32 %v6062, %v6086
  %v6089 = vxor.u32 %v6088, 2147483648
  %v6090 = vmul.f32 %v6089, 1.442695
  %v6091 = vpow.pop %v6090
  %v6092 = vadd.f32 %v6091, 1.0
  %v6093 = vrcp.pop %v6092
  %v6094 = vmul.f32 %v6092, %v6093
  %v6095 = vsub.f32 1.0, %v6094
  %v6096 = vmul.f32 %v6093, %v6095
  %v6097 = vadd.f32 %v6093, %v6096
  %vm6098 = vweird.f32 %v6092
  %vm6099 = vweird.f32 %v6093
  %vm6100 = vmor %vm6098, %vm6099
  %v6101 = vsel %vm6100, %v6093, %v6097
  %v6102 = vand.u32 2147483647, %v6092
  %vm6103 = vcmp.eq.f32.partialorder %v6102, 8.507059e+37
  %v6104 = vand.u32 %v6092, 2147483648
  %v6105 = vor.u32 1.1754944e-38, %v6104
  %v6106 = vsel %vm6103, %v6105, %v6101
  %v6107 = vmul.f32 1.0, %v6106
  %6109 = vrot.lane.b32.xlu0 %v6082, 32
  %v6110 = vpop.permute.xlu0 %6109
  %v6112 = vadd.f32 %v6062, %v6110
  %v6113 = vxor.u32 %v6112, 2147483648
  %v6114 = vmul.f32 %v6113, 1.442695
  %v6115 = vpow.pop %v6114
  %v6116 = vadd.f32 %v6115, 1.0
  %v6117 = vrcp.pop %v6116
  %v6118 = vmul.f32 %v6116, %v6117
  %v6119 = vsub.f32 1.0, %v6118
  %v6120 = vmul.f32 %v6117, %v6119
  %v6121 = vadd.f32 %v6117, %v6120
  %vm6122 = vweird.f32 %v6116
  %vm6123 = vweird.f32 %v6117
  %vm6124 = vmor %vm6122, %vm6123
  %v6125 = vsel %vm6124, %v6117, %v6121
  %v6126 = vand.u32 2147483647, %v6116
  %vm6127 = vcmp.eq.f32.partialorder %v6126, 8.507059e+37
  %v6128 = vand.u32 %v6116, 2147483648
  %v6129 = vor.u32 1.1754944e-38, %v6128
  %v6130 = vsel %vm6127, %v6129, %v6125
  %v6131 = vmul.f32 1.0, %v6130
  %6132 = vrot.lane.b32.xlu0 %v6082, 96
  %v6133 = vpop.permute.xlu0 %6132
  %v6135 = vmul.f32 %v6107, %v6133
  %6137 = vrot.lane.b32.xlu0 %v6135, 64
  %v6138 = vpop.permute.xlu0 %6137
  %v6140 = vadd.f32 %v6062, %v6138
  %v6141 = vtanh.pop %v6140
  %v6142 = vsub.f32 1.0, %v6131
  %6144 = vrot.lane.b32.xlu0 %v6141, 96
  %v6145 = vpop.permute.xlu0 %6144
  %v6147 = vmul.f32 %v6142, %v6145
  %v6148 = vmul.f32 %v6131, %v5782
  %v6149 = vadd.f32 %v6147, %v6148
  %6151 = vrot.lane.b32.xlu0 %v6149, 96
  %v6152 = vpop.permute.xlu0 %6151
  %v6153 = vsel %vm88, %v6152, 0
  %6155 = vmatpush.xpose.msra.mxu0 0.0
  %6156 = vmatpush.xpose.msra.mxu0 0.0
  %6157 = vmatpush.xpose.msra.mxu0 0.0
  %6158 = vmatpush.xpose.msra.mxu0 0.0
  %6159 = vmatpush.xpose.msra.mxu0 0.0
  %6160 = vmatpush.xpose.msra.mxu0 0.0
  %6161 = vmatpush.xpose.msra.mxu0 0.0
  %6162 = vmatpush.xpose.msra.mxu0 0.0
  %6163 = vmatpush.xpose.msra.mxu0 0.0
  %6164 = vmatpush.xpose.msra.mxu0 0.0
  %6165 = vmatpush.xpose.msra.mxu0 0.0
  %6166 = vmatpush.xpose.msra.mxu0 0.0
  %6167 = vmatpush.xpose.msra.mxu0 0.0
  %6168 = vmatpush.xpose.msra.mxu0 0.0
  %6169 = vmatpush.xpose.msra.mxu0 0.0
  %6170 = vmatpush.xpose.msra.mxu0 %v2895
  %6171 = vmatmul.f32.gmra.mxu0 %v6153
  %v6172 = vpop.f32.mrf.mxu0
  %v6173 = vadd.f32 0.0, %v6172
  %6174 = vdwg.mxu0
  %v6175 = vsel %vm3226, %v6173, -inf
  %6176 = vmax.xlane.f32.xlu0 %v6175
  %v6177 = vpop.xlane.xlu0 %6176
  %v6178 = vsub.f32 %v6173, %v6177
  %v6179 = vmul.f32 %v6178, 1.442695
  %v6180 = vpow.pop %v6179
  %v6181 = vsel %vm3226, %v6180, 0.0
  %6182 = vadd.xlane.f32.xlu0 %v6181
  %v6183 = vpop.xlane.xlu0 %6182
  %v6184 = vrcp.pop %v6183
  %v6185 = vmul.f32 %v6180, %v6184
  %v6187 = vsel %vm3242, %v6185, 0
  %6189 = vmatpush.msra.mxu0 0.0
  %6190 = vmatpush.msra.mxu0 0.0
  %6191 = vmatpush.msra.mxu0 0.0
  %6192 = vmatpush.msra.mxu0 0.0
  %6193 = vmatpush.msra.mxu0 0.0
  %6194 = vmatpush.msra.mxu0 0.0
  %6195 = vmatpush.msra.mxu0 0.0
  %6196 = vmatpush.msra.mxu0 0.0
  %6197 = vmatpush.msra.mxu0 0.0
  %6198 = vmatpush.msra.mxu0 0.0
  %6199 = vmatpush.msra.mxu0 0.0
  %6200 = vmatpush.msra.mxu0 0.0
  %6201 = vmatpush.msra.mxu0 0.0
  %6202 = vmatpush.msra.mxu0 0.0
  %6203 = vmatpush.msra.mxu0 0.0
  %6204 = vmatpush.msra.mxu0 %v2915
  %6205 = vmatmul.f32.gmra.mxu0 %v6187
  %v6206 = vpop.f32.mrf.mxu0
  %v6207 = vadd.f32 0.0, %v6206
  %6208 = vdwg.mxu0
  %6209 = vmatpush.msra.mxu0 0.0
  %6210 = vmatpush.msra.mxu0 0.0
  %6211 = vmatpush.msra.mxu0 0.0
  %6212 = vmatpush.msra.mxu0 0.0
  %6213 = vmatpush.msra.mxu0 0.0
  %6214 = vmatpush.msra.mxu0 0.0
  %6215 = vmatpush.msra.mxu0 0.0
  %6216 = vmatpush.msra.mxu0 0.0
  %6217 = vmatpush.msra.mxu0 0.0
  %6218 = vmatpush.msra.mxu0 0.0
  %6219 = vmatpush.msra.mxu0 0.0
  %6220 = vmatpush.msra.mxu0 0.0
  %6221 = vmatpush.msra.mxu0 %v3241
  %6222 = vmatpush.msra.mxu0 %v3240
  %6223 = vmatpush.msra.mxu0 %v3239
  %6224 = vmatpush.msra.mxu0 %v3238
  %6225 = vmatmul.f32.gmra.mxu0 %v6153
  %v6226 = vpop.f32.mrf.mxu0
  %v6227 = vadd.f32 %v6207, %v6226
  %6228 = vdwg.mxu0
  %v6229 = vadd.f32 %v6227, %v3286
  %v6230 = vtanh.pop %v6229
  %v6232 = vsel %vm88, %v6230, 0
  %6234 = vmatpush.msra.mxu0 0.0
  %6235 = vmatpush.msra.mxu0 0.0
  %6236 = vmatpush.msra.mxu0 0.0
  %6237 = vmatpush.msra.mxu0 0.0
  %6238 = vmatpush.msra.mxu0 0.0
  %6239 = vmatpush.msra.mxu0 0.0
  %6240 = vmatpush.msra.mxu0 0.0
  %6241 = vmatpush.msra.mxu0 0.0
  %6242 = vmatpush.msra.mxu0 0.0
  %6243 = vmatpush.msra.mxu0 0.0
  %6244 = vmatpush.msra.mxu0 0.0
  %6245 = vmatpush.msra.mxu0 0.0
  %6246 = vmatpush.msra.mxu0 %v3292
  %6247 = vmatpush.msra.mxu0 %v3291
  %6248 = vmatpush.msra.mxu0 %v3290
  %6249 = vmatpush.msra.mxu0 %v3289
  %6250 = vmatmul.f32.gmra.mxu0 %v6232
  %v6251 = vpop.f32.mrf.mxu0
  %v6252 = vadd.f32 %v3293, %v6251
  %6253 = vdwg.mxu0
  %v6254 = vsel %vm3317, %v6252, -inf
  %6255 = vmax.xlane.f32.xlu0 %v6254
  %v6256 = vpop.xlane.xlu0 %6255
  %v6257 = vsub.f32 %v6252, %v6256
  %v6258 = vmul.f32 %v6257, 1.442695
  %v6259 = vpow.pop %v6258
  %v6260 = vsel %vm3317, %v6259, 0.0
  %6261 = vadd.xlane.f32.xlu0 %v6260
  %v6262 = vpop.xlane.xlu0 %6261
  %v6263 = vrcp.pop %v6262
  %v6264 = vmul.f32 %v6262, %v6263
  %v6265 = vsub.f32 1.0, %v6264
  %v6266 = vmul.f32 %v6263, %v6265
  %v6267 = vadd.f32 %v6263, %v6266
  %vm6268 = vweird.f32 %v6262
  %vm6269 = vweird.f32 %v6263
  %vm6270 = vmor %vm6268, %vm6269
  %v6271 = vsel %vm6270, %v6263, %v6267
  %v6272 = vand.u32 2147483647, %v6262
  %vm6273 = vcmp.eq.f32.partialorder %v6272, 8.507059e+37
  %v6274 = vand.u32 %v6262, 2147483648
  %v6275 = vor.u32 1.1754944e-38, %v6274
  %v6276 = vsel %vm6273, %v6275, %v6271
  %v6277 = vmul.f32 1.0, %v6276
  %vm6278 = vcmp.ge.f32.partialorder %v6252, %v6256
  %v6279 = vsel %vm6278, %v2917, 48.0
  %v6280 = vsel %vm3317, %v6279, inf
  %6281 = vmin.xlane.f32.xlu0 %v6280
  %v6282 = vpop.xlane.xlu0 %6281
  %vm6283 = vcmp.eq.s32.totalorder %v50, 8
  %v6284 = vcvt.f32.s32.to.zero.pseudo %v6282
  %v6285 = vsel %vm6283, %v6284, %v5918
  %v6286 = vsel %vm6283, %v6277, %v5919
  %vm6287 = vcmp.eq.f32.partialorder %v2917, %v6282
  %v6288 = vsel %vm6287, 1, 0
  %v6289 = vcvt.s32.f32 %v6288
  %6290 = vrot.lane.b32.xlu0 %v6035, 16
  %v6291 = vpop.permute.xlu0 %6290
  %v6293 = vsel %vm64, %v6289, %v6291
  %v6295 = vsel %vm2953, %v6293, 0
  %6297 = vmatpush.msra.mxu0 0.0
  %6298 = vmatpush.msra.mxu0 0.0
  %6299 = vmatpush.msra.mxu0 0.0
  %6300 = vmatpush.msra.mxu0 0.0
  %6301 = vmatpush.msra.mxu0 0.0
  %6302 = vmatpush.msra.mxu0 0.0
  %6303 = vmatpush.msra.mxu0 %v2945
  %6304 = vmatpush.msra.mxu0 %v2943
  %6305 = vmatpush.msra.mxu0 %v2941
  %6306 = vmatpush.msra.mxu0 %v2939
  %6307 = vmatpush.msra.mxu0 %v2937
  %6308 = vmatpush.msra.mxu0 %v2935
  %6309 = vmatpush.msra.mxu0 %v2933
  %6310 = vmatpush.msra.mxu0 %v2931
  %6311 = vmatpush.msra.mxu0 %v2929
  %6312 = vmatpush.msra.mxu0 %v2927
  %6313 = vmatmul.f32.gmra.mxu0 %v6295
  %v6314 = vpop.f32.mrf.mxu0
  %v6315 = vadd.f32 %v2949, %v6314
  %6316 = vdwg.mxu0
  %6317 = vmatpush.msra.mxu0 0.0
  %6318 = vmatpush.msra.mxu0 0.0
  %6319 = vmatpush.msra.mxu0 0.0
  %6320 = vmatpush.msra.mxu0 0.0
  %6321 = vmatpush.msra.mxu0 0.0
  %6322 = vmatpush.msra.mxu0 0.0
  %6323 = vmatpush.msra.mxu0 %v2946
  %6324 = vmatpush.msra.mxu0 %v2944
  %6325 = vmatpush.msra.mxu0 %v2942
  %6326 = vmatpush.msra.mxu0 %v2940
  %6327 = vmatpush.msra.mxu0 %v2938
  %6328 = vmatpush.msra.mxu0 %v2936
  %6329 = vmatpush.msra.mxu0 %v2934
  %6330 = vmatpush.msra.mxu0 %v2932
  %6331 = vmatpush.msra.mxu0 %v2930
  %6332 = vmatpush.msra.mxu0 %v2928
  %6333 = vmatmul.f32.gmra.mxu0 %v6295
  %v6334 = vpop.f32.mrf.mxu0
  %v6335 = vadd.f32 %v2950, %v6334
  %6336 = vdwg.mxu0
  %6338 = vrot.lane.b32.xlu0 %v6315, 32
  %v6339 = vpop.permute.xlu0 %6338
  %v6341 = vadd.f32 %v6315, %v6339
  %v6342 = vxor.u32 %v6341, 2147483648
  %v6343 = vmul.f32 %v6342, 1.442695
  %v6344 = vpow.pop %v6343
  %v6345 = vadd.f32 %v6344, 1.0
  %v6346 = vrcp.pop %v6345
  %v6347 = vmul.f32 %v6345, %v6346
  %v6348 = vsub.f32 1.0, %v6347
  %v6349 = vmul.f32 %v6346, %v6348
  %v6350 = vadd.f32 %v6346, %v6349
  %vm6351 = vweird.f32 %v6345
  %vm6352 = vweird.f32 %v6346
  %vm6353 = vmor %vm6351, %vm6352
  %v6354 = vsel %vm6353, %v6346, %v6350
  %v6355 = vand.u32 2147483647, %v6345
  %vm6356 = vcmp.eq.f32.partialorder %v6355, 8.507059e+37
  %v6357 = vand.u32 %v6345, 2147483648
  %v6358 = vor.u32 1.1754944e-38, %v6357
  %v6359 = vsel %vm6356, %v6358, %v6354
  %v6360 = vmul.f32 1.0, %v6359
  %6362 = vrot.lane.b32.xlu0 %v6335, 32
  %v6363 = vpop.permute.xlu0 %6362
  %v6365 = vadd.f32 %v6315, %v6363
  %v6366 = vxor.u32 %v6365, 2147483648
  %v6367 = vmul.f32 %v6366, 1.442695
  %v6368 = vpow.pop %v6367
  %v6369 = vadd.f32 %v6368, 1.0
  %v6370 = vrcp.pop %v6369
  %v6371 = vmul.f32 %v6369, %v6370
  %v6372 = vsub.f32 1.0, %v6371
  %v6373 = vmul.f32 %v6370, %v6372
  %v6374 = vadd.f32 %v6370, %v6373
  %vm6375 = vweird.f32 %v6369
  %vm6376 = vweird.f32 %v6370
  %vm6377 = vmor %vm6375, %vm6376
  %v6378 = vsel %vm6377, %v6370, %v6374
  %v6379 = vand.u32 2147483647, %v6369
  %vm6380 = vcmp.eq.f32.partialorder %v6379, 8.507059e+37
  %v6381 = vand.u32 %v6369, 2147483648
  %v6382 = vor.u32 1.1754944e-38, %v6381
  %v6383 = vsel %vm6380, %v6382, %v6378
  %v6384 = vmul.f32 1.0, %v6383
  %6385 = vrot.lane.b32.xlu0 %v6335, 96
  %v6386 = vpop.permute.xlu0 %6385
  %v6388 = vmul.f32 %v6360, %v6386
  %6390 = vrot.lane.b32.xlu0 %v6388, 64
  %v6391 = vpop.permute.xlu0 %6390
  %v6393 = vadd.f32 %v6315, %v6391
  %v6394 = vtanh.pop %v6393
  %v6395 = vsub.f32 1.0, %v6384
  %6397 = vrot.lane.b32.xlu0 %v6394, 96
  %v6398 = vpop.permute.xlu0 %6397
  %v6400 = vmul.f32 %v6395, %v6398
  %v6401 = vmul.f32 %v6384, %v6035
  %v6402 = vadd.f32 %v6400, %v6401
  %6404 = vrot.lane.b32.xlu0 %v6402, 96
  %v6405 = vpop.permute.xlu0 %6404
  %v6407 = vsel %vm88, %v6405, %v6149
  %v6409 = vsel %vm100, %v6407, 0
  %6411 = vmatpush.msra.mxu0 0.0
  %6412 = vmatpush.msra.mxu0 0.0
  %6413 = vmatpush.msra.mxu0 0.0
  %6414 = vmatpush.msra.mxu0 0.0
  %6415 = vmatpush.msra.mxu0 0.0
  %6416 = vmatpush.msra.mxu0 0.0
  %6417 = vmatpush.msra.mxu0 0.0
  %6418 = vmatpush.msra.mxu0 0.0
  %6419 = vmatpush.msra.mxu0 %v3083
  %6420 = vmatpush.msra.mxu0 %v3081
  %6421 = vmatpush.msra.mxu0 %v3079
  %6422 = vmatpush.msra.mxu0 %v3077
  %6423 = vmatpush.msra.mxu0 %v3075
  %6424 = vmatpush.msra.mxu0 %v3073
  %6425 = vmatpush.msra.mxu0 %v3071
  %6426 = vmatpush.msra.mxu0 %v3069
  %6427 = vmatmul.f32.gmra.mxu0 %v6409
  %v6428 = vpop.f32.mrf.mxu0
  %v6429 = vadd.f32 %v3088, %v6428
  %6430 = vdwg.mxu0
  %6431 = vmatpush.msra.mxu0 0.0
  %6432 = vmatpush.msra.mxu0 0.0
  %6433 = vmatpush.msra.mxu0 0.0
  %6434 = vmatpush.msra.mxu0 0.0
  %6435 = vmatpush.msra.mxu0 0.0
  %6436 = vmatpush.msra.mxu0 0.0
  %6437 = vmatpush.msra.mxu0 0.0
  %6438 = vmatpush.msra.mxu0 0.0
  %6439 = vmatpush.msra.mxu0 %v3084
  %6440 = vmatpush.msra.mxu0 %v3082
  %6441 = vmatpush.msra.mxu0 %v3080
  %6442 = vmatpush.msra.mxu0 %v3078
  %6443 = vmatpush.msra.mxu0 %v3076
  %6444 = vmatpush.msra.mxu0 %v3074
  %6445 = vmatpush.msra.mxu0 %v3072
  %6446 = vmatpush.msra.mxu0 %v3070
  %6447 = vmatmul.f32.gmra.mxu0 %v6409
  %v6448 = vpop.f32.mrf.mxu0
  %v6449 = vadd.f32 %v3089, %v6448
  %6450 = vdwg.mxu0
  %6452 = vrot.lane.b32.xlu0 %v6429, 32
  %v6453 = vpop.permute.xlu0 %6452
  %v6455 = vadd.f32 %v6429, %v6453
  %v6456 = vxor.u32 %v6455, 2147483648
  %v6457 = vmul.f32 %v6456, 1.442695
  %v6458 = vpow.pop %v6457
  %v6459 = vadd.f32 %v6458, 1.0
  %v6460 = vrcp.pop %v6459
  %v6461 = vmul.f32 %v6459, %v6460
  %v6462 = vsub.f32 1.0, %v6461
  %v6463 = vmul.f32 %v6460, %v6462
  %v6464 = vadd.f32 %v6460, %v6463
  %vm6465 = vweird.f32 %v6459
  %vm6466 = vweird.f32 %v6460
  %vm6467 = vmor %vm6465, %vm6466
  %v6468 = vsel %vm6467, %v6460, %v6464
  %v6469 = vand.u32 2147483647, %v6459
  %vm6470 = vcmp.eq.f32.partialorder %v6469, 8.507059e+37
  %v6471 = vand.u32 %v6459, 2147483648
  %v6472 = vor.u32 1.1754944e-38, %v6471
  %v6473 = vsel %vm6470, %v6472, %v6468
  %v6474 = vmul.f32 1.0, %v6473
  %6476 = vrot.lane.b32.xlu0 %v6449, 32
  %v6477 = vpop.permute.xlu0 %6476
  %v6479 = vadd.f32 %v6429, %v6477
  %v6480 = vxor.u32 %v6479, 2147483648
  %v6481 = vmul.f32 %v6480, 1.442695
  %v6482 = vpow.pop %v6481
  %v6483 = vadd.f32 %v6482, 1.0
  %v6484 = vrcp.pop %v6483
  %v6485 = vmul.f32 %v6483, %v6484
  %v6486 = vsub.f32 1.0, %v6485
  %v6487 = vmul.f32 %v6484, %v6486
  %v6488 = vadd.f32 %v6484, %v6487
  %vm6489 = vweird.f32 %v6483
  %vm6490 = vweird.f32 %v6484
  %vm6491 = vmor %vm6489, %vm6490
  %v6492 = vsel %vm6491, %v6484, %v6488
  %v6493 = vand.u32 2147483647, %v6483
  %vm6494 = vcmp.eq.f32.partialorder %v6493, 8.507059e+37
  %v6495 = vand.u32 %v6483, 2147483648
  %v6496 = vor.u32 1.1754944e-38, %v6495
  %v6497 = vsel %vm6494, %v6496, %v6492
  %v6498 = vmul.f32 1.0, %v6497
  %6499 = vrot.lane.b32.xlu0 %v6449, 96
  %v6500 = vpop.permute.xlu0 %6499
  %v6502 = vmul.f32 %v6474, %v6500
  %6504 = vrot.lane.b32.xlu0 %v6502, 64
  %v6505 = vpop.permute.xlu0 %6504
  %v6507 = vadd.f32 %v6429, %v6505
  %v6508 = vtanh.pop %v6507
  %v6509 = vsub.f32 1.0, %v6498
  %6511 = vrot.lane.b32.xlu0 %v6508, 96
  %v6512 = vpop.permute.xlu0 %6511
  %v6514 = vmul.f32 %v6509, %v6512
  %v6515 = vmul.f32 %v6498, %v6149
  %v6516 = vadd.f32 %v6514, %v6515
  %6518 = vrot.lane.b32.xlu0 %v6516, 96
  %v6519 = vpop.permute.xlu0 %6518
  %v6520 = vsel %vm88, %v6519, 0
  %6522 = vmatpush.xpose.msra.mxu0 0.0
  %6523 = vmatpush.xpose.msra.mxu0 0.0
  %6524 = vmatpush.xpose.msra.mxu0 0.0
  %6525 = vmatpush.xpose.msra.mxu0 0.0
  %6526 = vmatpush.xpose.msra.mxu0 0.0
  %6527 = vmatpush.xpose.msra.mxu0 0.0
  %6528 = vmatpush.xpose.msra.mxu0 0.0
  %6529 = vmatpush.xpose.msra.mxu0 0.0
  %6530 = vmatpush.xpose.msra.mxu0 0.0
  %6531 = vmatpush.xpose.msra.mxu0 0.0
  %6532 = vmatpush.xpose.msra.mxu0 0.0
  %6533 = vmatpush.xpose.msra.mxu0 0.0
  %6534 = vmatpush.xpose.msra.mxu0 0.0
  %6535 = vmatpush.xpose.msra.mxu0 0.0
  %6536 = vmatpush.xpose.msra.mxu0 0.0
  %6537 = vmatpush.xpose.msra.mxu0 %v2895
  %6538 = vmatmul.f32.gmra.mxu0 %v6520
  %v6539 = vpop.f32.mrf.mxu0
  %v6540 = vadd.f32 0.0, %v6539
  %6541 = vdwg.mxu0
  %v6542 = vsel %vm3226, %v6540, -inf
  %6543 = vmax.xlane.f32.xlu0 %v6542
  %v6544 = vpop.xlane.xlu0 %6543
  %v6545 = vsub.f32 %v6540, %v6544
  %v6546 = vmul.f32 %v6545, 1.442695
  %v6547 = vpow.pop %v6546
  %v6548 = vsel %vm3226, %v6547, 0.0
  %6549 = vadd.xlane.f32.xlu0 %v6548
  %v6550 = vpop.xlane.xlu0 %6549
  %v6551 = vrcp.pop %v6550
  %v6552 = vmul.f32 %v6547, %v6551
  %v6554 = vsel %vm3242, %v6552, 0
  %6556 = vmatpush.msra.mxu0 0.0
  %6557 = vmatpush.msra.mxu0 0.0
  %6558 = vmatpush.msra.mxu0 0.0
  %6559 = vmatpush.msra.mxu0 0.0
  %6560 = vmatpush.msra.mxu0 0.0
  %6561 = vmatpush.msra.mxu0 0.0
  %6562 = vmatpush.msra.mxu0 0.0
  %6563 = vmatpush.msra.mxu0 0.0
  %6564 = vmatpush.msra.mxu0 0.0
  %6565 = vmatpush.msra.mxu0 0.0
  %6566 = vmatpush.msra.mxu0 0.0
  %6567 = vmatpush.msra.mxu0 0.0
  %6568 = vmatpush.msra.mxu0 0.0
  %6569 = vmatpush.msra.mxu0 0.0
  %6570 = vmatpush.msra.mxu0 0.0
  %6571 = vmatpush.msra.mxu0 %v2915
  %6572 = vmatmul.f32.gmra.mxu0 %v6554
  %v6573 = vpop.f32.mrf.mxu0
  %v6574 = vadd.f32 0.0, %v6573
  %6575 = vdwg.mxu0
  %6576 = vmatpush.msra.mxu0 0.0
  %6577 = vmatpush.msra.mxu0 0.0
  %6578 = vmatpush.msra.mxu0 0.0
  %6579 = vmatpush.msra.mxu0 0.0
  %6580 = vmatpush.msra.mxu0 0.0
  %6581 = vmatpush.msra.mxu0 0.0
  %6582 = vmatpush.msra.mxu0 0.0
  %6583 = vmatpush.msra.mxu0 0.0
  %6584 = vmatpush.msra.mxu0 0.0
  %6585 = vmatpush.msra.mxu0 0.0
  %6586 = vmatpush.msra.mxu0 0.0
  %6587 = vmatpush.msra.mxu0 0.0
  %6588 = vmatpush.msra.mxu0 %v3241
  %6589 = vmatpush.msra.mxu0 %v3240
  %6590 = vmatpush.msra.mxu0 %v3239
  %6591 = vmatpush.msra.mxu0 %v3238
  %6592 = vmatmul.f32.gmra.mxu0 %v6520
  %v6593 = vpop.f32.mrf.mxu0
  %v6594 = vadd.f32 %v6574, %v6593
  %6595 = vdwg.mxu0
  %v6596 = vadd.f32 %v6594, %v3286
  %v6597 = vtanh.pop %v6596
  %v6599 = vsel %vm88, %v6597, 0
  %6601 = vmatpush.msra.mxu0 0.0
  %6602 = vmatpush.msra.mxu0 0.0
  %6603 = vmatpush.msra.mxu0 0.0
  %6604 = vmatpush.msra.mxu0 0.0
  %6605 = vmatpush.msra.mxu0 0.0
  %6606 = vmatpush.msra.mxu0 0.0
  %6607 = vmatpush.msra.mxu0 0.0
  %6608 = vmatpush.msra.mxu0 0.0
  %6609 = vmatpush.msra.mxu0 0.0
  %6610 = vmatpush.msra.mxu0 0.0
  %6611 = vmatpush.msra.mxu0 0.0
  %6612 = vmatpush.msra.mxu0 0.0
  %6613 = vmatpush.msra.mxu0 %v3292
  %6614 = vmatpush.msra.mxu0 %v3291
  %6615 = vmatpush.msra.mxu0 %v3290
  %6616 = vmatpush.msra.mxu0 %v3289
  %6617 = vmatmul.f32.gmra.mxu0 %v6599
  %v6618 = vpop.f32.mrf.mxu0
  %v6619 = vadd.f32 %v3293, %v6618
  %6620 = vdwg.mxu0
  %v6621 = vsel %vm3317, %v6619, -inf
  %6622 = vmax.xlane.f32.xlu0 %v6621
  %v6623 = vpop.xlane.xlu0 %6622
  %v6624 = vsub.f32 %v6619, %v6623
  %v6625 = vmul.f32 %v6624, 1.442695
  %v6626 = vpow.pop %v6625
  %v6627 = vsel %vm3317, %v6626, 0.0
  %6628 = vadd.xlane.f32.xlu0 %v6627
  %v6629 = vpop.xlane.xlu0 %6628
  %v6630 = vrcp.pop %v6629
  %v6631 = vmul.f32 %v6629, %v6630
  %v6632 = vsub.f32 1.0, %v6631
  %v6633 = vmul.f32 %v6630, %v6632
  %v6634 = vadd.f32 %v6630, %v6633
  %vm6635 = vweird.f32 %v6629
  %vm6636 = vweird.f32 %v6630
  %vm6637 = vmor %vm6635, %vm6636
  %v6638 = vsel %vm6637, %v6630, %v6634
  %v6639 = vand.u32 2147483647, %v6629
  %vm6640 = vcmp.eq.f32.partialorder %v6639, 8.507059e+37
  %v6641 = vand.u32 %v6629, 2147483648
  %v6642 = vor.u32 1.1754944e-38, %v6641
  %v6643 = vsel %vm6640, %v6642, %v6638
  %v6644 = vmul.f32 1.0, %v6643
  %vm6645 = vcmp.ge.f32.partialorder %v6619, %v6623
  %v6646 = vsel %vm6645, %v2917, 48.0
  %v6647 = vsel %vm3317, %v6646, inf
  %6648 = vmin.xlane.f32.xlu0 %v6647
  %v6649 = vpop.xlane.xlu0 %6648
  %vm6650 = vcmp.eq.s32.totalorder %v50, 9
  %v6651 = vcvt.f32.s32.to.zero.pseudo %v6649
  %v6652 = vsel %vm6650, %v6651, %v6285
  %v6653 = vsel %vm6650, %v6644, %v6286
  %6654 = vst [vmem:[%s14] sm:$0x1] %v6652
  %6655 = vst [vmem:[%s15] sm:$0x1] %v6653
  // Predicated region
  $region58: #{greedy_search_decoder_forward.1} parent=0 // pred_check
    _
  $region59: #{greedy_search_decoder_forward.1} parent=0 // pred_check_branch
    %6657 = sbr.rel (0) target = $region61
  $region60: #{greedy_search_decoder_forward.1} parent=0 // pred_region
    _
  $region61: #{greedy_search_decoder_forward.1} parent=0 // pred_fallthru
    _
  // Predicated region
  $region62: #{greedy_search_decoder_forward.1} parent=0 // pred_check
    _
  $region63: #{greedy_search_decoder_forward.1} parent=0 // pred_check_branch
    %6659 = sbr.rel (0) target = $region65
  $region64: #{greedy_search_decoder_forward.1} parent=0 // pred_region
    _
  $region65: #{greedy_search_decoder_forward.1} parent=0 // pred_fallthru
    _
  // Predicated region
  $region66: #{greedy_search_decoder_forward.1} parent=0 // pred_check
    _
  $region67: #{greedy_search_decoder_forward.1} parent=0 // pred_check_branch
    %6661 = sbr.rel (0) target = $region69
  $region68: #{greedy_search_decoder_forward.1} parent=0 // pred_region
    _
  $region69: #{greedy_search_decoder_forward.1} parent=0 // pred_fallthru
    _
  // Predicated region
  $region70: #{greedy_search_decoder_forward.1} parent=0 // pred_check
    _
  $region71: #{greedy_search_decoder_forward.1} parent=0 // pred_check_branch
    %6663 = sbr.rel (0) target = $region73
  $region72: #{greedy_search_decoder_forward.1} parent=0 // pred_region
    _
  $region73: #{greedy_search_decoder_forward.1} parent=0 // pred_fallthru
    _

</llo_original>
